<compile_context>
chip_gen: v7x
topology: tpu7x:2x2x1
jax: 0.10.0
libtpu: 0.0.40
codegen_flags: <defaults>
</compile_context>

<pallas_src>
import functools

import jax
import jax.numpy as jnp
from jax.experimental import pallas as pl
from jax.experimental.pallas import tpu as pltpu

HIGHEST = jax.lax.Precision.HIGHEST


def _softplus(x):
    # log1p-free softplus (exp/log only) for robust Mosaic lowering; x >= 0 here.
    return jnp.maximum(x, 0.0) + jnp.log(1.0 + jnp.exp(-jnp.abs(x)))


def _sigmoid(x):
    # x = ||.||^2 >= 0, so exp(-x) is always stable.
    return 1.0 / (1.0 + jnp.exp(-x))


# ----------------------------------------------------------------------------
# Kernel A: per-node quantities (tiled over nodes, params VMEM-resident).
# ----------------------------------------------------------------------------
def _node_kernel(n_ref, p_ref, q_ref,                       # tiled inputs
                 mrow_ref, gt_ref, gf_ref, at_ref, b_ref,   # resident params
                 m_ref, t_ref, f_ref, dq_ref, ddiss_ref, u_ref, su_ref, sv_ref):
    n_t = n_ref[...]
    p_t = p_ref[...]
    q_t = q_ref[...]

    # m = n @ massive / 50 as a lane-reduction (massive passed as a (1, n_dim) row).
    m = jnp.sum(n_t * mrow_ref[...], axis=1, keepdims=True) * (1.0 / 50.0)
    inv_m = 1.0 / m

    p_gt = jnp.dot(p_t, gt_ref[...], preferred_element_type=jnp.float32)  # p @ (W_T^T W_T)
    p_gf = jnp.dot(p_t, gf_ref[...], preferred_element_type=jnp.float32)  # p @ (W_F^T W_F)

    # Kinetic / dissipated energies; nan->0 mirrors the torch guard on the
    # elementwise energy terms.
    t_el = p_t * p_gt * inv_m
    t_el = jnp.where(jnp.isnan(t_el), 0.0, t_el)
    f_el = p_t * p_gf * (inv_m * inv_m)
    f_el = jnp.where(jnp.isnan(f_el), 0.0, f_el)

    u = jnp.dot(q_t, at_ref[...], preferred_element_type=jnp.float32)     # q @ A^T
    v = u + b_ref[...]

    m_ref[...] = m
    t_ref[...] = jnp.sum(t_el, axis=1, keepdims=True)
    f_ref[...] = jnp.sum(f_el, axis=1, keepdims=True)
    dq_ref[...] = 2.0 * p_gt * inv_m                   # dH/dp
    ddiss_ref[...] = 2.0 * p_gf * inv_m                # (dF/dp) * m
    u_ref[...] = u
    su_ref[...] = jnp.sum(u * u, axis=1, keepdims=True)
    sv_ref[...] = jnp.sum(v * v, axis=1, keepdims=True)


# ----------------------------------------------------------------------------
# Kernel B: pairwise potential energy + dU/dq (tiled over output rows; the
# per-node features of *all* nodes stay VMEM-resident across grid steps).
# ----------------------------------------------------------------------------
def _pair_kernel(u_l_ref, t_l_ref, ddiss_l_ref, m_l_ref, mnmt_l_ref,       # tiled
                 u_all_ref, ut_ref, squ_row_ref, sqv_row_ref, m_row_ref,
                 mnm_ref, a_ref, b_ref,                                    # resident
                 ham_ref, dp_ref):
    tile_rows = u_l_ref.shape[0]

    u_l = u_l_ref[...]                   # (TL, HU)
    b_row = b_ref[...]                   # (1, HU)
    v_l = u_l + b_row

    sq_u_l = jnp.sum(u_l * u_l, axis=1, keepdims=True)       # (TL, 1)
    sq_v_l = jnp.sum(v_l * v_l, axis=1, keepdims=True)
    u_dot_b = jnp.sum(u_l * b_row, axis=1, keepdims=True)

    u_all = u_all_ref[...]               # (N, HU)
    u_t = ut_ref[...]                    # (HU, N)

    u_ut = jnp.dot(u_l, u_t, preferred_element_type=jnp.float32)   # u_l . u_j   (TL, N)
    v_ut = jnp.dot(v_l, u_t, preferred_element_type=jnp.float32)   # v_l . u_i   (TL, N)

    # s_rows[l, j] = ||v_j - u_l||^2 = s[l, j]   ;   s_colt[l, i] = ||v_l - u_i||^2 = s[i, l]
    s_rows = sq_u_l + sqv_row_ref[...] - 2.0 * (u_ut + u_dot_b)
    s_colt = sq_v_l + squ_row_ref[...] - 2.0 * v_ut

    # nnm rows computed in-kernel from the molecule-node matrix (nnm is symmetric).
    nnm_rows = jnp.dot(mnmt_l_ref[...], mnm_ref[...],
                       preferred_element_type=jnp.float32)          # (TL, N)
    mask = nnm_rows * m_l_ref[...] * m_row_ref[...]                 # symmetric

    row0 = pl.program_id(0) * tile_rows
    rows = jax.lax.broadcasted_iota(jnp.int32, s_rows.shape, 0) + row0
    cols = jax.lax.broadcasted_iota(jnp.int32, s_rows.shape, 1)
    diag = rows == cols
    offdiag = jnp.where(diag, 0.0, 1.0)

    def gate(s):
        d = jnp.where(diag, 1.0, _softplus(s))
        inv_d = 1.0 / d
        inv_d2 = inv_d * inv_d
        energy = mask * (inv_d2 - inv_d)
        energy = jnp.where(jnp.isnan(energy), 0.0, energy)     # torch nan guard
        coef = mask * (inv_d2 - 2.0 * inv_d2 * inv_d) * offdiag * _sigmoid(s)
        return energy, coef

    e_rows, c_rows = gate(s_rows)        # c_rows[l, j] = c[l, j]
    _, c_cols = gate(s_colt)             # c_cols[l, i] = c[i, l]

    u_pot = jnp.sum(e_rows, axis=1, keepdims=True)                  # U_l
    row_c = jnp.sum(c_rows, axis=1, keepdims=True)                  # sum_j c[l, j]
    col_c = jnp.sum(c_cols, axis=1, keepdims=True)                  # sum_i c[i, l]

    cu_rows = jnp.dot(c_rows, u_all, preferred_element_type=jnp.float32)   # sum_j c[l,j] u_j
    cu_cols = jnp.dot(c_cols, u_all, preferred_element_type=jnp.float32)   # sum_i c[i,l] u_i

    r2 = cu_rows + row_c * b_row - row_c * u_l      # sum_j c[l,j] (v_j - u_l)
    r1 = col_c * v_l - cu_cols                      # sum_i c[i,l] (v_l - u_i)
    du_dq = 2.0 * jnp.dot(r1 - r2, a_ref[...], preferred_element_type=jnp.float32)

    ham_ref[...] = t_l_ref[...] + u_pot
    dp_ref[...] = -(du_dq + ddiss_l_ref[...])


# ----------------------------------------------------------------------------
# Wrapper
# ----------------------------------------------------------------------------
def _pick_tile(n, cap=128):
    for t in (cap, 64, 32, 16, 8):
        if t <= n and n % t == 0:
            return t
    return n  # single full block fallback


def prepare_params(params):
    """One-time parameter preprocessing (hoisted out of the hot call path):
    transposes, bias/massive reshapes and the Gram matrices W^T W used for the
    analytic kinetic / dissipation terms and their gradients."""
    w_t = params["kinetic_W"]       # (h_T, p_dim)
    w_f = params["dissipated_W"]    # (h_F, p_dim)
    a = params["potential_W"]       # (h_U, q_dim)
    b = params["potential_b"]       # (h_U,)
    massive = params["massive_matrix"]   # (n_dim, 1)
    f32 = jnp.float32
    return {
        "massive_row": massive.reshape(1, -1).astype(f32),
        "G_T": jnp.dot(w_t.T, w_t, precision=HIGHEST).astype(f32),
        "G_F": jnp.dot(w_f.T, w_f, precision=HIGHEST).astype(f32),
        "A": a.astype(f32),                     # (h_U, q_dim)
        "A_t": a.T.astype(f32),                 # (q_dim, h_U)
        "b_row": b.reshape(1, -1).astype(f32),
    }


def dissipative_hamiltonian_derivation(n, p, q, mol_node_matrix, prepared,
                                       e=None, mol_node_mask=None,
                                       return_energy=False, dissipate=True,
                                       tile_rows=None):
    """Pallas forward of DissipativeHamiltonianDerivation (returns dp, dq[, H, F])."""
    # e / mol_node_mask accepted for API parity with the PyTorch module; the
    # reference forward does not use them.
    del e, mol_node_mask
    f32 = jnp.float32
    num_nodes, n_dim = n.shape
    d = p.shape[1]
    assert q.shape[1] == d, "p_dim must equal q_dim (dp adds dH/dq and dF/dp*m)"
    num_mols = mol_node_matrix.shape[0]
    h_u = prepared["A"].shape[0]

    tile = tile_rows or _pick_tile(num_nodes)
    assert num_nodes % tile == 0, "choose a row tile dividing the node count"
    grid = (num_nodes // tile,)

    def row_spec(c):
        return pl.BlockSpec((tile, c), lambda i: (i, 0))

    def full(r, c):
        return pl.BlockSpec((r, c), lambda i: (0, 0))

    # ---- Kernel A: per-node terms -------------------------------------------------
    node_out = pl.pallas_call(
        _node_kernel,
        grid=grid,
        in_specs=[
            row_spec(n_dim), row_spec(d), row_spec(d),
            full(1, n_dim), full(d, d), full(d, d), full(d, h_u), full(1, h_u),
        ],
        out_specs=[
            row_spec(1), row_spec(1), row_spec(1),
            row_spec(d), row_spec(d), row_spec(h_u), row_spec(1), row_spec(1),
        ],
        out_shape=[
            jax.ShapeDtypeStruct((num_nodes, 1), f32),    # m
            jax.ShapeDtypeStruct((num_nodes, 1), f32),    # T (kinetic)
            jax.ShapeDtypeStruct((num_nodes, 1), f32),    # F (dissipations)
            jax.ShapeDtypeStruct((num_nodes, d), f32),    # dq = dH/dp
            jax.ShapeDtypeStruct((num_nodes, d), f32),    # (dF/dp) * m
            jax.ShapeDtypeStruct((num_nodes, h_u), f32),  # u = q A^T
            jax.ShapeDtypeStruct((num_nodes, 1), f32),    # ||u||^2
            jax.ShapeDtypeStruct((num_nodes, 1), f32),    # ||u + b||^2
        ],
        compiler_params=pltpu.CompilerParams(dimension_semantics=("parallel",)),
    )(n, p, q,
      prepared["massive_row"], prepared["G_T"], prepared["G_F"],
      prepared["A_t"], prepared["b_row"])

    m, t_kin, dissipations, dq, ddiss, u, su, sv = node_out

    # Tiny inter-kernel layout plumbing (kept lane-dense for the pair kernel).
    u_t = u.T                              # (h_u, N)
    squ_row = su.reshape(1, num_nodes)
    sqv_row = sv.reshape(1, num_nodes)
    m_row = m.reshape(1, num_nodes)
    mnm = mol_node_matrix
    mnm_t = mnm.T                          # (N, M)
    ddiss_eff = ddiss if dissipate else jnp.zeros_like(ddiss)

    # ---- Kernel B: pairwise potential + dU/dq -------------------------------------
    hamiltonians, dp = pl.pallas_call(
        _pair_kernel,
        grid=grid,
        in_specs=[
            row_spec(h_u),                 # u rows of this tile
            row_spec(1),                   # T rows
            row_spec(d),                   # (dF/dp)*m rows
            row_spec(1),                   # m rows
            row_spec(num_mols),            # mol_node_matrix^T rows
            full(num_nodes, h_u),          # u (all nodes, resident)
            full(h_u, num_nodes),          # u^T (resident)
            full(1, num_nodes),            # ||u||^2 row
            full(1, num_nodes),            # ||v||^2 row
            full(1, num_nodes),            # m row
            full(num_mols, num_nodes),     # mol_node_matrix
            full(h_u, d),                  # A
            full(1, h_u),                  # b
        ],
        out_specs=[row_spec(1), row_spec(d)],
        out_shape=[
            jax.ShapeDtypeStruct((num_nodes, 1), f32),    # hamiltonians = T + U
            jax.ShapeDtypeStruct((num_nodes, d), f32),    # dp
        ],
        compiler_params=pltpu.CompilerParams(dimension_semantics=("parallel",)),
    )(u, t_kin, ddiss_eff, m, mnm_t,
      u, u_t, squ_row, sqv_row, m_row, mnm, prepared["A"], prepared["b_row"])
    # TODO(synk): for very large N, also tile the "all nodes" axis of the pair
    # kernel with an accumulating reduction grid axis instead of keeping it resident.

    if return_energy:
        return dp, dq, hamiltonians, dissipations
    return dp, dq


# ----------------------------------------------------------------------------
# Pure-JAX reference (mirrors the torch forward incl. autograd.grad) for checking.
# ----------------------------------------------------------------------------
def reference_forward(n, p, q, mol_node_matrix, params, dissipate=True):
    w_t = params["kinetic_W"]
    w_f = params["dissipated_W"]
    a = params["potential_W"]
    b = params["potential_b"]
    massive = params["massive_matrix"]

    nnm = jnp.dot(mol_node_matrix.T, mol_node_matrix, precision=HIGHEST)
    m = jnp.dot(n, massive, precision=HIGHEST) / 50.0

    def kinetic(p_):
        pw = jnp.dot(p_, w_t.T, precision=HIGHEST)
        return jnp.sum((1.0 / m) * pw ** 2, axis=1, keepdims=True)

    def dissip(p_):
        pw = jnp.dot(p_, w_f.T, precision=HIGHEST)
        return jnp.sum((1.0 / m ** 2) * pw ** 2, axis=1, keepdims=True)

    def potential(q_):
        mm = m * m.reshape(1, -1)
        eye = jnp.eye(nnm.shape[1], dtype=jnp.float32)
        mask = nnm * mm
        delta = q_[None, :, :] - q_[:, None, :]
        root = jnp.einsum("ijk,hk->ijh", delta, a, precision=HIGHEST) + b
        dist = jax.nn.softplus(jnp.sum(root ** 2, axis=2)) * (1.0 - eye) + eye
        energy = mask * (dist ** (-2) - dist ** (-1))
        return jnp.sum(energy, axis=1, keepdims=True)

    hamiltonians = kinetic(p) + potential(q)
    dissipations = dissip(p)
    dq = jax.grad(lambda x: jnp.sum(kinetic(x)))(p)
    du_dq = jax.grad(lambda x: jnp.sum(potential(x)))(q)
    if dissipate:
        df_dp = jax.grad(lambda x: jnp.sum(dissip(x)))(p)
        dp = -(du_dq + df_dp * m)
    else:
        dp = -du_dq
    return dp, dq, hamiltonians, dissipations


if __name__ == "__main__":
    NUM_NODES, NUM_MOLS = 256, 4          # small graph batch; 2 row tiles of 128
    N_DIM, P_DIM, Q_DIM = 8, 8, 8
    H_T, H_U, H_F = 128, 32, 32

    root = jax.random.PRNGKey(0)
    k_w1, k_w2, k_w3, k_w4, k_type, k_p, k_q = jax.random.split(root, 7)

    bp = 1.0 / jnp.sqrt(jnp.float32(P_DIM))
    bq = 1.0 / jnp.sqrt(jnp.float32(Q_DIM))
    params = {
        "kinetic_W": jax.random.uniform(k_w1, (H_T, P_DIM), jnp.float32, -bp, bp),
        "dissipated_W": jax.random.uniform(k_w2, (H_F, P_DIM), jnp.float32, -bp, bp),
        "potential_W": jax.random.uniform(k_w3, (H_U, Q_DIM), jnp.float32, -bq, bq),
        "potential_b": jax.random.uniform(k_w4, (H_U,), jnp.float32, -bq, bq),
        # deterministic stand-in for get_default_atoms_massive_matrix()
        "massive_matrix": jnp.linspace(10.0, 60.0, N_DIM).reshape(N_DIM, 1).astype(jnp.float32),
    }

    atom_types = jax.random.randint(k_type, (NUM_NODES,), 0, N_DIM)
    n = jax.nn.one_hot(atom_types, N_DIM, dtype=jnp.float32)
    p = jax.random.normal(k_p, (NUM_NODES, P_DIM), jnp.float32)
    q = jax.random.normal(k_q, (NUM_NODES, Q_DIM), jnp.float32)
    mol_ids = jnp.arange(NUM_NODES) // (NUM_NODES // NUM_MOLS)
    mol_node_matrix = jax.nn.one_hot(mol_ids, NUM_MOLS, dtype=jnp.float32).T   # (M, N)

    prepared = prepare_params(params)
    fwd = jax.jit(functools.partial(dissipative_hamiltonian_derivation,
                                    return_energy=True))
    dp, dq, ham, diss = fwd(n, p, q, mol_node_matrix, prepared)
    dp = jax.block_until_ready(dp)

    ref_dp, ref_dq, ref_ham, ref_diss = reference_forward(n, p, q, mol_node_matrix, params)

    def check(name, got, want, rel=1e-2, atol=1e-2):
        err = float(jnp.max(jnp.abs(got - want)))
        scale = float(jnp.max(jnp.abs(want)))
        assert err <= atol + rel * scale, f"{name}: max_err={err:.3e} scale={scale:.3e}"

    check("dp", dp, ref_dp)
    check("dq", dq, ref_dq)
    check("hamiltonians", ham, ref_ham)
    check("dissipations", diss, ref_diss)

    print("KERNEL_OK")
</pallas_src>

<mosaic_0001>
module attributes {stable_mosaic.version = 11 : i64} {
  func.func @_node_kernel(%arg0: i32, %arg1: memref<128x8xf32, #tpu.memory_space<vmem>>, %arg2: memref<128x8xf32, #tpu.memory_space<vmem>>, %arg3: memref<128x8xf32, #tpu.memory_space<vmem>>, %arg4: memref<1x8xf32, #tpu.memory_space<vmem>>, %arg5: memref<8x8xf32, #tpu.memory_space<vmem>>, %arg6: memref<8x8xf32, #tpu.memory_space<vmem>>, %arg7: memref<8x32xf32, #tpu.memory_space<vmem>>, %arg8: memref<1x32xf32, #tpu.memory_space<vmem>>, %arg9: memref<128x1xf32, #tpu.memory_space<vmem>>, %arg10: memref<128x1xf32, #tpu.memory_space<vmem>>, %arg11: memref<128x1xf32, #tpu.memory_space<vmem>>, %arg12: memref<128x8xf32, #tpu.memory_space<vmem>>, %arg13: memref<128x8xf32, #tpu.memory_space<vmem>>, %arg14: memref<128x32xf32, #tpu.memory_space<vmem>>, %arg15: memref<128x1xf32, #tpu.memory_space<vmem>>, %arg16: memref<128x1xf32, #tpu.memory_space<vmem>>) attributes {dimension_semantics = [#tpu.dimension_semantics<parallel>], iteration_bounds = array<i64: 2>, scalar_prefetch = 0 : i64, scratch_operands = 0 : i64, tpu.core_type = #tpu.core_type<tc>, window_params = [{transform_indices = @transform_0, window_bounds = array<i64: 128, 8>}, {transform_indices = @transform_1, window_bounds = array<i64: 128, 8>}, {transform_indices = @transform_2, window_bounds = array<i64: 128, 8>}, {pipeline_mode = #tpu.pipeline_mode<synchronous>, transform_indices = @transform_3, window_bounds = array<i64: 1, 8>}, {pipeline_mode = #tpu.pipeline_mode<synchronous>, transform_indices = @transform_4, window_bounds = array<i64: 8, 8>}, {pipeline_mode = #tpu.pipeline_mode<synchronous>, transform_indices = @transform_5, window_bounds = array<i64: 8, 8>}, {pipeline_mode = #tpu.pipeline_mode<synchronous>, transform_indices = @transform_6, window_bounds = array<i64: 8, 32>}, {pipeline_mode = #tpu.pipeline_mode<synchronous>, transform_indices = @transform_7, window_bounds = array<i64: 1, 32>}, {transform_indices = @transform_8, window_bounds = array<i64: 128, 1>}, {transform_indices = @transform_9, window_bounds = array<i64: 128, 1>}, {transform_indices = @transform_10, window_bounds = array<i64: 128, 1>}, {transform_indices = @transform_11, window_bounds = array<i64: 128, 8>}, {transform_indices = @transform_12, window_bounds = array<i64: 128, 8>}, {transform_indices = @transform_13, window_bounds = array<i64: 128, 32>}, {transform_indices = @transform_14, window_bounds = array<i64: 128, 1>}, {transform_indices = @transform_15, window_bounds = array<i64: 128, 1>}]} {
    %c0 = arith.constant 0 : index
    %c0_0 = arith.constant 0 : index
    %0 = vector.load %arg1[%c0, %c0_0] : memref<128x8xf32, #tpu.memory_space<vmem>>, vector<128x8xf32>
    %c0_1 = arith.constant 0 : index
    %c0_2 = arith.constant 0 : index
    %1 = vector.load %arg2[%c0_1, %c0_2] : memref<128x8xf32, #tpu.memory_space<vmem>>, vector<128x8xf32>
    %c0_3 = arith.constant 0 : index
    %c0_4 = arith.constant 0 : index
    %2 = vector.load %arg3[%c0_3, %c0_4] : memref<128x8xf32, #tpu.memory_space<vmem>>, vector<128x8xf32>
    %c0_5 = arith.constant 0 : index
    %c0_6 = arith.constant 0 : index
    %3 = vector.load %arg4[%c0_5, %c0_6] : memref<1x8xf32, #tpu.memory_space<vmem>>, vector<1x8xf32>
    %4 = vector.broadcast %3 : vector<1x8xf32> to vector<128x8xf32>
    %5 = arith.mulf %0, %4 : vector<128x8xf32>
    %cst = arith.constant dense<0.000000e+00> : vector<128xf32>
    %6 = vector.multi_reduction <add>, %5, %cst [1] : vector<128x8xf32> to vector<128xf32>
    %7 = vector.shape_cast %6 : vector<128xf32> to vector<128x1xf32>
    %cst_7 = arith.constant 2.000000e-02 : f32
    %8 = vector.broadcast %cst_7 : f32 to vector<128x1xf32>
    %9 = arith.mulf %7, %8 : vector<128x1xf32>
    %cst_8 = arith.constant 1.000000e+00 : f32
    %10 = vector.broadcast %cst_8 : f32 to vector<128x1xf32>
    %11 = arith.divf %10, %9 : vector<128x1xf32>
    %c0_9 = arith.constant 0 : index
    %c0_10 = arith.constant 0 : index
    %12 = vector.load %arg5[%c0_9, %c0_10] : memref<8x8xf32, #tpu.memory_space<vmem>>, vector<8x8xf32>
    %cst_11 = arith.constant dense<0.000000e+00> : vector<128x8xf32>
    %13 = tpu.matmul %1, %12, %cst_11 {dimension_numbers = #tpu.dot_dimension_numbers<[1], [0], [0], [1], [0, 0, 1, 1], [], []>} : vector<128x8xf32>, vector<8x8xf32>, vector<128x8xf32> -> vector<128x8xf32>
    %c0_12 = arith.constant 0 : index
    %c0_13 = arith.constant 0 : index
    %14 = vector.load %arg6[%c0_12, %c0_13] : memref<8x8xf32, #tpu.memory_space<vmem>>, vector<8x8xf32>
    %cst_14 = arith.constant dense<0.000000e+00> : vector<128x8xf32>
    %15 = tpu.matmul %1, %14, %cst_14 {dimension_numbers = #tpu.dot_dimension_numbers<[1], [0], [0], [1], [0, 0, 1, 1], [], []>} : vector<128x8xf32>, vector<8x8xf32>, vector<128x8xf32> -> vector<128x8xf32>
    %16 = arith.mulf %1, %13 : vector<128x8xf32>
    %17 = vector.broadcast %11 : vector<128x1xf32> to vector<128x8xf32>
    %18 = arith.mulf %16, %17 : vector<128x8xf32>
    %19 = arith.cmpf one, %18, %18 : vector<128x8xf32>
    %cst_15 = arith.constant 0.000000e+00 : f32
    %20 = vector.broadcast %cst_15 : f32 to vector<128x8xf32>
    %21 = arith.select %19, %20, %18 : vector<128x8xi1>, vector<128x8xf32>
    %22 = arith.mulf %1, %15 : vector<128x8xf32>
    %23 = arith.mulf %11, %11 : vector<128x1xf32>
    %24 = vector.broadcast %23 : vector<128x1xf32> to vector<128x8xf32>
    %25 = arith.mulf %22, %24 : vector<128x8xf32>
    %26 = arith.cmpf one, %25, %25 : vector<128x8xf32>
    %cst_16 = arith.constant 0.000000e+00 : f32
    %27 = vector.broadcast %cst_16 : f32 to vector<128x8xf32>
    %28 = arith.select %26, %27, %25 : vector<128x8xi1>, vector<128x8xf32>
    %c0_17 = arith.constant 0 : index
    %c0_18 = arith.constant 0 : index
    %29 = vector.load %arg7[%c0_17, %c0_18] : memref<8x32xf32, #tpu.memory_space<vmem>>, vector<8x32xf32>
    %cst_19 = arith.constant dense<0.000000e+00> : vector<128x32xf32>
    %30 = tpu.matmul %2, %29, %cst_19 {dimension_numbers = #tpu.dot_dimension_numbers<[1], [0], [0], [1], [0, 0, 1, 1], [], []>} : vector<128x8xf32>, vector<8x32xf32>, vector<128x32xf32> -> vector<128x32xf32>
    %c0_20 = arith.constant 0 : index
    %c0_21 = arith.constant 0 : index
    %31 = vector.load %arg8[%c0_20, %c0_21] : memref<1x32xf32, #tpu.memory_space<vmem>>, vector<1x32xf32>
    %32 = vector.broadcast %31 : vector<1x32xf32> to vector<128x32xf32>
    %33 = arith.addf %30, %32 : vector<128x32xf32>
    %c0_22 = arith.constant 0 : index
    %c0_23 = arith.constant 0 : index
    %34 = vector.load %arg9[%c0_22, %c0_23] : memref<128x1xf32, #tpu.memory_space<vmem>>, vector<128x1xf32>
    tpu.vector_store %arg9[%c0_22, %c0_23], %9 {strides = array<i32>} : memref<128x1xf32, #tpu.memory_space<vmem>>, vector<128x1xf32>,
    %cst_24 = arith.constant dense<0.000000e+00> : vector<128xf32>
    %35 = vector.multi_reduction <add>, %21, %cst_24 [1] : vector<128x8xf32> to vector<128xf32>
    %36 = vector.shape_cast %35 : vector<128xf32> to vector<128x1xf32>
    %c0_25 = arith.constant 0 : index
    %c0_26 = arith.constant 0 : index
    %37 = vector.load %arg10[%c0_25, %c0_26] : memref<128x1xf32, #tpu.memory_space<vmem>>, vector<128x1xf32>
    tpu.vector_store %arg10[%c0_25, %c0_26], %36 {strides = array<i32>} : memref<128x1xf32, #tpu.memory_space<vmem>>, vector<128x1xf32>,
    %cst_27 = arith.constant dense<0.000000e+00> : vector<128xf32>
    %38 = vector.multi_reduction <add>, %28, %cst_27 [1] : vector<128x8xf32> to vector<128xf32>
    %39 = vector.shape_cast %38 : vector<128xf32> to vector<128x1xf32>
    %c0_28 = arith.constant 0 : index
    %c0_29 = arith.constant 0 : index
    %40 = vector.load %arg11[%c0_28, %c0_29] : memref<128x1xf32, #tpu.memory_space<vmem>>, vector<128x1xf32>
    tpu.vector_store %arg11[%c0_28, %c0_29], %39 {strides = array<i32>} : memref<128x1xf32, #tpu.memory_space<vmem>>, vector<128x1xf32>,
    %cst_30 = arith.constant 2.000000e+00 : f32
    %41 = vector.broadcast %cst_30 : f32 to vector<128x8xf32>
    %42 = arith.mulf %41, %13 : vector<128x8xf32>
    %43 = vector.broadcast %11 : vector<128x1xf32> to vector<128x8xf32>
    %44 = arith.mulf %42, %43 : vector<128x8xf32>
    %c0_31 = arith.constant 0 : index
    %c0_32 = arith.constant 0 : index
    %45 = vector.load %arg12[%c0_31, %c0_32] : memref<128x8xf32, #tpu.memory_space<vmem>>, vector<128x8xf32>
    tpu.vector_store %arg12[%c0_31, %c0_32], %44 {strides = array<i32>} : memref<128x8xf32, #tpu.memory_space<vmem>>, vector<128x8xf32>,
    %cst_33 = arith.constant 2.000000e+00 : f32
    %46 = vector.broadcast %cst_33 : f32 to vector<128x8xf32>
    %47 = arith.mulf %46, %15 : vector<128x8xf32>
    %48 = vector.broadcast %11 : vector<128x1xf32> to vector<128x8xf32>
    %49 = arith.mulf %47, %48 : vector<128x8xf32>
    %c0_34 = arith.constant 0 : index
    %c0_35 = arith.constant 0 : index
    %50 = vector.load %arg13[%c0_34, %c0_35] : memref<128x8xf32, #tpu.memory_space<vmem>>, vector<128x8xf32>
    tpu.vector_store %arg13[%c0_34, %c0_35], %49 {strides = array<i32>} : memref<128x8xf32, #tpu.memory_space<vmem>>, vector<128x8xf32>,
    %c0_36 = arith.constant 0 : index
    %c0_37 = arith.constant 0 : index
    %51 = vector.load %arg14[%c0_36, %c0_37] : memref<128x32xf32, #tpu.memory_space<vmem>>, vector<128x32xf32>
    tpu.vector_store %arg14[%c0_36, %c0_37], %30 {strides = array<i32>} : memref<128x32xf32, #tpu.memory_space<vmem>>, vector<128x32xf32>,
    %52 = arith.mulf %30, %30 : vector<128x32xf32>
    %cst_38 = arith.constant dense<0.000000e+00> : vector<128xf32>
    %53 = vector.multi_reduction <add>, %52, %cst_38 [1] : vector<128x32xf32> to vector<128xf32>
    %54 = vector.shape_cast %53 : vector<128xf32> to vector<128x1xf32>
    %c0_39 = arith.constant 0 : index
    %c0_40 = arith.constant 0 : index
    %55 = vector.load %arg15[%c0_39, %c0_40] : memref<128x1xf32, #tpu.memory_space<vmem>>, vector<128x1xf32>
    tpu.vector_store %arg15[%c0_39, %c0_40], %54 {strides = array<i32>} : memref<128x1xf32, #tpu.memory_space<vmem>>, vector<128x1xf32>,
    %56 = arith.mulf %33, %33 : vector<128x32xf32>
    %cst_41 = arith.constant dense<0.000000e+00> : vector<128xf32>
    %57 = vector.multi_reduction <add>, %56, %cst_41 [1] : vector<128x32xf32> to vector<128xf32>
    %58 = vector.shape_cast %57 : vector<128xf32> to vector<128x1xf32>
    %c0_42 = arith.constant 0 : index
    %c0_43 = arith.constant 0 : index
    %59 = vector.load %arg16[%c0_42, %c0_43] : memref<128x1xf32, #tpu.memory_space<vmem>>, vector<128x1xf32>
    tpu.vector_store %arg16[%c0_42, %c0_43], %58 {strides = array<i32>} : memref<128x1xf32, #tpu.memory_space<vmem>>, vector<128x1xf32>,
    return
  }
  func.func @transform_0(%arg0: i32) -> (i32, i32) {
    %c0_i32 = arith.constant 0 : i32
    %c0_i32_0 = arith.constant 0 : i32
    return %arg0, %c0_i32 : i32, i32
  }
  func.func @transform_1(%arg0: i32) -> (i32, i32) {
    %c0_i32 = arith.constant 0 : i32
    %c0_i32_0 = arith.constant 0 : i32
    return %arg0, %c0_i32 : i32, i32
  }
  func.func @transform_2(%arg0: i32) -> (i32, i32) {
    %c0_i32 = arith.constant 0 : i32
    %c0_i32_0 = arith.constant 0 : i32
    return %arg0, %c0_i32 : i32, i32
  }
  func.func @transform_3(%arg0: i32) -> (i32, i32) {
    %c0_i32 = arith.constant 0 : i32
    %c0_i32_0 = arith.constant 0 : i32
    %c0_i32_1 = arith.constant 0 : i32
    return %c0_i32, %c0_i32_0 : i32, i32
  }
  func.func @transform_4(%arg0: i32) -> (i32, i32) {
    %c0_i32 = arith.constant 0 : i32
    %c0_i32_0 = arith.constant 0 : i32
    %c0_i32_1 = arith.constant 0 : i32
    return %c0_i32, %c0_i32_0 : i32, i32
  }
  func.func @transform_5(%arg0: i32) -> (i32, i32) {
    %c0_i32 = arith.constant 0 : i32
    %c0_i32_0 = arith.constant 0 : i32
    %c0_i32_1 = arith.constant 0 : i32
    return %c0_i32, %c0_i32_0 : i32, i32
  }
  func.func @transform_6(%arg0: i32) -> (i32, i32) {
    %c0_i32 = arith.constant 0 : i32
    %c0_i32_0 = arith.constant 0 : i32
    %c0_i32_1 = arith.constant 0 : i32
    return %c0_i32, %c0_i32_0 : i32, i32
  }
  func.func @transform_7(%arg0: i32) -> (i32, i32) {
    %c0_i32 = arith.constant 0 : i32
    %c0_i32_0 = arith.constant 0 : i32
    %c0_i32_1 = arith.constant 0 : i32
    return %c0_i32, %c0_i32_0 : i32, i32
  }
  func.func @transform_8(%arg0: i32) -> (i32, i32) {
    %c0_i32 = arith.constant 0 : i32
    %c0_i32_0 = arith.constant 0 : i32
    return %arg0, %c0_i32 : i32, i32
  }
  func.func @transform_9(%arg0: i32) -> (i32, i32) {
    %c0_i32 = arith.constant 0 : i32
    %c0_i32_0 = arith.constant 0 : i32
    return %arg0, %c0_i32 : i32, i32
  }
  func.func @transform_10(%arg0: i32) -> (i32, i32) {
    %c0_i32 = arith.constant 0 : i32
    %c0_i32_0 = arith.constant 0 : i32
    return %arg0, %c0_i32 : i32, i32
  }
  func.func @transform_11(%arg0: i32) -> (i32, i32) {
    %c0_i32 = arith.constant 0 : i32
    %c0_i32_0 = arith.constant 0 : i32
    return %arg0, %c0_i32 : i32, i32
  }
  func.func @transform_12(%arg0: i32) -> (i32, i32) {
    %c0_i32 = arith.constant 0 : i32
    %c0_i32_0 = arith.constant 0 : i32
    return %arg0, %c0_i32 : i32, i32
  }
  func.func @transform_13(%arg0: i32) -> (i32, i32) {
    %c0_i32 = arith.constant 0 : i32
    %c0_i32_0 = arith.constant 0 : i32
    return %arg0, %c0_i32 : i32, i32
  }
  func.func @transform_14(%arg0: i32) -> (i32, i32) {
    %c0_i32 = arith.constant 0 : i32
    %c0_i32_0 = arith.constant 0 : i32
    return %arg0, %c0_i32 : i32, i32
  }
  func.func @transform_15(%arg0: i32) -> (i32, i32) {
    %c0_i32 = arith.constant 0 : i32
    %c0_i32_0 = arith.constant 0 : i32
    return %arg0, %c0_i32 : i32, i32
  }
}

module attributes {stable_mosaic.version = 11 : i64} {
  func.func @_pair_kernel(%arg0: i32, %arg1: memref<128x32xf32, #tpu.memory_space<vmem>>, %arg2: memref<128x1xf32, #tpu.memory_space<vmem>>, %arg3: memref<128x8xf32, #tpu.memory_space<vmem>>, %arg4: memref<128x1xf32, #tpu.memory_space<vmem>>, %arg5: memref<128x4xf32, #tpu.memory_space<vmem>>, %arg6: memref<256x32xf32, #tpu.memory_space<vmem>>, %arg7: memref<32x256xf32, #tpu.memory_space<vmem>>, %arg8: memref<1x256xf32, #tpu.memory_space<vmem>>, %arg9: memref<1x256xf32, #tpu.memory_space<vmem>>, %arg10: memref<1x256xf32, #tpu.memory_space<vmem>>, %arg11: memref<4x256xf32, #tpu.memory_space<vmem>>, %arg12: memref<32x8xf32, #tpu.memory_space<vmem>>, %arg13: memref<1x32xf32, #tpu.memory_space<vmem>>, %arg14: memref<128x1xf32, #tpu.memory_space<vmem>>, %arg15: memref<128x8xf32, #tpu.memory_space<vmem>>) attributes {dimension_semantics = [#tpu.dimension_semantics<parallel>], iteration_bounds = array<i64: 2>, scalar_prefetch = 0 : i64, scratch_operands = 0 : i64, tpu.core_type = #tpu.core_type<tc>, window_params = [{transform_indices = @transform_0, window_bounds = array<i64: 128, 32>}, {transform_indices = @transform_1, window_bounds = array<i64: 128, 1>}, {transform_indices = @transform_2, window_bounds = array<i64: 128, 8>}, {transform_indices = @transform_3, window_bounds = array<i64: 128, 1>}, {transform_indices = @transform_4, window_bounds = array<i64: 128, 4>}, {pipeline_mode = #tpu.pipeline_mode<synchronous>, transform_indices = @transform_5, window_bounds = array<i64: 256, 32>}, {pipeline_mode = #tpu.pipeline_mode<synchronous>, transform_indices = @transform_6, window_bounds = array<i64: 32, 256>}, {pipeline_mode = #tpu.pipeline_mode<synchronous>, transform_indices = @transform_7, window_bounds = array<i64: 1, 256>}, {pipeline_mode = #tpu.pipeline_mode<synchronous>, transform_indices = @transform_8, window_bounds = array<i64: 1, 256>}, {pipeline_mode = #tpu.pipeline_mode<synchronous>, transform_indices = @transform_9, window_bounds = array<i64: 1, 256>}, {pipeline_mode = #tpu.pipeline_mode<synchronous>, transform_indices = @transform_10, window_bounds = array<i64: 4, 256>}, {pipeline_mode = #tpu.pipeline_mode<synchronous>, transform_indices = @transform_11, window_bounds = array<i64: 32, 8>}, {pipeline_mode = #tpu.pipeline_mode<synchronous>, transform_indices = @transform_12, window_bounds = array<i64: 1, 32>}, {transform_indices = @transform_13, window_bounds = array<i64: 128, 1>}, {transform_indices = @transform_14, window_bounds = array<i64: 128, 8>}]} {
    %c0 = arith.constant 0 : index
    %c0_0 = arith.constant 0 : index
    %0 = vector.load %arg1[%c0, %c0_0] : memref<128x32xf32, #tpu.memory_space<vmem>>, vector<128x32xf32>
    %c0_1 = arith.constant 0 : index
    %c0_2 = arith.constant 0 : index
    %1 = vector.load %arg13[%c0_1, %c0_2] : memref<1x32xf32, #tpu.memory_space<vmem>>, vector<1x32xf32>
    %2 = vector.broadcast %1 : vector<1x32xf32> to vector<128x32xf32>
    %3 = arith.addf %0, %2 : vector<128x32xf32>
    %4 = arith.mulf %0, %0 : vector<128x32xf32>
    %cst = arith.constant dense<0.000000e+00> : vector<128xf32>
    %5 = vector.multi_reduction <add>, %4, %cst [1] : vector<128x32xf32> to vector<128xf32>
    %6 = vector.shape_cast %5 : vector<128xf32> to vector<128x1xf32>
    %7 = arith.mulf %3, %3 : vector<128x32xf32>
    %cst_3 = arith.constant dense<0.000000e+00> : vector<128xf32>
    %8 = vector.multi_reduction <add>, %7, %cst_3 [1] : vector<128x32xf32> to vector<128xf32>
    %9 = vector.shape_cast %8 : vector<128xf32> to vector<128x1xf32>
    %10 = vector.broadcast %1 : vector<1x32xf32> to vector<128x32xf32>
    %11 = arith.mulf %0, %10 : vector<128x32xf32>
    %cst_4 = arith.constant dense<0.000000e+00> : vector<128xf32>
    %12 = vector.multi_reduction <add>, %11, %cst_4 [1] : vector<128x32xf32> to vector<128xf32>
    %13 = vector.shape_cast %12 : vector<128xf32> to vector<128x1xf32>
    %c0_5 = arith.constant 0 : index
    %c0_6 = arith.constant 0 : index
    %14 = vector.load %arg6[%c0_5, %c0_6] : memref<256x32xf32, #tpu.memory_space<vmem>>, vector<256x32xf32>
    %c0_7 = arith.constant 0 : index
    %c0_8 = arith.constant 0 : index
    %15 = vector.load %arg7[%c0_7, %c0_8] : memref<32x256xf32, #tpu.memory_space<vmem>>, vector<32x256xf32>
    %cst_9 = arith.constant dense<0.000000e+00> : vector<128x256xf32>
    %16 = tpu.matmul %0, %15, %cst_9 {dimension_numbers = #tpu.dot_dimension_numbers<[1], [0], [0], [1], [0, 0, 1, 1], [], []>} : vector<128x32xf32>, vector<32x256xf32>, vector<128x256xf32> -> vector<128x256xf32>
    %cst_10 = arith.constant dense<0.000000e+00> : vector<128x256xf32>
    %17 = tpu.matmul %3, %15, %cst_10 {dimension_numbers = #tpu.dot_dimension_numbers<[1], [0], [0], [1], [0, 0, 1, 1], [], []>} : vector<128x32xf32>, vector<32x256xf32>, vector<128x256xf32> -> vector<128x256xf32>
    %c0_11 = arith.constant 0 : index
    %c0_12 = arith.constant 0 : index
    %18 = vector.load %arg9[%c0_11, %c0_12] : memref<1x256xf32, #tpu.memory_space<vmem>>, vector<1x256xf32>
    %19 = vector.broadcast %6 : vector<128x1xf32> to vector<128x256xf32>
    %20 = vector.broadcast %18 : vector<1x256xf32> to vector<128x256xf32>
    %21 = arith.addf %19, %20 : vector<128x256xf32>
    %22 = vector.broadcast %13 : vector<128x1xf32> to vector<128x256xf32>
    %23 = arith.addf %16, %22 : vector<128x256xf32>
    %cst_13 = arith.constant 2.000000e+00 : f32
    %24 = vector.broadcast %cst_13 : f32 to vector<128x256xf32>
    %25 = arith.mulf %24, %23 : vector<128x256xf32>
    %26 = arith.subf %21, %25 : vector<128x256xf32>
    %c0_14 = arith.constant 0 : index
    %c0_15 = arith.constant 0 : index
    %27 = vector.load %arg8[%c0_14, %c0_15] : memref<1x256xf32, #tpu.memory_space<vmem>>, vector<1x256xf32>
    %28 = vector.broadcast %9 : vector<128x1xf32> to vector<128x256xf32>
    %29 = vector.broadcast %27 : vector<1x256xf32> to vector<128x256xf32>
    %30 = arith.addf %28, %29 : vector<128x256xf32>
    %cst_16 = arith.constant 2.000000e+00 : f32
    %31 = vector.broadcast %cst_16 : f32 to vector<128x256xf32>
    %32 = arith.mulf %31, %17 : vector<128x256xf32>
    %33 = arith.subf %30, %32 : vector<128x256xf32>
    %c0_17 = arith.constant 0 : index
    %c0_18 = arith.constant 0 : index
    %34 = vector.load %arg5[%c0_17, %c0_18] : memref<128x4xf32, #tpu.memory_space<vmem>>, vector<128x4xf32>
    %c0_19 = arith.constant 0 : index
    %c0_20 = arith.constant 0 : index
    %35 = vector.load %arg11[%c0_19, %c0_20] : memref<4x256xf32, #tpu.memory_space<vmem>>, vector<4x256xf32>
    %cst_21 = arith.constant dense<0.000000e+00> : vector<128x256xf32>
    %36 = tpu.matmul %34, %35, %cst_21 {dimension_numbers = #tpu.dot_dimension_numbers<[1], [0], [0], [1], [0, 0, 1, 1], [], []>} : vector<128x4xf32>, vector<4x256xf32>, vector<128x256xf32> -> vector<128x256xf32>
    %c0_22 = arith.constant 0 : index
    %c0_23 = arith.constant 0 : index
    %37 = vector.load %arg4[%c0_22, %c0_23] : memref<128x1xf32, #tpu.memory_space<vmem>>, vector<128x1xf32>
    %38 = vector.broadcast %37 : vector<128x1xf32> to vector<128x256xf32>
    %39 = arith.mulf %36, %38 : vector<128x256xf32>
    %c0_24 = arith.constant 0 : index
    %c0_25 = arith.constant 0 : index
    %40 = vector.load %arg10[%c0_24, %c0_25] : memref<1x256xf32, #tpu.memory_space<vmem>>, vector<1x256xf32>
    %41 = vector.broadcast %40 : vector<1x256xf32> to vector<128x256xf32>
    %42 = arith.mulf %39, %41 : vector<128x256xf32>
    %c128_i32 = arith.constant 128 : i32
    %43 = arith.muli %arg0, %c128_i32 : i32
    %44 = tpu.iota {dimensions = array<i32: 0>} : vector<128x256xi32>
    %45 = vector.broadcast %43 : i32 to vector<128x256xi32>
    %46 = arith.addi %44, %45 : vector<128x256xi32>
    %47 = tpu.iota {dimensions = array<i32: 1>} : vector<128x256xi32>
    %48 = arith.cmpi eq, %46, %47 : vector<128x256xi32>
    %cst_26 = arith.constant 0.000000e+00 : f32
    %cst_27 = arith.constant 1.000000e+00 : f32
    %49 = vector.broadcast %cst_26 : f32 to vector<128x256xf32>
    %50 = vector.broadcast %cst_27 : f32 to vector<128x256xf32>
    %51 = arith.select %48, %49, %50 : vector<128x256xi1>, vector<128x256xf32>
    %cst_28 = arith.constant 0.000000e+00 : f32
    %52 = vector.broadcast %cst_28 : f32 to vector<128x256xf32>
    %53 = arith.maximumf %26, %52 : vector<128x256xf32>
    %54 = math.absf %26 : vector<128x256xf32>
    %cst_29 = arith.constant 0.000000e+00 : f32
    %55 = vector.broadcast %cst_29 : f32 to vector<128x256xf32>
    %56 = arith.subf %55, %54 : vector<128x256xf32>
    %57 = math.exp %56 : vector<128x256xf32>
    %cst_30 = arith.constant 1.000000e+00 : f32
    %58 = vector.broadcast %cst_30 : f32 to vector<128x256xf32>
    %59 = arith.addf %58, %57 : vector<128x256xf32>
    %60 = math.log %59 : vector<128x256xf32>
    %61 = arith.addf %53, %60 : vector<128x256xf32>
    %cst_31 = arith.constant 1.000000e+00 : f32
    %62 = vector.broadcast %cst_31 : f32 to vector<128x256xf32>
    %63 = arith.select %48, %62, %61 : vector<128x256xi1>, vector<128x256xf32>
    %cst_32 = arith.constant 1.000000e+00 : f32
    %64 = vector.broadcast %cst_32 : f32 to vector<128x256xf32>
    %65 = arith.divf %64, %63 : vector<128x256xf32>
    %66 = arith.mulf %65, %65 : vector<128x256xf32>
    %67 = arith.subf %66, %65 : vector<128x256xf32>
    %68 = arith.mulf %42, %67 : vector<128x256xf32>
    %69 = arith.cmpf one, %68, %68 : vector<128x256xf32>
    %cst_33 = arith.constant 0.000000e+00 : f32
    %70 = vector.broadcast %cst_33 : f32 to vector<128x256xf32>
    %71 = arith.select %69, %70, %68 : vector<128x256xi1>, vector<128x256xf32>
    %cst_34 = arith.constant 2.000000e+00 : f32
    %72 = vector.broadcast %cst_34 : f32 to vector<128x256xf32>
    %73 = arith.mulf %72, %66 : vector<128x256xf32>
    %74 = arith.mulf %73, %65 : vector<128x256xf32>
    %75 = arith.subf %66, %74 : vector<128x256xf32>
    %76 = arith.mulf %42, %75 : vector<128x256xf32>
    %77 = arith.mulf %76, %51 : vector<128x256xf32>
    %cst_35 = arith.constant 0.000000e+00 : f32
    %78 = vector.broadcast %cst_35 : f32 to vector<128x256xf32>
    %79 = arith.subf %78, %26 : vector<128x256xf32>
    %80 = math.exp %79 : vector<128x256xf32>
    %cst_36 = arith.constant 1.000000e+00 : f32
    %81 = vector.broadcast %cst_36 : f32 to vector<128x256xf32>
    %82 = arith.addf %81, %80 : vector<128x256xf32>
    %cst_37 = arith.constant 1.000000e+00 : f32
    %83 = vector.broadcast %cst_37 : f32 to vector<128x256xf32>
    %84 = arith.divf %83, %82 : vector<128x256xf32>
    %85 = arith.mulf %77, %84 : vector<128x256xf32>
    %cst_38 = arith.constant 0.000000e+00 : f32
    %86 = vector.broadcast %cst_38 : f32 to vector<128x256xf32>
    %87 = arith.maximumf %33, %86 : vector<128x256xf32>
    %88 = math.absf %33 : vector<128x256xf32>
    %cst_39 = arith.constant 0.000000e+00 : f32
    %89 = vector.broadcast %cst_39 : f32 to vector<128x256xf32>
    %90 = arith.subf %89, %88 : vector<128x256xf32>
    %91 = math.exp %90 : vector<128x256xf32>
    %cst_40 = arith.constant 1.000000e+00 : f32
    %92 = vector.broadcast %cst_40 : f32 to vector<128x256xf32>
    %93 = arith.addf %92, %91 : vector<128x256xf32>
    %94 = math.log %93 : vector<128x256xf32>
    %95 = arith.addf %87, %94 : vector<128x256xf32>
    %cst_41 = arith.constant 1.000000e+00 : f32
    %96 = vector.broadcast %cst_41 : f32 to vector<128x256xf32>
    %97 = arith.select %48, %96, %95 : vector<128x256xi1>, vector<128x256xf32>
    %cst_42 = arith.constant 1.000000e+00 : f32
    %98 = vector.broadcast %cst_42 : f32 to vector<128x256xf32>
    %99 = arith.divf %98, %97 : vector<128x256xf32>
    %100 = arith.mulf %99, %99 : vector<128x256xf32>
    %cst_43 = arith.constant 2.000000e+00 : f32
    %101 = vector.broadcast %cst_43 : f32 to vector<128x256xf32>
    %102 = arith.mulf %101, %100 : vector<128x256xf32>
    %103 = arith.mulf %102, %99 : vector<128x256xf32>
    %104 = arith.subf %100, %103 : vector<128x256xf32>
    %105 = arith.mulf %42, %104 : vector<128x256xf32>
    %106 = arith.mulf %105, %51 : vector<128x256xf32>
    %cst_44 = arith.constant 0.000000e+00 : f32
    %107 = vector.broadcast %cst_44 : f32 to vector<128x256xf32>
    %108 = arith.subf %107, %33 : vector<128x256xf32>
    %109 = math.exp %108 : vector<128x256xf32>
    %cst_45 = arith.constant 1.000000e+00 : f32
    %110 = vector.broadcast %cst_45 : f32 to vector<128x256xf32>
    %111 = arith.addf %110, %109 : vector<128x256xf32>
    %cst_46 = arith.constant 1.000000e+00 : f32
    %112 = vector.broadcast %cst_46 : f32 to vector<128x256xf32>
    %113 = arith.divf %112, %111 : vector<128x256xf32>
    %114 = arith.mulf %106, %113 : vector<128x256xf32>
    %cst_47 = arith.constant dense<0.000000e+00> : vector<128xf32>
    %115 = vector.multi_reduction <add>, %71, %cst_47 [1] : vector<128x256xf32> to vector<128xf32>
    %116 = vector.shape_cast %115 : vector<128xf32> to vector<128x1xf32>
    %cst_48 = arith.constant dense<0.000000e+00> : vector<128xf32>
    %117 = vector.multi_reduction <add>, %85, %cst_48 [1] : vector<128x256xf32> to vector<128xf32>
    %118 = vector.shape_cast %117 : vector<128xf32> to vector<128x1xf32>
    %cst_49 = arith.constant dense<0.000000e+00> : vector<128xf32>
    %119 = vector.multi_reduction <add>, %114, %cst_49 [1] : vector<128x256xf32> to vector<128xf32>
    %120 = vector.shape_cast %119 : vector<128xf32> to vector<128x1xf32>
    %cst_50 = arith.constant dense<0.000000e+00> : vector<128x32xf32>
    %121 = tpu.matmul %85, %14, %cst_50 {dimension_numbers = #tpu.dot_dimension_numbers<[1], [0], [0], [1], [0, 0, 1, 1], [], []>} : vector<128x256xf32>, vector<256x32xf32>, vector<128x32xf32> -> vector<128x32xf32>
    %cst_51 = arith.constant dense<0.000000e+00> : vector<128x32xf32>
    %122 = tpu.matmul %114, %14, %cst_51 {dimension_numbers = #tpu.dot_dimension_numbers<[1], [0], [0], [1], [0, 0, 1, 1], [], []>} : vector<128x256xf32>, vector<256x32xf32>, vector<128x32xf32> -> vector<128x32xf32>
    %123 = vector.broadcast %118 : vector<128x1xf32> to vector<128x32xf32>
    %124 = vector.broadcast %1 : vector<1x32xf32> to vector<128x32xf32>
    %125 = arith.mulf %123, %124 : vector<128x32xf32>
    %126 = arith.addf %121, %125 : vector<128x32xf32>
    %127 = vector.broadcast %118 : vector<128x1xf32> to vector<128x32xf32>
    %128 = arith.mulf %127, %0 : vector<128x32xf32>
    %129 = arith.subf %126, %128 : vector<128x32xf32>
    %130 = vector.broadcast %120 : vector<128x1xf32> to vector<128x32xf32>
    %131 = arith.mulf %130, %3 : vector<128x32xf32>
    %132 = arith.subf %131, %122 : vector<128x32xf32>
    %133 = arith.subf %132, %129 : vector<128x32xf32>
    %c0_52 = arith.constant 0 : index
    %c0_53 = arith.constant 0 : index
    %134 = vector.load %arg12[%c0_52, %c0_53] : memref<32x8xf32, #tpu.memory_space<vmem>>, vector<32x8xf32>
    %cst_54 = arith.constant dense<0.000000e+00> : vector<128x8xf32>
    %135 = tpu.matmul %133, %134, %cst_54 {dimension_numbers = #tpu.dot_dimension_numbers<[1], [0], [0], [1], [0, 0, 1, 1], [], []>} : vector<128x32xf32>, vector<32x8xf32>, vector<128x8xf32> -> vector<128x8xf32>
    %cst_55 = arith.constant 2.000000e+00 : f32
    %136 = vector.broadcast %cst_55 : f32 to vector<128x8xf32>
    %137 = arith.mulf %136, %135 : vector<128x8xf32>
    %c0_56 = arith.constant 0 : index
    %c0_57 = arith.constant 0 : index
    %138 = vector.load %arg2[%c0_56, %c0_57] : memref<128x1xf32, #tpu.memory_space<vmem>>, vector<128x1xf32>
    %139 = arith.addf %138, %116 : vector<128x1xf32>
    %c0_58 = arith.constant 0 : index
    %c0_59 = arith.constant 0 : index
    %140 = vector.load %arg14[%c0_58, %c0_59] : memref<128x1xf32, #tpu.memory_space<vmem>>, vector<128x1xf32>
    tpu.vector_store %arg14[%c0_58, %c0_59], %139 {strides = array<i32>} : memref<128x1xf32, #tpu.memory_space<vmem>>, vector<128x1xf32>,
    %c0_60 = arith.constant 0 : index
    %c0_61 = arith.constant 0 : index
    %141 = vector.load %arg3[%c0_60, %c0_61] : memref<128x8xf32, #tpu.memory_space<vmem>>, vector<128x8xf32>
    %142 = arith.addf %137, %141 : vector<128x8xf32>
    %cst_62 = arith.constant 0.000000e+00 : f32
    %143 = vector.broadcast %cst_62 : f32 to vector<128x8xf32>
    %144 = arith.subf %143, %142 : vector<128x8xf32>
    %c0_63 = arith.constant 0 : index
    %c0_64 = arith.constant 0 : index
    %145 = vector.load %arg15[%c0_63, %c0_64] : memref<128x8xf32, #tpu.memory_space<vmem>>, vector<128x8xf32>
    tpu.vector_store %arg15[%c0_63, %c0_64], %144 {strides = array<i32>} : memref<128x8xf32, #tpu.memory_space<vmem>>, vector<128x8xf32>,
    return
  }
  func.func @transform_0(%arg0: i32) -> (i32, i32) {
    %c0_i32 = arith.constant 0 : i32
    %c0_i32_0 = arith.constant 0 : i32
    return %arg0, %c0_i32 : i32, i32
  }
  func.func @transform_1(%arg0: i32) -> (i32, i32) {
    %c0_i32 = arith.constant 0 : i32
    %c0_i32_0 = arith.constant 0 : i32
    return %arg0, %c0_i32 : i32, i32
  }
  func.func @transform_2(%arg0: i32) -> (i32, i32) {
    %c0_i32 = arith.constant 0 : i32
    %c0_i32_0 = arith.constant 0 : i32
    return %arg0, %c0_i32 : i32, i32
  }
  func.func @transform_3(%arg0: i32) -> (i32, i32) {
    %c0_i32 = arith.constant 0 : i32
    %c0_i32_0 = arith.constant 0 : i32
    return %arg0, %c0_i32 : i32, i32
  }
  func.func @transform_4(%arg0: i32) -> (i32, i32) {
    %c0_i32 = arith.constant 0 : i32
    %c0_i32_0 = arith.constant 0 : i32
    return %arg0, %c0_i32 : i32, i32
  }
  func.func @transform_5(%arg0: i32) -> (i32, i32) {
    %c0_i32 = arith.constant 0 : i32
    %c0_i32_0 = arith.constant 0 : i32
    %c0_i32_1 = arith.constant 0 : i32
    return %c0_i32, %c0_i32_0 : i32, i32
  }
  func.func @transform_6(%arg0: i32) -> (i32, i32) {
    %c0_i32 = arith.constant 0 : i32
    %c0_i32_0 = arith.constant 0 : i32
    %c0_i32_1 = arith.constant 0 : i32
    return %c0_i32, %c0_i32_0 : i32, i32
  }
  func.func @transform_7(%arg0: i32) -> (i32, i32) {
    %c0_i32 = arith.constant 0 : i32
    %c0_i32_0 = arith.constant 0 : i32
    %c0_i32_1 = arith.constant 0 : i32
    return %c0_i32, %c0_i32_0 : i32, i32
  }
  func.func @transform_8(%arg0: i32) -> (i32, i32) {
    %c0_i32 = arith.constant 0 : i32
    %c0_i32_0 = arith.constant 0 : i32
    %c0_i32_1 = arith.constant 0 : i32
    return %c0_i32, %c0_i32_0 : i32, i32
  }
  func.func @transform_9(%arg0: i32) -> (i32, i32) {
    %c0_i32 = arith.constant 0 : i32
    %c0_i32_0 = arith.constant 0 : i32
    %c0_i32_1 = arith.constant 0 : i32
    return %c0_i32, %c0_i32_0 : i32, i32
  }
  func.func @transform_10(%arg0: i32) -> (i32, i32) {
    %c0_i32 = arith.constant 0 : i32
    %c0_i32_0 = arith.constant 0 : i32
    %c0_i32_1 = arith.constant 0 : i32
    return %c0_i32, %c0_i32_0 : i32, i32
  }
  func.func @transform_11(%arg0: i32) -> (i32, i32) {
    %c0_i32 = arith.constant 0 : i32
    %c0_i32_0 = arith.constant 0 : i32
    %c0_i32_1 = arith.constant 0 : i32
    return %c0_i32, %c0_i32_0 : i32, i32
  }
  func.func @transform_12(%arg0: i32) -> (i32, i32) {
    %c0_i32 = arith.constant 0 : i32
    %c0_i32_0 = arith.constant 0 : i32
    %c0_i32_1 = arith.constant 0 : i32
    return %c0_i32, %c0_i32_0 : i32, i32
  }
  func.func @transform_13(%arg0: i32) -> (i32, i32) {
    %c0_i32 = arith.constant 0 : i32
    %c0_i32_0 = arith.constant 0 : i32
    return %arg0, %c0_i32 : i32, i32
  }
  func.func @transform_14(%arg0: i32) -> (i32, i32) {
    %c0_i32 = arith.constant 0 : i32
    %c0_i32_0 = arith.constant 0 : i32
    return %arg0, %c0_i32 : i32, i32
  }
}

</mosaic_0001>

<llo_original>
// kernel: dissipative_hamiltonian_derivation.2
$region0: #{dissipative_hamiltonian_derivation.2}
  #allocation0 [shape = 'u32[]', space=smem, size = 0x4, offset = 0x4, fixed_abs, tag = 'smem constant byte address 0x4 - core index']
  #allocation1 [shape = 'u32[144,128]{1,0:T(1,128)}', space=vmem, size = 0x12000, scoped, tag = 'internal scratch']
  %s0 = inlined_call_operand.vmem [shape: f32[256,8], index: 0, kind: input, shape index: {}]
  %s1 = inlined_call_operand.vmem [shape: f32[256,8], index: 1, kind: input, shape index: {}]
  %s2 = inlined_call_operand.vmem [shape: f32[256,8], index: 2, kind: input, shape index: {}]
  %s3 = inlined_call_operand.vmem [shape: f32[1,8], index: 3, kind: input, shape index: {}]
  %s4 = inlined_call_operand.vmem [shape: f32[8,8], index: 4, kind: input, shape index: {}]
  %s5 = inlined_call_operand.vmem [shape: f32[8,8], index: 5, kind: input, shape index: {}]
  %s6 = inlined_call_operand.vmem [shape: f32[8,32], index: 6, kind: input, shape index: {}]
  %s7 = inlined_call_operand.vmem [shape: f32[1,32], index: 7, kind: input, shape index: {}]
  %s8 = inlined_call_operand.vmem [shape: f32[256,1], index: 8, kind: output, shape index: {0}]
  %s9 = inlined_call_operand.vmem [shape: f32[256,1], index: 9, kind: output, shape index: {1}]
  %s10 = inlined_call_operand.vmem [shape: f32[256,1], index: 10, kind: output, shape index: {2}]
  %s11 = inlined_call_operand.vmem [shape: f32[256,8], index: 11, kind: output, shape index: {3}]
  %s12 = inlined_call_operand.vmem [shape: f32[256,8], index: 12, kind: output, shape index: {4}]
  %s13 = inlined_call_operand.vmem [shape: f32[256,32], index: 13, kind: output, shape index: {5}]
  %s14 = inlined_call_operand.vmem [shape: f32[256,1], index: 14, kind: output, shape index: {6}]
  %s15 = inlined_call_operand.vmem [shape: f32[256,1], index: 15, kind: output, shape index: {7}]
  %16 = xla_tuple %s8, %s9, %s10, %s11, %s12, %s13, %s14, %s15
  %s17 = sld [smem:[#allocation0]]
  $region121: #{dissipative_hamiltonian_derivation.2} parent=0
    _
  %s19 = ssub.s32 1, %s17
  %s20 = scalar_select 0, %s19, %s17
  loop: start=0, step=1, limit=4
  $region2: #{dissipative_hamiltonian_derivation.2} parent=0 // loop_pre_header
    _
  $region3: #{dissipative_hamiltonian_derivation.2} parent=0 // loop_header
    %s22 = sphi 0, %s26
    %p23 = scmp.ge.s32.totalorder %s22, 4
    %s32 = sphi 0, %s34
    %s35 = sphi 0, %s32
    %s36 = sphi 0, %s35
    %s52 = sphi 0, %s36
    %s58 = sphi 0, %s60
    %s61 = sphi 0, %s58
    %s62 = sphi 0, %s61
    %s78 = sphi 0, %s62
    %s84 = sphi 0, %s86
    %s87 = sphi 0, %s84
    %s88 = sphi 0, %s87
    %s104 = sphi 0, %s88
    %s108 = sphi 0, %s108
    %s110 = sphi 0, %s108
    %s111 = sphi 0, %s110
    %s125 = sphi 0, %s111
    %s129 = sphi 0, %s129
    %s131 = sphi 0, %s129
    %s132 = sphi 0, %s131
    %s146 = sphi 0, %s132
    %s150 = sphi 0, %s150
    %s152 = sphi 0, %s150
    %s153 = sphi 0, %s152
    %s167 = sphi 0, %s153
    %s171 = sphi 0, %s171
    %s173 = sphi 0, %s171
    %s174 = sphi 0, %s173
    %s188 = sphi 0, %s174
    %s192 = sphi 0, %s192
    %s194 = sphi 0, %s192
    %s195 = sphi 0, %s194
    %s209 = sphi 0, %s195
    %s215 = sphi 0, %s217
    %s218 = sphi 0, %s215
    %s219 = sphi 0, %s218
    %s235 = sphi 0, %s219
    %s241 = sphi 0, %s243
    %s244 = sphi 0, %s241
    %s245 = sphi 0, %s244
    %s261 = sphi 0, %s245
    %s267 = sphi 0, %s269
    %s270 = sphi 0, %s267
    %s271 = sphi 0, %s270
    %s287 = sphi 0, %s271
    %s293 = sphi 0, %s295
    %s296 = sphi 0, %s293
    %s297 = sphi 0, %s296
    %s313 = sphi 0, %s297
    %s319 = sphi 0, %s321
    %s322 = sphi 0, %s319
    %s323 = sphi 0, %s322
    %s339 = sphi 0, %s323
    %s345 = sphi 0, %s347
    %s348 = sphi 0, %s345
    %s349 = sphi 0, %s348
    %s365 = sphi 0, %s349
    %s371 = sphi 0, %s373
    %s374 = sphi 0, %s371
    %s375 = sphi 0, %s374
    %s391 = sphi 0, %s375
    %s397 = sphi 0, %s399
    %s400 = sphi 0, %s397
    %s401 = sphi 0, %s400
    %s417 = sphi 0, %s401
  $region4: #{dissipative_hamiltonian_derivation.2} parent=0 // loop_header_branch
    %25 = sbr.rel (%p23) target = $region8
  $region5: #{dissipative_hamiltonian_derivation.2} parent=0 // loop_body
    %s27 = ssub.s32 %s22, 1
    %s28 = ssub.s32 %s22, 2
    %s29 = sadd.s32 %s22, 1
    %s30 = ssub.s32 %s22, %s29
    %p31 = scmp.eq.s32.totalorder %s30, 0
    %s33 = sadd.s32 %s32, 1
    %s34 = scalar_select %p31, %s32, %s33
    %p37 = pneg %p31
    %p38 = scmp.eq.s32.totalorder %s22, 1
    %p39 = por %p37, %p38
    %p40 = scmp.ne.s32.totalorder %s32, %s35
    %p41 = scmp.eq.s32.totalorder %s22, 0
    %p42 = por %p40, %p41
    %p43 = scmp.ne.s32.totalorder %s32, %s35
    %p44 = scmp.eq.s32.totalorder %s27, 1
    %p45 = por %p43, %p44
    %p46 = scmp.ne.s32.totalorder %s35, %s36
    %p47 = scmp.eq.s32.totalorder %s27, 0
    %p48 = por %p46, %p47
    %p49 = scmp.ne.s32.totalorder %s35, %s36
    %p50 = scmp.eq.s32.totalorder %s28, 1
    %p51 = por %p49, %p50
    %p53 = scmp.ne.s32.totalorder %s36, %s52
    %p54 = scmp.eq.s32.totalorder %s28, 0
    %p55 = por %p53, %p54
    %s56 = ssub.s32 %s22, %s29
    %p57 = scmp.eq.s32.totalorder %s56, 0
    %s59 = sadd.s32 %s58, 1
    %s60 = scalar_select %p57, %s58, %s59
    %p63 = pneg %p57
    %p64 = scmp.eq.s32.totalorder %s22, 1
    %p65 = por %p63, %p64
    %p66 = scmp.ne.s32.totalorder %s58, %s61
    %p67 = scmp.eq.s32.totalorder %s22, 0
    %p68 = por %p66, %p67
    %p69 = scmp.ne.s32.totalorder %s58, %s61
    %p70 = scmp.eq.s32.totalorder %s27, 1
    %p71 = por %p69, %p70
    %p72 = scmp.ne.s32.totalorder %s61, %s62
    %p73 = scmp.eq.s32.totalorder %s27, 0
    %p74 = por %p72, %p73
    %p75 = scmp.ne.s32.totalorder %s61, %s62
    %p76 = scmp.eq.s32.totalorder %s28, 1
    %p77 = por %p75, %p76
    %p79 = scmp.ne.s32.totalorder %s62, %s78
    %p80 = scmp.eq.s32.totalorder %s28, 0
    %p81 = por %p79, %p80
    %s82 = ssub.s32 %s22, %s29
    %p83 = scmp.eq.s32.totalorder %s82, 0
    %s85 = sadd.s32 %s84, 1
    %s86 = scalar_select %p83, %s84, %s85
    %p89 = pneg %p83
    %p90 = scmp.eq.s32.totalorder %s22, 1
    %p91 = por %p89, %p90
    %p92 = scmp.ne.s32.totalorder %s84, %s87
    %p93 = scmp.eq.s32.totalorder %s22, 0
    %p94 = por %p92, %p93
    %p95 = scmp.ne.s32.totalorder %s84, %s87
    %p96 = scmp.eq.s32.totalorder %s27, 1
    %p97 = por %p95, %p96
    %p98 = scmp.ne.s32.totalorder %s87, %s88
    %p99 = scmp.eq.s32.totalorder %s27, 0
    %p100 = por %p98, %p99
    %p101 = scmp.ne.s32.totalorder %s87, %s88
    %p102 = scmp.eq.s32.totalorder %s28, 1
    %p103 = por %p101, %p102
    %p105 = scmp.ne.s32.totalorder %s88, %s104
    %p106 = scmp.eq.s32.totalorder %s28, 0
    %p107 = por %p105, %p106
    %s109 = sadd.s32 %s108, 1
    %p112 = scmp.eq.s32.totalorder %s22, 1
    %p113 = scmp.ne.s32.totalorder %s108, %s110
    %p114 = scmp.eq.s32.totalorder %s22, 0
    %p115 = por %p113, %p114
    %p116 = scmp.ne.s32.totalorder %s108, %s110
    %p117 = scmp.eq.s32.totalorder %s27, 1
    %p118 = por %p116, %p117
    %p119 = scmp.ne.s32.totalorder %s110, %s111
    %p120 = scmp.eq.s32.totalorder %s27, 0
    %p121 = por %p119, %p120
    %p122 = scmp.ne.s32.totalorder %s110, %s111
    %p123 = scmp.eq.s32.totalorder %s28, 1
    %p124 = por %p122, %p123
    %p126 = scmp.ne.s32.totalorder %s111, %s125
    %p127 = scmp.eq.s32.totalorder %s28, 0
    %p128 = por %p126, %p127
    %s130 = sadd.s32 %s129, 1
    %p133 = scmp.eq.s32.totalorder %s22, 1
    %p134 = scmp.ne.s32.totalorder %s129, %s131
    %p135 = scmp.eq.s32.totalorder %s22, 0
    %p136 = por %p134, %p135
    %p137 = scmp.ne.s32.totalorder %s129, %s131
    %p138 = scmp.eq.s32.totalorder %s27, 1
    %p139 = por %p137, %p138
    %p140 = scmp.ne.s32.totalorder %s131, %s132
    %p141 = scmp.eq.s32.totalorder %s27, 0
    %p142 = por %p140, %p141
    %p143 = scmp.ne.s32.totalorder %s131, %s132
    %p144 = scmp.eq.s32.totalorder %s28, 1
    %p145 = por %p143, %p144
    %p147 = scmp.ne.s32.totalorder %s132, %s146
    %p148 = scmp.eq.s32.totalorder %s28, 0
    %p149 = por %p147, %p148
    %s151 = sadd.s32 %s150, 1
    %p154 = scmp.eq.s32.totalorder %s22, 1
    %p155 = scmp.ne.s32.totalorder %s150, %s152
    %p156 = scmp.eq.s32.totalorder %s22, 0
    %p157 = por %p155, %p156
    %p158 = scmp.ne.s32.totalorder %s150, %s152
    %p159 = scmp.eq.s32.totalorder %s27, 1
    %p160 = por %p158, %p159
    %p161 = scmp.ne.s32.totalorder %s152, %s153
    %p162 = scmp.eq.s32.totalorder %s27, 0
    %p163 = por %p161, %p162
    %p164 = scmp.ne.s32.totalorder %s152, %s153
    %p165 = scmp.eq.s32.totalorder %s28, 1
    %p166 = por %p164, %p165
    %p168 = scmp.ne.s32.totalorder %s153, %s167
    %p169 = scmp.eq.s32.totalorder %s28, 0
    %p170 = por %p168, %p169
    %s172 = sadd.s32 %s171, 1
    %p175 = scmp.eq.s32.totalorder %s22, 1
    %p176 = scmp.ne.s32.totalorder %s171, %s173
    %p177 = scmp.eq.s32.totalorder %s22, 0
    %p178 = por %p176, %p177
    %p179 = scmp.ne.s32.totalorder %s171, %s173
    %p180 = scmp.eq.s32.totalorder %s27, 1
    %p181 = por %p179, %p180
    %p182 = scmp.ne.s32.totalorder %s173, %s174
    %p183 = scmp.eq.s32.totalorder %s27, 0
    %p184 = por %p182, %p183
    %p185 = scmp.ne.s32.totalorder %s173, %s174
    %p186 = scmp.eq.s32.totalorder %s28, 1
    %p187 = por %p185, %p186
    %p189 = scmp.ne.s32.totalorder %s174, %s188
    %p190 = scmp.eq.s32.totalorder %s28, 0
    %p191 = por %p189, %p190
    %s193 = sadd.s32 %s192, 1
    %p196 = scmp.eq.s32.totalorder %s22, 1
    %p197 = scmp.ne.s32.totalorder %s192, %s194
    %p198 = scmp.eq.s32.totalorder %s22, 0
    %p199 = por %p197, %p198
    %p200 = scmp.ne.s32.totalorder %s192, %s194
    %p201 = scmp.eq.s32.totalorder %s27, 1
    %p202 = por %p200, %p201
    %p203 = scmp.ne.s32.totalorder %s194, %s195
    %p204 = scmp.eq.s32.totalorder %s27, 0
    %p205 = por %p203, %p204
    %p206 = scmp.ne.s32.totalorder %s194, %s195
    %p207 = scmp.eq.s32.totalorder %s28, 1
    %p208 = por %p206, %p207
    %p210 = scmp.ne.s32.totalorder %s195, %s209
    %p211 = scmp.eq.s32.totalorder %s28, 0
    %p212 = por %p210, %p211
    %s213 = ssub.s32 %s22, %s29
    %p214 = scmp.eq.s32.totalorder %s213, 0
    %s216 = sadd.s32 %s215, 1
    %s217 = scalar_select %p214, %s215, %s216
    %p220 = pneg %p214
    %p221 = scmp.eq.s32.totalorder %s22, 1
    %p222 = por %p220, %p221
    %p223 = scmp.ne.s32.totalorder %s215, %s218
    %p224 = scmp.eq.s32.totalorder %s22, 0
    %p225 = por %p223, %p224
    %p226 = scmp.ne.s32.totalorder %s215, %s218
    %p227 = scmp.eq.s32.totalorder %s27, 1
    %p228 = por %p226, %p227
    %p229 = scmp.ne.s32.totalorder %s218, %s219
    %p230 = scmp.eq.s32.totalorder %s27, 0
    %p231 = por %p229, %p230
    %p232 = scmp.ne.s32.totalorder %s218, %s219
    %p233 = scmp.eq.s32.totalorder %s28, 1
    %p234 = por %p232, %p233
    %p236 = scmp.ne.s32.totalorder %s219, %s235
    %p237 = scmp.eq.s32.totalorder %s28, 0
    %p238 = por %p236, %p237
    %s239 = ssub.s32 %s22, %s29
    %p240 = scmp.eq.s32.totalorder %s239, 0
    %s242 = sadd.s32 %s241, 1
    %s243 = scalar_select %p240, %s241, %s242
    %p246 = pneg %p240
    %p247 = scmp.eq.s32.totalorder %s22, 1
    %p248 = por %p246, %p247
    %p249 = scmp.ne.s32.totalorder %s241, %s244
    %p250 = scmp.eq.s32.totalorder %s22, 0
    %p251 = por %p249, %p250
    %p252 = scmp.ne.s32.totalorder %s241, %s244
    %p253 = scmp.eq.s32.totalorder %s27, 1
    %p254 = por %p252, %p253
    %p255 = scmp.ne.s32.totalorder %s244, %s245
    %p256 = scmp.eq.s32.totalorder %s27, 0
    %p257 = por %p255, %p256
    %p258 = scmp.ne.s32.totalorder %s244, %s245
    %p259 = scmp.eq.s32.totalorder %s28, 1
    %p260 = por %p258, %p259
    %p262 = scmp.ne.s32.totalorder %s245, %s261
    %p263 = scmp.eq.s32.totalorder %s28, 0
    %p264 = por %p262, %p263
    %s265 = ssub.s32 %s22, %s29
    %p266 = scmp.eq.s32.totalorder %s265, 0
    %s268 = sadd.s32 %s267, 1
    %s269 = scalar_select %p266, %s267, %s268
    %p272 = pneg %p266
    %p273 = scmp.eq.s32.totalorder %s22, 1
    %p274 = por %p272, %p273
    %p275 = scmp.ne.s32.totalorder %s267, %s270
    %p276 = scmp.eq.s32.totalorder %s22, 0
    %p277 = por %p275, %p276
    %p278 = scmp.ne.s32.totalorder %s267, %s270
    %p279 = scmp.eq.s32.totalorder %s27, 1
    %p280 = por %p278, %p279
    %p281 = scmp.ne.s32.totalorder %s270, %s271
    %p282 = scmp.eq.s32.totalorder %s27, 0
    %p283 = por %p281, %p282
    %p284 = scmp.ne.s32.totalorder %s270, %s271
    %p285 = scmp.eq.s32.totalorder %s28, 1
    %p286 = por %p284, %p285
    %p288 = scmp.ne.s32.totalorder %s271, %s287
    %p289 = scmp.eq.s32.totalorder %s28, 0
    %p290 = por %p288, %p289
    %s291 = ssub.s32 %s22, %s29
    %p292 = scmp.eq.s32.totalorder %s291, 0
    %s294 = sadd.s32 %s293, 1
    %s295 = scalar_select %p292, %s293, %s294
    %p298 = pneg %p292
    %p299 = scmp.eq.s32.totalorder %s22, 1
    %p300 = por %p298, %p299
    %p301 = scmp.ne.s32.totalorder %s293, %s296
    %p302 = scmp.eq.s32.totalorder %s22, 0
    %p303 = por %p301, %p302
    %p304 = scmp.ne.s32.totalorder %s293, %s296
    %p305 = scmp.eq.s32.totalorder %s27, 1
    %p306 = por %p304, %p305
    %p307 = scmp.ne.s32.totalorder %s296, %s297
    %p308 = scmp.eq.s32.totalorder %s27, 0
    %p309 = por %p307, %p308
    %p310 = scmp.ne.s32.totalorder %s296, %s297
    %p311 = scmp.eq.s32.totalorder %s28, 1
    %p312 = por %p310, %p311
    %p314 = scmp.ne.s32.totalorder %s297, %s313
    %p315 = scmp.eq.s32.totalorder %s28, 0
    %p316 = por %p314, %p315
    %s317 = ssub.s32 %s22, %s29
    %p318 = scmp.eq.s32.totalorder %s317, 0
    %s320 = sadd.s32 %s319, 1
    %s321 = scalar_select %p318, %s319, %s320
    %p324 = pneg %p318
    %p325 = scmp.eq.s32.totalorder %s22, 1
    %p326 = por %p324, %p325
    %p327 = scmp.ne.s32.totalorder %s319, %s322
    %p328 = scmp.eq.s32.totalorder %s22, 0
    %p329 = por %p327, %p328
    %p330 = scmp.ne.s32.totalorder %s319, %s322
    %p331 = scmp.eq.s32.totalorder %s27, 1
    %p332 = por %p330, %p331
    %p333 = scmp.ne.s32.totalorder %s322, %s323
    %p334 = scmp.eq.s32.totalorder %s27, 0
    %p335 = por %p333, %p334
    %p336 = scmp.ne.s32.totalorder %s322, %s323
    %p337 = scmp.eq.s32.totalorder %s28, 1
    %p338 = por %p336, %p337
    %p340 = scmp.ne.s32.totalorder %s323, %s339
    %p341 = scmp.eq.s32.totalorder %s28, 0
    %p342 = por %p340, %p341
    %s343 = ssub.s32 %s22, %s29
    %p344 = scmp.eq.s32.totalorder %s343, 0
    %s346 = sadd.s32 %s345, 1
    %s347 = scalar_select %p344, %s345, %s346
    %p350 = pneg %p344
    %p351 = scmp.eq.s32.totalorder %s22, 1
    %p352 = por %p350, %p351
    %p353 = scmp.ne.s32.totalorder %s345, %s348
    %p354 = scmp.eq.s32.totalorder %s22, 0
    %p355 = por %p353, %p354
    %p356 = scmp.ne.s32.totalorder %s345, %s348
    %p357 = scmp.eq.s32.totalorder %s27, 1
    %p358 = por %p356, %p357
    %p359 = scmp.ne.s32.totalorder %s348, %s349
    %p360 = scmp.eq.s32.totalorder %s27, 0
    %p361 = por %p359, %p360
    %p362 = scmp.ne.s32.totalorder %s348, %s349
    %p363 = scmp.eq.s32.totalorder %s28, 1
    %p364 = por %p362, %p363
    %p366 = scmp.ne.s32.totalorder %s349, %s365
    %p367 = scmp.eq.s32.totalorder %s28, 0
    %p368 = por %p366, %p367
    %s369 = ssub.s32 %s22, %s29
    %p370 = scmp.eq.s32.totalorder %s369, 0
    %s372 = sadd.s32 %s371, 1
    %s373 = scalar_select %p370, %s371, %s372
    %p376 = pneg %p370
    %p377 = scmp.eq.s32.totalorder %s22, 1
    %p378 = por %p376, %p377
    %p379 = scmp.ne.s32.totalorder %s371, %s374
    %p380 = scmp.eq.s32.totalorder %s22, 0
    %p381 = por %p379, %p380
    %p382 = scmp.ne.s32.totalorder %s371, %s374
    %p383 = scmp.eq.s32.totalorder %s27, 1
    %p384 = por %p382, %p383
    %p385 = scmp.ne.s32.totalorder %s374, %s375
    %p386 = scmp.eq.s32.totalorder %s27, 0
    %p387 = por %p385, %p386
    %p388 = scmp.ne.s32.totalorder %s374, %s375
    %p389 = scmp.eq.s32.totalorder %s28, 1
    %p390 = por %p388, %p389
    %p392 = scmp.ne.s32.totalorder %s375, %s391
    %p393 = scmp.eq.s32.totalorder %s28, 0
    %p394 = por %p392, %p393
    %s395 = ssub.s32 %s22, %s29
    %p396 = scmp.eq.s32.totalorder %s395, 0
    %s398 = sadd.s32 %s397, 1
    %s399 = scalar_select %p396, %s397, %s398
    %p402 = pneg %p396
    %p403 = scmp.eq.s32.totalorder %s22, 1
    %p404 = por %p402, %p403
    %p405 = scmp.ne.s32.totalorder %s397, %s400
    %p406 = scmp.eq.s32.totalorder %s22, 0
    %p407 = por %p405, %p406
    %p408 = scmp.ne.s32.totalorder %s397, %s400
    %p409 = scmp.eq.s32.totalorder %s27, 1
    %p410 = por %p408, %p409
    %p411 = scmp.ne.s32.totalorder %s400, %s401
    %p412 = scmp.eq.s32.totalorder %s27, 0
    %p413 = por %p411, %p412
    %p414 = scmp.ne.s32.totalorder %s400, %s401
    %p415 = scmp.eq.s32.totalorder %s28, 1
    %p416 = por %p414, %p415
    %p418 = scmp.ne.s32.totalorder %s401, %s417
    %p419 = scmp.eq.s32.totalorder %s28, 0
    %p420 = por %p418, %p419
    %p421 = scmp.le.s32.totalorder 1, %s22
    %p422 = scmp.lt.s32.totalorder %s22, 3
    %p423 = pnand %p421, %p422
    %p424 = pneg %p423
    // Predicated region
    $region9: #{dissipative_hamiltonian_derivation.2} parent=5 // pred_check
      _
    $region10: #{dissipative_hamiltonian_derivation.2} parent=5 // pred_check_branch
      %426 = sbr.rel (%p423) target = $region12
    $region11: #{dissipative_hamiltonian_derivation.2} parent=5 // pred_region
      %s427 = ssub.s32 %s22, 1
      // Predicated region
      $region13: #{dissipative_hamiltonian_derivation.2} parent=11 // pred_check
        %p428 = pneg %p121
      $region14: #{dissipative_hamiltonian_derivation.2} parent=11 // pred_check_branch
        %430 = sbr.rel (%p428) target = $region16
      $region15: #{dissipative_hamiltonian_derivation.2} parent=11 // pred_region
        _
      $region16: #{dissipative_hamiltonian_derivation.2} parent=11 // pred_fallthru
        _
      // Predicated region
      $region17: #{dissipative_hamiltonian_derivation.2} parent=11 // pred_check
        %p431 = pneg %p142
      $region18: #{dissipative_hamiltonian_derivation.2} parent=11 // pred_check_branch
        %433 = sbr.rel (%p431) target = $region20
      $region19: #{dissipative_hamiltonian_derivation.2} parent=11 // pred_region
        _
      $region20: #{dissipative_hamiltonian_derivation.2} parent=11 // pred_fallthru
        _
      // Predicated region
      $region21: #{dissipative_hamiltonian_derivation.2} parent=11 // pred_check
        %p434 = pneg %p163
      $region22: #{dissipative_hamiltonian_derivation.2} parent=11 // pred_check_branch
        %436 = sbr.rel (%p434) target = $region24
      $region23: #{dissipative_hamiltonian_derivation.2} parent=11 // pred_region
        _
      $region24: #{dissipative_hamiltonian_derivation.2} parent=11 // pred_fallthru
        _
      // Predicated region
      $region25: #{dissipative_hamiltonian_derivation.2} parent=11 // pred_check
        %p437 = pneg %p184
      $region26: #{dissipative_hamiltonian_derivation.2} parent=11 // pred_check_branch
        %439 = sbr.rel (%p437) target = $region28
      $region27: #{dissipative_hamiltonian_derivation.2} parent=11 // pred_region
        _
      $region28: #{dissipative_hamiltonian_derivation.2} parent=11 // pred_fallthru
        _
      // Predicated region
      $region29: #{dissipative_hamiltonian_derivation.2} parent=11 // pred_check
        %p440 = pneg %p205
      $region30: #{dissipative_hamiltonian_derivation.2} parent=11 // pred_check_branch
        %442 = sbr.rel (%p440) target = $region32
      $region31: #{dissipative_hamiltonian_derivation.2} parent=11 // pred_region
        _
      $region32: #{dissipative_hamiltonian_derivation.2} parent=11 // pred_fallthru
        _
    $region12: #{dissipative_hamiltonian_derivation.2} parent=5 // pred_fallthru
      _
    %p443 = scmp.lt.s32.totalorder %s22, 2
    // Predicated region
    $region33: #{dissipative_hamiltonian_derivation.2} parent=5 // pred_check
      %p444 = pneg %p443
    $region34: #{dissipative_hamiltonian_derivation.2} parent=5 // pred_check_branch
      %446 = sbr.rel (%p444) target = $region36
    $region35: #{dissipative_hamiltonian_derivation.2} parent=5 // pred_region
      // Predicated region
      $region37: #{dissipative_hamiltonian_derivation.2} parent=35 // pred_check
        %p447 = pneg %p42
      $region38: #{dissipative_hamiltonian_derivation.2} parent=35 // pred_check_branch
        %449 = sbr.rel (%p447) target = $region40
      $region39: #{dissipative_hamiltonian_derivation.2} parent=35 // pred_region
        %s450 = smul.u32 16, %s22
        %p451 = scmp.lt.s32.totalorder %s450, 31
        %s452 = scalar_select %p451, %s450, 31
        %s453 = smul.addr %s452, 8
        %s454 = scalar_lea.vmem %s0, %s453
        %s455 = smul.u32 16, %s22
      $region40: #{dissipative_hamiltonian_derivation.2} parent=35 // pred_fallthru
        _
      // Predicated region
      $region41: #{dissipative_hamiltonian_derivation.2} parent=35 // pred_check
        %p456 = pneg %p68
      $region42: #{dissipative_hamiltonian_derivation.2} parent=35 // pred_check_branch
        %458 = sbr.rel (%p456) target = $region44
      $region43: #{dissipative_hamiltonian_derivation.2} parent=35 // pred_region
        %s459 = smul.u32 16, %s22
        %p460 = scmp.lt.s32.totalorder %s459, 31
        %s461 = scalar_select %p460, %s459, 31
        %s462 = smul.addr %s461, 8
        %s463 = scalar_lea.vmem %s1, %s462
        %s464 = smul.u32 16, %s22
      $region44: #{dissipative_hamiltonian_derivation.2} parent=35 // pred_fallthru
        _
      // Predicated region
      $region45: #{dissipative_hamiltonian_derivation.2} parent=35 // pred_check
        %p465 = pneg %p94
      $region46: #{dissipative_hamiltonian_derivation.2} parent=35 // pred_check_branch
        %467 = sbr.rel (%p465) target = $region48
      $region47: #{dissipative_hamiltonian_derivation.2} parent=35 // pred_region
        %s468 = smul.u32 16, %s22
        %p469 = scmp.lt.s32.totalorder %s468, 31
        %s470 = scalar_select %p469, %s468, 31
        %s471 = smul.addr %s470, 8
        %s472 = scalar_lea.vmem %s2, %s471
        %s473 = smul.u32 16, %s22
      $region48: #{dissipative_hamiltonian_derivation.2} parent=35 // pred_fallthru
        _
    $region36: #{dissipative_hamiltonian_derivation.2} parent=5 // pred_fallthru
      _
    %p474 = scmp.le.s32.totalorder 1, %s22
    %p475 = scmp.lt.s32.totalorder %s22, 3
    %p476 = pnand %p474, %p475
    %p477 = pneg %p476
    // Predicated region
    $region49: #{dissipative_hamiltonian_derivation.2} parent=5 // pred_check
      _
    $region50: #{dissipative_hamiltonian_derivation.2} parent=5 // pred_check_branch
      %479 = sbr.rel (%p476) target = $region52
    $region51: #{dissipative_hamiltonian_derivation.2} parent=5 // pred_region
      %s480 = ssub.s32 %s22, 1
      %s481 = smul.u32 16, %s27
      %p482 = scmp.lt.s32.totalorder %s481, 31
      %s483 = scalar_select %p482, %s481, 31
      %s484 = smul.addr %s483, 8
      %s485 = scalar_lea.vmem %s0, %s484
      %p486 = pneg %p48
      %p487 = pneg %p45
      %s488 = smul.u32 16, %s27
      %p489 = scmp.lt.s32.totalorder %s488, 31
      %s490 = scalar_select %p489, %s488, 31
      %s491 = smul.addr %s490, 8
      %s492 = scalar_lea.vmem %s1, %s491
      %p493 = pneg %p74
      %p494 = pneg %p71
      %s495 = smul.u32 16, %s27
      %p496 = scmp.lt.s32.totalorder %s495, 31
      %s497 = scalar_select %p496, %s495, 31
      %s498 = smul.addr %s497, 8
      %s499 = scalar_lea.vmem %s2, %s498
      %p500 = pneg %p100
      %p501 = pneg %p97
      %p502 = pneg %p121
      %p503 = pneg %p118
      %p504 = pneg %p142
      %p505 = pneg %p139
      %p506 = pneg %p163
      %p507 = pneg %p160
      %p508 = pneg %p184
      %p509 = pneg %p181
      %p510 = pneg %p205
      %p511 = pneg %p202
      %p512 = pneg %p231
      %p513 = pneg %p228
      %s514 = smul.u32 16, %s27
      %p515 = scmp.lt.s32.totalorder %s514, 31
      %s516 = scalar_select %p515, %s514, 31
      %s517 = smul.addr %s516, 8
      %s518 = scalar_lea.vmem %s8, %s517
      %p519 = pneg %p257
      %p520 = pneg %p254
      %s521 = smul.u32 16, %s27
      %p522 = scmp.lt.s32.totalorder %s521, 31
      %s523 = scalar_select %p522, %s521, 31
      %s524 = smul.addr %s523, 8
      %s525 = scalar_lea.vmem %s9, %s524
      %p526 = pneg %p283
      %p527 = pneg %p280
      %s528 = smul.u32 16, %s27
      %p529 = scmp.lt.s32.totalorder %s528, 31
      %s530 = scalar_select %p529, %s528, 31
      %s531 = smul.addr %s530, 8
      %s532 = scalar_lea.vmem %s10, %s531
      %p533 = pneg %p309
      %p534 = pneg %p306
      %s535 = smul.u32 16, %s27
      %p536 = scmp.lt.s32.totalorder %s535, 31
      %s537 = scalar_select %p536, %s535, 31
      %s538 = smul.addr %s537, 8
      %s539 = scalar_lea.vmem %s11, %s538
      %p540 = pneg %p335
      %p541 = pneg %p332
      %s542 = smul.u32 16, %s27
      %p543 = scmp.lt.s32.totalorder %s542, 31
      %s544 = scalar_select %p543, %s542, 31
      %s545 = smul.addr %s544, 8
      %s546 = scalar_lea.vmem %s12, %s545
      %p547 = pneg %p361
      %p548 = pneg %p358
      %s549 = smul.u32 16, %s27
      %p550 = scmp.lt.s32.totalorder %s549, 31
      %s551 = scalar_select %p550, %s549, 31
      %s552 = smul.addr %s551, 8
      %s553 = scalar_lea.vmem %s13, %s552
      %p554 = pneg %p387
      %p555 = pneg %p384
      %s556 = smul.u32 16, %s27
      %p557 = scmp.lt.s32.totalorder %s556, 31
      %s558 = scalar_select %p557, %s556, 31
      %s559 = smul.addr %s558, 8
      %s560 = scalar_lea.vmem %s14, %s559
      %p561 = pneg %p413
      %p562 = pneg %p410
      %s563 = smul.u32 16, %s27
      %p564 = scmp.lt.s32.totalorder %s563, 31
      %s565 = scalar_select %p564, %s563, 31
      %s566 = smul.addr %s565, 8
      %s567 = scalar_lea.vmem %s15, %s566
      %s568 = smul.u32 16, %s27
      %p569 = scmp.lt.s32.totalorder %s568, 31
      %s570 = scalar_select %p569, %s568, 31
      %s571 = smul.addr %s570, 8
      %s572 = scalar_lea.vmem %s0, %s571
      %s573 = smul.u32 16, %s27
      %s574 = smul.u32 16, %s27
      %p575 = scmp.lt.s32.totalorder %s574, 31
      %s576 = scalar_select %p575, %s574, 31
      %s577 = smul.addr %s576, 8
      %s578 = scalar_lea.vmem %s1, %s577
      %s579 = smul.u32 16, %s27
      %s580 = smul.u32 16, %s27
      %p581 = scmp.lt.s32.totalorder %s580, 31
      %s582 = scalar_select %p581, %s580, 31
      %s583 = smul.addr %s582, 8
      %s584 = scalar_lea.vmem %s2, %s583
      %s585 = smul.u32 16, %s27
      %s586 = smul.u32 16, %s27
      %p587 = scmp.lt.s32.totalorder %s586, 31
      %s588 = scalar_select %p587, %s586, 31
      %s589 = smul.addr %s588, 8
      %s590 = scalar_lea.vmem %s8, %s589
      %s591 = smul.u32 16, %s27
      %s592 = smul.u32 16, %s27
      %p593 = scmp.lt.s32.totalorder %s592, 31
      %s594 = scalar_select %p593, %s592, 31
      %s595 = smul.addr %s594, 8
      %s596 = scalar_lea.vmem %s9, %s595
      %s597 = smul.u32 16, %s27
      %s598 = smul.u32 16, %s27
      %p599 = scmp.lt.s32.totalorder %s598, 31
      %s600 = scalar_select %p599, %s598, 31
      %s601 = smul.addr %s600, 8
      %s602 = scalar_lea.vmem %s10, %s601
      %s603 = smul.u32 16, %s27
      %s604 = smul.u32 16, %s27
      %p605 = scmp.lt.s32.totalorder %s604, 31
      %s606 = scalar_select %p605, %s604, 31
      %s607 = smul.addr %s606, 8
      %s608 = scalar_lea.vmem %s11, %s607
      %s609 = smul.u32 16, %s27
      %s610 = smul.u32 16, %s27
      %p611 = scmp.lt.s32.totalorder %s610, 31
      %s612 = scalar_select %p611, %s610, 31
      %s613 = smul.addr %s612, 8
      %s614 = scalar_lea.vmem %s12, %s613
      %s615 = smul.u32 16, %s27
      %s616 = smul.u32 16, %s27
      %p617 = scmp.lt.s32.totalorder %s616, 31
      %s618 = scalar_select %p617, %s616, 31
      %s619 = smul.addr %s618, 8
      %s620 = scalar_lea.vmem %s13, %s619
      %s621 = smul.u32 16, %s27
      %s622 = smul.u32 16, %s27
      %p623 = scmp.lt.s32.totalorder %s622, 31
      %s624 = scalar_select %p623, %s622, 31
      %s625 = smul.addr %s624, 8
      %s626 = scalar_lea.vmem %s14, %s625
      %s627 = smul.u32 16, %s27
      %s628 = smul.u32 16, %s27
      %p629 = scmp.lt.s32.totalorder %s628, 31
      %s630 = scalar_select %p629, %s628, 31
      %s631 = smul.addr %s630, 8
      %s632 = scalar_lea.vmem %s15, %s631
      %s633 = smul.u32 16, %s27
      %v634 = vld [vmem:[%s572] sm:$0xff]
      %v635 = vld [vmem:[%s572 + $0x8] sm:$0xff]
      %v636 = vld [vmem:[%s572 + $0x10] sm:$0xff]
      %v637 = vld [vmem:[%s572 + $0x18] sm:$0xff]
      %v638 = vld [vmem:[%s572 + $0x20] sm:$0xff]
      %v639 = vld [vmem:[%s572 + $0x28] sm:$0xff]
      %v640 = vld [vmem:[%s572 + $0x30] sm:$0xff]
      %v641 = vld [vmem:[%s572 + $0x38] sm:$0xff]
      %v642 = vld [vmem:[%s572 + $0x40] sm:$0xff]
      %v643 = vld [vmem:[%s572 + $0x48] sm:$0xff]
      %v644 = vld [vmem:[%s572 + $0x50] sm:$0xff]
      %v645 = vld [vmem:[%s572 + $0x58] sm:$0xff]
      %v646 = vld [vmem:[%s572 + $0x60] sm:$0xff]
      %v647 = vld [vmem:[%s572 + $0x68] sm:$0xff]
      %v648 = vld [vmem:[%s572 + $0x70] sm:$0xff]
      %v649 = vld [vmem:[%s572 + $0x78] sm:$0xff]
      %v650 = vld [vmem:[%s578] sm:$0xff]
      %v651 = vld [vmem:[%s578 + $0x8] sm:$0xff]
      %v652 = vld [vmem:[%s578 + $0x10] sm:$0xff]
      %v653 = vld [vmem:[%s578 + $0x18] sm:$0xff]
      %v654 = vld [vmem:[%s578 + $0x20] sm:$0xff]
      %v655 = vld [vmem:[%s578 + $0x28] sm:$0xff]
      %v656 = vld [vmem:[%s578 + $0x30] sm:$0xff]
      %v657 = vld [vmem:[%s578 + $0x38] sm:$0xff]
      %v658 = vld [vmem:[%s578 + $0x40] sm:$0xff]
      %v659 = vld [vmem:[%s578 + $0x48] sm:$0xff]
      %v660 = vld [vmem:[%s578 + $0x50] sm:$0xff]
      %v661 = vld [vmem:[%s578 + $0x58] sm:$0xff]
      %v662 = vld [vmem:[%s578 + $0x60] sm:$0xff]
      %v663 = vld [vmem:[%s578 + $0x68] sm:$0xff]
      %v664 = vld [vmem:[%s578 + $0x70] sm:$0xff]
      %v665 = vld [vmem:[%s578 + $0x78] sm:$0xff]
      %v666 = vld [vmem:[%s584] sm:$0xff]
      %v667 = vld [vmem:[%s584 + $0x8] sm:$0xff]
      %v668 = vld [vmem:[%s584 + $0x10] sm:$0xff]
      %v669 = vld [vmem:[%s584 + $0x18] sm:$0xff]
      %v670 = vld [vmem:[%s584 + $0x20] sm:$0xff]
      %v671 = vld [vmem:[%s584 + $0x28] sm:$0xff]
      %v672 = vld [vmem:[%s584 + $0x30] sm:$0xff]
      %v673 = vld [vmem:[%s584 + $0x38] sm:$0xff]
      %v674 = vld [vmem:[%s584 + $0x40] sm:$0xff]
      %v675 = vld [vmem:[%s584 + $0x48] sm:$0xff]
      %v676 = vld [vmem:[%s584 + $0x50] sm:$0xff]
      %v677 = vld [vmem:[%s584 + $0x58] sm:$0xff]
      %v678 = vld [vmem:[%s584 + $0x60] sm:$0xff]
      %v679 = vld [vmem:[%s584 + $0x68] sm:$0xff]
      %v680 = vld [vmem:[%s584 + $0x70] sm:$0xff]
      %v681 = vld [vmem:[%s584 + $0x78] sm:$0xff]
      %v682 = vld [vmem:[%s3] sm:$0x1]
      %v684 = vlaneseq
      %v685 = vshrl.u32 %v684, 7
      %v686 = vsub.s32 0, %v685
      %v687 = vrot.slane %v682, %v686
      %v689 = vmul.f32 %v634, %v687
      %v690 = vmul.f32 %v635, %v687
      %v691 = vmul.f32 %v636, %v687
      %v692 = vmul.f32 %v637, %v687
      %v693 = vmul.f32 %v638, %v687
      %v694 = vmul.f32 %v639, %v687
      %v695 = vmul.f32 %v640, %v687
      %v696 = vmul.f32 %v641, %v687
      %v697 = vmul.f32 %v642, %v687
      %v698 = vmul.f32 %v643, %v687
      %v699 = vmul.f32 %v644, %v687
      %v700 = vmul.f32 %v645, %v687
      %v701 = vmul.f32 %v646, %v687
      %v702 = vmul.f32 %v647, %v687
      %v703 = vmul.f32 %v648, %v687
      %v704 = vmul.f32 %v649, %v687
      %vm705 = vcmask 64512
      %v706 = vsel %vm705, %v689, 0.0
      %707 = vadd.xlane.f32.xlu0 %v706
      %v708 = vpop.xlane.xlu0 %707
      %v709 = vsel %vm705, %v690, 0.0
      %710 = vadd.xlane.f32.xlu0 %v709
      %v711 = vpop.xlane.xlu0 %710
      %v712 = vsel %vm705, %v691, 0.0
      %713 = vadd.xlane.f32.xlu0 %v712
      %v714 = vpop.xlane.xlu0 %713
      %v715 = vsel %vm705, %v692, 0.0
      %716 = vadd.xlane.f32.xlu0 %v715
      %v717 = vpop.xlane.xlu0 %716
      %v718 = vsel %vm705, %v693, 0.0
      %719 = vadd.xlane.f32.xlu0 %v718
      %v720 = vpop.xlane.xlu0 %719
      %v721 = vsel %vm705, %v694, 0.0
      %722 = vadd.xlane.f32.xlu0 %v721
      %v723 = vpop.xlane.xlu0 %722
      %v724 = vsel %vm705, %v695, 0.0
      %725 = vadd.xlane.f32.xlu0 %v724
      %v726 = vpop.xlane.xlu0 %725
      %v727 = vsel %vm705, %v696, 0.0
      %728 = vadd.xlane.f32.xlu0 %v727
      %v729 = vpop.xlane.xlu0 %728
      %v730 = vsel %vm705, %v697, 0.0
      %731 = vadd.xlane.f32.xlu0 %v730
      %v732 = vpop.xlane.xlu0 %731
      %v733 = vsel %vm705, %v698, 0.0
      %734 = vadd.xlane.f32.xlu0 %v733
      %v735 = vpop.xlane.xlu0 %734
      %v736 = vsel %vm705, %v699, 0.0
      %737 = vadd.xlane.f32.xlu0 %v736
      %v738 = vpop.xlane.xlu0 %737
      %v739 = vsel %vm705, %v700, 0.0
      %740 = vadd.xlane.f32.xlu0 %v739
      %v741 = vpop.xlane.xlu0 %740
      %v742 = vsel %vm705, %v701, 0.0
      %743 = vadd.xlane.f32.xlu0 %v742
      %v744 = vpop.xlane.xlu0 %743
      %v745 = vsel %vm705, %v702, 0.0
      %746 = vadd.xlane.f32.xlu0 %v745
      %v747 = vpop.xlane.xlu0 %746
      %v748 = vsel %vm705, %v703, 0.0
      %749 = vadd.xlane.f32.xlu0 %v748
      %v750 = vpop.xlane.xlu0 %749
      %v751 = vsel %vm705, %v704, 0.0
      %752 = vadd.xlane.f32.xlu0 %v751
      %v753 = vpop.xlane.xlu0 %752
      %v754 = vmul.f32 %v708, 0.02
      %v755 = vmul.f32 %v711, 0.02
      %v756 = vmul.f32 %v714, 0.02
      %v757 = vmul.f32 %v717, 0.02
      %v758 = vmul.f32 %v720, 0.02
      %v759 = vmul.f32 %v723, 0.02
      %v760 = vmul.f32 %v726, 0.02
      %v761 = vmul.f32 %v729, 0.02
      %v762 = vmul.f32 %v732, 0.02
      %v763 = vmul.f32 %v735, 0.02
      %v764 = vmul.f32 %v738, 0.02
      %v765 = vmul.f32 %v741, 0.02
      %v766 = vmul.f32 %v744, 0.02
      %v767 = vmul.f32 %v747, 0.02
      %v768 = vmul.f32 %v750, 0.02
      %v769 = vmul.f32 %v753, 0.02
      %v770 = vrcp.pop %v754
      %v771 = vmul.f32 1.0, %v770
      %v772 = vrcp.pop %v755
      %v773 = vmul.f32 1.0, %v772
      %v774 = vrcp.pop %v756
      %v775 = vmul.f32 1.0, %v774
      %v776 = vrcp.pop %v757
      %v777 = vmul.f32 1.0, %v776
      %v778 = vrcp.pop %v758
      %v779 = vmul.f32 1.0, %v778
      %v780 = vrcp.pop %v759
      %v781 = vmul.f32 1.0, %v780
      %v782 = vrcp.pop %v760
      %v783 = vmul.f32 1.0, %v782
      %v784 = vrcp.pop %v761
      %v785 = vmul.f32 1.0, %v784
      %v786 = vrcp.pop %v762
      %v787 = vmul.f32 1.0, %v786
      %v788 = vrcp.pop %v763
      %v789 = vmul.f32 1.0, %v788
      %v790 = vrcp.pop %v764
      %v791 = vmul.f32 1.0, %v790
      %v792 = vrcp.pop %v765
      %v793 = vmul.f32 1.0, %v792
      %v794 = vrcp.pop %v766
      %v795 = vmul.f32 1.0, %v794
      %v796 = vrcp.pop %v767
      %v797 = vmul.f32 1.0, %v796
      %v798 = vrcp.pop %v768
      %v799 = vmul.f32 1.0, %v798
      %v800 = vrcp.pop %v769
      %v801 = vmul.f32 1.0, %v800
      %v802 = vld [vmem:[%s4] sm:$0xff]
      %v804 = vsel %vm705, %v650, 0
      %v807 = vsel %vm705, %v651, 0
      %v810 = vsel %vm705, %v652, 0
      %v813 = vsel %vm705, %v653, 0
      %v816 = vsel %vm705, %v654, 0
      %v819 = vsel %vm705, %v655, 0
      %v822 = vsel %vm705, %v656, 0
      %v825 = vsel %vm705, %v657, 0
      %v828 = vsel %vm705, %v658, 0
      %v831 = vsel %vm705, %v659, 0
      %v834 = vsel %vm705, %v660, 0
      %v837 = vsel %vm705, %v661, 0
      %v840 = vsel %vm705, %v662, 0
      %v843 = vsel %vm705, %v663, 0
      %v846 = vsel %vm705, %v664, 0
      %v849 = vsel %vm705, %v665, 0
      %851 = vmatprep.subr.mxu0 0.0
      %852 = vmatpush1.msra.mxu0 %v802
      %853 = vmatprep.subr.mxu0 0.0
      %854 = vmatpush1.msra.mxu0 0.0
      %855 = vmatprep.subr.mxu0 0.0
      %856 = vmatpush1.msra.mxu0 0.0
      %857 = vmatprep.subr.mxu0 0.0
      %858 = vmatpush1.msra.mxu0 0.0
      %859 = vmatprep.subr.mxu0 0.0
      %860 = vmatpush1.msra.mxu0 0.0
      %861 = vmatprep.subr.mxu0 0.0
      %862 = vmatpush1.msra.mxu0 0.0
      %863 = vmatprep.subr.mxu0 0.0
      %864 = vmatpush1.msra.mxu0 0.0
      %865 = vmatprep.subr.mxu0 0.0
      %866 = vmatpush1.msra.mxu0 0.0
      %867 = vmatprep.subr.mxu0 0.0
      %868 = vmatpush1.msra.mxu0 0.0
      %869 = vmatprep.subr.mxu0 0.0
      %870 = vmatpush1.msra.mxu0 0.0
      %871 = vmatprep.subr.mxu0 0.0
      %872 = vmatpush1.msra.mxu0 0.0
      %873 = vmatprep.subr.mxu0 0.0
      %874 = vmatpush1.msra.mxu0 0.0
      %875 = vmatprep.subr.mxu0 0.0
      %876 = vmatpush1.msra.mxu0 0.0
      %877 = vmatprep.subr.mxu0 0.0
      %878 = vmatpush1.msra.mxu0 0.0
      %879 = vmatprep.subr.mxu0 0.0
      %880 = vmatpush1.msra.mxu0 0.0
      %881 = vmatprep.subr.mxu0 0.0
      %882 = vmatpush1.msra.mxu0 0.0
      %883 = vmatprep.subr.mxu0 0.0
      %884 = vmatpush1.msra.mxu0 0.0
      %885 = vmatprep.subr.mxu0 0.0
      %886 = vmatpush1.msra.mxu0 0.0
      %887 = vmatprep.subr.mxu0 0.0
      %888 = vmatpush1.msra.mxu0 0.0
      %889 = vmatprep.subr.mxu0 0.0
      %890 = vmatpush1.msra.mxu0 0.0
      %891 = vmatprep.subr.mxu0 0.0
      %892 = vmatpush1.msra.mxu0 0.0
      %893 = vmatprep.subr.mxu0 0.0
      %894 = vmatpush1.msra.mxu0 0.0
      %895 = vmatprep.subr.mxu0 0.0
      %896 = vmatpush1.msra.mxu0 0.0
      %897 = vmatprep.subr.mxu0 0.0
      %898 = vmatpush1.msra.mxu0 0.0
      %899 = vmatprep.subr.mxu0 0.0
      %900 = vmatpush1.msra.mxu0 0.0
      %901 = vmatprep.subr.mxu0 0.0
      %902 = vmatpush1.msra.mxu0 0.0
      %903 = vmatprep.subr.mxu0 0.0
      %904 = vmatpush1.msra.mxu0 0.0
      %905 = vmatprep.subr.mxu0 0.0
      %906 = vmatpush1.msra.mxu0 0.0
      %907 = vmatprep.subr.mxu0 0.0
      %908 = vmatpush1.msra.mxu0 0.0
      %909 = vmatprep.subr.mxu0 0.0
      %910 = vmatpush1.msra.mxu0 0.0
      %911 = vmatprep.subr.mxu0 0.0
      %912 = vmatpush1.msra.mxu0 0.0
      %913 = vmatprep.subr.mxu0 0.0
      %914 = vmatpush1.msra.mxu0 0.0
      %915 = vmatprep.mubr.f32.mxu0 0.0
      %916 = vmatmul.mubr.f32.gmra.mrb[0].mxu0 %v804
      %v917 = vpop.f32.mrb[0].mxu0
      %v918 = vadd.f32 0.0, %v917
      %v919 = vpop.f32.mrb[0].mxu0
      %920 = vmatprep.mubr.f32.mxu0 0.0
      %921 = vmatmul.mubr.f32.gmra.mrb[0].mxu0 %v807
      %v922 = vpop.f32.mrb[0].mxu0
      %v923 = vadd.f32 0.0, %v922
      %v924 = vpop.f32.mrb[0].mxu0
      %925 = vmatprep.mubr.f32.mxu0 0.0
      %926 = vmatmul.mubr.f32.gmra.mrb[0].mxu0 %v810
      %v927 = vpop.f32.mrb[0].mxu0
      %v928 = vadd.f32 0.0, %v927
      %v929 = vpop.f32.mrb[0].mxu0
      %930 = vmatprep.mubr.f32.mxu0 0.0
      %931 = vmatmul.mubr.f32.gmra.mrb[0].mxu0 %v813
      %v932 = vpop.f32.mrb[0].mxu0
      %v933 = vadd.f32 0.0, %v932
      %v934 = vpop.f32.mrb[0].mxu0
      %935 = vmatprep.mubr.f32.mxu0 0.0
      %936 = vmatmul.mubr.f32.gmra.mrb[0].mxu0 %v816
      %v937 = vpop.f32.mrb[0].mxu0
      %v938 = vadd.f32 0.0, %v937
      %v939 = vpop.f32.mrb[0].mxu0
      %940 = vmatprep.mubr.f32.mxu0 0.0
      %941 = vmatmul.mubr.f32.gmra.mrb[0].mxu0 %v819
      %v942 = vpop.f32.mrb[0].mxu0
      %v943 = vadd.f32 0.0, %v942
      %v944 = vpop.f32.mrb[0].mxu0
      %945 = vmatprep.mubr.f32.mxu0 0.0
      %946 = vmatmul.mubr.f32.gmra.mrb[0].mxu0 %v822
      %v947 = vpop.f32.mrb[0].mxu0
      %v948 = vadd.f32 0.0, %v947
      %v949 = vpop.f32.mrb[0].mxu0
      %950 = vmatprep.mubr.f32.mxu0 0.0
      %951 = vmatmul.mubr.f32.gmra.mrb[0].mxu0 %v825
      %v952 = vpop.f32.mrb[0].mxu0
      %v953 = vadd.f32 0.0, %v952
      %v954 = vpop.f32.mrb[0].mxu0
      %955 = vmatprep.mubr.f32.mxu0 0.0
      %956 = vmatmul.mubr.f32.gmra.mrb[0].mxu0 %v828
      %v957 = vpop.f32.mrb[0].mxu0
      %v958 = vadd.f32 0.0, %v957
      %v959 = vpop.f32.mrb[0].mxu0
      %960 = vmatprep.mubr.f32.mxu0 0.0
      %961 = vmatmul.mubr.f32.gmra.mrb[0].mxu0 %v831
      %v962 = vpop.f32.mrb[0].mxu0
      %v963 = vadd.f32 0.0, %v962
      %v964 = vpop.f32.mrb[0].mxu0
      %965 = vmatprep.mubr.f32.mxu0 0.0
      %966 = vmatmul.mubr.f32.gmra.mrb[0].mxu0 %v834
      %v967 = vpop.f32.mrb[0].mxu0
      %v968 = vadd.f32 0.0, %v967
      %v969 = vpop.f32.mrb[0].mxu0
      %970 = vmatprep.mubr.f32.mxu0 0.0
      %971 = vmatmul.mubr.f32.gmra.mrb[0].mxu0 %v837
      %v972 = vpop.f32.mrb[0].mxu0
      %v973 = vadd.f32 0.0, %v972
      %v974 = vpop.f32.mrb[0].mxu0
      %975 = vmatprep.mubr.f32.mxu0 0.0
      %976 = vmatmul.mubr.f32.gmra.mrb[0].mxu0 %v840
      %v977 = vpop.f32.mrb[0].mxu0
      %v978 = vadd.f32 0.0, %v977
      %v979 = vpop.f32.mrb[0].mxu0
      %980 = vmatprep.mubr.f32.mxu0 0.0
      %981 = vmatmul.mubr.f32.gmra.mrb[0].mxu0 %v843
      %v982 = vpop.f32.mrb[0].mxu0
      %v983 = vadd.f32 0.0, %v982
      %v984 = vpop.f32.mrb[0].mxu0
      %985 = vmatprep.mubr.f32.mxu0 0.0
      %986 = vmatmul.mubr.f32.gmra.mrb[0].mxu0 %v846
      %v987 = vpop.f32.mrb[0].mxu0
      %v988 = vadd.f32 0.0, %v987
      %v989 = vpop.f32.mrb[0].mxu0
      %990 = vmatprep.mubr.f32.mxu0 0.0
      %991 = vmatmul.mubr.f32.gmra.mrb[0].mxu0 %v849
      %v992 = vpop.f32.mrb[0].mxu0
      %v993 = vadd.f32 0.0, %v992
      %v994 = vpop.f32.mrb[0].mxu0
      %995 = vdwg.mxu0
      %v996 = vld [vmem:[%s5] sm:$0xff]
      %997 = vmatprep.subr.mxu0 0.0
      %998 = vmatpush1.msra.mxu0 %v996
      %999 = vmatprep.subr.mxu0 0.0
      %1000 = vmatpush1.msra.mxu0 0.0
      %1001 = vmatprep.subr.mxu0 0.0
      %1002 = vmatpush1.msra.mxu0 0.0
      %1003 = vmatprep.subr.mxu0 0.0
      %1004 = vmatpush1.msra.mxu0 0.0
      %1005 = vmatprep.subr.mxu0 0.0
      %1006 = vmatpush1.msra.mxu0 0.0
      %1007 = vmatprep.subr.mxu0 0.0
      %1008 = vmatpush1.msra.mxu0 0.0
      %1009 = vmatprep.subr.mxu0 0.0
      %1010 = vmatpush1.msra.mxu0 0.0
      %1011 = vmatprep.subr.mxu0 0.0
      %1012 = vmatpush1.msra.mxu0 0.0
      %1013 = vmatprep.subr.mxu0 0.0
      %1014 = vmatpush1.msra.mxu0 0.0
      %1015 = vmatprep.subr.mxu0 0.0
      %1016 = vmatpush1.msra.mxu0 0.0
      %1017 = vmatprep.subr.mxu0 0.0
      %1018 = vmatpush1.msra.mxu0 0.0
      %1019 = vmatprep.subr.mxu0 0.0
      %1020 = vmatpush1.msra.mxu0 0.0
      %1021 = vmatprep.subr.mxu0 0.0
      %1022 = vmatpush1.msra.mxu0 0.0
      %1023 = vmatprep.subr.mxu0 0.0
      %1024 = vmatpush1.msra.mxu0 0.0
      %1025 = vmatprep.subr.mxu0 0.0
      %1026 = vmatpush1.msra.mxu0 0.0
      %1027 = vmatprep.subr.mxu0 0.0
      %1028 = vmatpush1.msra.mxu0 0.0
      %1029 = vmatprep.subr.mxu0 0.0
      %1030 = vmatpush1.msra.mxu0 0.0
      %1031 = vmatprep.subr.mxu0 0.0
      %1032 = vmatpush1.msra.mxu0 0.0
      %1033 = vmatprep.subr.mxu0 0.0
      %1034 = vmatpush1.msra.mxu0 0.0
      %1035 = vmatprep.subr.mxu0 0.0
      %1036 = vmatpush1.msra.mxu0 0.0
      %1037 = vmatprep.subr.mxu0 0.0
      %1038 = vmatpush1.msra.mxu0 0.0
      %1039 = vmatprep.subr.mxu0 0.0
      %1040 = vmatpush1.msra.mxu0 0.0
      %1041 = vmatprep.subr.mxu0 0.0
      %1042 = vmatpush1.msra.mxu0 0.0
      %1043 = vmatprep.subr.mxu0 0.0
      %1044 = vmatpush1.msra.mxu0 0.0
      %1045 = vmatprep.subr.mxu0 0.0
      %1046 = vmatpush1.msra.mxu0 0.0
      %1047 = vmatprep.subr.mxu0 0.0
      %1048 = vmatpush1.msra.mxu0 0.0
      %1049 = vmatprep.subr.mxu0 0.0
      %1050 = vmatpush1.msra.mxu0 0.0
      %1051 = vmatprep.subr.mxu0 0.0
      %1052 = vmatpush1.msra.mxu0 0.0
      %1053 = vmatprep.subr.mxu0 0.0
      %1054 = vmatpush1.msra.mxu0 0.0
      %1055 = vmatprep.subr.mxu0 0.0
      %1056 = vmatpush1.msra.mxu0 0.0
      %1057 = vmatprep.subr.mxu0 0.0
      %1058 = vmatpush1.msra.mxu0 0.0
      %1059 = vmatprep.subr.mxu0 0.0
      %1060 = vmatpush1.msra.mxu0 0.0
      %1061 = vmatprep.mubr.f32.mxu0 0.0
      %1062 = vmatmul.mubr.f32.gmra.mrb[0].mxu0 %v804
      %v1063 = vpop.f32.mrb[0].mxu0
      %v1064 = vadd.f32 0.0, %v1063
      %v1065 = vpop.f32.mrb[0].mxu0
      %1066 = vmatprep.mubr.f32.mxu0 0.0
      %1067 = vmatmul.mubr.f32.gmra.mrb[0].mxu0 %v807
      %v1068 = vpop.f32.mrb[0].mxu0
      %v1069 = vadd.f32 0.0, %v1068
      %v1070 = vpop.f32.mrb[0].mxu0
      %1071 = vmatprep.mubr.f32.mxu0 0.0
      %1072 = vmatmul.mubr.f32.gmra.mrb[0].mxu0 %v810
      %v1073 = vpop.f32.mrb[0].mxu0
      %v1074 = vadd.f32 0.0, %v1073
      %v1075 = vpop.f32.mrb[0].mxu0
      %1076 = vmatprep.mubr.f32.mxu0 0.0
      %1077 = vmatmul.mubr.f32.gmra.mrb[0].mxu0 %v813
      %v1078 = vpop.f32.mrb[0].mxu0
      %v1079 = vadd.f32 0.0, %v1078
      %v1080 = vpop.f32.mrb[0].mxu0
      %1081 = vmatprep.mubr.f32.mxu0 0.0
      %1082 = vmatmul.mubr.f32.gmra.mrb[0].mxu0 %v816
      %v1083 = vpop.f32.mrb[0].mxu0
      %v1084 = vadd.f32 0.0, %v1083
      %v1085 = vpop.f32.mrb[0].mxu0
      %1086 = vmatprep.mubr.f32.mxu0 0.0
      %1087 = vmatmul.mubr.f32.gmra.mrb[0].mxu0 %v819
      %v1088 = vpop.f32.mrb[0].mxu0
      %v1089 = vadd.f32 0.0, %v1088
      %v1090 = vpop.f32.mrb[0].mxu0
      %1091 = vmatprep.mubr.f32.mxu0 0.0
      %1092 = vmatmul.mubr.f32.gmra.mrb[0].mxu0 %v822
      %v1093 = vpop.f32.mrb[0].mxu0
      %v1094 = vadd.f32 0.0, %v1093
      %v1095 = vpop.f32.mrb[0].mxu0
      %1096 = vmatprep.mubr.f32.mxu0 0.0
      %1097 = vmatmul.mubr.f32.gmra.mrb[0].mxu0 %v825
      %v1098 = vpop.f32.mrb[0].mxu0
      %v1099 = vadd.f32 0.0, %v1098
      %v1100 = vpop.f32.mrb[0].mxu0
      %1101 = vmatprep.mubr.f32.mxu0 0.0
      %1102 = vmatmul.mubr.f32.gmra.mrb[0].mxu0 %v828
      %v1103 = vpop.f32.mrb[0].mxu0
      %v1104 = vadd.f32 0.0, %v1103
      %v1105 = vpop.f32.mrb[0].mxu0
      %1106 = vmatprep.mubr.f32.mxu0 0.0
      %1107 = vmatmul.mubr.f32.gmra.mrb[0].mxu0 %v831
      %v1108 = vpop.f32.mrb[0].mxu0
      %v1109 = vadd.f32 0.0, %v1108
      %v1110 = vpop.f32.mrb[0].mxu0
      %1111 = vmatprep.mubr.f32.mxu0 0.0
      %1112 = vmatmul.mubr.f32.gmra.mrb[0].mxu0 %v834
      %v1113 = vpop.f32.mrb[0].mxu0
      %v1114 = vadd.f32 0.0, %v1113
      %v1115 = vpop.f32.mrb[0].mxu0
      %1116 = vmatprep.mubr.f32.mxu0 0.0
      %1117 = vmatmul.mubr.f32.gmra.mrb[0].mxu0 %v837
      %v1118 = vpop.f32.mrb[0].mxu0
      %v1119 = vadd.f32 0.0, %v1118
      %v1120 = vpop.f32.mrb[0].mxu0
      %1121 = vmatprep.mubr.f32.mxu0 0.0
      %1122 = vmatmul.mubr.f32.gmra.mrb[0].mxu0 %v840
      %v1123 = vpop.f32.mrb[0].mxu0
      %v1124 = vadd.f32 0.0, %v1123
      %v1125 = vpop.f32.mrb[0].mxu0
      %1126 = vmatprep.mubr.f32.mxu0 0.0
      %1127 = vmatmul.mubr.f32.gmra.mrb[0].mxu0 %v843
      %v1128 = vpop.f32.mrb[0].mxu0
      %v1129 = vadd.f32 0.0, %v1128
      %v1130 = vpop.f32.mrb[0].mxu0
      %1131 = vmatprep.mubr.f32.mxu0 0.0
      %1132 = vmatmul.mubr.f32.gmra.mrb[0].mxu0 %v846
      %v1133 = vpop.f32.mrb[0].mxu0
      %v1134 = vadd.f32 0.0, %v1133
      %v1135 = vpop.f32.mrb[0].mxu0
      %1136 = vmatprep.mubr.f32.mxu0 0.0
      %1137 = vmatmul.mubr.f32.gmra.mrb[0].mxu0 %v849
      %v1138 = vpop.f32.mrb[0].mxu0
      %v1139 = vadd.f32 0.0, %v1138
      %v1140 = vpop.f32.mrb[0].mxu0
      %1141 = vdwg.mxu0
      %v1142 = vmul.f32 %v650, %v918
      %v1143 = vmul.f32 %v651, %v923
      %v1144 = vmul.f32 %v652, %v928
      %v1145 = vmul.f32 %v653, %v933
      %v1146 = vmul.f32 %v654, %v938
      %v1147 = vmul.f32 %v655, %v943
      %v1148 = vmul.f32 %v656, %v948
      %v1149 = vmul.f32 %v657, %v953
      %v1150 = vmul.f32 %v658, %v958
      %v1151 = vmul.f32 %v659, %v963
      %v1152 = vmul.f32 %v660, %v968
      %v1153 = vmul.f32 %v661, %v973
      %v1154 = vmul.f32 %v662, %v978
      %v1155 = vmul.f32 %v663, %v983
      %v1156 = vmul.f32 %v664, %v988
      %v1157 = vmul.f32 %v665, %v993
      %v1158 = vmul.f32 %v1142, %v771
      %v1159 = vmul.f32 %v1143, %v773
      %v1160 = vmul.f32 %v1144, %v775
      %v1161 = vmul.f32 %v1145, %v777
      %v1162 = vmul.f32 %v1146, %v779
      %v1163 = vmul.f32 %v1147, %v781
      %v1164 = vmul.f32 %v1148, %v783
      %v1165 = vmul.f32 %v1149, %v785
      %v1166 = vmul.f32 %v1150, %v787
      %v1167 = vmul.f32 %v1151, %v789
      %v1168 = vmul.f32 %v1152, %v791
      %v1169 = vmul.f32 %v1153, %v793
      %v1170 = vmul.f32 %v1154, %v795
      %v1171 = vmul.f32 %v1155, %v797
      %v1172 = vmul.f32 %v1156, %v799
      %v1173 = vmul.f32 %v1157, %v801
      %vm1174 = vcmp.ne.f32.partialorder %v1158, %v1158
      %vm1175 = vcmp.ne.f32.partialorder %v1159, %v1159
      %vm1176 = vcmp.ne.f32.partialorder %v1160, %v1160
      %vm1177 = vcmp.ne.f32.partialorder %v1161, %v1161
      %vm1178 = vcmp.ne.f32.partialorder %v1162, %v1162
      %vm1179 = vcmp.ne.f32.partialorder %v1163, %v1163
      %vm1180 = vcmp.ne.f32.partialorder %v1164, %v1164
      %vm1181 = vcmp.ne.f32.partialorder %v1165, %v1165
      %vm1182 = vcmp.ne.f32.partialorder %v1166, %v1166
      %vm1183 = vcmp.ne.f32.partialorder %v1167, %v1167
      %vm1184 = vcmp.ne.f32.partialorder %v1168, %v1168
      %vm1185 = vcmp.ne.f32.partialorder %v1169, %v1169
      %vm1186 = vcmp.ne.f32.partialorder %v1170, %v1170
      %vm1187 = vcmp.ne.f32.partialorder %v1171, %v1171
      %vm1188 = vcmp.ne.f32.partialorder %v1172, %v1172
      %vm1189 = vcmp.ne.f32.partialorder %v1173, %v1173
      %v1190 = vsel %vm1174, 0.0, %v1158
      %v1191 = vsel %vm1175, 0.0, %v1159
      %v1192 = vsel %vm1176, 0.0, %v1160
      %v1193 = vsel %vm1177, 0.0, %v1161
      %v1194 = vsel %vm1178, 0.0, %v1162
      %v1195 = vsel %vm1179, 0.0, %v1163
      %v1196 = vsel %vm1180, 0.0, %v1164
      %v1197 = vsel %vm1181, 0.0, %v1165
      %v1198 = vsel %vm1182, 0.0, %v1166
      %v1199 = vsel %vm1183, 0.0, %v1167
      %v1200 = vsel %vm1184, 0.0, %v1168
      %v1201 = vsel %vm1185, 0.0, %v1169
      %v1202 = vsel %vm1186, 0.0, %v1170
      %v1203 = vsel %vm1187, 0.0, %v1171
      %v1204 = vsel %vm1188, 0.0, %v1172
      %v1205 = vsel %vm1189, 0.0, %v1173
      %v1206 = vmul.f32 %v650, %v1064
      %v1207 = vmul.f32 %v651, %v1069
      %v1208 = vmul.f32 %v652, %v1074
      %v1209 = vmul.f32 %v653, %v1079
      %v1210 = vmul.f32 %v654, %v1084
      %v1211 = vmul.f32 %v655, %v1089
      %v1212 = vmul.f32 %v656, %v1094
      %v1213 = vmul.f32 %v657, %v1099
      %v1214 = vmul.f32 %v658, %v1104
      %v1215 = vmul.f32 %v659, %v1109
      %v1216 = vmul.f32 %v660, %v1114
      %v1217 = vmul.f32 %v661, %v1119
      %v1218 = vmul.f32 %v662, %v1124
      %v1219 = vmul.f32 %v663, %v1129
      %v1220 = vmul.f32 %v664, %v1134
      %v1221 = vmul.f32 %v665, %v1139
      %v1222 = vmul.f32 %v771, %v771
      %v1223 = vmul.f32 %v773, %v773
      %v1224 = vmul.f32 %v775, %v775
      %v1225 = vmul.f32 %v777, %v777
      %v1226 = vmul.f32 %v779, %v779
      %v1227 = vmul.f32 %v781, %v781
      %v1228 = vmul.f32 %v783, %v783
      %v1229 = vmul.f32 %v785, %v785
      %v1230 = vmul.f32 %v787, %v787
      %v1231 = vmul.f32 %v789, %v789
      %v1232 = vmul.f32 %v791, %v791
      %v1233 = vmul.f32 %v793, %v793
      %v1234 = vmul.f32 %v795, %v795
      %v1235 = vmul.f32 %v797, %v797
      %v1236 = vmul.f32 %v799, %v799
      %v1237 = vmul.f32 %v801, %v801
      %v1238 = vmul.f32 %v1206, %v1222
      %v1239 = vmul.f32 %v1207, %v1223
      %v1240 = vmul.f32 %v1208, %v1224
      %v1241 = vmul.f32 %v1209, %v1225
      %v1242 = vmul.f32 %v1210, %v1226
      %v1243 = vmul.f32 %v1211, %v1227
      %v1244 = vmul.f32 %v1212, %v1228
      %v1245 = vmul.f32 %v1213, %v1229
      %v1246 = vmul.f32 %v1214, %v1230
      %v1247 = vmul.f32 %v1215, %v1231
      %v1248 = vmul.f32 %v1216, %v1232
      %v1249 = vmul.f32 %v1217, %v1233
      %v1250 = vmul.f32 %v1218, %v1234
      %v1251 = vmul.f32 %v1219, %v1235
      %v1252 = vmul.f32 %v1220, %v1236
      %v1253 = vmul.f32 %v1221, %v1237
      %vm1254 = vcmp.ne.f32.partialorder %v1238, %v1238
      %vm1255 = vcmp.ne.f32.partialorder %v1239, %v1239
      %vm1256 = vcmp.ne.f32.partialorder %v1240, %v1240
      %vm1257 = vcmp.ne.f32.partialorder %v1241, %v1241
      %vm1258 = vcmp.ne.f32.partialorder %v1242, %v1242
      %vm1259 = vcmp.ne.f32.partialorder %v1243, %v1243
      %vm1260 = vcmp.ne.f32.partialorder %v1244, %v1244
      %vm1261 = vcmp.ne.f32.partialorder %v1245, %v1245
      %vm1262 = vcmp.ne.f32.partialorder %v1246, %v1246
      %vm1263 = vcmp.ne.f32.partialorder %v1247, %v1247
      %vm1264 = vcmp.ne.f32.partialorder %v1248, %v1248
      %vm1265 = vcmp.ne.f32.partialorder %v1249, %v1249
      %vm1266 = vcmp.ne.f32.partialorder %v1250, %v1250
      %vm1267 = vcmp.ne.f32.partialorder %v1251, %v1251
      %vm1268 = vcmp.ne.f32.partialorder %v1252, %v1252
      %vm1269 = vcmp.ne.f32.partialorder %v1253, %v1253
      %v1270 = vsel %vm1254, 0.0, %v1238
      %v1271 = vsel %vm1255, 0.0, %v1239
      %v1272 = vsel %vm1256, 0.0, %v1240
      %v1273 = vsel %vm1257, 0.0, %v1241
      %v1274 = vsel %vm1258, 0.0, %v1242
      %v1275 = vsel %vm1259, 0.0, %v1243
      %v1276 = vsel %vm1260, 0.0, %v1244
      %v1277 = vsel %vm1261, 0.0, %v1245
      %v1278 = vsel %vm1262, 0.0, %v1246
      %v1279 = vsel %vm1263, 0.0, %v1247
      %v1280 = vsel %vm1264, 0.0, %v1248
      %v1281 = vsel %vm1265, 0.0, %v1249
      %v1282 = vsel %vm1266, 0.0, %v1250
      %v1283 = vsel %vm1267, 0.0, %v1251
      %v1284 = vsel %vm1268, 0.0, %v1252
      %v1285 = vsel %vm1269, 0.0, %v1253
      %v1286 = vld [vmem:[%s6] sm:$0xff]
      %v1288 = vsel %vm705, %v666, 0
      %v1291 = vsel %vm705, %v667, 0
      %v1294 = vsel %vm705, %v668, 0
      %v1297 = vsel %vm705, %v669, 0
      %v1300 = vsel %vm705, %v670, 0
      %v1303 = vsel %vm705, %v671, 0
      %v1306 = vsel %vm705, %v672, 0
      %v1309 = vsel %vm705, %v673, 0
      %v1312 = vsel %vm705, %v674, 0
      %v1315 = vsel %vm705, %v675, 0
      %v1318 = vsel %vm705, %v676, 0
      %v1321 = vsel %vm705, %v677, 0
      %v1324 = vsel %vm705, %v678, 0
      %v1327 = vsel %vm705, %v679, 0
      %v1330 = vsel %vm705, %v680, 0
      %v1333 = vsel %vm705, %v681, 0
      %1335 = vmatprep.subr.mxu0 0.0
      %1336 = vmatpush1.msra.mxu0 %v1286
      %1337 = vmatprep.subr.mxu0 0.0
      %1338 = vmatpush1.msra.mxu0 0.0
      %1339 = vmatprep.subr.mxu0 0.0
      %1340 = vmatpush1.msra.mxu0 0.0
      %1341 = vmatprep.subr.mxu0 0.0
      %1342 = vmatpush1.msra.mxu0 0.0
      %1343 = vmatprep.subr.mxu0 0.0
      %1344 = vmatpush1.msra.mxu0 0.0
      %1345 = vmatprep.subr.mxu0 0.0
      %1346 = vmatpush1.msra.mxu0 0.0
      %1347 = vmatprep.subr.mxu0 0.0
      %1348 = vmatpush1.msra.mxu0 0.0
      %1349 = vmatprep.subr.mxu0 0.0
      %1350 = vmatpush1.msra.mxu0 0.0
      %1351 = vmatprep.subr.mxu0 0.0
      %1352 = vmatpush1.msra.mxu0 0.0
      %1353 = vmatprep.subr.mxu0 0.0
      %1354 = vmatpush1.msra.mxu0 0.0
      %1355 = vmatprep.subr.mxu0 0.0
      %1356 = vmatpush1.msra.mxu0 0.0
      %1357 = vmatprep.subr.mxu0 0.0
      %1358 = vmatpush1.msra.mxu0 0.0
      %1359 = vmatprep.subr.mxu0 0.0
      %1360 = vmatpush1.msra.mxu0 0.0
      %1361 = vmatprep.subr.mxu0 0.0
      %1362 = vmatpush1.msra.mxu0 0.0
      %1363 = vmatprep.subr.mxu0 0.0
      %1364 = vmatpush1.msra.mxu0 0.0
      %1365 = vmatprep.subr.mxu0 0.0
      %1366 = vmatpush1.msra.mxu0 0.0
      %1367 = vmatprep.subr.mxu0 0.0
      %1368 = vmatpush1.msra.mxu0 0.0
      %1369 = vmatprep.subr.mxu0 0.0
      %1370 = vmatpush1.msra.mxu0 0.0
      %1371 = vmatprep.subr.mxu0 0.0
      %1372 = vmatpush1.msra.mxu0 0.0
      %1373 = vmatprep.subr.mxu0 0.0
      %1374 = vmatpush1.msra.mxu0 0.0
      %1375 = vmatprep.subr.mxu0 0.0
      %1376 = vmatpush1.msra.mxu0 0.0
      %1377 = vmatprep.subr.mxu0 0.0
      %1378 = vmatpush1.msra.mxu0 0.0
      %1379 = vmatprep.subr.mxu0 0.0
      %1380 = vmatpush1.msra.mxu0 0.0
      %1381 = vmatprep.subr.mxu0 0.0
      %1382 = vmatpush1.msra.mxu0 0.0
      %1383 = vmatprep.subr.mxu0 0.0
      %1384 = vmatpush1.msra.mxu0 0.0
      %1385 = vmatprep.subr.mxu0 0.0
      %1386 = vmatpush1.msra.mxu0 0.0
      %1387 = vmatprep.subr.mxu0 0.0
      %1388 = vmatpush1.msra.mxu0 0.0
      %1389 = vmatprep.subr.mxu0 0.0
      %1390 = vmatpush1.msra.mxu0 0.0
      %1391 = vmatprep.subr.mxu0 0.0
      %1392 = vmatpush1.msra.mxu0 0.0
      %1393 = vmatprep.subr.mxu0 0.0
      %1394 = vmatpush1.msra.mxu0 0.0
      %1395 = vmatprep.subr.mxu0 0.0
      %1396 = vmatpush1.msra.mxu0 0.0
      %1397 = vmatprep.subr.mxu0 0.0
      %1398 = vmatpush1.msra.mxu0 0.0
      %1399 = vmatprep.mubr.f32.mxu0 0.0
      %1400 = vmatmul.mubr.f32.gmra.mrb[0].mxu0 %v1288
      %v1401 = vpop.f32.mrb[0].mxu0
      %v1402 = vadd.f32 0.0, %v1401
      %v1403 = vpop.f32.mrb[0].mxu0
      %1404 = vmatprep.mubr.f32.mxu0 0.0
      %1405 = vmatmul.mubr.f32.gmra.mrb[0].mxu0 %v1291
      %v1406 = vpop.f32.mrb[0].mxu0
      %v1407 = vadd.f32 0.0, %v1406
      %v1408 = vpop.f32.mrb[0].mxu0
      %1409 = vmatprep.mubr.f32.mxu0 0.0
      %1410 = vmatmul.mubr.f32.gmra.mrb[0].mxu0 %v1294
      %v1411 = vpop.f32.mrb[0].mxu0
      %v1412 = vadd.f32 0.0, %v1411
      %v1413 = vpop.f32.mrb[0].mxu0
      %1414 = vmatprep.mubr.f32.mxu0 0.0
      %1415 = vmatmul.mubr.f32.gmra.mrb[0].mxu0 %v1297
      %v1416 = vpop.f32.mrb[0].mxu0
      %v1417 = vadd.f32 0.0, %v1416
      %v1418 = vpop.f32.mrb[0].mxu0
      %1419 = vmatprep.mubr.f32.mxu0 0.0
      %1420 = vmatmul.mubr.f32.gmra.mrb[0].mxu0 %v1300
      %v1421 = vpop.f32.mrb[0].mxu0
      %v1422 = vadd.f32 0.0, %v1421
      %v1423 = vpop.f32.mrb[0].mxu0
      %1424 = vmatprep.mubr.f32.mxu0 0.0
      %1425 = vmatmul.mubr.f32.gmra.mrb[0].mxu0 %v1303
      %v1426 = vpop.f32.mrb[0].mxu0
      %v1427 = vadd.f32 0.0, %v1426
      %v1428 = vpop.f32.mrb[0].mxu0
      %1429 = vmatprep.mubr.f32.mxu0 0.0
      %1430 = vmatmul.mubr.f32.gmra.mrb[0].mxu0 %v1306
      %v1431 = vpop.f32.mrb[0].mxu0
      %v1432 = vadd.f32 0.0, %v1431
      %v1433 = vpop.f32.mrb[0].mxu0
      %1434 = vmatprep.mubr.f32.mxu0 0.0
      %1435 = vmatmul.mubr.f32.gmra.mrb[0].mxu0 %v1309
      %v1436 = vpop.f32.mrb[0].mxu0
      %v1437 = vadd.f32 0.0, %v1436
      %v1438 = vpop.f32.mrb[0].mxu0
      %1439 = vmatprep.mubr.f32.mxu0 0.0
      %1440 = vmatmul.mubr.f32.gmra.mrb[0].mxu0 %v1312
      %v1441 = vpop.f32.mrb[0].mxu0
      %v1442 = vadd.f32 0.0, %v1441
      %v1443 = vpop.f32.mrb[0].mxu0
      %1444 = vmatprep.mubr.f32.mxu0 0.0
      %1445 = vmatmul.mubr.f32.gmra.mrb[0].mxu0 %v1315
      %v1446 = vpop.f32.mrb[0].mxu0
      %v1447 = vadd.f32 0.0, %v1446
      %v1448 = vpop.f32.mrb[0].mxu0
      %1449 = vmatprep.mubr.f32.mxu0 0.0
      %1450 = vmatmul.mubr.f32.gmra.mrb[0].mxu0 %v1318
      %v1451 = vpop.f32.mrb[0].mxu0
      %v1452 = vadd.f32 0.0, %v1451
      %v1453 = vpop.f32.mrb[0].mxu0
      %1454 = vmatprep.mubr.f32.mxu0 0.0
      %1455 = vmatmul.mubr.f32.gmra.mrb[0].mxu0 %v1321
      %v1456 = vpop.f32.mrb[0].mxu0
      %v1457 = vadd.f32 0.0, %v1456
      %v1458 = vpop.f32.mrb[0].mxu0
      %1459 = vmatprep.mubr.f32.mxu0 0.0
      %1460 = vmatmul.mubr.f32.gmra.mrb[0].mxu0 %v1324
      %v1461 = vpop.f32.mrb[0].mxu0
      %v1462 = vadd.f32 0.0, %v1461
      %v1463 = vpop.f32.mrb[0].mxu0
      %1464 = vmatprep.mubr.f32.mxu0 0.0
      %1465 = vmatmul.mubr.f32.gmra.mrb[0].mxu0 %v1327
      %v1466 = vpop.f32.mrb[0].mxu0
      %v1467 = vadd.f32 0.0, %v1466
      %v1468 = vpop.f32.mrb[0].mxu0
      %1469 = vmatprep.mubr.f32.mxu0 0.0
      %1470 = vmatmul.mubr.f32.gmra.mrb[0].mxu0 %v1330
      %v1471 = vpop.f32.mrb[0].mxu0
      %v1472 = vadd.f32 0.0, %v1471
      %v1473 = vpop.f32.mrb[0].mxu0
      %1474 = vmatprep.mubr.f32.mxu0 0.0
      %1475 = vmatmul.mubr.f32.gmra.mrb[0].mxu0 %v1333
      %v1476 = vpop.f32.mrb[0].mxu0
      %v1477 = vadd.f32 0.0, %v1476
      %v1478 = vpop.f32.mrb[0].mxu0
      %1479 = vdwg.mxu0
      %v1480 = vld [vmem:[%s7] sm:$0x1]
      %v1482 = vlaneseq
      %v1483 = vshrl.u32 %v1482, 7
      %v1484 = vsub.s32 0, %v1483
      %v1485 = vrot.slane %v1480, %v1484
      %v1487 = vadd.f32 %v1402, %v1485
      %v1488 = vadd.f32 %v1407, %v1485
      %v1489 = vadd.f32 %v1412, %v1485
      %v1490 = vadd.f32 %v1417, %v1485
      %v1491 = vadd.f32 %v1422, %v1485
      %v1492 = vadd.f32 %v1427, %v1485
      %v1493 = vadd.f32 %v1432, %v1485
      %v1494 = vadd.f32 %v1437, %v1485
      %v1495 = vadd.f32 %v1442, %v1485
      %v1496 = vadd.f32 %v1447, %v1485
      %v1497 = vadd.f32 %v1452, %v1485
      %v1498 = vadd.f32 %v1457, %v1485
      %v1499 = vadd.f32 %v1462, %v1485
      %v1500 = vadd.f32 %v1467, %v1485
      %v1501 = vadd.f32 %v1472, %v1485
      %v1502 = vadd.f32 %v1477, %v1485
      %vm1503 = vcmask 7168
      %1504 = vst.msk [vmem:[%s590] sm:$0xff] %vm1503, %v754
      %1505 = vst.msk [vmem:[%s590 + $0x8] sm:$0xff] %vm1503, %v755
      %1506 = vst.msk [vmem:[%s590 + $0x10] sm:$0xff] %vm1503, %v756
      %1507 = vst.msk [vmem:[%s590 + $0x18] sm:$0xff] %vm1503, %v757
      %1508 = vst.msk [vmem:[%s590 + $0x20] sm:$0xff] %vm1503, %v758
      %1509 = vst.msk [vmem:[%s590 + $0x28] sm:$0xff] %vm1503, %v759
      %1510 = vst.msk [vmem:[%s590 + $0x30] sm:$0xff] %vm1503, %v760
      %1511 = vst.msk [vmem:[%s590 + $0x38] sm:$0xff] %vm1503, %v761
      %1512 = vst.msk [vmem:[%s590 + $0x40] sm:$0xff] %vm1503, %v762
      %1513 = vst.msk [vmem:[%s590 + $0x48] sm:$0xff] %vm1503, %v763
      %1514 = vst.msk [vmem:[%s590 + $0x50] sm:$0xff] %vm1503, %v764
      %1515 = vst.msk [vmem:[%s590 + $0x58] sm:$0xff] %vm1503, %v765
      %1516 = vst.msk [vmem:[%s590 + $0x60] sm:$0xff] %vm1503, %v766
      %1517 = vst.msk [vmem:[%s590 + $0x68] sm:$0xff] %vm1503, %v767
      %1518 = vst.msk [vmem:[%s590 + $0x70] sm:$0xff] %vm1503, %v768
      %1519 = vst.msk [vmem:[%s590 + $0x78] sm:$0xff] %vm1503, %v769
      %v1520 = vsel %vm705, %v1190, 0.0
      %1521 = vadd.xlane.f32.xlu0 %v1520
      %v1522 = vpop.xlane.xlu0 %1521
      %v1523 = vsel %vm705, %v1191, 0.0
      %1524 = vadd.xlane.f32.xlu0 %v1523
      %v1525 = vpop.xlane.xlu0 %1524
      %v1526 = vsel %vm705, %v1192, 0.0
      %1527 = vadd.xlane.f32.xlu0 %v1526
      %v1528 = vpop.xlane.xlu0 %1527
      %v1529 = vsel %vm705, %v1193, 0.0
      %1530 = vadd.xlane.f32.xlu0 %v1529
      %v1531 = vpop.xlane.xlu0 %1530
      %v1532 = vsel %vm705, %v1194, 0.0
      %1533 = vadd.xlane.f32.xlu0 %v1532
      %v1534 = vpop.xlane.xlu0 %1533
      %v1535 = vsel %vm705, %v1195, 0.0
      %1536 = vadd.xlane.f32.xlu0 %v1535
      %v1537 = vpop.xlane.xlu0 %1536
      %v1538 = vsel %vm705, %v1196, 0.0
      %1539 = vadd.xlane.f32.xlu0 %v1538
      %v1540 = vpop.xlane.xlu0 %1539
      %v1541 = vsel %vm705, %v1197, 0.0
      %1542 = vadd.xlane.f32.xlu0 %v1541
      %v1543 = vpop.xlane.xlu0 %1542
      %v1544 = vsel %vm705, %v1198, 0.0
      %1545 = vadd.xlane.f32.xlu0 %v1544
      %v1546 = vpop.xlane.xlu0 %1545
      %v1547 = vsel %vm705, %v1199, 0.0
      %1548 = vadd.xlane.f32.xlu0 %v1547
      %v1549 = vpop.xlane.xlu0 %1548
      %v1550 = vsel %vm705, %v1200, 0.0
      %1551 = vadd.xlane.f32.xlu0 %v1550
      %v1552 = vpop.xlane.xlu0 %1551
      %v1553 = vsel %vm705, %v1201, 0.0
      %1554 = vadd.xlane.f32.xlu0 %v1553
      %v1555 = vpop.xlane.xlu0 %1554
      %v1556 = vsel %vm705, %v1202, 0.0
      %1557 = vadd.xlane.f32.xlu0 %v1556
      %v1558 = vpop.xlane.xlu0 %1557
      %v1559 = vsel %vm705, %v1203, 0.0
      %1560 = vadd.xlane.f32.xlu0 %v1559
      %v1561 = vpop.xlane.xlu0 %1560
      %v1562 = vsel %vm705, %v1204, 0.0
      %1563 = vadd.xlane.f32.xlu0 %v1562
      %v1564 = vpop.xlane.xlu0 %1563
      %v1565 = vsel %vm705, %v1205, 0.0
      %1566 = vadd.xlane.f32.xlu0 %v1565
      %v1567 = vpop.xlane.xlu0 %1566
      %1568 = vst.msk [vmem:[%s596] sm:$0xff] %vm1503, %v1522
      %1569 = vst.msk [vmem:[%s596 + $0x8] sm:$0xff] %vm1503, %v1525
      %1570 = vst.msk [vmem:[%s596 + $0x10] sm:$0xff] %vm1503, %v1528
      %1571 = vst.msk [vmem:[%s596 + $0x18] sm:$0xff] %vm1503, %v1531
      %1572 = vst.msk [vmem:[%s596 + $0x20] sm:$0xff] %vm1503, %v1534
      %1573 = vst.msk [vmem:[%s596 + $0x28] sm:$0xff] %vm1503, %v1537
      %1574 = vst.msk [vmem:[%s596 + $0x30] sm:$0xff] %vm1503, %v1540
      %1575 = vst.msk [vmem:[%s596 + $0x38] sm:$0xff] %vm1503, %v1543
      %1576 = vst.msk [vmem:[%s596 + $0x40] sm:$0xff] %vm1503, %v1546
      %1577 = vst.msk [vmem:[%s596 + $0x48] sm:$0xff] %vm1503, %v1549
      %1578 = vst.msk [vmem:[%s596 + $0x50] sm:$0xff] %vm1503, %v1552
      %1579 = vst.msk [vmem:[%s596 + $0x58] sm:$0xff] %vm1503, %v1555
      %1580 = vst.msk [vmem:[%s596 + $0x60] sm:$0xff] %vm1503, %v1558
      %1581 = vst.msk [vmem:[%s596 + $0x68] sm:$0xff] %vm1503, %v1561
      %1582 = vst.msk [vmem:[%s596 + $0x70] sm:$0xff] %vm1503, %v1564
      %1583 = vst.msk [vmem:[%s596 + $0x78] sm:$0xff] %vm1503, %v1567
      %v1584 = vsel %vm705, %v1270, 0.0
      %1585 = vadd.xlane.f32.xlu0 %v1584
      %v1586 = vpop.xlane.xlu0 %1585
      %v1587 = vsel %vm705, %v1271, 0.0
      %1588 = vadd.xlane.f32.xlu0 %v1587
      %v1589 = vpop.xlane.xlu0 %1588
      %v1590 = vsel %vm705, %v1272, 0.0
      %1591 = vadd.xlane.f32.xlu0 %v1590
      %v1592 = vpop.xlane.xlu0 %1591
      %v1593 = vsel %vm705, %v1273, 0.0
      %1594 = vadd.xlane.f32.xlu0 %v1593
      %v1595 = vpop.xlane.xlu0 %1594
      %v1596 = vsel %vm705, %v1274, 0.0
      %1597 = vadd.xlane.f32.xlu0 %v1596
      %v1598 = vpop.xlane.xlu0 %1597
      %v1599 = vsel %vm705, %v1275, 0.0
      %1600 = vadd.xlane.f32.xlu0 %v1599
      %v1601 = vpop.xlane.xlu0 %1600
      %v1602 = vsel %vm705, %v1276, 0.0
      %1603 = vadd.xlane.f32.xlu0 %v1602
      %v1604 = vpop.xlane.xlu0 %1603
      %v1605 = vsel %vm705, %v1277, 0.0
      %1606 = vadd.xlane.f32.xlu0 %v1605
      %v1607 = vpop.xlane.xlu0 %1606
      %v1608 = vsel %vm705, %v1278, 0.0
      %1609 = vadd.xlane.f32.xlu0 %v1608
      %v1610 = vpop.xlane.xlu0 %1609
      %v1611 = vsel %vm705, %v1279, 0.0
      %1612 = vadd.xlane.f32.xlu0 %v1611
      %v1613 = vpop.xlane.xlu0 %1612
      %v1614 = vsel %vm705, %v1280, 0.0
      %1615 = vadd.xlane.f32.xlu0 %v1614
      %v1616 = vpop.xlane.xlu0 %1615
      %v1617 = vsel %vm705, %v1281, 0.0
      %1618 = vadd.xlane.f32.xlu0 %v1617
      %v1619 = vpop.xlane.xlu0 %1618
      %v1620 = vsel %vm705, %v1282, 0.0
      %1621 = vadd.xlane.f32.xlu0 %v1620
      %v1622 = vpop.xlane.xlu0 %1621
      %v1623 = vsel %vm705, %v1283, 0.0
      %1624 = vadd.xlane.f32.xlu0 %v1623
      %v1625 = vpop.xlane.xlu0 %1624
      %v1626 = vsel %vm705, %v1284, 0.0
      %1627 = vadd.xlane.f32.xlu0 %v1626
      %v1628 = vpop.xlane.xlu0 %1627
      %v1629 = vsel %vm705, %v1285, 0.0
      %1630 = vadd.xlane.f32.xlu0 %v1629
      %v1631 = vpop.xlane.xlu0 %1630
      %1632 = vst.msk [vmem:[%s602] sm:$0xff] %vm1503, %v1586
      %1633 = vst.msk [vmem:[%s602 + $0x8] sm:$0xff] %vm1503, %v1589
      %1634 = vst.msk [vmem:[%s602 + $0x10] sm:$0xff] %vm1503, %v1592
      %1635 = vst.msk [vmem:[%s602 + $0x18] sm:$0xff] %vm1503, %v1595
      %1636 = vst.msk [vmem:[%s602 + $0x20] sm:$0xff] %vm1503, %v1598
      %1637 = vst.msk [vmem:[%s602 + $0x28] sm:$0xff] %vm1503, %v1601
      %1638 = vst.msk [vmem:[%s602 + $0x30] sm:$0xff] %vm1503, %v1604
      %1639 = vst.msk [vmem:[%s602 + $0x38] sm:$0xff] %vm1503, %v1607
      %1640 = vst.msk [vmem:[%s602 + $0x40] sm:$0xff] %vm1503, %v1610
      %1641 = vst.msk [vmem:[%s602 + $0x48] sm:$0xff] %vm1503, %v1613
      %1642 = vst.msk [vmem:[%s602 + $0x50] sm:$0xff] %vm1503, %v1616
      %1643 = vst.msk [vmem:[%s602 + $0x58] sm:$0xff] %vm1503, %v1619
      %1644 = vst.msk [vmem:[%s602 + $0x60] sm:$0xff] %vm1503, %v1622
      %1645 = vst.msk [vmem:[%s602 + $0x68] sm:$0xff] %vm1503, %v1625
      %1646 = vst.msk [vmem:[%s602 + $0x70] sm:$0xff] %vm1503, %v1628
      %1647 = vst.msk [vmem:[%s602 + $0x78] sm:$0xff] %vm1503, %v1631
      %v1648 = vmul.f32 %v918, 2.0
      %v1649 = vmul.f32 %v923, 2.0
      %v1650 = vmul.f32 %v928, 2.0
      %v1651 = vmul.f32 %v933, 2.0
      %v1652 = vmul.f32 %v938, 2.0
      %v1653 = vmul.f32 %v943, 2.0
      %v1654 = vmul.f32 %v948, 2.0
      %v1655 = vmul.f32 %v953, 2.0
      %v1656 = vmul.f32 %v958, 2.0
      %v1657 = vmul.f32 %v963, 2.0
      %v1658 = vmul.f32 %v968, 2.0
      %v1659 = vmul.f32 %v973, 2.0
      %v1660 = vmul.f32 %v978, 2.0
      %v1661 = vmul.f32 %v983, 2.0
      %v1662 = vmul.f32 %v988, 2.0
      %v1663 = vmul.f32 %v993, 2.0
      %v1664 = vmul.f32 %v1648, %v771
      %v1665 = vmul.f32 %v1649, %v773
      %v1666 = vmul.f32 %v1650, %v775
      %v1667 = vmul.f32 %v1651, %v777
      %v1668 = vmul.f32 %v1652, %v779
      %v1669 = vmul.f32 %v1653, %v781
      %v1670 = vmul.f32 %v1654, %v783
      %v1671 = vmul.f32 %v1655, %v785
      %v1672 = vmul.f32 %v1656, %v787
      %v1673 = vmul.f32 %v1657, %v789
      %v1674 = vmul.f32 %v1658, %v791
      %v1675 = vmul.f32 %v1659, %v793
      %v1676 = vmul.f32 %v1660, %v795
      %v1677 = vmul.f32 %v1661, %v797
      %v1678 = vmul.f32 %v1662, %v799
      %v1679 = vmul.f32 %v1663, %v801
      %1680 = vst.msk [vmem:[%s608] sm:$0xff] %vm705, %v1664
      %1681 = vst.msk [vmem:[%s608 + $0x8] sm:$0xff] %vm705, %v1665
      %1682 = vst.msk [vmem:[%s608 + $0x10] sm:$0xff] %vm705, %v1666
      %1683 = vst.msk [vmem:[%s608 + $0x18] sm:$0xff] %vm705, %v1667
      %1684 = vst.msk [vmem:[%s608 + $0x20] sm:$0xff] %vm705, %v1668
      %1685 = vst.msk [vmem:[%s608 + $0x28] sm:$0xff] %vm705, %v1669
      %1686 = vst.msk [vmem:[%s608 + $0x30] sm:$0xff] %vm705, %v1670
      %1687 = vst.msk [vmem:[%s608 + $0x38] sm:$0xff] %vm705, %v1671
      %1688 = vst.msk [vmem:[%s608 + $0x40] sm:$0xff] %vm705, %v1672
      %1689 = vst.msk [vmem:[%s608 + $0x48] sm:$0xff] %vm705, %v1673
      %1690 = vst.msk [vmem:[%s608 + $0x50] sm:$0xff] %vm705, %v1674
      %1691 = vst.msk [vmem:[%s608 + $0x58] sm:$0xff] %vm705, %v1675
      %1692 = vst.msk [vmem:[%s608 + $0x60] sm:$0xff] %vm705, %v1676
      %1693 = vst.msk [vmem:[%s608 + $0x68] sm:$0xff] %vm705, %v1677
      %1694 = vst.msk [vmem:[%s608 + $0x70] sm:$0xff] %vm705, %v1678
      %1695 = vst.msk [vmem:[%s608 + $0x78] sm:$0xff] %vm705, %v1679
      %v1696 = vmul.f32 %v1064, 2.0
      %v1697 = vmul.f32 %v1069, 2.0
      %v1698 = vmul.f32 %v1074, 2.0
      %v1699 = vmul.f32 %v1079, 2.0
      %v1700 = vmul.f32 %v1084, 2.0
      %v1701 = vmul.f32 %v1089, 2.0
      %v1702 = vmul.f32 %v1094, 2.0
      %v1703 = vmul.f32 %v1099, 2.0
      %v1704 = vmul.f32 %v1104, 2.0
      %v1705 = vmul.f32 %v1109, 2.0
      %v1706 = vmul.f32 %v1114, 2.0
      %v1707 = vmul.f32 %v1119, 2.0
      %v1708 = vmul.f32 %v1124, 2.0
      %v1709 = vmul.f32 %v1129, 2.0
      %v1710 = vmul.f32 %v1134, 2.0
      %v1711 = vmul.f32 %v1139, 2.0
      %v1712 = vmul.f32 %v1696, %v771
      %v1713 = vmul.f32 %v1697, %v773
      %v1714 = vmul.f32 %v1698, %v775
      %v1715 = vmul.f32 %v1699, %v777
      %v1716 = vmul.f32 %v1700, %v779
      %v1717 = vmul.f32 %v1701, %v781
      %v1718 = vmul.f32 %v1702, %v783
      %v1719 = vmul.f32 %v1703, %v785
      %v1720 = vmul.f32 %v1704, %v787
      %v1721 = vmul.f32 %v1705, %v789
      %v1722 = vmul.f32 %v1706, %v791
      %v1723 = vmul.f32 %v1707, %v793
      %v1724 = vmul.f32 %v1708, %v795
      %v1725 = vmul.f32 %v1709, %v797
      %v1726 = vmul.f32 %v1710, %v799
      %v1727 = vmul.f32 %v1711, %v801
      %1728 = vst.msk [vmem:[%s614] sm:$0xff] %vm705, %v1712
      %1729 = vst.msk [vmem:[%s614 + $0x8] sm:$0xff] %vm705, %v1713
      %1730 = vst.msk [vmem:[%s614 + $0x10] sm:$0xff] %vm705, %v1714
      %1731 = vst.msk [vmem:[%s614 + $0x18] sm:$0xff] %vm705, %v1715
      %1732 = vst.msk [vmem:[%s614 + $0x20] sm:$0xff] %vm705, %v1716
      %1733 = vst.msk [vmem:[%s614 + $0x28] sm:$0xff] %vm705, %v1717
      %1734 = vst.msk [vmem:[%s614 + $0x30] sm:$0xff] %vm705, %v1718
      %1735 = vst.msk [vmem:[%s614 + $0x38] sm:$0xff] %vm705, %v1719
      %1736 = vst.msk [vmem:[%s614 + $0x40] sm:$0xff] %vm705, %v1720
      %1737 = vst.msk [vmem:[%s614 + $0x48] sm:$0xff] %vm705, %v1721
      %1738 = vst.msk [vmem:[%s614 + $0x50] sm:$0xff] %vm705, %v1722
      %1739 = vst.msk [vmem:[%s614 + $0x58] sm:$0xff] %vm705, %v1723
      %1740 = vst.msk [vmem:[%s614 + $0x60] sm:$0xff] %vm705, %v1724
      %1741 = vst.msk [vmem:[%s614 + $0x68] sm:$0xff] %vm705, %v1725
      %1742 = vst.msk [vmem:[%s614 + $0x70] sm:$0xff] %vm705, %v1726
      %1743 = vst.msk [vmem:[%s614 + $0x78] sm:$0xff] %vm705, %v1727
      %vm1744 = vcmask 261120
      %1745 = vst.msk [vmem:[%s620] sm:$0xff] %vm1744, %v1402
      %1746 = vst.msk [vmem:[%s620 + $0x8] sm:$0xff] %vm1744, %v1407
      %1747 = vst.msk [vmem:[%s620 + $0x10] sm:$0xff] %vm1744, %v1412
      %1748 = vst.msk [vmem:[%s620 + $0x18] sm:$0xff] %vm1744, %v1417
      %1749 = vst.msk [vmem:[%s620 + $0x20] sm:$0xff] %vm1744, %v1422
      %1750 = vst.msk [vmem:[%s620 + $0x28] sm:$0xff] %vm1744, %v1427
      %1751 = vst.msk [vmem:[%s620 + $0x30] sm:$0xff] %vm1744, %v1432
      %1752 = vst.msk [vmem:[%s620 + $0x38] sm:$0xff] %vm1744, %v1437
      %1753 = vst.msk [vmem:[%s620 + $0x40] sm:$0xff] %vm1744, %v1442
      %1754 = vst.msk [vmem:[%s620 + $0x48] sm:$0xff] %vm1744, %v1447
      %1755 = vst.msk [vmem:[%s620 + $0x50] sm:$0xff] %vm1744, %v1452
      %1756 = vst.msk [vmem:[%s620 + $0x58] sm:$0xff] %vm1744, %v1457
      %1757 = vst.msk [vmem:[%s620 + $0x60] sm:$0xff] %vm1744, %v1462
      %1758 = vst.msk [vmem:[%s620 + $0x68] sm:$0xff] %vm1744, %v1467
      %1759 = vst.msk [vmem:[%s620 + $0x70] sm:$0xff] %vm1744, %v1472
      %1760 = vst.msk [vmem:[%s620 + $0x78] sm:$0xff] %vm1744, %v1477
      %v1761 = vmul.f32 %v1402, %v1402
      %v1762 = vmul.f32 %v1407, %v1407
      %v1763 = vmul.f32 %v1412, %v1412
      %v1764 = vmul.f32 %v1417, %v1417
      %v1765 = vmul.f32 %v1422, %v1422
      %v1766 = vmul.f32 %v1427, %v1427
      %v1767 = vmul.f32 %v1432, %v1432
      %v1768 = vmul.f32 %v1437, %v1437
      %v1769 = vmul.f32 %v1442, %v1442
      %v1770 = vmul.f32 %v1447, %v1447
      %v1771 = vmul.f32 %v1452, %v1452
      %v1772 = vmul.f32 %v1457, %v1457
      %v1773 = vmul.f32 %v1462, %v1462
      %v1774 = vmul.f32 %v1467, %v1467
      %v1775 = vmul.f32 %v1472, %v1472
      %v1776 = vmul.f32 %v1477, %v1477
      %v1777 = vsel %vm1744, %v1761, 0.0
      %1778 = vadd.xlane.f32.xlu0 %v1777
      %v1779 = vpop.xlane.xlu0 %1778
      %v1780 = vsel %vm1744, %v1762, 0.0
      %1781 = vadd.xlane.f32.xlu0 %v1780
      %v1782 = vpop.xlane.xlu0 %1781
      %v1783 = vsel %vm1744, %v1763, 0.0
      %1784 = vadd.xlane.f32.xlu0 %v1783
      %v1785 = vpop.xlane.xlu0 %1784
      %v1786 = vsel %vm1744, %v1764, 0.0
      %1787 = vadd.xlane.f32.xlu0 %v1786
      %v1788 = vpop.xlane.xlu0 %1787
      %v1789 = vsel %vm1744, %v1765, 0.0
      %1790 = vadd.xlane.f32.xlu0 %v1789
      %v1791 = vpop.xlane.xlu0 %1790
      %v1792 = vsel %vm1744, %v1766, 0.0
      %1793 = vadd.xlane.f32.xlu0 %v1792
      %v1794 = vpop.xlane.xlu0 %1793
      %v1795 = vsel %vm1744, %v1767, 0.0
      %1796 = vadd.xlane.f32.xlu0 %v1795
      %v1797 = vpop.xlane.xlu0 %1796
      %v1798 = vsel %vm1744, %v1768, 0.0
      %1799 = vadd.xlane.f32.xlu0 %v1798
      %v1800 = vpop.xlane.xlu0 %1799
      %v1801 = vsel %vm1744, %v1769, 0.0
      %1802 = vadd.xlane.f32.xlu0 %v1801
      %v1803 = vpop.xlane.xlu0 %1802
      %v1804 = vsel %vm1744, %v1770, 0.0
      %1805 = vadd.xlane.f32.xlu0 %v1804
      %v1806 = vpop.xlane.xlu0 %1805
      %v1807 = vsel %vm1744, %v1771, 0.0
      %1808 = vadd.xlane.f32.xlu0 %v1807
      %v1809 = vpop.xlane.xlu0 %1808
      %v1810 = vsel %vm1744, %v1772, 0.0
      %1811 = vadd.xlane.f32.xlu0 %v1810
      %v1812 = vpop.xlane.xlu0 %1811
      %v1813 = vsel %vm1744, %v1773, 0.0
      %1814 = vadd.xlane.f32.xlu0 %v1813
      %v1815 = vpop.xlane.xlu0 %1814
      %v1816 = vsel %vm1744, %v1774, 0.0
      %1817 = vadd.xlane.f32.xlu0 %v1816
      %v1818 = vpop.xlane.xlu0 %1817
      %v1819 = vsel %vm1744, %v1775, 0.0
      %1820 = vadd.xlane.f32.xlu0 %v1819
      %v1821 = vpop.xlane.xlu0 %1820
      %v1822 = vsel %vm1744, %v1776, 0.0
      %1823 = vadd.xlane.f32.xlu0 %v1822
      %v1824 = vpop.xlane.xlu0 %1823
      %1825 = vst.msk [vmem:[%s626] sm:$0xff] %vm1503, %v1779
      %1826 = vst.msk [vmem:[%s626 + $0x8] sm:$0xff] %vm1503, %v1782
      %1827 = vst.msk [vmem:[%s626 + $0x10] sm:$0xff] %vm1503, %v1785
      %1828 = vst.msk [vmem:[%s626 + $0x18] sm:$0xff] %vm1503, %v1788
      %1829 = vst.msk [vmem:[%s626 + $0x20] sm:$0xff] %vm1503, %v1791
      %1830 = vst.msk [vmem:[%s626 + $0x28] sm:$0xff] %vm1503, %v1794
      %1831 = vst.msk [vmem:[%s626 + $0x30] sm:$0xff] %vm1503, %v1797
      %1832 = vst.msk [vmem:[%s626 + $0x38] sm:$0xff] %vm1503, %v1800
      %1833 = vst.msk [vmem:[%s626 + $0x40] sm:$0xff] %vm1503, %v1803
      %1834 = vst.msk [vmem:[%s626 + $0x48] sm:$0xff] %vm1503, %v1806
      %1835 = vst.msk [vmem:[%s626 + $0x50] sm:$0xff] %vm1503, %v1809
      %1836 = vst.msk [vmem:[%s626 + $0x58] sm:$0xff] %vm1503, %v1812
      %1837 = vst.msk [vmem:[%s626 + $0x60] sm:$0xff] %vm1503, %v1815
      %1838 = vst.msk [vmem:[%s626 + $0x68] sm:$0xff] %vm1503, %v1818
      %1839 = vst.msk [vmem:[%s626 + $0x70] sm:$0xff] %vm1503, %v1821
      %1840 = vst.msk [vmem:[%s626 + $0x78] sm:$0xff] %vm1503, %v1824
      %v1841 = vmul.f32 %v1487, %v1487
      %v1842 = vmul.f32 %v1488, %v1488
      %v1843 = vmul.f32 %v1489, %v1489
      %v1844 = vmul.f32 %v1490, %v1490
      %v1845 = vmul.f32 %v1491, %v1491
      %v1846 = vmul.f32 %v1492, %v1492
      %v1847 = vmul.f32 %v1493, %v1493
      %v1848 = vmul.f32 %v1494, %v1494
      %v1849 = vmul.f32 %v1495, %v1495
      %v1850 = vmul.f32 %v1496, %v1496
      %v1851 = vmul.f32 %v1497, %v1497
      %v1852 = vmul.f32 %v1498, %v1498
      %v1853 = vmul.f32 %v1499, %v1499
      %v1854 = vmul.f32 %v1500, %v1500
      %v1855 = vmul.f32 %v1501, %v1501
      %v1856 = vmul.f32 %v1502, %v1502
      %v1857 = vsel %vm1744, %v1841, 0.0
      %1858 = vadd.xlane.f32.xlu0 %v1857
      %v1859 = vpop.xlane.xlu0 %1858
      %v1860 = vsel %vm1744, %v1842, 0.0
      %1861 = vadd.xlane.f32.xlu0 %v1860
      %v1862 = vpop.xlane.xlu0 %1861
      %v1863 = vsel %vm1744, %v1843, 0.0
      %1864 = vadd.xlane.f32.xlu0 %v1863
      %v1865 = vpop.xlane.xlu0 %1864
      %v1866 = vsel %vm1744, %v1844, 0.0
      %1867 = vadd.xlane.f32.xlu0 %v1866
      %v1868 = vpop.xlane.xlu0 %1867
      %v1869 = vsel %vm1744, %v1845, 0.0
      %1870 = vadd.xlane.f32.xlu0 %v1869
      %v1871 = vpop.xlane.xlu0 %1870
      %v1872 = vsel %vm1744, %v1846, 0.0
      %1873 = vadd.xlane.f32.xlu0 %v1872
      %v1874 = vpop.xlane.xlu0 %1873
      %v1875 = vsel %vm1744, %v1847, 0.0
      %1876 = vadd.xlane.f32.xlu0 %v1875
      %v1877 = vpop.xlane.xlu0 %1876
      %v1878 = vsel %vm1744, %v1848, 0.0
      %1879 = vadd.xlane.f32.xlu0 %v1878
      %v1880 = vpop.xlane.xlu0 %1879
      %v1881 = vsel %vm1744, %v1849, 0.0
      %1882 = vadd.xlane.f32.xlu0 %v1881
      %v1883 = vpop.xlane.xlu0 %1882
      %v1884 = vsel %vm1744, %v1850, 0.0
      %1885 = vadd.xlane.f32.xlu0 %v1884
      %v1886 = vpop.xlane.xlu0 %1885
      %v1887 = vsel %vm1744, %v1851, 0.0
      %1888 = vadd.xlane.f32.xlu0 %v1887
      %v1889 = vpop.xlane.xlu0 %1888
      %v1890 = vsel %vm1744, %v1852, 0.0
      %1891 = vadd.xlane.f32.xlu0 %v1890
      %v1892 = vpop.xlane.xlu0 %1891
      %v1893 = vsel %vm1744, %v1853, 0.0
      %1894 = vadd.xlane.f32.xlu0 %v1893
      %v1895 = vpop.xlane.xlu0 %1894
      %v1896 = vsel %vm1744, %v1854, 0.0
      %1897 = vadd.xlane.f32.xlu0 %v1896
      %v1898 = vpop.xlane.xlu0 %1897
      %v1899 = vsel %vm1744, %v1855, 0.0
      %1900 = vadd.xlane.f32.xlu0 %v1899
      %v1901 = vpop.xlane.xlu0 %1900
      %v1902 = vsel %vm1744, %v1856, 0.0
      %1903 = vadd.xlane.f32.xlu0 %v1902
      %v1904 = vpop.xlane.xlu0 %1903
      %1905 = vst.msk [vmem:[%s632] sm:$0xff] %vm1503, %v1859
      %1906 = vst.msk [vmem:[%s632 + $0x8] sm:$0xff] %vm1503, %v1862
      %1907 = vst.msk [vmem:[%s632 + $0x10] sm:$0xff] %vm1503, %v1865
      %1908 = vst.msk [vmem:[%s632 + $0x18] sm:$0xff] %vm1503, %v1868
      %1909 = vst.msk [vmem:[%s632 + $0x20] sm:$0xff] %vm1503, %v1871
      %1910 = vst.msk [vmem:[%s632 + $0x28] sm:$0xff] %vm1503, %v1874
      %1911 = vst.msk [vmem:[%s632 + $0x30] sm:$0xff] %vm1503, %v1877
      %1912 = vst.msk [vmem:[%s632 + $0x38] sm:$0xff] %vm1503, %v1880
      %1913 = vst.msk [vmem:[%s632 + $0x40] sm:$0xff] %vm1503, %v1883
      %1914 = vst.msk [vmem:[%s632 + $0x48] sm:$0xff] %vm1503, %v1886
      %1915 = vst.msk [vmem:[%s632 + $0x50] sm:$0xff] %vm1503, %v1889
      %1916 = vst.msk [vmem:[%s632 + $0x58] sm:$0xff] %vm1503, %v1892
      %1917 = vst.msk [vmem:[%s632 + $0x60] sm:$0xff] %vm1503, %v1895
      %1918 = vst.msk [vmem:[%s632 + $0x68] sm:$0xff] %vm1503, %v1898
      %1919 = vst.msk [vmem:[%s632 + $0x70] sm:$0xff] %vm1503, %v1901
      %1920 = vst.msk [vmem:[%s632 + $0x78] sm:$0xff] %vm1503, %v1904
      %s1921 = smul.u32 16, %s27
      %p1922 = scmp.lt.s32.totalorder %s1921, 31
      %s1923 = scalar_select %p1922, %s1921, 31
      %s1924 = smul.addr %s1923, 8
      %s1925 = scalar_lea.vmem %s8, %s1924
      %s1926 = smul.u32 16, %s27
      %p1927 = scmp.lt.s32.totalorder %s1926, 31
      %s1928 = scalar_select %p1927, %s1926, 31
      %s1929 = smul.addr %s1928, 8
      %s1930 = scalar_lea.vmem %s9, %s1929
      %s1931 = smul.u32 16, %s27
      %p1932 = scmp.lt.s32.totalorder %s1931, 31
      %s1933 = scalar_select %p1932, %s1931, 31
      %s1934 = smul.addr %s1933, 8
      %s1935 = scalar_lea.vmem %s10, %s1934
      %s1936 = smul.u32 16, %s27
      %p1937 = scmp.lt.s32.totalorder %s1936, 31
      %s1938 = scalar_select %p1937, %s1936, 31
      %s1939 = smul.addr %s1938, 8
      %s1940 = scalar_lea.vmem %s11, %s1939
      %s1941 = smul.u32 16, %s27
      %p1942 = scmp.lt.s32.totalorder %s1941, 31
      %s1943 = scalar_select %p1942, %s1941, 31
      %s1944 = smul.addr %s1943, 8
      %s1945 = scalar_lea.vmem %s12, %s1944
      %s1946 = smul.u32 16, %s27
      %p1947 = scmp.lt.s32.totalorder %s1946, 31
      %s1948 = scalar_select %p1947, %s1946, 31
      %s1949 = smul.addr %s1948, 8
      %s1950 = scalar_lea.vmem %s13, %s1949
      %s1951 = smul.u32 16, %s27
      %p1952 = scmp.lt.s32.totalorder %s1951, 31
      %s1953 = scalar_select %p1952, %s1951, 31
      %s1954 = smul.addr %s1953, 8
      %s1955 = scalar_lea.vmem %s14, %s1954
      %s1956 = smul.u32 16, %s27
      %p1957 = scmp.lt.s32.totalorder %s1956, 31
      %s1958 = scalar_select %p1957, %s1956, 31
      %s1959 = smul.addr %s1958, 8
      %s1960 = scalar_lea.vmem %s15, %s1959
      // Predicated region
      $region53: #{dissipative_hamiltonian_derivation.2} parent=51 // pred_check
        %p1961 = pneg %p228
      $region54: #{dissipative_hamiltonian_derivation.2} parent=51 // pred_check_branch
        %1963 = sbr.rel (%p1961) target = $region56
      $region55: #{dissipative_hamiltonian_derivation.2} parent=51 // pred_region
        %s1964 = smul.u32 16, %s27
      $region56: #{dissipative_hamiltonian_derivation.2} parent=51 // pred_fallthru
        _
      // Predicated region
      $region57: #{dissipative_hamiltonian_derivation.2} parent=51 // pred_check
        %p1965 = pneg %p254
      $region58: #{dissipative_hamiltonian_derivation.2} parent=51 // pred_check_branch
        %1967 = sbr.rel (%p1965) target = $region60
      $region59: #{dissipative_hamiltonian_derivation.2} parent=51 // pred_region
        %s1968 = smul.u32 16, %s27
      $region60: #{dissipative_hamiltonian_derivation.2} parent=51 // pred_fallthru
        _
      // Predicated region
      $region61: #{dissipative_hamiltonian_derivation.2} parent=51 // pred_check
        %p1969 = pneg %p280
      $region62: #{dissipative_hamiltonian_derivation.2} parent=51 // pred_check_branch
        %1971 = sbr.rel (%p1969) target = $region64
      $region63: #{dissipative_hamiltonian_derivation.2} parent=51 // pred_region
        %s1972 = smul.u32 16, %s27
      $region64: #{dissipative_hamiltonian_derivation.2} parent=51 // pred_fallthru
        _
      // Predicated region
      $region65: #{dissipative_hamiltonian_derivation.2} parent=51 // pred_check
        %p1973 = pneg %p306
      $region66: #{dissipative_hamiltonian_derivation.2} parent=51 // pred_check_branch
        %1975 = sbr.rel (%p1973) target = $region68
      $region67: #{dissipative_hamiltonian_derivation.2} parent=51 // pred_region
        %s1976 = smul.u32 16, %s27
      $region68: #{dissipative_hamiltonian_derivation.2} parent=51 // pred_fallthru
        _
      // Predicated region
      $region69: #{dissipative_hamiltonian_derivation.2} parent=51 // pred_check
        %p1977 = pneg %p332
      $region70: #{dissipative_hamiltonian_derivation.2} parent=51 // pred_check_branch
        %1979 = sbr.rel (%p1977) target = $region72
      $region71: #{dissipative_hamiltonian_derivation.2} parent=51 // pred_region
        %s1980 = smul.u32 16, %s27
      $region72: #{dissipative_hamiltonian_derivation.2} parent=51 // pred_fallthru
        _
      // Predicated region
      $region73: #{dissipative_hamiltonian_derivation.2} parent=51 // pred_check
        %p1981 = pneg %p358
      $region74: #{dissipative_hamiltonian_derivation.2} parent=51 // pred_check_branch
        %1983 = sbr.rel (%p1981) target = $region76
      $region75: #{dissipative_hamiltonian_derivation.2} parent=51 // pred_region
        %s1984 = smul.u32 16, %s27
      $region76: #{dissipative_hamiltonian_derivation.2} parent=51 // pred_fallthru
        _
      // Predicated region
      $region77: #{dissipative_hamiltonian_derivation.2} parent=51 // pred_check
        %p1985 = pneg %p384
      $region78: #{dissipative_hamiltonian_derivation.2} parent=51 // pred_check_branch
        %1987 = sbr.rel (%p1985) target = $region80
      $region79: #{dissipative_hamiltonian_derivation.2} parent=51 // pred_region
        %s1988 = smul.u32 16, %s27
      $region80: #{dissipative_hamiltonian_derivation.2} parent=51 // pred_fallthru
        _
      // Predicated region
      $region81: #{dissipative_hamiltonian_derivation.2} parent=51 // pred_check
        %p1989 = pneg %p410
      $region82: #{dissipative_hamiltonian_derivation.2} parent=51 // pred_check_branch
        %1991 = sbr.rel (%p1989) target = $region84
      $region83: #{dissipative_hamiltonian_derivation.2} parent=51 // pred_region
        %s1992 = smul.u32 16, %s27
      $region84: #{dissipative_hamiltonian_derivation.2} parent=51 // pred_fallthru
        _
    $region52: #{dissipative_hamiltonian_derivation.2} parent=5 // pred_fallthru
      _
    %p1993 = scmp.le.s32.totalorder 2, %s22
    // Predicated region
    $region85: #{dissipative_hamiltonian_derivation.2} parent=5 // pred_check
      %p1994 = pneg %p1993
    $region86: #{dissipative_hamiltonian_derivation.2} parent=5 // pred_check_branch
      %1996 = sbr.rel (%p1994) target = $region88
    $region87: #{dissipative_hamiltonian_derivation.2} parent=5 // pred_region
      %s1997 = ssub.s32 %s22, 2
      // Predicated region
      $region89: #{dissipative_hamiltonian_derivation.2} parent=87 // pred_check
        %p1998 = pneg %p234
      $region90: #{dissipative_hamiltonian_derivation.2} parent=87 // pred_check_branch
        %2000 = sbr.rel (%p1998) target = $region92
      $region91: #{dissipative_hamiltonian_derivation.2} parent=87 // pred_region
        %s2001 = smul.u32 16, %s28
        %p2002 = scmp.lt.s32.totalorder %s2001, 31
        %s2003 = scalar_select %p2002, %s2001, 31
        %s2004 = smul.addr %s2003, 8
        %s2005 = scalar_lea.vmem %s8, %s2004
      $region92: #{dissipative_hamiltonian_derivation.2} parent=87 // pred_fallthru
        _
      // Predicated region
      $region93: #{dissipative_hamiltonian_derivation.2} parent=87 // pred_check
        %p2006 = pneg %p260
      $region94: #{dissipative_hamiltonian_derivation.2} parent=87 // pred_check_branch
        %2008 = sbr.rel (%p2006) target = $region96
      $region95: #{dissipative_hamiltonian_derivation.2} parent=87 // pred_region
        %s2009 = smul.u32 16, %s28
        %p2010 = scmp.lt.s32.totalorder %s2009, 31
        %s2011 = scalar_select %p2010, %s2009, 31
        %s2012 = smul.addr %s2011, 8
        %s2013 = scalar_lea.vmem %s9, %s2012
      $region96: #{dissipative_hamiltonian_derivation.2} parent=87 // pred_fallthru
        _
      // Predicated region
      $region97: #{dissipative_hamiltonian_derivation.2} parent=87 // pred_check
        %p2014 = pneg %p286
      $region98: #{dissipative_hamiltonian_derivation.2} parent=87 // pred_check_branch
        %2016 = sbr.rel (%p2014) target = $region100
      $region99: #{dissipative_hamiltonian_derivation.2} parent=87 // pred_region
        %s2017 = smul.u32 16, %s28
        %p2018 = scmp.lt.s32.totalorder %s2017, 31
        %s2019 = scalar_select %p2018, %s2017, 31
        %s2020 = smul.addr %s2019, 8
        %s2021 = scalar_lea.vmem %s10, %s2020
      $region100: #{dissipative_hamiltonian_derivation.2} parent=87 // pred_fallthru
        _
      // Predicated region
      $region101: #{dissipative_hamiltonian_derivation.2} parent=87 // pred_check
        %p2022 = pneg %p312
      $region102: #{dissipative_hamiltonian_derivation.2} parent=87 // pred_check_branch
        %2024 = sbr.rel (%p2022) target = $region104
      $region103: #{dissipative_hamiltonian_derivation.2} parent=87 // pred_region
        %s2025 = smul.u32 16, %s28
        %p2026 = scmp.lt.s32.totalorder %s2025, 31
        %s2027 = scalar_select %p2026, %s2025, 31
        %s2028 = smul.addr %s2027, 8
        %s2029 = scalar_lea.vmem %s11, %s2028
      $region104: #{dissipative_hamiltonian_derivation.2} parent=87 // pred_fallthru
        _
      // Predicated region
      $region105: #{dissipative_hamiltonian_derivation.2} parent=87 // pred_check
        %p2030 = pneg %p338
      $region106: #{dissipative_hamiltonian_derivation.2} parent=87 // pred_check_branch
        %2032 = sbr.rel (%p2030) target = $region108
      $region107: #{dissipative_hamiltonian_derivation.2} parent=87 // pred_region
        %s2033 = smul.u32 16, %s28
        %p2034 = scmp.lt.s32.totalorder %s2033, 31
        %s2035 = scalar_select %p2034, %s2033, 31
        %s2036 = smul.addr %s2035, 8
        %s2037 = scalar_lea.vmem %s12, %s2036
      $region108: #{dissipative_hamiltonian_derivation.2} parent=87 // pred_fallthru
        _
      // Predicated region
      $region109: #{dissipative_hamiltonian_derivation.2} parent=87 // pred_check
        %p2038 = pneg %p364
      $region110: #{dissipative_hamiltonian_derivation.2} parent=87 // pred_check_branch
        %2040 = sbr.rel (%p2038) target = $region112
      $region111: #{dissipative_hamiltonian_derivation.2} parent=87 // pred_region
        %s2041 = smul.u32 16, %s28
        %p2042 = scmp.lt.s32.totalorder %s2041, 31
        %s2043 = scalar_select %p2042, %s2041, 31
        %s2044 = smul.addr %s2043, 8
        %s2045 = scalar_lea.vmem %s13, %s2044
      $region112: #{dissipative_hamiltonian_derivation.2} parent=87 // pred_fallthru
        _
      // Predicated region
      $region113: #{dissipative_hamiltonian_derivation.2} parent=87 // pred_check
        %p2046 = pneg %p390
      $region114: #{dissipative_hamiltonian_derivation.2} parent=87 // pred_check_branch
        %2048 = sbr.rel (%p2046) target = $region116
      $region115: #{dissipative_hamiltonian_derivation.2} parent=87 // pred_region
        %s2049 = smul.u32 16, %s28
        %p2050 = scmp.lt.s32.totalorder %s2049, 31
        %s2051 = scalar_select %p2050, %s2049, 31
        %s2052 = smul.addr %s2051, 8
        %s2053 = scalar_lea.vmem %s14, %s2052
      $region116: #{dissipative_hamiltonian_derivation.2} parent=87 // pred_fallthru
        _
      // Predicated region
      $region117: #{dissipative_hamiltonian_derivation.2} parent=87 // pred_check
        %p2054 = pneg %p416
      $region118: #{dissipative_hamiltonian_derivation.2} parent=87 // pred_check_branch
        %2056 = sbr.rel (%p2054) target = $region120
      $region119: #{dissipative_hamiltonian_derivation.2} parent=87 // pred_region
        %s2057 = smul.u32 16, %s28
        %p2058 = scmp.lt.s32.totalorder %s2057, 31
        %s2059 = scalar_select %p2058, %s2057, 31
        %s2060 = smul.addr %s2059, 8
        %s2061 = scalar_lea.vmem %s15, %s2060
      $region120: #{dissipative_hamiltonian_derivation.2} parent=87 // pred_fallthru
        _
    $region88: #{dissipative_hamiltonian_derivation.2} parent=5 // pred_fallthru
      _
  $region6: #{dissipative_hamiltonian_derivation.2} parent=0 // loop_footer
    %s26 = sadd.s32 1, %s22
  $region7: #{dissipative_hamiltonian_derivation.2} parent=0 // loop_footer_branch
    %21 = sbr.rel target = $region3
  $region8: #{dissipative_hamiltonian_derivation.2} parent=0 // loop_exit
    _

// kernel: dissipative_hamiltonian_derivation.3
$region0: #{dissipative_hamiltonian_derivation.3}
  #allocation0 [shape = 'u32[]', space=smem, size = 0x4, offset = 0x4, fixed_abs, tag = 'smem constant byte address 0x4 - core index']
  #allocation1 [shape = 'u32[144,128]{1,0:T(1,128)}', space=vmem, size = 0x12000, scoped, tag = 'internal scratch']
  %s0 = inlined_call_operand.vmem [shape: f32[256,32], index: 0, kind: input, shape index: {}, may-alias: {0,5}]
  %s1 = inlined_call_operand.vmem [shape: f32[256,1], index: 1, kind: input, shape index: {}]
  %s2 = inlined_call_operand.vmem [shape: f32[256,8], index: 2, kind: input, shape index: {}]
  %s3 = inlined_call_operand.vmem [shape: f32[256,1], index: 3, kind: input, shape index: {}]
  %s4 = inlined_call_operand.vmem [shape: f32[256,4], index: 4, kind: input, shape index: {}]
  %s5 = inlined_call_operand.vmem [shape: f32[256,32], index: 5, kind: input, shape index: {}, may-alias: {0,5}]
  %s6 = inlined_call_operand.vmem [shape: f32[32,256], index: 6, kind: input, shape index: {}]
  %s7 = inlined_call_operand.vmem [shape: f32[1,256], index: 7, kind: input, shape index: {}]
  %s8 = inlined_call_operand.vmem [shape: f32[1,256], index: 8, kind: input, shape index: {}]
  %s9 = inlined_call_operand.vmem [shape: f32[1,256], index: 9, kind: input, shape index: {}]
  %s10 = inlined_call_operand.vmem [shape: f32[4,256], index: 10, kind: input, shape index: {}]
  %s11 = inlined_call_operand.vmem [shape: f32[32,8], index: 11, kind: input, shape index: {}]
  %s12 = inlined_call_operand.vmem [shape: f32[1,32], index: 12, kind: input, shape index: {}]
  %s13 = inlined_call_operand.vmem [shape: f32[256,1], index: 13, kind: output, shape index: {0}]
  %s14 = inlined_call_operand.vmem [shape: f32[256,8], index: 14, kind: output, shape index: {1}]
  %15 = xla_tuple %s13, %s14
  %s16 = sld [smem:[#allocation0]]
  $region93: #{dissipative_hamiltonian_derivation.3} parent=0
    _
  %s18 = ssub.s32 1, %s16
  %s19 = scalar_select 0, %s18, %s16
  loop: start=0, step=1, limit=4
  $region2: #{dissipative_hamiltonian_derivation.3} parent=0 // loop_pre_header
    _
  $region3: #{dissipative_hamiltonian_derivation.3} parent=0 // loop_header
    %s21 = sphi 0, %s25
    %p22 = scmp.ge.s32.totalorder %s21, 4
    %s31 = sphi 0, %s33
    %s34 = sphi 0, %s31
    %s35 = sphi 0, %s34
    %s51 = sphi 0, %s35
    %s57 = sphi 0, %s59
    %s60 = sphi 0, %s57
    %s61 = sphi 0, %s60
    %s77 = sphi 0, %s61
    %s83 = sphi 0, %s85
    %s86 = sphi 0, %s83
    %s87 = sphi 0, %s86
    %s103 = sphi 0, %s87
    %s109 = sphi 0, %s111
    %s112 = sphi 0, %s109
    %s113 = sphi 0, %s112
    %s129 = sphi 0, %s113
    %s135 = sphi 0, %s137
    %s138 = sphi 0, %s135
    %s139 = sphi 0, %s138
    %s155 = sphi 0, %s139
    %s159 = sphi 0, %s159
    %s161 = sphi 0, %s159
    %s162 = sphi 0, %s161
    %s176 = sphi 0, %s162
    %s180 = sphi 0, %s180
    %s182 = sphi 0, %s180
    %s183 = sphi 0, %s182
    %s197 = sphi 0, %s183
    %s201 = sphi 0, %s201
    %s203 = sphi 0, %s201
    %s204 = sphi 0, %s203
    %s218 = sphi 0, %s204
    %s222 = sphi 0, %s222
    %s224 = sphi 0, %s222
    %s225 = sphi 0, %s224
    %s239 = sphi 0, %s225
    %s243 = sphi 0, %s243
    %s245 = sphi 0, %s243
    %s246 = sphi 0, %s245
    %s260 = sphi 0, %s246
    %s264 = sphi 0, %s264
    %s266 = sphi 0, %s264
    %s267 = sphi 0, %s266
    %s281 = sphi 0, %s267
    %s285 = sphi 0, %s285
    %s287 = sphi 0, %s285
    %s288 = sphi 0, %s287
    %s302 = sphi 0, %s288
    %s306 = sphi 0, %s306
    %s308 = sphi 0, %s306
    %s309 = sphi 0, %s308
    %s323 = sphi 0, %s309
    %s329 = sphi 0, %s331
    %s332 = sphi 0, %s329
    %s333 = sphi 0, %s332
    %s349 = sphi 0, %s333
    %s355 = sphi 0, %s357
    %s358 = sphi 0, %s355
    %s359 = sphi 0, %s358
    %s375 = sphi 0, %s359
  $region4: #{dissipative_hamiltonian_derivation.3} parent=0 // loop_header_branch
    %24 = sbr.rel (%p22) target = $region8
  $region5: #{dissipative_hamiltonian_derivation.3} parent=0 // loop_body
    %s26 = ssub.s32 %s21, 1
    %s27 = ssub.s32 %s21, 2
    %s28 = sadd.s32 %s21, 1
    %s29 = ssub.s32 %s21, %s28
    %p30 = scmp.eq.s32.totalorder %s29, 0
    %s32 = sadd.s32 %s31, 1
    %s33 = scalar_select %p30, %s31, %s32
    %p36 = pneg %p30
    %p37 = scmp.eq.s32.totalorder %s21, 1
    %p38 = por %p36, %p37
    %p39 = scmp.ne.s32.totalorder %s31, %s34
    %p40 = scmp.eq.s32.totalorder %s21, 0
    %p41 = por %p39, %p40
    %p42 = scmp.ne.s32.totalorder %s31, %s34
    %p43 = scmp.eq.s32.totalorder %s26, 1
    %p44 = por %p42, %p43
    %p45 = scmp.ne.s32.totalorder %s34, %s35
    %p46 = scmp.eq.s32.totalorder %s26, 0
    %p47 = por %p45, %p46
    %p48 = scmp.ne.s32.totalorder %s34, %s35
    %p49 = scmp.eq.s32.totalorder %s27, 1
    %p50 = por %p48, %p49
    %p52 = scmp.ne.s32.totalorder %s35, %s51
    %p53 = scmp.eq.s32.totalorder %s27, 0
    %p54 = por %p52, %p53
    %s55 = ssub.s32 %s21, %s28
    %p56 = scmp.eq.s32.totalorder %s55, 0
    %s58 = sadd.s32 %s57, 1
    %s59 = scalar_select %p56, %s57, %s58
    %p62 = pneg %p56
    %p63 = scmp.eq.s32.totalorder %s21, 1
    %p64 = por %p62, %p63
    %p65 = scmp.ne.s32.totalorder %s57, %s60
    %p66 = scmp.eq.s32.totalorder %s21, 0
    %p67 = por %p65, %p66
    %p68 = scmp.ne.s32.totalorder %s57, %s60
    %p69 = scmp.eq.s32.totalorder %s26, 1
    %p70 = por %p68, %p69
    %p71 = scmp.ne.s32.totalorder %s60, %s61
    %p72 = scmp.eq.s32.totalorder %s26, 0
    %p73 = por %p71, %p72
    %p74 = scmp.ne.s32.totalorder %s60, %s61
    %p75 = scmp.eq.s32.totalorder %s27, 1
    %p76 = por %p74, %p75
    %p78 = scmp.ne.s32.totalorder %s61, %s77
    %p79 = scmp.eq.s32.totalorder %s27, 0
    %p80 = por %p78, %p79
    %s81 = ssub.s32 %s21, %s28
    %p82 = scmp.eq.s32.totalorder %s81, 0
    %s84 = sadd.s32 %s83, 1
    %s85 = scalar_select %p82, %s83, %s84
    %p88 = pneg %p82
    %p89 = scmp.eq.s32.totalorder %s21, 1
    %p90 = por %p88, %p89
    %p91 = scmp.ne.s32.totalorder %s83, %s86
    %p92 = scmp.eq.s32.totalorder %s21, 0
    %p93 = por %p91, %p92
    %p94 = scmp.ne.s32.totalorder %s83, %s86
    %p95 = scmp.eq.s32.totalorder %s26, 1
    %p96 = por %p94, %p95
    %p97 = scmp.ne.s32.totalorder %s86, %s87
    %p98 = scmp.eq.s32.totalorder %s26, 0
    %p99 = por %p97, %p98
    %p100 = scmp.ne.s32.totalorder %s86, %s87
    %p101 = scmp.eq.s32.totalorder %s27, 1
    %p102 = por %p100, %p101
    %p104 = scmp.ne.s32.totalorder %s87, %s103
    %p105 = scmp.eq.s32.totalorder %s27, 0
    %p106 = por %p104, %p105
    %s107 = ssub.s32 %s21, %s28
    %p108 = scmp.eq.s32.totalorder %s107, 0
    %s110 = sadd.s32 %s109, 1
    %s111 = scalar_select %p108, %s109, %s110
    %p114 = pneg %p108
    %p115 = scmp.eq.s32.totalorder %s21, 1
    %p116 = por %p114, %p115
    %p117 = scmp.ne.s32.totalorder %s109, %s112
    %p118 = scmp.eq.s32.totalorder %s21, 0
    %p119 = por %p117, %p118
    %p120 = scmp.ne.s32.totalorder %s109, %s112
    %p121 = scmp.eq.s32.totalorder %s26, 1
    %p122 = por %p120, %p121
    %p123 = scmp.ne.s32.totalorder %s112, %s113
    %p124 = scmp.eq.s32.totalorder %s26, 0
    %p125 = por %p123, %p124
    %p126 = scmp.ne.s32.totalorder %s112, %s113
    %p127 = scmp.eq.s32.totalorder %s27, 1
    %p128 = por %p126, %p127
    %p130 = scmp.ne.s32.totalorder %s113, %s129
    %p131 = scmp.eq.s32.totalorder %s27, 0
    %p132 = por %p130, %p131
    %s133 = ssub.s32 %s21, %s28
    %p134 = scmp.eq.s32.totalorder %s133, 0
    %s136 = sadd.s32 %s135, 1
    %s137 = scalar_select %p134, %s135, %s136
    %p140 = pneg %p134
    %p141 = scmp.eq.s32.totalorder %s21, 1
    %p142 = por %p140, %p141
    %p143 = scmp.ne.s32.totalorder %s135, %s138
    %p144 = scmp.eq.s32.totalorder %s21, 0
    %p145 = por %p143, %p144
    %p146 = scmp.ne.s32.totalorder %s135, %s138
    %p147 = scmp.eq.s32.totalorder %s26, 1
    %p148 = por %p146, %p147
    %p149 = scmp.ne.s32.totalorder %s138, %s139
    %p150 = scmp.eq.s32.totalorder %s26, 0
    %p151 = por %p149, %p150
    %p152 = scmp.ne.s32.totalorder %s138, %s139
    %p153 = scmp.eq.s32.totalorder %s27, 1
    %p154 = por %p152, %p153
    %p156 = scmp.ne.s32.totalorder %s139, %s155
    %p157 = scmp.eq.s32.totalorder %s27, 0
    %p158 = por %p156, %p157
    %s160 = sadd.s32 %s159, 1
    %p163 = scmp.eq.s32.totalorder %s21, 1
    %p164 = scmp.ne.s32.totalorder %s159, %s161
    %p165 = scmp.eq.s32.totalorder %s21, 0
    %p166 = por %p164, %p165
    %p167 = scmp.ne.s32.totalorder %s159, %s161
    %p168 = scmp.eq.s32.totalorder %s26, 1
    %p169 = por %p167, %p168
    %p170 = scmp.ne.s32.totalorder %s161, %s162
    %p171 = scmp.eq.s32.totalorder %s26, 0
    %p172 = por %p170, %p171
    %p173 = scmp.ne.s32.totalorder %s161, %s162
    %p174 = scmp.eq.s32.totalorder %s27, 1
    %p175 = por %p173, %p174
    %p177 = scmp.ne.s32.totalorder %s162, %s176
    %p178 = scmp.eq.s32.totalorder %s27, 0
    %p179 = por %p177, %p178
    %s181 = sadd.s32 %s180, 1
    %p184 = scmp.eq.s32.totalorder %s21, 1
    %p185 = scmp.ne.s32.totalorder %s180, %s182
    %p186 = scmp.eq.s32.totalorder %s21, 0
    %p187 = por %p185, %p186
    %p188 = scmp.ne.s32.totalorder %s180, %s182
    %p189 = scmp.eq.s32.totalorder %s26, 1
    %p190 = por %p188, %p189
    %p191 = scmp.ne.s32.totalorder %s182, %s183
    %p192 = scmp.eq.s32.totalorder %s26, 0
    %p193 = por %p191, %p192
    %p194 = scmp.ne.s32.totalorder %s182, %s183
    %p195 = scmp.eq.s32.totalorder %s27, 1
    %p196 = por %p194, %p195
    %p198 = scmp.ne.s32.totalorder %s183, %s197
    %p199 = scmp.eq.s32.totalorder %s27, 0
    %p200 = por %p198, %p199
    %s202 = sadd.s32 %s201, 1
    %p205 = scmp.eq.s32.totalorder %s21, 1
    %p206 = scmp.ne.s32.totalorder %s201, %s203
    %p207 = scmp.eq.s32.totalorder %s21, 0
    %p208 = por %p206, %p207
    %p209 = scmp.ne.s32.totalorder %s201, %s203
    %p210 = scmp.eq.s32.totalorder %s26, 1
    %p211 = por %p209, %p210
    %p212 = scmp.ne.s32.totalorder %s203, %s204
    %p213 = scmp.eq.s32.totalorder %s26, 0
    %p214 = por %p212, %p213
    %p215 = scmp.ne.s32.totalorder %s203, %s204
    %p216 = scmp.eq.s32.totalorder %s27, 1
    %p217 = por %p215, %p216
    %p219 = scmp.ne.s32.totalorder %s204, %s218
    %p220 = scmp.eq.s32.totalorder %s27, 0
    %p221 = por %p219, %p220
    %s223 = sadd.s32 %s222, 1
    %p226 = scmp.eq.s32.totalorder %s21, 1
    %p227 = scmp.ne.s32.totalorder %s222, %s224
    %p228 = scmp.eq.s32.totalorder %s21, 0
    %p229 = por %p227, %p228
    %p230 = scmp.ne.s32.totalorder %s222, %s224
    %p231 = scmp.eq.s32.totalorder %s26, 1
    %p232 = por %p230, %p231
    %p233 = scmp.ne.s32.totalorder %s224, %s225
    %p234 = scmp.eq.s32.totalorder %s26, 0
    %p235 = por %p233, %p234
    %p236 = scmp.ne.s32.totalorder %s224, %s225
    %p237 = scmp.eq.s32.totalorder %s27, 1
    %p238 = por %p236, %p237
    %p240 = scmp.ne.s32.totalorder %s225, %s239
    %p241 = scmp.eq.s32.totalorder %s27, 0
    %p242 = por %p240, %p241
    %s244 = sadd.s32 %s243, 1
    %p247 = scmp.eq.s32.totalorder %s21, 1
    %p248 = scmp.ne.s32.totalorder %s243, %s245
    %p249 = scmp.eq.s32.totalorder %s21, 0
    %p250 = por %p248, %p249
    %p251 = scmp.ne.s32.totalorder %s243, %s245
    %p252 = scmp.eq.s32.totalorder %s26, 1
    %p253 = por %p251, %p252
    %p254 = scmp.ne.s32.totalorder %s245, %s246
    %p255 = scmp.eq.s32.totalorder %s26, 0
    %p256 = por %p254, %p255
    %p257 = scmp.ne.s32.totalorder %s245, %s246
    %p258 = scmp.eq.s32.totalorder %s27, 1
    %p259 = por %p257, %p258
    %p261 = scmp.ne.s32.totalorder %s246, %s260
    %p262 = scmp.eq.s32.totalorder %s27, 0
    %p263 = por %p261, %p262
    %s265 = sadd.s32 %s264, 1
    %p268 = scmp.eq.s32.totalorder %s21, 1
    %p269 = scmp.ne.s32.totalorder %s264, %s266
    %p270 = scmp.eq.s32.totalorder %s21, 0
    %p271 = por %p269, %p270
    %p272 = scmp.ne.s32.totalorder %s264, %s266
    %p273 = scmp.eq.s32.totalorder %s26, 1
    %p274 = por %p272, %p273
    %p275 = scmp.ne.s32.totalorder %s266, %s267
    %p276 = scmp.eq.s32.totalorder %s26, 0
    %p277 = por %p275, %p276
    %p278 = scmp.ne.s32.totalorder %s266, %s267
    %p279 = scmp.eq.s32.totalorder %s27, 1
    %p280 = por %p278, %p279
    %p282 = scmp.ne.s32.totalorder %s267, %s281
    %p283 = scmp.eq.s32.totalorder %s27, 0
    %p284 = por %p282, %p283
    %s286 = sadd.s32 %s285, 1
    %p289 = scmp.eq.s32.totalorder %s21, 1
    %p290 = scmp.ne.s32.totalorder %s285, %s287
    %p291 = scmp.eq.s32.totalorder %s21, 0
    %p292 = por %p290, %p291
    %p293 = scmp.ne.s32.totalorder %s285, %s287
    %p294 = scmp.eq.s32.totalorder %s26, 1
    %p295 = por %p293, %p294
    %p296 = scmp.ne.s32.totalorder %s287, %s288
    %p297 = scmp.eq.s32.totalorder %s26, 0
    %p298 = por %p296, %p297
    %p299 = scmp.ne.s32.totalorder %s287, %s288
    %p300 = scmp.eq.s32.totalorder %s27, 1
    %p301 = por %p299, %p300
    %p303 = scmp.ne.s32.totalorder %s288, %s302
    %p304 = scmp.eq.s32.totalorder %s27, 0
    %p305 = por %p303, %p304
    %s307 = sadd.s32 %s306, 1
    %p310 = scmp.eq.s32.totalorder %s21, 1
    %p311 = scmp.ne.s32.totalorder %s306, %s308
    %p312 = scmp.eq.s32.totalorder %s21, 0
    %p313 = por %p311, %p312
    %p314 = scmp.ne.s32.totalorder %s306, %s308
    %p315 = scmp.eq.s32.totalorder %s26, 1
    %p316 = por %p314, %p315
    %p317 = scmp.ne.s32.totalorder %s308, %s309
    %p318 = scmp.eq.s32.totalorder %s26, 0
    %p319 = por %p317, %p318
    %p320 = scmp.ne.s32.totalorder %s308, %s309
    %p321 = scmp.eq.s32.totalorder %s27, 1
    %p322 = por %p320, %p321
    %p324 = scmp.ne.s32.totalorder %s309, %s323
    %p325 = scmp.eq.s32.totalorder %s27, 0
    %p326 = por %p324, %p325
    %s327 = ssub.s32 %s21, %s28
    %p328 = scmp.eq.s32.totalorder %s327, 0
    %s330 = sadd.s32 %s329, 1
    %s331 = scalar_select %p328, %s329, %s330
    %p334 = pneg %p328
    %p335 = scmp.eq.s32.totalorder %s21, 1
    %p336 = por %p334, %p335
    %p337 = scmp.ne.s32.totalorder %s329, %s332
    %p338 = scmp.eq.s32.totalorder %s21, 0
    %p339 = por %p337, %p338
    %p340 = scmp.ne.s32.totalorder %s329, %s332
    %p341 = scmp.eq.s32.totalorder %s26, 1
    %p342 = por %p340, %p341
    %p343 = scmp.ne.s32.totalorder %s332, %s333
    %p344 = scmp.eq.s32.totalorder %s26, 0
    %p345 = por %p343, %p344
    %p346 = scmp.ne.s32.totalorder %s332, %s333
    %p347 = scmp.eq.s32.totalorder %s27, 1
    %p348 = por %p346, %p347
    %p350 = scmp.ne.s32.totalorder %s333, %s349
    %p351 = scmp.eq.s32.totalorder %s27, 0
    %p352 = por %p350, %p351
    %s353 = ssub.s32 %s21, %s28
    %p354 = scmp.eq.s32.totalorder %s353, 0
    %s356 = sadd.s32 %s355, 1
    %s357 = scalar_select %p354, %s355, %s356
    %p360 = pneg %p354
    %p361 = scmp.eq.s32.totalorder %s21, 1
    %p362 = por %p360, %p361
    %p363 = scmp.ne.s32.totalorder %s355, %s358
    %p364 = scmp.eq.s32.totalorder %s21, 0
    %p365 = por %p363, %p364
    %p366 = scmp.ne.s32.totalorder %s355, %s358
    %p367 = scmp.eq.s32.totalorder %s26, 1
    %p368 = por %p366, %p367
    %p369 = scmp.ne.s32.totalorder %s358, %s359
    %p370 = scmp.eq.s32.totalorder %s26, 0
    %p371 = por %p369, %p370
    %p372 = scmp.ne.s32.totalorder %s358, %s359
    %p373 = scmp.eq.s32.totalorder %s27, 1
    %p374 = por %p372, %p373
    %p376 = scmp.ne.s32.totalorder %s359, %s375
    %p377 = scmp.eq.s32.totalorder %s27, 0
    %p378 = por %p376, %p377
    %p379 = scmp.le.s32.totalorder 1, %s21
    %p380 = scmp.lt.s32.totalorder %s21, 3
    %p381 = pnand %p379, %p380
    %p382 = pneg %p381
    // Predicated region
    $region9: #{dissipative_hamiltonian_derivation.3} parent=5 // pred_check
      _
    $region10: #{dissipative_hamiltonian_derivation.3} parent=5 // pred_check_branch
      %384 = sbr.rel (%p381) target = $region12
    $region11: #{dissipative_hamiltonian_derivation.3} parent=5 // pred_region
      %s385 = ssub.s32 %s21, 1
      // Predicated region
      $region13: #{dissipative_hamiltonian_derivation.3} parent=11 // pred_check
        %p386 = pneg %p172
      $region14: #{dissipative_hamiltonian_derivation.3} parent=11 // pred_check_branch
        %388 = sbr.rel (%p386) target = $region16
      $region15: #{dissipative_hamiltonian_derivation.3} parent=11 // pred_region
        _
      $region16: #{dissipative_hamiltonian_derivation.3} parent=11 // pred_fallthru
        _
      // Predicated region
      $region17: #{dissipative_hamiltonian_derivation.3} parent=11 // pred_check
        %p389 = pneg %p193
      $region18: #{dissipative_hamiltonian_derivation.3} parent=11 // pred_check_branch
        %391 = sbr.rel (%p389) target = $region20
      $region19: #{dissipative_hamiltonian_derivation.3} parent=11 // pred_region
        _
      $region20: #{dissipative_hamiltonian_derivation.3} parent=11 // pred_fallthru
        _
      // Predicated region
      $region21: #{dissipative_hamiltonian_derivation.3} parent=11 // pred_check
        %p392 = pneg %p214
      $region22: #{dissipative_hamiltonian_derivation.3} parent=11 // pred_check_branch
        %394 = sbr.rel (%p392) target = $region24
      $region23: #{dissipative_hamiltonian_derivation.3} parent=11 // pred_region
        _
      $region24: #{dissipative_hamiltonian_derivation.3} parent=11 // pred_fallthru
        _
      // Predicated region
      $region25: #{dissipative_hamiltonian_derivation.3} parent=11 // pred_check
        %p395 = pneg %p235
      $region26: #{dissipative_hamiltonian_derivation.3} parent=11 // pred_check_branch
        %397 = sbr.rel (%p395) target = $region28
      $region27: #{dissipative_hamiltonian_derivation.3} parent=11 // pred_region
        _
      $region28: #{dissipative_hamiltonian_derivation.3} parent=11 // pred_fallthru
        _
      // Predicated region
      $region29: #{dissipative_hamiltonian_derivation.3} parent=11 // pred_check
        %p398 = pneg %p256
      $region30: #{dissipative_hamiltonian_derivation.3} parent=11 // pred_check_branch
        %400 = sbr.rel (%p398) target = $region32
      $region31: #{dissipative_hamiltonian_derivation.3} parent=11 // pred_region
        _
      $region32: #{dissipative_hamiltonian_derivation.3} parent=11 // pred_fallthru
        _
      // Predicated region
      $region33: #{dissipative_hamiltonian_derivation.3} parent=11 // pred_check
        %p401 = pneg %p277
      $region34: #{dissipative_hamiltonian_derivation.3} parent=11 // pred_check_branch
        %403 = sbr.rel (%p401) target = $region36
      $region35: #{dissipative_hamiltonian_derivation.3} parent=11 // pred_region
        _
      $region36: #{dissipative_hamiltonian_derivation.3} parent=11 // pred_fallthru
        _
      // Predicated region
      $region37: #{dissipative_hamiltonian_derivation.3} parent=11 // pred_check
        %p404 = pneg %p298
      $region38: #{dissipative_hamiltonian_derivation.3} parent=11 // pred_check_branch
        %406 = sbr.rel (%p404) target = $region40
      $region39: #{dissipative_hamiltonian_derivation.3} parent=11 // pred_region
        _
      $region40: #{dissipative_hamiltonian_derivation.3} parent=11 // pred_fallthru
        _
      // Predicated region
      $region41: #{dissipative_hamiltonian_derivation.3} parent=11 // pred_check
        %p407 = pneg %p319
      $region42: #{dissipative_hamiltonian_derivation.3} parent=11 // pred_check_branch
        %409 = sbr.rel (%p407) target = $region44
      $region43: #{dissipative_hamiltonian_derivation.3} parent=11 // pred_region
        _
      $region44: #{dissipative_hamiltonian_derivation.3} parent=11 // pred_fallthru
        _
    $region12: #{dissipative_hamiltonian_derivation.3} parent=5 // pred_fallthru
      _
    %p410 = scmp.lt.s32.totalorder %s21, 2
    // Predicated region
    $region45: #{dissipative_hamiltonian_derivation.3} parent=5 // pred_check
      %p411 = pneg %p410
    $region46: #{dissipative_hamiltonian_derivation.3} parent=5 // pred_check_branch
      %413 = sbr.rel (%p411) target = $region48
    $region47: #{dissipative_hamiltonian_derivation.3} parent=5 // pred_region
      // Predicated region
      $region49: #{dissipative_hamiltonian_derivation.3} parent=47 // pred_check
        %p414 = pneg %p41
      $region50: #{dissipative_hamiltonian_derivation.3} parent=47 // pred_check_branch
        %416 = sbr.rel (%p414) target = $region52
      $region51: #{dissipative_hamiltonian_derivation.3} parent=47 // pred_region
        %s417 = smul.u32 16, %s21
        %p418 = scmp.lt.s32.totalorder %s417, 31
        %s419 = scalar_select %p418, %s417, 31
        %s420 = smul.addr %s419, 8
        %s421 = scalar_lea.vmem %s0, %s420
        %s422 = smul.u32 16, %s21
      $region52: #{dissipative_hamiltonian_derivation.3} parent=47 // pred_fallthru
        _
      // Predicated region
      $region53: #{dissipative_hamiltonian_derivation.3} parent=47 // pred_check
        %p423 = pneg %p67
      $region54: #{dissipative_hamiltonian_derivation.3} parent=47 // pred_check_branch
        %425 = sbr.rel (%p423) target = $region56
      $region55: #{dissipative_hamiltonian_derivation.3} parent=47 // pred_region
        %s426 = smul.u32 16, %s21
        %p427 = scmp.lt.s32.totalorder %s426, 31
        %s428 = scalar_select %p427, %s426, 31
        %s429 = smul.addr %s428, 8
        %s430 = scalar_lea.vmem %s1, %s429
        %s431 = smul.u32 16, %s21
      $region56: #{dissipative_hamiltonian_derivation.3} parent=47 // pred_fallthru
        _
      // Predicated region
      $region57: #{dissipative_hamiltonian_derivation.3} parent=47 // pred_check
        %p432 = pneg %p93
      $region58: #{dissipative_hamiltonian_derivation.3} parent=47 // pred_check_branch
        %434 = sbr.rel (%p432) target = $region60
      $region59: #{dissipative_hamiltonian_derivation.3} parent=47 // pred_region
        %s435 = smul.u32 16, %s21
        %p436 = scmp.lt.s32.totalorder %s435, 31
        %s437 = scalar_select %p436, %s435, 31
        %s438 = smul.addr %s437, 8
        %s439 = scalar_lea.vmem %s2, %s438
        %s440 = smul.u32 16, %s21
      $region60: #{dissipative_hamiltonian_derivation.3} parent=47 // pred_fallthru
        _
      // Predicated region
      $region61: #{dissipative_hamiltonian_derivation.3} parent=47 // pred_check
        %p441 = pneg %p119
      $region62: #{dissipative_hamiltonian_derivation.3} parent=47 // pred_check_branch
        %443 = sbr.rel (%p441) target = $region64
      $region63: #{dissipative_hamiltonian_derivation.3} parent=47 // pred_region
        %s444 = smul.u32 16, %s21
        %p445 = scmp.lt.s32.totalorder %s444, 31
        %s446 = scalar_select %p445, %s444, 31
        %s447 = smul.addr %s446, 8
        %s448 = scalar_lea.vmem %s3, %s447
        %s449 = smul.u32 16, %s21
      $region64: #{dissipative_hamiltonian_derivation.3} parent=47 // pred_fallthru
        _
      // Predicated region
      $region65: #{dissipative_hamiltonian_derivation.3} parent=47 // pred_check
        %p450 = pneg %p145
      $region66: #{dissipative_hamiltonian_derivation.3} parent=47 // pred_check_branch
        %452 = sbr.rel (%p450) target = $region68
      $region67: #{dissipative_hamiltonian_derivation.3} parent=47 // pred_region
        %s453 = smul.u32 16, %s21
        %p454 = scmp.lt.s32.totalorder %s453, 31
        %s455 = scalar_select %p454, %s453, 31
        %s456 = smul.addr %s455, 8
        %s457 = scalar_lea.vmem %s4, %s456
        %s458 = smul.u32 16, %s21
      $region68: #{dissipative_hamiltonian_derivation.3} parent=47 // pred_fallthru
        _
    $region48: #{dissipative_hamiltonian_derivation.3} parent=5 // pred_fallthru
      _
    %p459 = scmp.le.s32.totalorder 1, %s21
    %p460 = scmp.lt.s32.totalorder %s21, 3
    %p461 = pnand %p459, %p460
    %p462 = pneg %p461
    // Predicated region
    $region69: #{dissipative_hamiltonian_derivation.3} parent=5 // pred_check
      _
    $region70: #{dissipative_hamiltonian_derivation.3} parent=5 // pred_check_branch
      %464 = sbr.rel (%p461) target = $region72
    $region71: #{dissipative_hamiltonian_derivation.3} parent=5 // pred_region
      %s465 = ssub.s32 %s21, 1
      %s466 = smul.u32 16, %s26
      %p467 = scmp.lt.s32.totalorder %s466, 31
      %s468 = scalar_select %p467, %s466, 31
      %s469 = smul.addr %s468, 8
      %s470 = scalar_lea.vmem %s0, %s469
      %p471 = pneg %p47
      %p472 = pneg %p44
      %s473 = smul.u32 16, %s26
      %p474 = scmp.lt.s32.totalorder %s473, 31
      %s475 = scalar_select %p474, %s473, 31
      %s476 = smul.addr %s475, 8
      %s477 = scalar_lea.vmem %s1, %s476
      %p478 = pneg %p73
      %p479 = pneg %p70
      %s480 = smul.u32 16, %s26
      %p481 = scmp.lt.s32.totalorder %s480, 31
      %s482 = scalar_select %p481, %s480, 31
      %s483 = smul.addr %s482, 8
      %s484 = scalar_lea.vmem %s2, %s483
      %p485 = pneg %p99
      %p486 = pneg %p96
      %s487 = smul.u32 16, %s26
      %p488 = scmp.lt.s32.totalorder %s487, 31
      %s489 = scalar_select %p488, %s487, 31
      %s490 = smul.addr %s489, 8
      %s491 = scalar_lea.vmem %s3, %s490
      %p492 = pneg %p125
      %p493 = pneg %p122
      %s494 = smul.u32 16, %s26
      %p495 = scmp.lt.s32.totalorder %s494, 31
      %s496 = scalar_select %p495, %s494, 31
      %s497 = smul.addr %s496, 8
      %s498 = scalar_lea.vmem %s4, %s497
      %p499 = pneg %p151
      %p500 = pneg %p148
      %p501 = pneg %p172
      %p502 = pneg %p169
      %p503 = pneg %p193
      %p504 = pneg %p190
      %p505 = pneg %p214
      %p506 = pneg %p211
      %p507 = pneg %p235
      %p508 = pneg %p232
      %p509 = pneg %p256
      %p510 = pneg %p253
      %p511 = pneg %p277
      %p512 = pneg %p274
      %p513 = pneg %p298
      %p514 = pneg %p295
      %p515 = pneg %p319
      %p516 = pneg %p316
      %p517 = pneg %p345
      %p518 = pneg %p342
      %s519 = smul.u32 16, %s26
      %p520 = scmp.lt.s32.totalorder %s519, 31
      %s521 = scalar_select %p520, %s519, 31
      %s522 = smul.addr %s521, 8
      %s523 = scalar_lea.vmem %s13, %s522
      %p524 = pneg %p371
      %p525 = pneg %p368
      %s526 = smul.u32 16, %s26
      %p527 = scmp.lt.s32.totalorder %s526, 31
      %s528 = scalar_select %p527, %s526, 31
      %s529 = smul.addr %s528, 8
      %s530 = scalar_lea.vmem %s14, %s529
      %s531 = smul.u32 16, %s26
      %p532 = scmp.lt.s32.totalorder %s531, 31
      %s533 = scalar_select %p532, %s531, 31
      %s534 = smul.addr %s533, 8
      %s535 = scalar_lea.vmem %s0, %s534
      %s536 = smul.u32 16, %s26
      %s537 = smul.u32 16, %s26
      %p538 = scmp.lt.s32.totalorder %s537, 31
      %s539 = scalar_select %p538, %s537, 31
      %s540 = smul.addr %s539, 8
      %s541 = scalar_lea.vmem %s1, %s540
      %s542 = smul.u32 16, %s26
      %s543 = smul.u32 16, %s26
      %p544 = scmp.lt.s32.totalorder %s543, 31
      %s545 = scalar_select %p544, %s543, 31
      %s546 = smul.addr %s545, 8
      %s547 = scalar_lea.vmem %s2, %s546
      %s548 = smul.u32 16, %s26
      %s549 = smul.u32 16, %s26
      %p550 = scmp.lt.s32.totalorder %s549, 31
      %s551 = scalar_select %p550, %s549, 31
      %s552 = smul.addr %s551, 8
      %s553 = scalar_lea.vmem %s3, %s552
      %s554 = smul.u32 16, %s26
      %s555 = smul.u32 16, %s26
      %p556 = scmp.lt.s32.totalorder %s555, 31
      %s557 = scalar_select %p556, %s555, 31
      %s558 = smul.addr %s557, 8
      %s559 = scalar_lea.vmem %s4, %s558
      %s560 = smul.u32 16, %s26
      %s561 = smul.u32 16, %s26
      %p562 = scmp.lt.s32.totalorder %s561, 31
      %s563 = scalar_select %p562, %s561, 31
      %s564 = smul.addr %s563, 8
      %s565 = scalar_lea.vmem %s13, %s564
      %s566 = smul.u32 16, %s26
      %s567 = smul.u32 16, %s26
      %p568 = scmp.lt.s32.totalorder %s567, 31
      %s569 = scalar_select %p568, %s567, 31
      %s570 = smul.addr %s569, 8
      %s571 = scalar_lea.vmem %s14, %s570
      %s572 = smul.u32 16, %s26
      %v573 = vld [vmem:[%s535] sm:$0xff]
      %v574 = vld [vmem:[%s535 + $0x8] sm:$0xff]
      %v575 = vld [vmem:[%s535 + $0x10] sm:$0xff]
      %v576 = vld [vmem:[%s535 + $0x18] sm:$0xff]
      %v577 = vld [vmem:[%s535 + $0x20] sm:$0xff]
      %v578 = vld [vmem:[%s535 + $0x28] sm:$0xff]
      %v579 = vld [vmem:[%s535 + $0x30] sm:$0xff]
      %v580 = vld [vmem:[%s535 + $0x38] sm:$0xff]
      %v581 = vld [vmem:[%s535 + $0x40] sm:$0xff]
      %v582 = vld [vmem:[%s535 + $0x48] sm:$0xff]
      %v583 = vld [vmem:[%s535 + $0x50] sm:$0xff]
      %v584 = vld [vmem:[%s535 + $0x58] sm:$0xff]
      %v585 = vld [vmem:[%s535 + $0x60] sm:$0xff]
      %v586 = vld [vmem:[%s535 + $0x68] sm:$0xff]
      %v587 = vld [vmem:[%s535 + $0x70] sm:$0xff]
      %v588 = vld [vmem:[%s535 + $0x78] sm:$0xff]
      %v589 = vld [vmem:[%s12] sm:$0x1]
      %v591 = vlaneseq
      %v592 = vshrl.u32 %v591, 7
      %v593 = vsub.s32 0, %v592
      %v594 = vrot.slane %v589, %v593
      %v596 = vadd.f32 %v573, %v594
      %v597 = vadd.f32 %v574, %v594
      %v598 = vadd.f32 %v575, %v594
      %v599 = vadd.f32 %v576, %v594
      %v600 = vadd.f32 %v577, %v594
      %v601 = vadd.f32 %v578, %v594
      %v602 = vadd.f32 %v579, %v594
      %v603 = vadd.f32 %v580, %v594
      %v604 = vadd.f32 %v581, %v594
      %v605 = vadd.f32 %v582, %v594
      %v606 = vadd.f32 %v583, %v594
      %v607 = vadd.f32 %v584, %v594
      %v608 = vadd.f32 %v585, %v594
      %v609 = vadd.f32 %v586, %v594
      %v610 = vadd.f32 %v587, %v594
      %v611 = vadd.f32 %v588, %v594
      %v612 = vmul.f32 %v573, %v573
      %v613 = vmul.f32 %v574, %v574
      %v614 = vmul.f32 %v575, %v575
      %v615 = vmul.f32 %v576, %v576
      %v616 = vmul.f32 %v577, %v577
      %v617 = vmul.f32 %v578, %v578
      %v618 = vmul.f32 %v579, %v579
      %v619 = vmul.f32 %v580, %v580
      %v620 = vmul.f32 %v581, %v581
      %v621 = vmul.f32 %v582, %v582
      %v622 = vmul.f32 %v583, %v583
      %v623 = vmul.f32 %v584, %v584
      %v624 = vmul.f32 %v585, %v585
      %v625 = vmul.f32 %v586, %v586
      %v626 = vmul.f32 %v587, %v587
      %v627 = vmul.f32 %v588, %v588
      %vm628 = vcmask 261120
      %v629 = vsel %vm628, %v612, 0.0
      %630 = vadd.xlane.f32.xlu0 %v629
      %v631 = vpop.xlane.xlu0 %630
      %v632 = vsel %vm628, %v613, 0.0
      %633 = vadd.xlane.f32.xlu0 %v632
      %v634 = vpop.xlane.xlu0 %633
      %v635 = vsel %vm628, %v614, 0.0
      %636 = vadd.xlane.f32.xlu0 %v635
      %v637 = vpop.xlane.xlu0 %636
      %v638 = vsel %vm628, %v615, 0.0
      %639 = vadd.xlane.f32.xlu0 %v638
      %v640 = vpop.xlane.xlu0 %639
      %v641 = vsel %vm628, %v616, 0.0
      %642 = vadd.xlane.f32.xlu0 %v641
      %v643 = vpop.xlane.xlu0 %642
      %v644 = vsel %vm628, %v617, 0.0
      %645 = vadd.xlane.f32.xlu0 %v644
      %v646 = vpop.xlane.xlu0 %645
      %v647 = vsel %vm628, %v618, 0.0
      %648 = vadd.xlane.f32.xlu0 %v647
      %v649 = vpop.xlane.xlu0 %648
      %v650 = vsel %vm628, %v619, 0.0
      %651 = vadd.xlane.f32.xlu0 %v650
      %v652 = vpop.xlane.xlu0 %651
      %v653 = vsel %vm628, %v620, 0.0
      %654 = vadd.xlane.f32.xlu0 %v653
      %v655 = vpop.xlane.xlu0 %654
      %v656 = vsel %vm628, %v621, 0.0
      %657 = vadd.xlane.f32.xlu0 %v656
      %v658 = vpop.xlane.xlu0 %657
      %v659 = vsel %vm628, %v622, 0.0
      %660 = vadd.xlane.f32.xlu0 %v659
      %v661 = vpop.xlane.xlu0 %660
      %v662 = vsel %vm628, %v623, 0.0
      %663 = vadd.xlane.f32.xlu0 %v662
      %v664 = vpop.xlane.xlu0 %663
      %v665 = vsel %vm628, %v624, 0.0
      %666 = vadd.xlane.f32.xlu0 %v665
      %v667 = vpop.xlane.xlu0 %666
      %v668 = vsel %vm628, %v625, 0.0
      %669 = vadd.xlane.f32.xlu0 %v668
      %v670 = vpop.xlane.xlu0 %669
      %v671 = vsel %vm628, %v626, 0.0
      %672 = vadd.xlane.f32.xlu0 %v671
      %v673 = vpop.xlane.xlu0 %672
      %v674 = vsel %vm628, %v627, 0.0
      %675 = vadd.xlane.f32.xlu0 %v674
      %v676 = vpop.xlane.xlu0 %675
      %v677 = vmul.f32 %v596, %v596
      %v678 = vmul.f32 %v597, %v597
      %v679 = vmul.f32 %v598, %v598
      %v680 = vmul.f32 %v599, %v599
      %v681 = vmul.f32 %v600, %v600
      %v682 = vmul.f32 %v601, %v601
      %v683 = vmul.f32 %v602, %v602
      %v684 = vmul.f32 %v603, %v603
      %v685 = vmul.f32 %v604, %v604
      %v686 = vmul.f32 %v605, %v605
      %v687 = vmul.f32 %v606, %v606
      %v688 = vmul.f32 %v607, %v607
      %v689 = vmul.f32 %v608, %v608
      %v690 = vmul.f32 %v609, %v609
      %v691 = vmul.f32 %v610, %v610
      %v692 = vmul.f32 %v611, %v611
      %v693 = vsel %vm628, %v677, 0.0
      %694 = vadd.xlane.f32.xlu0 %v693
      %v695 = vpop.xlane.xlu0 %694
      %v696 = vsel %vm628, %v678, 0.0
      %697 = vadd.xlane.f32.xlu0 %v696
      %v698 = vpop.xlane.xlu0 %697
      %v699 = vsel %vm628, %v679, 0.0
      %700 = vadd.xlane.f32.xlu0 %v699
      %v701 = vpop.xlane.xlu0 %700
      %v702 = vsel %vm628, %v680, 0.0
      %703 = vadd.xlane.f32.xlu0 %v702
      %v704 = vpop.xlane.xlu0 %703
      %v705 = vsel %vm628, %v681, 0.0
      %706 = vadd.xlane.f32.xlu0 %v705
      %v707 = vpop.xlane.xlu0 %706
      %v708 = vsel %vm628, %v682, 0.0
      %709 = vadd.xlane.f32.xlu0 %v708
      %v710 = vpop.xlane.xlu0 %709
      %v711 = vsel %vm628, %v683, 0.0
      %712 = vadd.xlane.f32.xlu0 %v711
      %v713 = vpop.xlane.xlu0 %712
      %v714 = vsel %vm628, %v684, 0.0
      %715 = vadd.xlane.f32.xlu0 %v714
      %v716 = vpop.xlane.xlu0 %715
      %v717 = vsel %vm628, %v685, 0.0
      %718 = vadd.xlane.f32.xlu0 %v717
      %v719 = vpop.xlane.xlu0 %718
      %v720 = vsel %vm628, %v686, 0.0
      %721 = vadd.xlane.f32.xlu0 %v720
      %v722 = vpop.xlane.xlu0 %721
      %v723 = vsel %vm628, %v687, 0.0
      %724 = vadd.xlane.f32.xlu0 %v723
      %v725 = vpop.xlane.xlu0 %724
      %v726 = vsel %vm628, %v688, 0.0
      %727 = vadd.xlane.f32.xlu0 %v726
      %v728 = vpop.xlane.xlu0 %727
      %v729 = vsel %vm628, %v689, 0.0
      %730 = vadd.xlane.f32.xlu0 %v729
      %v731 = vpop.xlane.xlu0 %730
      %v732 = vsel %vm628, %v690, 0.0
      %733 = vadd.xlane.f32.xlu0 %v732
      %v734 = vpop.xlane.xlu0 %733
      %v735 = vsel %vm628, %v691, 0.0
      %736 = vadd.xlane.f32.xlu0 %v735
      %v737 = vpop.xlane.xlu0 %736
      %v738 = vsel %vm628, %v692, 0.0
      %739 = vadd.xlane.f32.xlu0 %v738
      %v740 = vpop.xlane.xlu0 %739
      %v741 = vmul.f32 %v573, %v594
      %v742 = vmul.f32 %v574, %v594
      %v743 = vmul.f32 %v575, %v594
      %v744 = vmul.f32 %v576, %v594
      %v745 = vmul.f32 %v577, %v594
      %v746 = vmul.f32 %v578, %v594
      %v747 = vmul.f32 %v579, %v594
      %v748 = vmul.f32 %v580, %v594
      %v749 = vmul.f32 %v581, %v594
      %v750 = vmul.f32 %v582, %v594
      %v751 = vmul.f32 %v583, %v594
      %v752 = vmul.f32 %v584, %v594
      %v753 = vmul.f32 %v585, %v594
      %v754 = vmul.f32 %v586, %v594
      %v755 = vmul.f32 %v587, %v594
      %v756 = vmul.f32 %v588, %v594
      %v757 = vsel %vm628, %v741, 0.0
      %758 = vadd.xlane.f32.xlu0 %v757
      %v759 = vpop.xlane.xlu0 %758
      %v760 = vsel %vm628, %v742, 0.0
      %761 = vadd.xlane.f32.xlu0 %v760
      %v762 = vpop.xlane.xlu0 %761
      %v763 = vsel %vm628, %v743, 0.0
      %764 = vadd.xlane.f32.xlu0 %v763
      %v765 = vpop.xlane.xlu0 %764
      %v766 = vsel %vm628, %v744, 0.0
      %767 = vadd.xlane.f32.xlu0 %v766
      %v768 = vpop.xlane.xlu0 %767
      %v769 = vsel %vm628, %v745, 0.0
      %770 = vadd.xlane.f32.xlu0 %v769
      %v771 = vpop.xlane.xlu0 %770
      %v772 = vsel %vm628, %v746, 0.0
      %773 = vadd.xlane.f32.xlu0 %v772
      %v774 = vpop.xlane.xlu0 %773
      %v775 = vsel %vm628, %v747, 0.0
      %776 = vadd.xlane.f32.xlu0 %v775
      %v777 = vpop.xlane.xlu0 %776
      %v778 = vsel %vm628, %v748, 0.0
      %779 = vadd.xlane.f32.xlu0 %v778
      %v780 = vpop.xlane.xlu0 %779
      %v781 = vsel %vm628, %v749, 0.0
      %782 = vadd.xlane.f32.xlu0 %v781
      %v783 = vpop.xlane.xlu0 %782
      %v784 = vsel %vm628, %v750, 0.0
      %785 = vadd.xlane.f32.xlu0 %v784
      %v786 = vpop.xlane.xlu0 %785
      %v787 = vsel %vm628, %v751, 0.0
      %788 = vadd.xlane.f32.xlu0 %v787
      %v789 = vpop.xlane.xlu0 %788
      %v790 = vsel %vm628, %v752, 0.0
      %791 = vadd.xlane.f32.xlu0 %v790
      %v792 = vpop.xlane.xlu0 %791
      %v793 = vsel %vm628, %v753, 0.0
      %794 = vadd.xlane.f32.xlu0 %v793
      %v795 = vpop.xlane.xlu0 %794
      %v796 = vsel %vm628, %v754, 0.0
      %797 = vadd.xlane.f32.xlu0 %v796
      %v798 = vpop.xlane.xlu0 %797
      %v799 = vsel %vm628, %v755, 0.0
      %800 = vadd.xlane.f32.xlu0 %v799
      %v801 = vpop.xlane.xlu0 %800
      %v802 = vsel %vm628, %v756, 0.0
      %803 = vadd.xlane.f32.xlu0 %v802
      %v804 = vpop.xlane.xlu0 %803
      %v805 = vld [vmem:[%s5] sm:$0xff]
      %v806 = vld [vmem:[%s5 + $0x8] sm:$0xff]
      %v807 = vld [vmem:[%s5 + $0x10] sm:$0xff]
      %v808 = vld [vmem:[%s5 + $0x18] sm:$0xff]
      %v809 = vld [vmem:[%s5 + $0x20] sm:$0xff]
      %v810 = vld [vmem:[%s5 + $0x28] sm:$0xff]
      %v811 = vld [vmem:[%s5 + $0x30] sm:$0xff]
      %v812 = vld [vmem:[%s5 + $0x38] sm:$0xff]
      %v813 = vld [vmem:[%s5 + $0x40] sm:$0xff]
      %v814 = vld [vmem:[%s5 + $0x48] sm:$0xff]
      %v815 = vld [vmem:[%s5 + $0x50] sm:$0xff]
      %v816 = vld [vmem:[%s5 + $0x58] sm:$0xff]
      %v817 = vld [vmem:[%s5 + $0x60] sm:$0xff]
      %v818 = vld [vmem:[%s5 + $0x68] sm:$0xff]
      %v819 = vld [vmem:[%s5 + $0x70] sm:$0xff]
      %v820 = vld [vmem:[%s5 + $0x78] sm:$0xff]
      %v821 = vld [vmem:[%s5 + $0x80] sm:$0xff]
      %v822 = vld [vmem:[%s5 + $0x88] sm:$0xff]
      %v823 = vld [vmem:[%s5 + $0x90] sm:$0xff]
      %v824 = vld [vmem:[%s5 + $0x98] sm:$0xff]
      %v825 = vld [vmem:[%s5 + $0xa0] sm:$0xff]
      %v826 = vld [vmem:[%s5 + $0xa8] sm:$0xff]
      %v827 = vld [vmem:[%s5 + $0xb0] sm:$0xff]
      %v828 = vld [vmem:[%s5 + $0xb8] sm:$0xff]
      %v829 = vld [vmem:[%s5 + $0xc0] sm:$0xff]
      %v830 = vld [vmem:[%s5 + $0xc8] sm:$0xff]
      %v831 = vld [vmem:[%s5 + $0xd0] sm:$0xff]
      %v832 = vld [vmem:[%s5 + $0xd8] sm:$0xff]
      %v833 = vld [vmem:[%s5 + $0xe0] sm:$0xff]
      %v834 = vld [vmem:[%s5 + $0xe8] sm:$0xff]
      %v835 = vld [vmem:[%s5 + $0xf0] sm:$0xff]
      %v836 = vld [vmem:[%s5 + $0xf8] sm:$0xff]
      %v837 = vld [vmem:[%s6] sm:$0xff]
      %v838 = vld [vmem:[%s6 + $0x8] sm:$0xff]
      %v839 = vld [vmem:[%s6 + $0x10] sm:$0xff]
      %v840 = vld [vmem:[%s6 + $0x18] sm:$0xff]
      %v841 = vld [vmem:[%s6 + $0x20] sm:$0xff]
      %v842 = vld [vmem:[%s6 + $0x28] sm:$0xff]
      %v843 = vld [vmem:[%s6 + $0x30] sm:$0xff]
      %v844 = vld [vmem:[%s6 + $0x38] sm:$0xff]
      %v846 = vsel %vm628, %v596, 0
      %v849 = vsel %vm628, %v597, 0
      %v852 = vsel %vm628, %v598, 0
      %v855 = vsel %vm628, %v599, 0
      %v858 = vsel %vm628, %v600, 0
      %v861 = vsel %vm628, %v601, 0
      %v864 = vsel %vm628, %v602, 0
      %v867 = vsel %vm628, %v603, 0
      %v870 = vsel %vm628, %v604, 0
      %v873 = vsel %vm628, %v605, 0
      %v876 = vsel %vm628, %v606, 0
      %v879 = vsel %vm628, %v607, 0
      %v882 = vsel %vm628, %v608, 0
      %v885 = vsel %vm628, %v609, 0
      %v888 = vsel %vm628, %v610, 0
      %v891 = vsel %vm628, %v611, 0
      %893 = vmatprep.subr.mxu0 %v838
      %894 = vmatpush1.msra.mxu0 %v837
      %895 = vmatprep.subr.mxu0 %v840
      %896 = vmatpush1.msra.mxu0 %v839
      %897 = vmatprep.subr.mxu0 %v842
      %898 = vmatpush1.msra.mxu0 %v841
      %899 = vmatprep.subr.mxu0 %v844
      %900 = vmatpush1.msra.mxu0 %v843
      %901 = vmatprep.subr.mxu0 0.0
      %902 = vmatpush1.msra.mxu0 0.0
      %903 = vmatprep.subr.mxu0 0.0
      %904 = vmatpush1.msra.mxu0 0.0
      %905 = vmatprep.subr.mxu0 0.0
      %906 = vmatpush1.msra.mxu0 0.0
      %907 = vmatprep.subr.mxu0 0.0
      %908 = vmatpush1.msra.mxu0 0.0
      %909 = vmatprep.subr.mxu0 0.0
      %910 = vmatpush1.msra.mxu0 0.0
      %911 = vmatprep.subr.mxu0 0.0
      %912 = vmatpush1.msra.mxu0 0.0
      %913 = vmatprep.subr.mxu0 0.0
      %914 = vmatpush1.msra.mxu0 0.0
      %915 = vmatprep.subr.mxu0 0.0
      %916 = vmatpush1.msra.mxu0 0.0
      %917 = vmatprep.subr.mxu0 0.0
      %918 = vmatpush1.msra.mxu0 0.0
      %919 = vmatprep.subr.mxu0 0.0
      %920 = vmatpush1.msra.mxu0 0.0
      %921 = vmatprep.subr.mxu0 0.0
      %922 = vmatpush1.msra.mxu0 0.0
      %923 = vmatprep.subr.mxu0 0.0
      %924 = vmatpush1.msra.mxu0 0.0
      %925 = vmatprep.subr.mxu0 0.0
      %926 = vmatpush1.msra.mxu0 0.0
      %927 = vmatprep.subr.mxu0 0.0
      %928 = vmatpush1.msra.mxu0 0.0
      %929 = vmatprep.subr.mxu0 0.0
      %930 = vmatpush1.msra.mxu0 0.0
      %931 = vmatprep.subr.mxu0 0.0
      %932 = vmatpush1.msra.mxu0 0.0
      %933 = vmatprep.subr.mxu0 0.0
      %934 = vmatpush1.msra.mxu0 0.0
      %935 = vmatprep.subr.mxu0 0.0
      %936 = vmatpush1.msra.mxu0 0.0
      %937 = vmatprep.subr.mxu0 0.0
      %938 = vmatpush1.msra.mxu0 0.0
      %939 = vmatprep.subr.mxu0 0.0
      %940 = vmatpush1.msra.mxu0 0.0
      %941 = vmatprep.subr.mxu0 0.0
      %942 = vmatpush1.msra.mxu0 0.0
      %943 = vmatprep.subr.mxu0 0.0
      %944 = vmatpush1.msra.mxu0 0.0
      %945 = vmatprep.subr.mxu0 0.0
      %946 = vmatpush1.msra.mxu0 0.0
      %947 = vmatprep.subr.mxu0 0.0
      %948 = vmatpush1.msra.mxu0 0.0
      %949 = vmatprep.subr.mxu0 0.0
      %950 = vmatpush1.msra.mxu0 0.0
      %951 = vmatprep.subr.mxu0 0.0
      %952 = vmatpush1.msra.mxu0 0.0
      %953 = vmatprep.subr.mxu0 0.0
      %954 = vmatpush1.msra.mxu0 0.0
      %955 = vmatprep.subr.mxu0 0.0
      %956 = vmatpush1.msra.mxu0 0.0
      %957 = vmatprep.mubr.f32.mxu0 0.0
      %958 = vmatmul.mubr.f32.gmra.mrb[0].mxu0 %v846
      %v959 = vpop.f32.mrb[0].mxu0
      %v960 = vadd.f32 0.0, %v959
      %v961 = vpop.f32.mrb[0].mxu0
      %v962 = vadd.f32 0.0, %v961
      %963 = vmatprep.mubr.f32.mxu0 0.0
      %964 = vmatmul.mubr.f32.gmra.mrb[0].mxu0 %v849
      %v965 = vpop.f32.mrb[0].mxu0
      %v966 = vadd.f32 0.0, %v965
      %v967 = vpop.f32.mrb[0].mxu0
      %v968 = vadd.f32 0.0, %v967
      %969 = vmatprep.mubr.f32.mxu0 0.0
      %970 = vmatmul.mubr.f32.gmra.mrb[0].mxu0 %v852
      %v971 = vpop.f32.mrb[0].mxu0
      %v972 = vadd.f32 0.0, %v971
      %v973 = vpop.f32.mrb[0].mxu0
      %v974 = vadd.f32 0.0, %v973
      %975 = vmatprep.mubr.f32.mxu0 0.0
      %976 = vmatmul.mubr.f32.gmra.mrb[0].mxu0 %v855
      %v977 = vpop.f32.mrb[0].mxu0
      %v978 = vadd.f32 0.0, %v977
      %v979 = vpop.f32.mrb[0].mxu0
      %v980 = vadd.f32 0.0, %v979
      %981 = vmatprep.mubr.f32.mxu0 0.0
      %982 = vmatmul.mubr.f32.gmra.mrb[0].mxu0 %v858
      %v983 = vpop.f32.mrb[0].mxu0
      %v984 = vadd.f32 0.0, %v983
      %v985 = vpop.f32.mrb[0].mxu0
      %v986 = vadd.f32 0.0, %v985
      %987 = vmatprep.mubr.f32.mxu0 0.0
      %988 = vmatmul.mubr.f32.gmra.mrb[0].mxu0 %v861
      %v989 = vpop.f32.mrb[0].mxu0
      %v990 = vadd.f32 0.0, %v989
      %v991 = vpop.f32.mrb[0].mxu0
      %v992 = vadd.f32 0.0, %v991
      %993 = vmatprep.mubr.f32.mxu0 0.0
      %994 = vmatmul.mubr.f32.gmra.mrb[0].mxu0 %v864
      %v995 = vpop.f32.mrb[0].mxu0
      %v996 = vadd.f32 0.0, %v995
      %v997 = vpop.f32.mrb[0].mxu0
      %v998 = vadd.f32 0.0, %v997
      %999 = vmatprep.mubr.f32.mxu0 0.0
      %1000 = vmatmul.mubr.f32.gmra.mrb[0].mxu0 %v867
      %v1001 = vpop.f32.mrb[0].mxu0
      %v1002 = vadd.f32 0.0, %v1001
      %v1003 = vpop.f32.mrb[0].mxu0
      %v1004 = vadd.f32 0.0, %v1003
      %1005 = vmatprep.mubr.f32.mxu0 0.0
      %1006 = vmatmul.mubr.f32.gmra.mrb[0].mxu0 %v870
      %v1007 = vpop.f32.mrb[0].mxu0
      %v1008 = vadd.f32 0.0, %v1007
      %v1009 = vpop.f32.mrb[0].mxu0
      %v1010 = vadd.f32 0.0, %v1009
      %1011 = vmatprep.mubr.f32.mxu0 0.0
      %1012 = vmatmul.mubr.f32.gmra.mrb[0].mxu0 %v873
      %v1013 = vpop.f32.mrb[0].mxu0
      %v1014 = vadd.f32 0.0, %v1013
      %v1015 = vpop.f32.mrb[0].mxu0
      %v1016 = vadd.f32 0.0, %v1015
      %1017 = vmatprep.mubr.f32.mxu0 0.0
      %1018 = vmatmul.mubr.f32.gmra.mrb[0].mxu0 %v876
      %v1019 = vpop.f32.mrb[0].mxu0
      %v1020 = vadd.f32 0.0, %v1019
      %v1021 = vpop.f32.mrb[0].mxu0
      %v1022 = vadd.f32 0.0, %v1021
      %1023 = vmatprep.mubr.f32.mxu0 0.0
      %1024 = vmatmul.mubr.f32.gmra.mrb[0].mxu0 %v879
      %v1025 = vpop.f32.mrb[0].mxu0
      %v1026 = vadd.f32 0.0, %v1025
      %v1027 = vpop.f32.mrb[0].mxu0
      %v1028 = vadd.f32 0.0, %v1027
      %1029 = vmatprep.mubr.f32.mxu0 0.0
      %1030 = vmatmul.mubr.f32.gmra.mrb[0].mxu0 %v882
      %v1031 = vpop.f32.mrb[0].mxu0
      %v1032 = vadd.f32 0.0, %v1031
      %v1033 = vpop.f32.mrb[0].mxu0
      %v1034 = vadd.f32 0.0, %v1033
      %1035 = vmatprep.mubr.f32.mxu0 0.0
      %1036 = vmatmul.mubr.f32.gmra.mrb[0].mxu0 %v885
      %v1037 = vpop.f32.mrb[0].mxu0
      %v1038 = vadd.f32 0.0, %v1037
      %v1039 = vpop.f32.mrb[0].mxu0
      %v1040 = vadd.f32 0.0, %v1039
      %1041 = vmatprep.mubr.f32.mxu0 0.0
      %1042 = vmatmul.mubr.f32.gmra.mrb[0].mxu0 %v888
      %v1043 = vpop.f32.mrb[0].mxu0
      %v1044 = vadd.f32 0.0, %v1043
      %v1045 = vpop.f32.mrb[0].mxu0
      %v1046 = vadd.f32 0.0, %v1045
      %1047 = vmatprep.mubr.f32.mxu0 0.0
      %1048 = vmatmul.mubr.f32.gmra.mrb[0].mxu0 %v891
      %v1049 = vpop.f32.mrb[0].mxu0
      %v1050 = vadd.f32 0.0, %v1049
      %v1051 = vpop.f32.mrb[0].mxu0
      %v1052 = vadd.f32 0.0, %v1051
      %1053 = vdwg.mxu0
      %v1054 = vld [vmem:[%s8] sm:$0x3]
      %v1056 = vlaneseq
      %v1057 = vshrl.u32 %v1056, 7
      %v1058 = vsub.s32 0, %v1057
      %v1059 = vrot.slane %v1054, %v1058
      %v1060 = vlaneseq
      %v1061 = vshrl.u32 %v1060, 7
      %v1062 = vsub.s32 1, %v1061
      %v1063 = vrot.slane %v1054, %v1062
      %v1066 = vadd.f32 %v631, %v1059
      %v1067 = vadd.f32 %v631, %v1063
      %v1068 = vadd.f32 %v634, %v1059
      %v1069 = vadd.f32 %v634, %v1063
      %v1070 = vadd.f32 %v637, %v1059
      %v1071 = vadd.f32 %v637, %v1063
      %v1072 = vadd.f32 %v640, %v1059
      %v1073 = vadd.f32 %v640, %v1063
      %v1074 = vadd.f32 %v643, %v1059
      %v1075 = vadd.f32 %v643, %v1063
      %v1076 = vadd.f32 %v646, %v1059
      %v1077 = vadd.f32 %v646, %v1063
      %v1078 = vadd.f32 %v649, %v1059
      %v1079 = vadd.f32 %v649, %v1063
      %v1080 = vadd.f32 %v652, %v1059
      %v1081 = vadd.f32 %v652, %v1063
      %v1082 = vadd.f32 %v655, %v1059
      %v1083 = vadd.f32 %v655, %v1063
      %v1084 = vadd.f32 %v658, %v1059
      %v1085 = vadd.f32 %v658, %v1063
      %v1086 = vadd.f32 %v661, %v1059
      %v1087 = vadd.f32 %v661, %v1063
      %v1088 = vadd.f32 %v664, %v1059
      %v1089 = vadd.f32 %v664, %v1063
      %v1090 = vadd.f32 %v667, %v1059
      %v1091 = vadd.f32 %v667, %v1063
      %v1092 = vadd.f32 %v670, %v1059
      %v1093 = vadd.f32 %v670, %v1063
      %v1094 = vadd.f32 %v673, %v1059
      %v1095 = vadd.f32 %v673, %v1063
      %v1096 = vadd.f32 %v676, %v1059
      %v1097 = vadd.f32 %v676, %v1063
      %v1099 = vsel %vm628, %v573, 0
      %v1102 = vsel %vm628, %v574, 0
      %v1105 = vsel %vm628, %v575, 0
      %v1108 = vsel %vm628, %v576, 0
      %v1111 = vsel %vm628, %v577, 0
      %v1114 = vsel %vm628, %v578, 0
      %v1117 = vsel %vm628, %v579, 0
      %v1120 = vsel %vm628, %v580, 0
      %v1123 = vsel %vm628, %v581, 0
      %v1126 = vsel %vm628, %v582, 0
      %v1129 = vsel %vm628, %v583, 0
      %v1132 = vsel %vm628, %v584, 0
      %v1135 = vsel %vm628, %v585, 0
      %v1138 = vsel %vm628, %v586, 0
      %v1141 = vsel %vm628, %v587, 0
      %v1144 = vsel %vm628, %v588, 0
      %1146 = vmatprep.subr.mxu0 %v838
      %1147 = vmatpush1.msra.mxu0 %v837
      %1148 = vmatprep.subr.mxu0 %v840
      %1149 = vmatpush1.msra.mxu0 %v839
      %1150 = vmatprep.subr.mxu0 %v842
      %1151 = vmatpush1.msra.mxu0 %v841
      %1152 = vmatprep.subr.mxu0 %v844
      %1153 = vmatpush1.msra.mxu0 %v843
      %1154 = vmatprep.subr.mxu0 0.0
      %1155 = vmatpush1.msra.mxu0 0.0
      %1156 = vmatprep.subr.mxu0 0.0
      %1157 = vmatpush1.msra.mxu0 0.0
      %1158 = vmatprep.subr.mxu0 0.0
      %1159 = vmatpush1.msra.mxu0 0.0
      %1160 = vmatprep.subr.mxu0 0.0
      %1161 = vmatpush1.msra.mxu0 0.0
      %1162 = vmatprep.subr.mxu0 0.0
      %1163 = vmatpush1.msra.mxu0 0.0
      %1164 = vmatprep.subr.mxu0 0.0
      %1165 = vmatpush1.msra.mxu0 0.0
      %1166 = vmatprep.subr.mxu0 0.0
      %1167 = vmatpush1.msra.mxu0 0.0
      %1168 = vmatprep.subr.mxu0 0.0
      %1169 = vmatpush1.msra.mxu0 0.0
      %1170 = vmatprep.subr.mxu0 0.0
      %1171 = vmatpush1.msra.mxu0 0.0
      %1172 = vmatprep.subr.mxu0 0.0
      %1173 = vmatpush1.msra.mxu0 0.0
      %1174 = vmatprep.subr.mxu0 0.0
      %1175 = vmatpush1.msra.mxu0 0.0
      %1176 = vmatprep.subr.mxu0 0.0
      %1177 = vmatpush1.msra.mxu0 0.0
      %1178 = vmatprep.subr.mxu0 0.0
      %1179 = vmatpush1.msra.mxu0 0.0
      %1180 = vmatprep.subr.mxu0 0.0
      %1181 = vmatpush1.msra.mxu0 0.0
      %1182 = vmatprep.subr.mxu0 0.0
      %1183 = vmatpush1.msra.mxu0 0.0
      %1184 = vmatprep.subr.mxu0 0.0
      %1185 = vmatpush1.msra.mxu0 0.0
      %1186 = vmatprep.subr.mxu0 0.0
      %1187 = vmatpush1.msra.mxu0 0.0
      %1188 = vmatprep.subr.mxu0 0.0
      %1189 = vmatpush1.msra.mxu0 0.0
      %1190 = vmatprep.subr.mxu0 0.0
      %1191 = vmatpush1.msra.mxu0 0.0
      %1192 = vmatprep.subr.mxu0 0.0
      %1193 = vmatpush1.msra.mxu0 0.0
      %1194 = vmatprep.subr.mxu0 0.0
      %1195 = vmatpush1.msra.mxu0 0.0
      %1196 = vmatprep.subr.mxu0 0.0
      %1197 = vmatpush1.msra.mxu0 0.0
      %1198 = vmatprep.subr.mxu0 0.0
      %1199 = vmatpush1.msra.mxu0 0.0
      %1200 = vmatprep.subr.mxu0 0.0
      %1201 = vmatpush1.msra.mxu0 0.0
      %1202 = vmatprep.subr.mxu0 0.0
      %1203 = vmatpush1.msra.mxu0 0.0
      %1204 = vmatprep.subr.mxu0 0.0
      %1205 = vmatpush1.msra.mxu0 0.0
      %1206 = vmatprep.subr.mxu0 0.0
      %1207 = vmatpush1.msra.mxu0 0.0
      %1208 = vmatprep.subr.mxu0 0.0
      %1209 = vmatpush1.msra.mxu0 0.0
      %1210 = vmatprep.mubr.f32.mxu0 0.0
      %1211 = vmatmul.mubr.f32.gmra.mrb[0].mxu0 %v1099
      %v1212 = vpop.f32.mrb[0].mxu0
      %v1213 = vadd.f32 %v759, %v1212
      %v1214 = vpop.f32.mrb[0].mxu0
      %v1215 = vadd.f32 %v759, %v1214
      %1216 = vmatprep.mubr.f32.mxu0 0.0
      %1217 = vmatmul.mubr.f32.gmra.mrb[0].mxu0 %v1102
      %v1218 = vpop.f32.mrb[0].mxu0
      %v1219 = vadd.f32 %v762, %v1218
      %v1220 = vpop.f32.mrb[0].mxu0
      %v1221 = vadd.f32 %v762, %v1220
      %1222 = vmatprep.mubr.f32.mxu0 0.0
      %1223 = vmatmul.mubr.f32.gmra.mrb[0].mxu0 %v1105
      %v1224 = vpop.f32.mrb[0].mxu0
      %v1225 = vadd.f32 %v765, %v1224
      %v1226 = vpop.f32.mrb[0].mxu0
      %v1227 = vadd.f32 %v765, %v1226
      %1228 = vmatprep.mubr.f32.mxu0 0.0
      %1229 = vmatmul.mubr.f32.gmra.mrb[0].mxu0 %v1108
      %v1230 = vpop.f32.mrb[0].mxu0
      %v1231 = vadd.f32 %v768, %v1230
      %v1232 = vpop.f32.mrb[0].mxu0
      %v1233 = vadd.f32 %v768, %v1232
      %1234 = vmatprep.mubr.f32.mxu0 0.0
      %1235 = vmatmul.mubr.f32.gmra.mrb[0].mxu0 %v1111
      %v1236 = vpop.f32.mrb[0].mxu0
      %v1237 = vadd.f32 %v771, %v1236
      %v1238 = vpop.f32.mrb[0].mxu0
      %v1239 = vadd.f32 %v771, %v1238
      %1240 = vmatprep.mubr.f32.mxu0 0.0
      %1241 = vmatmul.mubr.f32.gmra.mrb[0].mxu0 %v1114
      %v1242 = vpop.f32.mrb[0].mxu0
      %v1243 = vadd.f32 %v774, %v1242
      %v1244 = vpop.f32.mrb[0].mxu0
      %v1245 = vadd.f32 %v774, %v1244
      %1246 = vmatprep.mubr.f32.mxu0 0.0
      %1247 = vmatmul.mubr.f32.gmra.mrb[0].mxu0 %v1117
      %v1248 = vpop.f32.mrb[0].mxu0
      %v1249 = vadd.f32 %v777, %v1248
      %v1250 = vpop.f32.mrb[0].mxu0
      %v1251 = vadd.f32 %v777, %v1250
      %1252 = vmatprep.mubr.f32.mxu0 0.0
      %1253 = vmatmul.mubr.f32.gmra.mrb[0].mxu0 %v1120
      %v1254 = vpop.f32.mrb[0].mxu0
      %v1255 = vadd.f32 %v780, %v1254
      %v1256 = vpop.f32.mrb[0].mxu0
      %v1257 = vadd.f32 %v780, %v1256
      %1258 = vmatprep.mubr.f32.mxu0 0.0
      %1259 = vmatmul.mubr.f32.gmra.mrb[0].mxu0 %v1123
      %v1260 = vpop.f32.mrb[0].mxu0
      %v1261 = vadd.f32 %v783, %v1260
      %v1262 = vpop.f32.mrb[0].mxu0
      %v1263 = vadd.f32 %v783, %v1262
      %1264 = vmatprep.mubr.f32.mxu0 0.0
      %1265 = vmatmul.mubr.f32.gmra.mrb[0].mxu0 %v1126
      %v1266 = vpop.f32.mrb[0].mxu0
      %v1267 = vadd.f32 %v786, %v1266
      %v1268 = vpop.f32.mrb[0].mxu0
      %v1269 = vadd.f32 %v786, %v1268
      %1270 = vmatprep.mubr.f32.mxu0 0.0
      %1271 = vmatmul.mubr.f32.gmra.mrb[0].mxu0 %v1129
      %v1272 = vpop.f32.mrb[0].mxu0
      %v1273 = vadd.f32 %v789, %v1272
      %v1274 = vpop.f32.mrb[0].mxu0
      %v1275 = vadd.f32 %v789, %v1274
      %1276 = vmatprep.mubr.f32.mxu0 0.0
      %1277 = vmatmul.mubr.f32.gmra.mrb[0].mxu0 %v1132
      %v1278 = vpop.f32.mrb[0].mxu0
      %v1279 = vadd.f32 %v792, %v1278
      %v1280 = vpop.f32.mrb[0].mxu0
      %v1281 = vadd.f32 %v792, %v1280
      %1282 = vmatprep.mubr.f32.mxu0 0.0
      %1283 = vmatmul.mubr.f32.gmra.mrb[0].mxu0 %v1135
      %v1284 = vpop.f32.mrb[0].mxu0
      %v1285 = vadd.f32 %v795, %v1284
      %v1286 = vpop.f32.mrb[0].mxu0
      %v1287 = vadd.f32 %v795, %v1286
      %1288 = vmatprep.mubr.f32.mxu0 0.0
      %1289 = vmatmul.mubr.f32.gmra.mrb[0].mxu0 %v1138
      %v1290 = vpop.f32.mrb[0].mxu0
      %v1291 = vadd.f32 %v798, %v1290
      %v1292 = vpop.f32.mrb[0].mxu0
      %v1293 = vadd.f32 %v798, %v1292
      %1294 = vmatprep.mubr.f32.mxu0 0.0
      %1295 = vmatmul.mubr.f32.gmra.mrb[0].mxu0 %v1141
      %v1296 = vpop.f32.mrb[0].mxu0
      %v1297 = vadd.f32 %v801, %v1296
      %v1298 = vpop.f32.mrb[0].mxu0
      %v1299 = vadd.f32 %v801, %v1298
      %1300 = vmatprep.mubr.f32.mxu0 0.0
      %1301 = vmatmul.mubr.f32.gmra.mrb[0].mxu0 %v1144
      %v1302 = vpop.f32.mrb[0].mxu0
      %v1303 = vadd.f32 %v804, %v1302
      %v1304 = vpop.f32.mrb[0].mxu0
      %v1305 = vadd.f32 %v804, %v1304
      %1306 = vdwg.mxu0
      %v1307 = vmul.f32 %v1213, 2.0
      %v1308 = vmul.f32 %v1215, 2.0
      %v1309 = vmul.f32 %v1219, 2.0
      %v1310 = vmul.f32 %v1221, 2.0
      %v1311 = vmul.f32 %v1225, 2.0
      %v1312 = vmul.f32 %v1227, 2.0
      %v1313 = vmul.f32 %v1231, 2.0
      %v1314 = vmul.f32 %v1233, 2.0
      %v1315 = vmul.f32 %v1237, 2.0
      %v1316 = vmul.f32 %v1239, 2.0
      %v1317 = vmul.f32 %v1243, 2.0
      %v1318 = vmul.f32 %v1245, 2.0
      %v1319 = vmul.f32 %v1249, 2.0
      %v1320 = vmul.f32 %v1251, 2.0
      %v1321 = vmul.f32 %v1255, 2.0
      %v1322 = vmul.f32 %v1257, 2.0
      %v1323 = vmul.f32 %v1261, 2.0
      %v1324 = vmul.f32 %v1263, 2.0
      %v1325 = vmul.f32 %v1267, 2.0
      %v1326 = vmul.f32 %v1269, 2.0
      %v1327 = vmul.f32 %v1273, 2.0
      %v1328 = vmul.f32 %v1275, 2.0
      %v1329 = vmul.f32 %v1279, 2.0
      %v1330 = vmul.f32 %v1281, 2.0
      %v1331 = vmul.f32 %v1285, 2.0
      %v1332 = vmul.f32 %v1287, 2.0
      %v1333 = vmul.f32 %v1291, 2.0
      %v1334 = vmul.f32 %v1293, 2.0
      %v1335 = vmul.f32 %v1297, 2.0
      %v1336 = vmul.f32 %v1299, 2.0
      %v1337 = vmul.f32 %v1303, 2.0
      %v1338 = vmul.f32 %v1305, 2.0
      %v1339 = vsub.f32 %v1066, %v1307
      %v1340 = vsub.f32 %v1067, %v1308
      %v1341 = vsub.f32 %v1068, %v1309
      %v1342 = vsub.f32 %v1069, %v1310
      %v1343 = vsub.f32 %v1070, %v1311
      %v1344 = vsub.f32 %v1071, %v1312
      %v1345 = vsub.f32 %v1072, %v1313
      %v1346 = vsub.f32 %v1073, %v1314
      %v1347 = vsub.f32 %v1074, %v1315
      %v1348 = vsub.f32 %v1075, %v1316
      %v1349 = vsub.f32 %v1076, %v1317
      %v1350 = vsub.f32 %v1077, %v1318
      %v1351 = vsub.f32 %v1078, %v1319
      %v1352 = vsub.f32 %v1079, %v1320
      %v1353 = vsub.f32 %v1080, %v1321
      %v1354 = vsub.f32 %v1081, %v1322
      %v1355 = vsub.f32 %v1082, %v1323
      %v1356 = vsub.f32 %v1083, %v1324
      %v1357 = vsub.f32 %v1084, %v1325
      %v1358 = vsub.f32 %v1085, %v1326
      %v1359 = vsub.f32 %v1086, %v1327
      %v1360 = vsub.f32 %v1087, %v1328
      %v1361 = vsub.f32 %v1088, %v1329
      %v1362 = vsub.f32 %v1089, %v1330
      %v1363 = vsub.f32 %v1090, %v1331
      %v1364 = vsub.f32 %v1091, %v1332
      %v1365 = vsub.f32 %v1092, %v1333
      %v1366 = vsub.f32 %v1093, %v1334
      %v1367 = vsub.f32 %v1094, %v1335
      %v1368 = vsub.f32 %v1095, %v1336
      %v1369 = vsub.f32 %v1096, %v1337
      %v1370 = vsub.f32 %v1097, %v1338
      %v1371 = vld [vmem:[%s7] sm:$0x3]
      %v1373 = vlaneseq
      %v1374 = vshrl.u32 %v1373, 7
      %v1375 = vsub.s32 0, %v1374
      %v1376 = vrot.slane %v1371, %v1375
      %v1377 = vlaneseq
      %v1378 = vshrl.u32 %v1377, 7
      %v1379 = vsub.s32 1, %v1378
      %v1380 = vrot.slane %v1371, %v1379
      %v1383 = vadd.f32 %v695, %v1376
      %v1384 = vadd.f32 %v695, %v1380
      %v1385 = vadd.f32 %v698, %v1376
      %v1386 = vadd.f32 %v698, %v1380
      %v1387 = vadd.f32 %v701, %v1376
      %v1388 = vadd.f32 %v701, %v1380
      %v1389 = vadd.f32 %v704, %v1376
      %v1390 = vadd.f32 %v704, %v1380
      %v1391 = vadd.f32 %v707, %v1376
      %v1392 = vadd.f32 %v707, %v1380
      %v1393 = vadd.f32 %v710, %v1376
      %v1394 = vadd.f32 %v710, %v1380
      %v1395 = vadd.f32 %v713, %v1376
      %v1396 = vadd.f32 %v713, %v1380
      %v1397 = vadd.f32 %v716, %v1376
      %v1398 = vadd.f32 %v716, %v1380
      %v1399 = vadd.f32 %v719, %v1376
      %v1400 = vadd.f32 %v719, %v1380
      %v1401 = vadd.f32 %v722, %v1376
      %v1402 = vadd.f32 %v722, %v1380
      %v1403 = vadd.f32 %v725, %v1376
      %v1404 = vadd.f32 %v725, %v1380
      %v1405 = vadd.f32 %v728, %v1376
      %v1406 = vadd.f32 %v728, %v1380
      %v1407 = vadd.f32 %v731, %v1376
      %v1408 = vadd.f32 %v731, %v1380
      %v1409 = vadd.f32 %v734, %v1376
      %v1410 = vadd.f32 %v734, %v1380
      %v1411 = vadd.f32 %v737, %v1376
      %v1412 = vadd.f32 %v737, %v1380
      %v1413 = vadd.f32 %v740, %v1376
      %v1414 = vadd.f32 %v740, %v1380
      %v1415 = vmul.f32 %v960, 2.0
      %v1416 = vmul.f32 %v962, 2.0
      %v1417 = vmul.f32 %v966, 2.0
      %v1418 = vmul.f32 %v968, 2.0
      %v1419 = vmul.f32 %v972, 2.0
      %v1420 = vmul.f32 %v974, 2.0
      %v1421 = vmul.f32 %v978, 2.0
      %v1422 = vmul.f32 %v980, 2.0
      %v1423 = vmul.f32 %v984, 2.0
      %v1424 = vmul.f32 %v986, 2.0
      %v1425 = vmul.f32 %v990, 2.0
      %v1426 = vmul.f32 %v992, 2.0
      %v1427 = vmul.f32 %v996, 2.0
      %v1428 = vmul.f32 %v998, 2.0
      %v1429 = vmul.f32 %v1002, 2.0
      %v1430 = vmul.f32 %v1004, 2.0
      %v1431 = vmul.f32 %v1008, 2.0
      %v1432 = vmul.f32 %v1010, 2.0
      %v1433 = vmul.f32 %v1014, 2.0
      %v1434 = vmul.f32 %v1016, 2.0
      %v1435 = vmul.f32 %v1020, 2.0
      %v1436 = vmul.f32 %v1022, 2.0
      %v1437 = vmul.f32 %v1026, 2.0
      %v1438 = vmul.f32 %v1028, 2.0
      %v1439 = vmul.f32 %v1032, 2.0
      %v1440 = vmul.f32 %v1034, 2.0
      %v1441 = vmul.f32 %v1038, 2.0
      %v1442 = vmul.f32 %v1040, 2.0
      %v1443 = vmul.f32 %v1044, 2.0
      %v1444 = vmul.f32 %v1046, 2.0
      %v1445 = vmul.f32 %v1050, 2.0
      %v1446 = vmul.f32 %v1052, 2.0
      %v1447 = vsub.f32 %v1383, %v1415
      %v1448 = vsub.f32 %v1384, %v1416
      %v1449 = vsub.f32 %v1385, %v1417
      %v1450 = vsub.f32 %v1386, %v1418
      %v1451 = vsub.f32 %v1387, %v1419
      %v1452 = vsub.f32 %v1388, %v1420
      %v1453 = vsub.f32 %v1389, %v1421
      %v1454 = vsub.f32 %v1390, %v1422
      %v1455 = vsub.f32 %v1391, %v1423
      %v1456 = vsub.f32 %v1392, %v1424
      %v1457 = vsub.f32 %v1393, %v1425
      %v1458 = vsub.f32 %v1394, %v1426
      %v1459 = vsub.f32 %v1395, %v1427
      %v1460 = vsub.f32 %v1396, %v1428
      %v1461 = vsub.f32 %v1397, %v1429
      %v1462 = vsub.f32 %v1398, %v1430
      %v1463 = vsub.f32 %v1399, %v1431
      %v1464 = vsub.f32 %v1400, %v1432
      %v1465 = vsub.f32 %v1401, %v1433
      %v1466 = vsub.f32 %v1402, %v1434
      %v1467 = vsub.f32 %v1403, %v1435
      %v1468 = vsub.f32 %v1404, %v1436
      %v1469 = vsub.f32 %v1405, %v1437
      %v1470 = vsub.f32 %v1406, %v1438
      %v1471 = vsub.f32 %v1407, %v1439
      %v1472 = vsub.f32 %v1408, %v1440
      %v1473 = vsub.f32 %v1409, %v1441
      %v1474 = vsub.f32 %v1410, %v1442
      %v1475 = vsub.f32 %v1411, %v1443
      %v1476 = vsub.f32 %v1412, %v1444
      %v1477 = vsub.f32 %v1413, %v1445
      %v1478 = vsub.f32 %v1414, %v1446
      %v1479 = vld [vmem:[%s559] sm:$0xff]
      %v1480 = vld [vmem:[%s559 + $0x8] sm:$0xff]
      %v1481 = vld [vmem:[%s559 + $0x10] sm:$0xff]
      %v1482 = vld [vmem:[%s559 + $0x18] sm:$0xff]
      %v1483 = vld [vmem:[%s559 + $0x20] sm:$0xff]
      %v1484 = vld [vmem:[%s559 + $0x28] sm:$0xff]
      %v1485 = vld [vmem:[%s559 + $0x30] sm:$0xff]
      %v1486 = vld [vmem:[%s559 + $0x38] sm:$0xff]
      %v1487 = vld [vmem:[%s559 + $0x40] sm:$0xff]
      %v1488 = vld [vmem:[%s559 + $0x48] sm:$0xff]
      %v1489 = vld [vmem:[%s559 + $0x50] sm:$0xff]
      %v1490 = vld [vmem:[%s559 + $0x58] sm:$0xff]
      %v1491 = vld [vmem:[%s559 + $0x60] sm:$0xff]
      %v1492 = vld [vmem:[%s559 + $0x68] sm:$0xff]
      %v1493 = vld [vmem:[%s559 + $0x70] sm:$0xff]
      %v1494 = vld [vmem:[%s559 + $0x78] sm:$0xff]
      %v1495 = vld [vmem:[%s10] sm:$0xff]
      %v1497 = vcombine.high %v1495, %v1495
      %vm1498 = vcmask 31744
      %v1500 = vsel %vm1498, %v1479, 0
      %v1503 = vsel %vm1498, %v1480, 0
      %v1506 = vsel %vm1498, %v1481, 0
      %v1509 = vsel %vm1498, %v1482, 0
      %v1512 = vsel %vm1498, %v1483, 0
      %v1515 = vsel %vm1498, %v1484, 0
      %v1518 = vsel %vm1498, %v1485, 0
      %v1521 = vsel %vm1498, %v1486, 0
      %v1524 = vsel %vm1498, %v1487, 0
      %v1527 = vsel %vm1498, %v1488, 0
      %v1530 = vsel %vm1498, %v1489, 0
      %v1533 = vsel %vm1498, %v1490, 0
      %v1536 = vsel %vm1498, %v1491, 0
      %v1539 = vsel %vm1498, %v1492, 0
      %v1542 = vsel %vm1498, %v1493, 0
      %v1545 = vsel %vm1498, %v1494, 0
      %vm1547 = vcmask 1043456
      %v1548 = vsel %vm1547, %v1495, 0
      %v1550 = vsel %vm1547, %v1497, 0
      %1552 = vmatprep.subr.mxu0 %v1550
      %1553 = vmatpush1.msra.mxu0 %v1548
      %1554 = vmatprep.subr.mxu0 0.0
      %1555 = vmatpush1.msra.mxu0 0.0
      %1556 = vmatprep.subr.mxu0 0.0
      %1557 = vmatpush1.msra.mxu0 0.0
      %1558 = vmatprep.subr.mxu0 0.0
      %1559 = vmatpush1.msra.mxu0 0.0
      %1560 = vmatprep.subr.mxu0 0.0
      %1561 = vmatpush1.msra.mxu0 0.0
      %1562 = vmatprep.subr.mxu0 0.0
      %1563 = vmatpush1.msra.mxu0 0.0
      %1564 = vmatprep.subr.mxu0 0.0
      %1565 = vmatpush1.msra.mxu0 0.0
      %1566 = vmatprep.subr.mxu0 0.0
      %1567 = vmatpush1.msra.mxu0 0.0
      %1568 = vmatprep.subr.mxu0 0.0
      %1569 = vmatpush1.msra.mxu0 0.0
      %1570 = vmatprep.subr.mxu0 0.0
      %1571 = vmatpush1.msra.mxu0 0.0
      %1572 = vmatprep.subr.mxu0 0.0
      %1573 = vmatpush1.msra.mxu0 0.0
      %1574 = vmatprep.subr.mxu0 0.0
      %1575 = vmatpush1.msra.mxu0 0.0
      %1576 = vmatprep.subr.mxu0 0.0
      %1577 = vmatpush1.msra.mxu0 0.0
      %1578 = vmatprep.subr.mxu0 0.0
      %1579 = vmatpush1.msra.mxu0 0.0
      %1580 = vmatprep.subr.mxu0 0.0
      %1581 = vmatpush1.msra.mxu0 0.0
      %1582 = vmatprep.subr.mxu0 0.0
      %1583 = vmatpush1.msra.mxu0 0.0
      %1584 = vmatprep.subr.mxu0 0.0
      %1585 = vmatpush1.msra.mxu0 0.0
      %1586 = vmatprep.subr.mxu0 0.0
      %1587 = vmatpush1.msra.mxu0 0.0
      %1588 = vmatprep.subr.mxu0 0.0
      %1589 = vmatpush1.msra.mxu0 0.0
      %1590 = vmatprep.subr.mxu0 0.0
      %1591 = vmatpush1.msra.mxu0 0.0
      %1592 = vmatprep.subr.mxu0 0.0
      %1593 = vmatpush1.msra.mxu0 0.0
      %1594 = vmatprep.subr.mxu0 0.0
      %1595 = vmatpush1.msra.mxu0 0.0
      %1596 = vmatprep.subr.mxu0 0.0
      %1597 = vmatpush1.msra.mxu0 0.0
      %1598 = vmatprep.subr.mxu0 0.0
      %1599 = vmatpush1.msra.mxu0 0.0
      %1600 = vmatprep.subr.mxu0 0.0
      %1601 = vmatpush1.msra.mxu0 0.0
      %1602 = vmatprep.subr.mxu0 0.0
      %1603 = vmatpush1.msra.mxu0 0.0
      %1604 = vmatprep.subr.mxu0 0.0
      %1605 = vmatpush1.msra.mxu0 0.0
      %1606 = vmatprep.subr.mxu0 0.0
      %1607 = vmatpush1.msra.mxu0 0.0
      %1608 = vmatprep.subr.mxu0 0.0
      %1609 = vmatpush1.msra.mxu0 0.0
      %1610 = vmatprep.subr.mxu0 0.0
      %1611 = vmatpush1.msra.mxu0 0.0
      %1612 = vmatprep.subr.mxu0 0.0
      %1613 = vmatpush1.msra.mxu0 0.0
      %1614 = vmatprep.subr.mxu0 0.0
      %1615 = vmatpush1.msra.mxu0 0.0
      %1616 = vmatprep.mubr.f32.mxu0 0.0
      %1617 = vmatmul.mubr.f32.gmra.mrb[0].mxu0 %v1500
      %v1618 = vpop.f32.mrb[0].mxu0
      %v1619 = vadd.f32 0.0, %v1618
      %v1620 = vpop.f32.mrb[0].mxu0
      %v1621 = vadd.f32 0.0, %v1620
      %1622 = vmatprep.mubr.f32.mxu0 0.0
      %1623 = vmatmul.mubr.f32.gmra.mrb[0].mxu0 %v1503
      %v1624 = vpop.f32.mrb[0].mxu0
      %v1625 = vadd.f32 0.0, %v1624
      %v1626 = vpop.f32.mrb[0].mxu0
      %v1627 = vadd.f32 0.0, %v1626
      %1628 = vmatprep.mubr.f32.mxu0 0.0
      %1629 = vmatmul.mubr.f32.gmra.mrb[0].mxu0 %v1506
      %v1630 = vpop.f32.mrb[0].mxu0
      %v1631 = vadd.f32 0.0, %v1630
      %v1632 = vpop.f32.mrb[0].mxu0
      %v1633 = vadd.f32 0.0, %v1632
      %1634 = vmatprep.mubr.f32.mxu0 0.0
      %1635 = vmatmul.mubr.f32.gmra.mrb[0].mxu0 %v1509
      %v1636 = vpop.f32.mrb[0].mxu0
      %v1637 = vadd.f32 0.0, %v1636
      %v1638 = vpop.f32.mrb[0].mxu0
      %v1639 = vadd.f32 0.0, %v1638
      %1640 = vmatprep.mubr.f32.mxu0 0.0
      %1641 = vmatmul.mubr.f32.gmra.mrb[0].mxu0 %v1512
      %v1642 = vpop.f32.mrb[0].mxu0
      %v1643 = vadd.f32 0.0, %v1642
      %v1644 = vpop.f32.mrb[0].mxu0
      %v1645 = vadd.f32 0.0, %v1644
      %1646 = vmatprep.mubr.f32.mxu0 0.0
      %1647 = vmatmul.mubr.f32.gmra.mrb[0].mxu0 %v1515
      %v1648 = vpop.f32.mrb[0].mxu0
      %v1649 = vadd.f32 0.0, %v1648
      %v1650 = vpop.f32.mrb[0].mxu0
      %v1651 = vadd.f32 0.0, %v1650
      %1652 = vmatprep.mubr.f32.mxu0 0.0
      %1653 = vmatmul.mubr.f32.gmra.mrb[0].mxu0 %v1518
      %v1654 = vpop.f32.mrb[0].mxu0
      %v1655 = vadd.f32 0.0, %v1654
      %v1656 = vpop.f32.mrb[0].mxu0
      %v1657 = vadd.f32 0.0, %v1656
      %1658 = vmatprep.mubr.f32.mxu0 0.0
      %1659 = vmatmul.mubr.f32.gmra.mrb[0].mxu0 %v1521
      %v1660 = vpop.f32.mrb[0].mxu0
      %v1661 = vadd.f32 0.0, %v1660
      %v1662 = vpop.f32.mrb[0].mxu0
      %v1663 = vadd.f32 0.0, %v1662
      %1664 = vmatprep.mubr.f32.mxu0 0.0
      %1665 = vmatmul.mubr.f32.gmra.mrb[0].mxu0 %v1524
      %v1666 = vpop.f32.mrb[0].mxu0
      %v1667 = vadd.f32 0.0, %v1666
      %v1668 = vpop.f32.mrb[0].mxu0
      %v1669 = vadd.f32 0.0, %v1668
      %1670 = vmatprep.mubr.f32.mxu0 0.0
      %1671 = vmatmul.mubr.f32.gmra.mrb[0].mxu0 %v1527
      %v1672 = vpop.f32.mrb[0].mxu0
      %v1673 = vadd.f32 0.0, %v1672
      %v1674 = vpop.f32.mrb[0].mxu0
      %v1675 = vadd.f32 0.0, %v1674
      %1676 = vmatprep.mubr.f32.mxu0 0.0
      %1677 = vmatmul.mubr.f32.gmra.mrb[0].mxu0 %v1530
      %v1678 = vpop.f32.mrb[0].mxu0
      %v1679 = vadd.f32 0.0, %v1678
      %v1680 = vpop.f32.mrb[0].mxu0
      %v1681 = vadd.f32 0.0, %v1680
      %1682 = vmatprep.mubr.f32.mxu0 0.0
      %1683 = vmatmul.mubr.f32.gmra.mrb[0].mxu0 %v1533
      %v1684 = vpop.f32.mrb[0].mxu0
      %v1685 = vadd.f32 0.0, %v1684
      %v1686 = vpop.f32.mrb[0].mxu0
      %v1687 = vadd.f32 0.0, %v1686
      %1688 = vmatprep.mubr.f32.mxu0 0.0
      %1689 = vmatmul.mubr.f32.gmra.mrb[0].mxu0 %v1536
      %v1690 = vpop.f32.mrb[0].mxu0
      %v1691 = vadd.f32 0.0, %v1690
      %v1692 = vpop.f32.mrb[0].mxu0
      %v1693 = vadd.f32 0.0, %v1692
      %1694 = vmatprep.mubr.f32.mxu0 0.0
      %1695 = vmatmul.mubr.f32.gmra.mrb[0].mxu0 %v1539
      %v1696 = vpop.f32.mrb[0].mxu0
      %v1697 = vadd.f32 0.0, %v1696
      %v1698 = vpop.f32.mrb[0].mxu0
      %v1699 = vadd.f32 0.0, %v1698
      %1700 = vmatprep.mubr.f32.mxu0 0.0
      %1701 = vmatmul.mubr.f32.gmra.mrb[0].mxu0 %v1542
      %v1702 = vpop.f32.mrb[0].mxu0
      %v1703 = vadd.f32 0.0, %v1702
      %v1704 = vpop.f32.mrb[0].mxu0
      %v1705 = vadd.f32 0.0, %v1704
      %1706 = vmatprep.mubr.f32.mxu0 0.0
      %1707 = vmatmul.mubr.f32.gmra.mrb[0].mxu0 %v1545
      %v1708 = vpop.f32.mrb[0].mxu0
      %v1709 = vadd.f32 0.0, %v1708
      %v1710 = vpop.f32.mrb[0].mxu0
      %v1711 = vadd.f32 0.0, %v1710
      %1712 = vdwg.mxu0
      %v1713 = vld [vmem:[%s553] sm:$0xff]
      %v1714 = vld [vmem:[%s553 + $0x8] sm:$0xff]
      %v1715 = vld [vmem:[%s553 + $0x10] sm:$0xff]
      %v1716 = vld [vmem:[%s553 + $0x18] sm:$0xff]
      %v1717 = vld [vmem:[%s553 + $0x20] sm:$0xff]
      %v1718 = vld [vmem:[%s553 + $0x28] sm:$0xff]
      %v1719 = vld [vmem:[%s553 + $0x30] sm:$0xff]
      %v1720 = vld [vmem:[%s553 + $0x38] sm:$0xff]
      %v1721 = vld [vmem:[%s553 + $0x40] sm:$0xff]
      %v1722 = vld [vmem:[%s553 + $0x48] sm:$0xff]
      %v1723 = vld [vmem:[%s553 + $0x50] sm:$0xff]
      %v1724 = vld [vmem:[%s553 + $0x58] sm:$0xff]
      %v1725 = vld [vmem:[%s553 + $0x60] sm:$0xff]
      %v1726 = vld [vmem:[%s553 + $0x68] sm:$0xff]
      %v1727 = vld [vmem:[%s553 + $0x70] sm:$0xff]
      %v1728 = vld [vmem:[%s553 + $0x78] sm:$0xff]
      %1730 = vset.pattern.permute.xlu0 0
      %1731 = vperm.xlu0 %1730, %v1713
      %v1732 = vpop.permute.xlu0 %1731
      %1735 = vset.pattern.permute.xlu0 0
      %1736 = vperm.xlu0 %1735, %v1714
      %v1737 = vpop.permute.xlu0 %1736
      %1740 = vset.pattern.permute.xlu0 0
      %1741 = vperm.xlu0 %1740, %v1715
      %v1742 = vpop.permute.xlu0 %1741
      %1745 = vset.pattern.permute.xlu0 0
      %1746 = vperm.xlu0 %1745, %v1716
      %v1747 = vpop.permute.xlu0 %1746
      %1750 = vset.pattern.permute.xlu0 0
      %1751 = vperm.xlu0 %1750, %v1717
      %v1752 = vpop.permute.xlu0 %1751
      %1755 = vset.pattern.permute.xlu0 0
      %1756 = vperm.xlu0 %1755, %v1718
      %v1757 = vpop.permute.xlu0 %1756
      %1760 = vset.pattern.permute.xlu0 0
      %1761 = vperm.xlu0 %1760, %v1719
      %v1762 = vpop.permute.xlu0 %1761
      %1765 = vset.pattern.permute.xlu0 0
      %1766 = vperm.xlu0 %1765, %v1720
      %v1767 = vpop.permute.xlu0 %1766
      %1770 = vset.pattern.permute.xlu0 0
      %1771 = vperm.xlu0 %1770, %v1721
      %v1772 = vpop.permute.xlu0 %1771
      %1775 = vset.pattern.permute.xlu0 0
      %1776 = vperm.xlu0 %1775, %v1722
      %v1777 = vpop.permute.xlu0 %1776
      %1780 = vset.pattern.permute.xlu0 0
      %1781 = vperm.xlu0 %1780, %v1723
      %v1782 = vpop.permute.xlu0 %1781
      %1785 = vset.pattern.permute.xlu0 0
      %1786 = vperm.xlu0 %1785, %v1724
      %v1787 = vpop.permute.xlu0 %1786
      %1790 = vset.pattern.permute.xlu0 0
      %1791 = vperm.xlu0 %1790, %v1725
      %v1792 = vpop.permute.xlu0 %1791
      %1795 = vset.pattern.permute.xlu0 0
      %1796 = vperm.xlu0 %1795, %v1726
      %v1797 = vpop.permute.xlu0 %1796
      %1800 = vset.pattern.permute.xlu0 0
      %1801 = vperm.xlu0 %1800, %v1727
      %v1802 = vpop.permute.xlu0 %1801
      %1805 = vset.pattern.permute.xlu0 0
      %1806 = vperm.xlu0 %1805, %v1728
      %v1807 = vpop.permute.xlu0 %1806
      %v1809 = vmul.f32 %v1619, %v1732
      %v1810 = vmul.f32 %v1621, %v1732
      %v1811 = vmul.f32 %v1625, %v1737
      %v1812 = vmul.f32 %v1627, %v1737
      %v1813 = vmul.f32 %v1631, %v1742
      %v1814 = vmul.f32 %v1633, %v1742
      %v1815 = vmul.f32 %v1637, %v1747
      %v1816 = vmul.f32 %v1639, %v1747
      %v1817 = vmul.f32 %v1643, %v1752
      %v1818 = vmul.f32 %v1645, %v1752
      %v1819 = vmul.f32 %v1649, %v1757
      %v1820 = vmul.f32 %v1651, %v1757
      %v1821 = vmul.f32 %v1655, %v1762
      %v1822 = vmul.f32 %v1657, %v1762
      %v1823 = vmul.f32 %v1661, %v1767
      %v1824 = vmul.f32 %v1663, %v1767
      %v1825 = vmul.f32 %v1667, %v1772
      %v1826 = vmul.f32 %v1669, %v1772
      %v1827 = vmul.f32 %v1673, %v1777
      %v1828 = vmul.f32 %v1675, %v1777
      %v1829 = vmul.f32 %v1679, %v1782
      %v1830 = vmul.f32 %v1681, %v1782
      %v1831 = vmul.f32 %v1685, %v1787
      %v1832 = vmul.f32 %v1687, %v1787
      %v1833 = vmul.f32 %v1691, %v1792
      %v1834 = vmul.f32 %v1693, %v1792
      %v1835 = vmul.f32 %v1697, %v1797
      %v1836 = vmul.f32 %v1699, %v1797
      %v1837 = vmul.f32 %v1703, %v1802
      %v1838 = vmul.f32 %v1705, %v1802
      %v1839 = vmul.f32 %v1709, %v1807
      %v1840 = vmul.f32 %v1711, %v1807
      %v1841 = vld [vmem:[%s9] sm:$0x3]
      %v1843 = vlaneseq
      %v1844 = vshrl.u32 %v1843, 7
      %v1845 = vsub.s32 0, %v1844
      %v1846 = vrot.slane %v1841, %v1845
      %v1847 = vlaneseq
      %v1848 = vshrl.u32 %v1847, 7
      %v1849 = vsub.s32 1, %v1848
      %v1850 = vrot.slane %v1841, %v1849
      %v1853 = vmul.f32 %v1809, %v1846
      %v1854 = vmul.f32 %v1810, %v1850
      %v1855 = vmul.f32 %v1811, %v1846
      %v1856 = vmul.f32 %v1812, %v1850
      %v1857 = vmul.f32 %v1813, %v1846
      %v1858 = vmul.f32 %v1814, %v1850
      %v1859 = vmul.f32 %v1815, %v1846
      %v1860 = vmul.f32 %v1816, %v1850
      %v1861 = vmul.f32 %v1817, %v1846
      %v1862 = vmul.f32 %v1818, %v1850
      %v1863 = vmul.f32 %v1819, %v1846
      %v1864 = vmul.f32 %v1820, %v1850
      %v1865 = vmul.f32 %v1821, %v1846
      %v1866 = vmul.f32 %v1822, %v1850
      %v1867 = vmul.f32 %v1823, %v1846
      %v1868 = vmul.f32 %v1824, %v1850
      %v1869 = vmul.f32 %v1825, %v1846
      %v1870 = vmul.f32 %v1826, %v1850
      %v1871 = vmul.f32 %v1827, %v1846
      %v1872 = vmul.f32 %v1828, %v1850
      %v1873 = vmul.f32 %v1829, %v1846
      %v1874 = vmul.f32 %v1830, %v1850
      %v1875 = vmul.f32 %v1831, %v1846
      %v1876 = vmul.f32 %v1832, %v1850
      %v1877 = vmul.f32 %v1833, %v1846
      %v1878 = vmul.f32 %v1834, %v1850
      %v1879 = vmul.f32 %v1835, %v1846
      %v1880 = vmul.f32 %v1836, %v1850
      %v1881 = vmul.f32 %v1837, %v1846
      %v1882 = vmul.f32 %v1838, %v1850
      %v1883 = vmul.f32 %v1839, %v1846
      %v1884 = vmul.f32 %v1840, %v1850
      %s1885 = smul.u32 %s26, 128
      %v1886 = vlaneseq
      %v1887 = vshrl.u32 %v1886, 7
      %v1888 = vadd.s32 %v1887, 8
      %v1889 = vadd.s32 %v1887, 16
      %v1890 = vadd.s32 %v1887, 24
      %v1891 = vadd.s32 %v1887, 32
      %v1892 = vadd.s32 %v1887, 40
      %v1893 = vadd.s32 %v1887, 48
      %v1894 = vadd.s32 %v1887, 56
      %v1895 = vadd.s32 %v1887, 64
      %v1896 = vadd.s32 %v1887, 72
      %v1897 = vadd.s32 %v1887, 80
      %v1898 = vadd.s32 %v1887, 88
      %v1899 = vadd.s32 %v1887, 96
      %v1900 = vadd.s32 %v1887, 104
      %v1901 = vadd.s32 %v1887, 112
      %v1902 = vadd.s32 %v1887, 120
      %v1903 = vstv %s1885
      %v1904 = vadd.s32 %v1887, %v1903
      %v1905 = vadd.s32 %v1888, %v1903
      %v1906 = vadd.s32 %v1889, %v1903
      %v1907 = vadd.s32 %v1890, %v1903
      %v1908 = vadd.s32 %v1891, %v1903
      %v1909 = vadd.s32 %v1892, %v1903
      %v1910 = vadd.s32 %v1893, %v1903
      %v1911 = vadd.s32 %v1894, %v1903
      %v1912 = vadd.s32 %v1895, %v1903
      %v1913 = vadd.s32 %v1896, %v1903
      %v1914 = vadd.s32 %v1897, %v1903
      %v1915 = vadd.s32 %v1898, %v1903
      %v1916 = vadd.s32 %v1899, %v1903
      %v1917 = vadd.s32 %v1900, %v1903
      %v1918 = vadd.s32 %v1901, %v1903
      %v1919 = vadd.s32 %v1902, %v1903
      %v1920 = vlaneseq
      %v1921 = vand.u32 %v1920, 127
      %v1922 = vadd.s32 %v1921, 128
      %vm1923 = vcmp.eq.s32.totalorder %v1904, %v1921
      %vm1924 = vcmp.eq.s32.totalorder %v1904, %v1922
      %vm1925 = vcmp.eq.s32.totalorder %v1905, %v1921
      %vm1926 = vcmp.eq.s32.totalorder %v1905, %v1922
      %vm1927 = vcmp.eq.s32.totalorder %v1906, %v1921
      %vm1928 = vcmp.eq.s32.totalorder %v1906, %v1922
      %vm1929 = vcmp.eq.s32.totalorder %v1907, %v1921
      %vm1930 = vcmp.eq.s32.totalorder %v1907, %v1922
      %vm1931 = vcmp.eq.s32.totalorder %v1908, %v1921
      %vm1932 = vcmp.eq.s32.totalorder %v1908, %v1922
      %vm1933 = vcmp.eq.s32.totalorder %v1909, %v1921
      %vm1934 = vcmp.eq.s32.totalorder %v1909, %v1922
      %vm1935 = vcmp.eq.s32.totalorder %v1910, %v1921
      %vm1936 = vcmp.eq.s32.totalorder %v1910, %v1922
      %vm1937 = vcmp.eq.s32.totalorder %v1911, %v1921
      %vm1938 = vcmp.eq.s32.totalorder %v1911, %v1922
      %vm1939 = vcmp.eq.s32.totalorder %v1912, %v1921
      %vm1940 = vcmp.eq.s32.totalorder %v1912, %v1922
      %vm1941 = vcmp.eq.s32.totalorder %v1913, %v1921
      %vm1942 = vcmp.eq.s32.totalorder %v1913, %v1922
      %vm1943 = vcmp.eq.s32.totalorder %v1914, %v1921
      %vm1944 = vcmp.eq.s32.totalorder %v1914, %v1922
      %vm1945 = vcmp.eq.s32.totalorder %v1915, %v1921
      %vm1946 = vcmp.eq.s32.totalorder %v1915, %v1922
      %vm1947 = vcmp.eq.s32.totalorder %v1916, %v1921
      %vm1948 = vcmp.eq.s32.totalorder %v1916, %v1922
      %vm1949 = vcmp.eq.s32.totalorder %v1917, %v1921
      %vm1950 = vcmp.eq.s32.totalorder %v1917, %v1922
      %vm1951 = vcmp.eq.s32.totalorder %v1918, %v1921
      %vm1952 = vcmp.eq.s32.totalorder %v1918, %v1922
      %vm1953 = vcmp.eq.s32.totalorder %v1919, %v1921
      %vm1954 = vcmp.eq.s32.totalorder %v1919, %v1922
      %v1955 = vsel %vm1923, 0.0, 1.0
      %v1956 = vsel %vm1924, 0.0, 1.0
      %v1957 = vsel %vm1925, 0.0, 1.0
      %v1958 = vsel %vm1926, 0.0, 1.0
      %v1959 = vsel %vm1927, 0.0, 1.0
      %v1960 = vsel %vm1928, 0.0, 1.0
      %v1961 = vsel %vm1929, 0.0, 1.0
      %v1962 = vsel %vm1930, 0.0, 1.0
      %v1963 = vsel %vm1931, 0.0, 1.0
      %v1964 = vsel %vm1932, 0.0, 1.0
      %v1965 = vsel %vm1933, 0.0, 1.0
      %v1966 = vsel %vm1934, 0.0, 1.0
      %v1967 = vsel %vm1935, 0.0, 1.0
      %v1968 = vsel %vm1936, 0.0, 1.0
      %v1969 = vsel %vm1937, 0.0, 1.0
      %v1970 = vsel %vm1938, 0.0, 1.0
      %v1971 = vsel %vm1939, 0.0, 1.0
      %v1972 = vsel %vm1940, 0.0, 1.0
      %v1973 = vsel %vm1941, 0.0, 1.0
      %v1974 = vsel %vm1942, 0.0, 1.0
      %v1975 = vsel %vm1943, 0.0, 1.0
      %v1976 = vsel %vm1944, 0.0, 1.0
      %v1977 = vsel %vm1945, 0.0, 1.0
      %v1978 = vsel %vm1946, 0.0, 1.0
      %v1979 = vsel %vm1947, 0.0, 1.0
      %v1980 = vsel %vm1948, 0.0, 1.0
      %v1981 = vsel %vm1949, 0.0, 1.0
      %v1982 = vsel %vm1950, 0.0, 1.0
      %v1983 = vsel %vm1951, 0.0, 1.0
      %v1984 = vsel %vm1952, 0.0, 1.0
      %v1985 = vsel %vm1953, 0.0, 1.0
      %v1986 = vsel %vm1954, 0.0, 1.0
      %v1987 = vmax.f32 %v1339, 0.0
      %v1988 = vmax.f32 %v1340, 0.0
      %v1989 = vmax.f32 %v1341, 0.0
      %v1990 = vmax.f32 %v1342, 0.0
      %v1991 = vmax.f32 %v1343, 0.0
      %v1992 = vmax.f32 %v1344, 0.0
      %v1993 = vmax.f32 %v1345, 0.0
      %v1994 = vmax.f32 %v1346, 0.0
      %v1995 = vmax.f32 %v1347, 0.0
      %v1996 = vmax.f32 %v1348, 0.0
      %v1997 = vmax.f32 %v1349, 0.0
      %v1998 = vmax.f32 %v1350, 0.0
      %v1999 = vmax.f32 %v1351, 0.0
      %v2000 = vmax.f32 %v1352, 0.0
      %v2001 = vmax.f32 %v1353, 0.0
      %v2002 = vmax.f32 %v1354, 0.0
      %v2003 = vmax.f32 %v1355, 0.0
      %v2004 = vmax.f32 %v1356, 0.0
      %v2005 = vmax.f32 %v1357, 0.0
      %v2006 = vmax.f32 %v1358, 0.0
      %v2007 = vmax.f32 %v1359, 0.0
      %v2008 = vmax.f32 %v1360, 0.0
      %v2009 = vmax.f32 %v1361, 0.0
      %v2010 = vmax.f32 %v1362, 0.0
      %v2011 = vmax.f32 %v1363, 0.0
      %v2012 = vmax.f32 %v1364, 0.0
      %v2013 = vmax.f32 %v1365, 0.0
      %v2014 = vmax.f32 %v1366, 0.0
      %v2015 = vmax.f32 %v1367, 0.0
      %v2016 = vmax.f32 %v1368, 0.0
      %v2017 = vmax.f32 %v1369, 0.0
      %v2018 = vmax.f32 %v1370, 0.0
      %v2019 = vand.u32 2147483647, %v1339
      %v2020 = vand.u32 2147483647, %v1340
      %v2021 = vand.u32 2147483647, %v1341
      %v2022 = vand.u32 2147483647, %v1342
      %v2023 = vand.u32 2147483647, %v1343
      %v2024 = vand.u32 2147483647, %v1344
      %v2025 = vand.u32 2147483647, %v1345
      %v2026 = vand.u32 2147483647, %v1346
      %v2027 = vand.u32 2147483647, %v1347
      %v2028 = vand.u32 2147483647, %v1348
      %v2029 = vand.u32 2147483647, %v1349
      %v2030 = vand.u32 2147483647, %v1350
      %v2031 = vand.u32 2147483647, %v1351
      %v2032 = vand.u32 2147483647, %v1352
      %v2033 = vand.u32 2147483647, %v1353
      %v2034 = vand.u32 2147483647, %v1354
      %v2035 = vand.u32 2147483647, %v1355
      %v2036 = vand.u32 2147483647, %v1356
      %v2037 = vand.u32 2147483647, %v1357
      %v2038 = vand.u32 2147483647, %v1358
      %v2039 = vand.u32 2147483647, %v1359
      %v2040 = vand.u32 2147483647, %v1360
      %v2041 = vand.u32 2147483647, %v1361
      %v2042 = vand.u32 2147483647, %v1362
      %v2043 = vand.u32 2147483647, %v1363
      %v2044 = vand.u32 2147483647, %v1364
      %v2045 = vand.u32 2147483647, %v1365
      %v2046 = vand.u32 2147483647, %v1366
      %v2047 = vand.u32 2147483647, %v1367
      %v2048 = vand.u32 2147483647, %v1368
      %v2049 = vand.u32 2147483647, %v1369
      %v2050 = vand.u32 2147483647, %v1370
      %v2051 = vsub.f32 0.0, %v2019
      %v2052 = vsub.f32 0.0, %v2020
      %v2053 = vsub.f32 0.0, %v2021
      %v2054 = vsub.f32 0.0, %v2022
      %v2055 = vsub.f32 0.0, %v2023
      %v2056 = vsub.f32 0.0, %v2024
      %v2057 = vsub.f32 0.0, %v2025
      %v2058 = vsub.f32 0.0, %v2026
      %v2059 = vsub.f32 0.0, %v2027
      %v2060 = vsub.f32 0.0, %v2028
      %v2061 = vsub.f32 0.0, %v2029
      %v2062 = vsub.f32 0.0, %v2030
      %v2063 = vsub.f32 0.0, %v2031
      %v2064 = vsub.f32 0.0, %v2032
      %v2065 = vsub.f32 0.0, %v2033
      %v2066 = vsub.f32 0.0, %v2034
      %v2067 = vsub.f32 0.0, %v2035
      %v2068 = vsub.f32 0.0, %v2036
      %v2069 = vsub.f32 0.0, %v2037
      %v2070 = vsub.f32 0.0, %v2038
      %v2071 = vsub.f32 0.0, %v2039
      %v2072 = vsub.f32 0.0, %v2040
      %v2073 = vsub.f32 0.0, %v2041
      %v2074 = vsub.f32 0.0, %v2042
      %v2075 = vsub.f32 0.0, %v2043
      %v2076 = vsub.f32 0.0, %v2044
      %v2077 = vsub.f32 0.0, %v2045
      %v2078 = vsub.f32 0.0, %v2046
      %v2079 = vsub.f32 0.0, %v2047
      %v2080 = vsub.f32 0.0, %v2048
      %v2081 = vsub.f32 0.0, %v2049
      %v2082 = vsub.f32 0.0, %v2050
      %v2083 = vmul.f32 %v2051, 1.442695
      %v2084 = vpow.pop %v2083
      %v2085 = vmul.f32 %v2052, 1.442695
      %v2086 = vpow.pop %v2085
      %v2087 = vmul.f32 %v2053, 1.442695
      %v2088 = vpow.pop %v2087
      %v2089 = vmul.f32 %v2054, 1.442695
      %v2090 = vpow.pop %v2089
      %v2091 = vmul.f32 %v2055, 1.442695
      %v2092 = vpow.pop %v2091
      %v2093 = vmul.f32 %v2056, 1.442695
      %v2094 = vpow.pop %v2093
      %v2095 = vmul.f32 %v2057, 1.442695
      %v2096 = vpow.pop %v2095
      %v2097 = vmul.f32 %v2058, 1.442695
      %v2098 = vpow.pop %v2097
      %v2099 = vmul.f32 %v2059, 1.442695
      %v2100 = vpow.pop %v2099
      %v2101 = vmul.f32 %v2060, 1.442695
      %v2102 = vpow.pop %v2101
      %v2103 = vmul.f32 %v2061, 1.442695
      %v2104 = vpow.pop %v2103
      %v2105 = vmul.f32 %v2062, 1.442695
      %v2106 = vpow.pop %v2105
      %v2107 = vmul.f32 %v2063, 1.442695
      %v2108 = vpow.pop %v2107
      %v2109 = vmul.f32 %v2064, 1.442695
      %v2110 = vpow.pop %v2109
      %v2111 = vmul.f32 %v2065, 1.442695
      %v2112 = vpow.pop %v2111
      %v2113 = vmul.f32 %v2066, 1.442695
      %v2114 = vpow.pop %v2113
      %v2115 = vmul.f32 %v2067, 1.442695
      %v2116 = vpow.pop %v2115
      %v2117 = vmul.f32 %v2068, 1.442695
      %v2118 = vpow.pop %v2117
      %v2119 = vmul.f32 %v2069, 1.442695
      %v2120 = vpow.pop %v2119
      %v2121 = vmul.f32 %v2070, 1.442695
      %v2122 = vpow.pop %v2121
      %v2123 = vmul.f32 %v2071, 1.442695
      %v2124 = vpow.pop %v2123
      %v2125 = vmul.f32 %v2072, 1.442695
      %v2126 = vpow.pop %v2125
      %v2127 = vmul.f32 %v2073, 1.442695
      %v2128 = vpow.pop %v2127
      %v2129 = vmul.f32 %v2074, 1.442695
      %v2130 = vpow.pop %v2129
      %v2131 = vmul.f32 %v2075, 1.442695
      %v2132 = vpow.pop %v2131
      %v2133 = vmul.f32 %v2076, 1.442695
      %v2134 = vpow.pop %v2133
      %v2135 = vmul.f32 %v2077, 1.442695
      %v2136 = vpow.pop %v2135
      %v2137 = vmul.f32 %v2078, 1.442695
      %v2138 = vpow.pop %v2137
      %v2139 = vmul.f32 %v2079, 1.442695
      %v2140 = vpow.pop %v2139
      %v2141 = vmul.f32 %v2080, 1.442695
      %v2142 = vpow.pop %v2141
      %v2143 = vmul.f32 %v2081, 1.442695
      %v2144 = vpow.pop %v2143
      %v2145 = vmul.f32 %v2082, 1.442695
      %v2146 = vpow.pop %v2145
      %v2147 = vadd.f32 %v2084, 1.0
      %v2148 = vadd.f32 %v2086, 1.0
      %v2149 = vadd.f32 %v2088, 1.0
      %v2150 = vadd.f32 %v2090, 1.0
      %v2151 = vadd.f32 %v2092, 1.0
      %v2152 = vadd.f32 %v2094, 1.0
      %v2153 = vadd.f32 %v2096, 1.0
      %v2154 = vadd.f32 %v2098, 1.0
      %v2155 = vadd.f32 %v2100, 1.0
      %v2156 = vadd.f32 %v2102, 1.0
      %v2157 = vadd.f32 %v2104, 1.0
      %v2158 = vadd.f32 %v2106, 1.0
      %v2159 = vadd.f32 %v2108, 1.0
      %v2160 = vadd.f32 %v2110, 1.0
      %v2161 = vadd.f32 %v2112, 1.0
      %v2162 = vadd.f32 %v2114, 1.0
      %v2163 = vadd.f32 %v2116, 1.0
      %v2164 = vadd.f32 %v2118, 1.0
      %v2165 = vadd.f32 %v2120, 1.0
      %v2166 = vadd.f32 %v2122, 1.0
      %v2167 = vadd.f32 %v2124, 1.0
      %v2168 = vadd.f32 %v2126, 1.0
      %v2169 = vadd.f32 %v2128, 1.0
      %v2170 = vadd.f32 %v2130, 1.0
      %v2171 = vadd.f32 %v2132, 1.0
      %v2172 = vadd.f32 %v2134, 1.0
      %v2173 = vadd.f32 %v2136, 1.0
      %v2174 = vadd.f32 %v2138, 1.0
      %v2175 = vadd.f32 %v2140, 1.0
      %v2176 = vadd.f32 %v2142, 1.0
      %v2177 = vadd.f32 %v2144, 1.0
      %v2178 = vadd.f32 %v2146, 1.0
      %v2179 = vlog2.pop %v2147
      %v2180 = vmul.f32 %v2179, 0.6931472
      %v2181 = vlog2.pop %v2148
      %v2182 = vmul.f32 %v2181, 0.6931472
      %v2183 = vlog2.pop %v2149
      %v2184 = vmul.f32 %v2183, 0.6931472
      %v2185 = vlog2.pop %v2150
      %v2186 = vmul.f32 %v2185, 0.6931472
      %v2187 = vlog2.pop %v2151
      %v2188 = vmul.f32 %v2187, 0.6931472
      %v2189 = vlog2.pop %v2152
      %v2190 = vmul.f32 %v2189, 0.6931472
      %v2191 = vlog2.pop %v2153
      %v2192 = vmul.f32 %v2191, 0.6931472
      %v2193 = vlog2.pop %v2154
      %v2194 = vmul.f32 %v2193, 0.6931472
      %v2195 = vlog2.pop %v2155
      %v2196 = vmul.f32 %v2195, 0.6931472
      %v2197 = vlog2.pop %v2156
      %v2198 = vmul.f32 %v2197, 0.6931472
      %v2199 = vlog2.pop %v2157
      %v2200 = vmul.f32 %v2199, 0.6931472
      %v2201 = vlog2.pop %v2158
      %v2202 = vmul.f32 %v2201, 0.6931472
      %v2203 = vlog2.pop %v2159
      %v2204 = vmul.f32 %v2203, 0.6931472
      %v2205 = vlog2.pop %v2160
      %v2206 = vmul.f32 %v2205, 0.6931472
      %v2207 = vlog2.pop %v2161
      %v2208 = vmul.f32 %v2207, 0.6931472
      %v2209 = vlog2.pop %v2162
      %v2210 = vmul.f32 %v2209, 0.6931472
      %v2211 = vlog2.pop %v2163
      %v2212 = vmul.f32 %v2211, 0.6931472
      %v2213 = vlog2.pop %v2164
      %v2214 = vmul.f32 %v2213, 0.6931472
      %v2215 = vlog2.pop %v2165
      %v2216 = vmul.f32 %v2215, 0.6931472
      %v2217 = vlog2.pop %v2166
      %v2218 = vmul.f32 %v2217, 0.6931472
      %v2219 = vlog2.pop %v2167
      %v2220 = vmul.f32 %v2219, 0.6931472
      %v2221 = vlog2.pop %v2168
      %v2222 = vmul.f32 %v2221, 0.6931472
      %v2223 = vlog2.pop %v2169
      %v2224 = vmul.f32 %v2223, 0.6931472
      %v2225 = vlog2.pop %v2170
      %v2226 = vmul.f32 %v2225, 0.6931472
      %v2227 = vlog2.pop %v2171
      %v2228 = vmul.f32 %v2227, 0.6931472
      %v2229 = vlog2.pop %v2172
      %v2230 = vmul.f32 %v2229, 0.6931472
      %v2231 = vlog2.pop %v2173
      %v2232 = vmul.f32 %v2231, 0.6931472
      %v2233 = vlog2.pop %v2174
      %v2234 = vmul.f32 %v2233, 0.6931472
      %v2235 = vlog2.pop %v2175
      %v2236 = vmul.f32 %v2235, 0.6931472
      %v2237 = vlog2.pop %v2176
      %v2238 = vmul.f32 %v2237, 0.6931472
      %v2239 = vlog2.pop %v2177
      %v2240 = vmul.f32 %v2239, 0.6931472
      %v2241 = vlog2.pop %v2178
      %v2242 = vmul.f32 %v2241, 0.6931472
      %v2243 = vadd.f32 %v1987, %v2180
      %v2244 = vadd.f32 %v1988, %v2182
      %v2245 = vadd.f32 %v1989, %v2184
      %v2246 = vadd.f32 %v1990, %v2186
      %v2247 = vadd.f32 %v1991, %v2188
      %v2248 = vadd.f32 %v1992, %v2190
      %v2249 = vadd.f32 %v1993, %v2192
      %v2250 = vadd.f32 %v1994, %v2194
      %v2251 = vadd.f32 %v1995, %v2196
      %v2252 = vadd.f32 %v1996, %v2198
      %v2253 = vadd.f32 %v1997, %v2200
      %v2254 = vadd.f32 %v1998, %v2202
      %v2255 = vadd.f32 %v1999, %v2204
      %v2256 = vadd.f32 %v2000, %v2206
      %v2257 = vadd.f32 %v2001, %v2208
      %v2258 = vadd.f32 %v2002, %v2210
      %v2259 = vadd.f32 %v2003, %v2212
      %v2260 = vadd.f32 %v2004, %v2214
      %v2261 = vadd.f32 %v2005, %v2216
      %v2262 = vadd.f32 %v2006, %v2218
      %v2263 = vadd.f32 %v2007, %v2220
      %v2264 = vadd.f32 %v2008, %v2222
      %v2265 = vadd.f32 %v2009, %v2224
      %v2266 = vadd.f32 %v2010, %v2226
      %v2267 = vadd.f32 %v2011, %v2228
      %v2268 = vadd.f32 %v2012, %v2230
      %v2269 = vadd.f32 %v2013, %v2232
      %v2270 = vadd.f32 %v2014, %v2234
      %v2271 = vadd.f32 %v2015, %v2236
      %v2272 = vadd.f32 %v2016, %v2238
      %v2273 = vadd.f32 %v2017, %v2240
      %v2274 = vadd.f32 %v2018, %v2242
      %v2275 = vsel %vm1923, 1.0, %v2243
      %v2276 = vsel %vm1924, 1.0, %v2244
      %v2277 = vsel %vm1925, 1.0, %v2245
      %v2278 = vsel %vm1926, 1.0, %v2246
      %v2279 = vsel %vm1927, 1.0, %v2247
      %v2280 = vsel %vm1928, 1.0, %v2248
      %v2281 = vsel %vm1929, 1.0, %v2249
      %v2282 = vsel %vm1930, 1.0, %v2250
      %v2283 = vsel %vm1931, 1.0, %v2251
      %v2284 = vsel %vm1932, 1.0, %v2252
      %v2285 = vsel %vm1933, 1.0, %v2253
      %v2286 = vsel %vm1934, 1.0, %v2254
      %v2287 = vsel %vm1935, 1.0, %v2255
      %v2288 = vsel %vm1936, 1.0, %v2256
      %v2289 = vsel %vm1937, 1.0, %v2257
      %v2290 = vsel %vm1938, 1.0, %v2258
      %v2291 = vsel %vm1939, 1.0, %v2259
      %v2292 = vsel %vm1940, 1.0, %v2260
      %v2293 = vsel %vm1941, 1.0, %v2261
      %v2294 = vsel %vm1942, 1.0, %v2262
      %v2295 = vsel %vm1943, 1.0, %v2263
      %v2296 = vsel %vm1944, 1.0, %v2264
      %v2297 = vsel %vm1945, 1.0, %v2265
      %v2298 = vsel %vm1946, 1.0, %v2266
      %v2299 = vsel %vm1947, 1.0, %v2267
      %v2300 = vsel %vm1948, 1.0, %v2268
      %v2301 = vsel %vm1949, 1.0, %v2269
      %v2302 = vsel %vm1950, 1.0, %v2270
      %v2303 = vsel %vm1951, 1.0, %v2271
      %v2304 = vsel %vm1952, 1.0, %v2272
      %v2305 = vsel %vm1953, 1.0, %v2273
      %v2306 = vsel %vm1954, 1.0, %v2274
      %v2307 = vrcp.pop %v2275
      %v2308 = vmul.f32 1.0, %v2307
      %v2309 = vrcp.pop %v2276
      %v2310 = vmul.f32 1.0, %v2309
      %v2311 = vrcp.pop %v2277
      %v2312 = vmul.f32 1.0, %v2311
      %v2313 = vrcp.pop %v2278
      %v2314 = vmul.f32 1.0, %v2313
      %v2315 = vrcp.pop %v2279
      %v2316 = vmul.f32 1.0, %v2315
      %v2317 = vrcp.pop %v2280
      %v2318 = vmul.f32 1.0, %v2317
      %v2319 = vrcp.pop %v2281
      %v2320 = vmul.f32 1.0, %v2319
      %v2321 = vrcp.pop %v2282
      %v2322 = vmul.f32 1.0, %v2321
      %v2323 = vrcp.pop %v2283
      %v2324 = vmul.f32 1.0, %v2323
      %v2325 = vrcp.pop %v2284
      %v2326 = vmul.f32 1.0, %v2325
      %v2327 = vrcp.pop %v2285
      %v2328 = vmul.f32 1.0, %v2327
      %v2329 = vrcp.pop %v2286
      %v2330 = vmul.f32 1.0, %v2329
      %v2331 = vrcp.pop %v2287
      %v2332 = vmul.f32 1.0, %v2331
      %v2333 = vrcp.pop %v2288
      %v2334 = vmul.f32 1.0, %v2333
      %v2335 = vrcp.pop %v2289
      %v2336 = vmul.f32 1.0, %v2335
      %v2337 = vrcp.pop %v2290
      %v2338 = vmul.f32 1.0, %v2337
      %v2339 = vrcp.pop %v2291
      %v2340 = vmul.f32 1.0, %v2339
      %v2341 = vrcp.pop %v2292
      %v2342 = vmul.f32 1.0, %v2341
      %v2343 = vrcp.pop %v2293
      %v2344 = vmul.f32 1.0, %v2343
      %v2345 = vrcp.pop %v2294
      %v2346 = vmul.f32 1.0, %v2345
      %v2347 = vrcp.pop %v2295
      %v2348 = vmul.f32 1.0, %v2347
      %v2349 = vrcp.pop %v2296
      %v2350 = vmul.f32 1.0, %v2349
      %v2351 = vrcp.pop %v2297
      %v2352 = vmul.f32 1.0, %v2351
      %v2353 = vrcp.pop %v2298
      %v2354 = vmul.f32 1.0, %v2353
      %v2355 = vrcp.pop %v2299
      %v2356 = vmul.f32 1.0, %v2355
      %v2357 = vrcp.pop %v2300
      %v2358 = vmul.f32 1.0, %v2357
      %v2359 = vrcp.pop %v2301
      %v2360 = vmul.f32 1.0, %v2359
      %v2361 = vrcp.pop %v2302
      %v2362 = vmul.f32 1.0, %v2361
      %v2363 = vrcp.pop %v2303
      %v2364 = vmul.f32 1.0, %v2363
      %v2365 = vrcp.pop %v2304
      %v2366 = vmul.f32 1.0, %v2365
      %v2367 = vrcp.pop %v2305
      %v2368 = vmul.f32 1.0, %v2367
      %v2369 = vrcp.pop %v2306
      %v2370 = vmul.f32 1.0, %v2369
      %v2371 = vmul.f32 %v2308, %v2308
      %v2372 = vmul.f32 %v2310, %v2310
      %v2373 = vmul.f32 %v2312, %v2312
      %v2374 = vmul.f32 %v2314, %v2314
      %v2375 = vmul.f32 %v2316, %v2316
      %v2376 = vmul.f32 %v2318, %v2318
      %v2377 = vmul.f32 %v2320, %v2320
      %v2378 = vmul.f32 %v2322, %v2322
      %v2379 = vmul.f32 %v2324, %v2324
      %v2380 = vmul.f32 %v2326, %v2326
      %v2381 = vmul.f32 %v2328, %v2328
      %v2382 = vmul.f32 %v2330, %v2330
      %v2383 = vmul.f32 %v2332, %v2332
      %v2384 = vmul.f32 %v2334, %v2334
      %v2385 = vmul.f32 %v2336, %v2336
      %v2386 = vmul.f32 %v2338, %v2338
      %v2387 = vmul.f32 %v2340, %v2340
      %v2388 = vmul.f32 %v2342, %v2342
      %v2389 = vmul.f32 %v2344, %v2344
      %v2390 = vmul.f32 %v2346, %v2346
      %v2391 = vmul.f32 %v2348, %v2348
      %v2392 = vmul.f32 %v2350, %v2350
      %v2393 = vmul.f32 %v2352, %v2352
      %v2394 = vmul.f32 %v2354, %v2354
      %v2395 = vmul.f32 %v2356, %v2356
      %v2396 = vmul.f32 %v2358, %v2358
      %v2397 = vmul.f32 %v2360, %v2360
      %v2398 = vmul.f32 %v2362, %v2362
      %v2399 = vmul.f32 %v2364, %v2364
      %v2400 = vmul.f32 %v2366, %v2366
      %v2401 = vmul.f32 %v2368, %v2368
      %v2402 = vmul.f32 %v2370, %v2370
      %v2403 = vsub.f32 %v2371, %v2308
      %v2404 = vsub.f32 %v2372, %v2310
      %v2405 = vsub.f32 %v2373, %v2312
      %v2406 = vsub.f32 %v2374, %v2314
      %v2407 = vsub.f32 %v2375, %v2316
      %v2408 = vsub.f32 %v2376, %v2318
      %v2409 = vsub.f32 %v2377, %v2320
      %v2410 = vsub.f32 %v2378, %v2322
      %v2411 = vsub.f32 %v2379, %v2324
      %v2412 = vsub.f32 %v2380, %v2326
      %v2413 = vsub.f32 %v2381, %v2328
      %v2414 = vsub.f32 %v2382, %v2330
      %v2415 = vsub.f32 %v2383, %v2332
      %v2416 = vsub.f32 %v2384, %v2334
      %v2417 = vsub.f32 %v2385, %v2336
      %v2418 = vsub.f32 %v2386, %v2338
      %v2419 = vsub.f32 %v2387, %v2340
      %v2420 = vsub.f32 %v2388, %v2342
      %v2421 = vsub.f32 %v2389, %v2344
      %v2422 = vsub.f32 %v2390, %v2346
      %v2423 = vsub.f32 %v2391, %v2348
      %v2424 = vsub.f32 %v2392, %v2350
      %v2425 = vsub.f32 %v2393, %v2352
      %v2426 = vsub.f32 %v2394, %v2354
      %v2427 = vsub.f32 %v2395, %v2356
      %v2428 = vsub.f32 %v2396, %v2358
      %v2429 = vsub.f32 %v2397, %v2360
      %v2430 = vsub.f32 %v2398, %v2362
      %v2431 = vsub.f32 %v2399, %v2364
      %v2432 = vsub.f32 %v2400, %v2366
      %v2433 = vsub.f32 %v2401, %v2368
      %v2434 = vsub.f32 %v2402, %v2370
      %v2435 = vmul.f32 %v1853, %v2403
      %v2436 = vmul.f32 %v1854, %v2404
      %v2437 = vmul.f32 %v1855, %v2405
      %v2438 = vmul.f32 %v1856, %v2406
      %v2439 = vmul.f32 %v1857, %v2407
      %v2440 = vmul.f32 %v1858, %v2408
      %v2441 = vmul.f32 %v1859, %v2409
      %v2442 = vmul.f32 %v1860, %v2410
      %v2443 = vmul.f32 %v1861, %v2411
      %v2444 = vmul.f32 %v1862, %v2412
      %v2445 = vmul.f32 %v1863, %v2413
      %v2446 = vmul.f32 %v1864, %v2414
      %v2447 = vmul.f32 %v1865, %v2415
      %v2448 = vmul.f32 %v1866, %v2416
      %v2449 = vmul.f32 %v1867, %v2417
      %v2450 = vmul.f32 %v1868, %v2418
      %v2451 = vmul.f32 %v1869, %v2419
      %v2452 = vmul.f32 %v1870, %v2420
      %v2453 = vmul.f32 %v1871, %v2421
      %v2454 = vmul.f32 %v1872, %v2422
      %v2455 = vmul.f32 %v1873, %v2423
      %v2456 = vmul.f32 %v1874, %v2424
      %v2457 = vmul.f32 %v1875, %v2425
      %v2458 = vmul.f32 %v1876, %v2426
      %v2459 = vmul.f32 %v1877, %v2427
      %v2460 = vmul.f32 %v1878, %v2428
      %v2461 = vmul.f32 %v1879, %v2429
      %v2462 = vmul.f32 %v1880, %v2430
      %v2463 = vmul.f32 %v1881, %v2431
      %v2464 = vmul.f32 %v1882, %v2432
      %v2465 = vmul.f32 %v1883, %v2433
      %v2466 = vmul.f32 %v1884, %v2434
      %vm2467 = vcmp.ne.f32.partialorder %v2435, %v2435
      %vm2468 = vcmp.ne.f32.partialorder %v2436, %v2436
      %vm2469 = vcmp.ne.f32.partialorder %v2437, %v2437
      %vm2470 = vcmp.ne.f32.partialorder %v2438, %v2438
      %vm2471 = vcmp.ne.f32.partialorder %v2439, %v2439
      %vm2472 = vcmp.ne.f32.partialorder %v2440, %v2440
      %vm2473 = vcmp.ne.f32.partialorder %v2441, %v2441
      %vm2474 = vcmp.ne.f32.partialorder %v2442, %v2442
      %vm2475 = vcmp.ne.f32.partialorder %v2443, %v2443
      %vm2476 = vcmp.ne.f32.partialorder %v2444, %v2444
      %vm2477 = vcmp.ne.f32.partialorder %v2445, %v2445
      %vm2478 = vcmp.ne.f32.partialorder %v2446, %v2446
      %vm2479 = vcmp.ne.f32.partialorder %v2447, %v2447
      %vm2480 = vcmp.ne.f32.partialorder %v2448, %v2448
      %vm2481 = vcmp.ne.f32.partialorder %v2449, %v2449
      %vm2482 = vcmp.ne.f32.partialorder %v2450, %v2450
      %vm2483 = vcmp.ne.f32.partialorder %v2451, %v2451
      %vm2484 = vcmp.ne.f32.partialorder %v2452, %v2452
      %vm2485 = vcmp.ne.f32.partialorder %v2453, %v2453
      %vm2486 = vcmp.ne.f32.partialorder %v2454, %v2454
      %vm2487 = vcmp.ne.f32.partialorder %v2455, %v2455
      %vm2488 = vcmp.ne.f32.partialorder %v2456, %v2456
      %vm2489 = vcmp.ne.f32.partialorder %v2457, %v2457
      %vm2490 = vcmp.ne.f32.partialorder %v2458, %v2458
      %vm2491 = vcmp.ne.f32.partialorder %v2459, %v2459
      %vm2492 = vcmp.ne.f32.partialorder %v2460, %v2460
      %vm2493 = vcmp.ne.f32.partialorder %v2461, %v2461
      %vm2494 = vcmp.ne.f32.partialorder %v2462, %v2462
      %vm2495 = vcmp.ne.f32.partialorder %v2463, %v2463
      %vm2496 = vcmp.ne.f32.partialorder %v2464, %v2464
      %vm2497 = vcmp.ne.f32.partialorder %v2465, %v2465
      %vm2498 = vcmp.ne.f32.partialorder %v2466, %v2466
      %v2499 = vsel %vm2467, 0.0, %v2435
      %v2500 = vsel %vm2468, 0.0, %v2436
      %v2501 = vsel %vm2469, 0.0, %v2437
      %v2502 = vsel %vm2470, 0.0, %v2438
      %v2503 = vsel %vm2471, 0.0, %v2439
      %v2504 = vsel %vm2472, 0.0, %v2440
      %v2505 = vsel %vm2473, 0.0, %v2441
      %v2506 = vsel %vm2474, 0.0, %v2442
      %v2507 = vsel %vm2475, 0.0, %v2443
      %v2508 = vsel %vm2476, 0.0, %v2444
      %v2509 = vsel %vm2477, 0.0, %v2445
      %v2510 = vsel %vm2478, 0.0, %v2446
      %v2511 = vsel %vm2479, 0.0, %v2447
      %v2512 = vsel %vm2480, 0.0, %v2448
      %v2513 = vsel %vm2481, 0.0, %v2449
      %v2514 = vsel %vm2482, 0.0, %v2450
      %v2515 = vsel %vm2483, 0.0, %v2451
      %v2516 = vsel %vm2484, 0.0, %v2452
      %v2517 = vsel %vm2485, 0.0, %v2453
      %v2518 = vsel %vm2486, 0.0, %v2454
      %v2519 = vsel %vm2487, 0.0, %v2455
      %v2520 = vsel %vm2488, 0.0, %v2456
      %v2521 = vsel %vm2489, 0.0, %v2457
      %v2522 = vsel %vm2490, 0.0, %v2458
      %v2523 = vsel %vm2491, 0.0, %v2459
      %v2524 = vsel %vm2492, 0.0, %v2460
      %v2525 = vsel %vm2493, 0.0, %v2461
      %v2526 = vsel %vm2494, 0.0, %v2462
      %v2527 = vsel %vm2495, 0.0, %v2463
      %v2528 = vsel %vm2496, 0.0, %v2464
      %v2529 = vsel %vm2497, 0.0, %v2465
      %v2530 = vsel %vm2498, 0.0, %v2466
      %v2531 = vmul.f32 %v2371, 2.0
      %v2532 = vmul.f32 %v2372, 2.0
      %v2533 = vmul.f32 %v2373, 2.0
      %v2534 = vmul.f32 %v2374, 2.0
      %v2535 = vmul.f32 %v2375, 2.0
      %v2536 = vmul.f32 %v2376, 2.0
      %v2537 = vmul.f32 %v2377, 2.0
      %v2538 = vmul.f32 %v2378, 2.0
      %v2539 = vmul.f32 %v2379, 2.0
      %v2540 = vmul.f32 %v2380, 2.0
      %v2541 = vmul.f32 %v2381, 2.0
      %v2542 = vmul.f32 %v2382, 2.0
      %v2543 = vmul.f32 %v2383, 2.0
      %v2544 = vmul.f32 %v2384, 2.0
      %v2545 = vmul.f32 %v2385, 2.0
      %v2546 = vmul.f32 %v2386, 2.0
      %v2547 = vmul.f32 %v2387, 2.0
      %v2548 = vmul.f32 %v2388, 2.0
      %v2549 = vmul.f32 %v2389, 2.0
      %v2550 = vmul.f32 %v2390, 2.0
      %v2551 = vmul.f32 %v2391, 2.0
      %v2552 = vmul.f32 %v2392, 2.0
      %v2553 = vmul.f32 %v2393, 2.0
      %v2554 = vmul.f32 %v2394, 2.0
      %v2555 = vmul.f32 %v2395, 2.0
      %v2556 = vmul.f32 %v2396, 2.0
      %v2557 = vmul.f32 %v2397, 2.0
      %v2558 = vmul.f32 %v2398, 2.0
      %v2559 = vmul.f32 %v2399, 2.0
      %v2560 = vmul.f32 %v2400, 2.0
      %v2561 = vmul.f32 %v2401, 2.0
      %v2562 = vmul.f32 %v2402, 2.0
      %v2563 = vmul.f32 %v2531, %v2308
      %v2564 = vmul.f32 %v2532, %v2310
      %v2565 = vmul.f32 %v2533, %v2312
      %v2566 = vmul.f32 %v2534, %v2314
      %v2567 = vmul.f32 %v2535, %v2316
      %v2568 = vmul.f32 %v2536, %v2318
      %v2569 = vmul.f32 %v2537, %v2320
      %v2570 = vmul.f32 %v2538, %v2322
      %v2571 = vmul.f32 %v2539, %v2324
      %v2572 = vmul.f32 %v2540, %v2326
      %v2573 = vmul.f32 %v2541, %v2328
      %v2574 = vmul.f32 %v2542, %v2330
      %v2575 = vmul.f32 %v2543, %v2332
      %v2576 = vmul.f32 %v2544, %v2334
      %v2577 = vmul.f32 %v2545, %v2336
      %v2578 = vmul.f32 %v2546, %v2338
      %v2579 = vmul.f32 %v2547, %v2340
      %v2580 = vmul.f32 %v2548, %v2342
      %v2581 = vmul.f32 %v2549, %v2344
      %v2582 = vmul.f32 %v2550, %v2346
      %v2583 = vmul.f32 %v2551, %v2348
      %v2584 = vmul.f32 %v2552, %v2350
      %v2585 = vmul.f32 %v2553, %v2352
      %v2586 = vmul.f32 %v2554, %v2354
      %v2587 = vmul.f32 %v2555, %v2356
      %v2588 = vmul.f32 %v2556, %v2358
      %v2589 = vmul.f32 %v2557, %v2360
      %v2590 = vmul.f32 %v2558, %v2362
      %v2591 = vmul.f32 %v2559, %v2364
      %v2592 = vmul.f32 %v2560, %v2366
      %v2593 = vmul.f32 %v2561, %v2368
      %v2594 = vmul.f32 %v2562, %v2370
      %v2595 = vsub.f32 %v2371, %v2563
      %v2596 = vsub.f32 %v2372, %v2564
      %v2597 = vsub.f32 %v2373, %v2565
      %v2598 = vsub.f32 %v2374, %v2566
      %v2599 = vsub.f32 %v2375, %v2567
      %v2600 = vsub.f32 %v2376, %v2568
      %v2601 = vsub.f32 %v2377, %v2569
      %v2602 = vsub.f32 %v2378, %v2570
      %v2603 = vsub.f32 %v2379, %v2571
      %v2604 = vsub.f32 %v2380, %v2572
      %v2605 = vsub.f32 %v2381, %v2573
      %v2606 = vsub.f32 %v2382, %v2574
      %v2607 = vsub.f32 %v2383, %v2575
      %v2608 = vsub.f32 %v2384, %v2576
      %v2609 = vsub.f32 %v2385, %v2577
      %v2610 = vsub.f32 %v2386, %v2578
      %v2611 = vsub.f32 %v2387, %v2579
      %v2612 = vsub.f32 %v2388, %v2580
      %v2613 = vsub.f32 %v2389, %v2581
      %v2614 = vsub.f32 %v2390, %v2582
      %v2615 = vsub.f32 %v2391, %v2583
      %v2616 = vsub.f32 %v2392, %v2584
      %v2617 = vsub.f32 %v2393, %v2585
      %v2618 = vsub.f32 %v2394, %v2586
      %v2619 = vsub.f32 %v2395, %v2587
      %v2620 = vsub.f32 %v2396, %v2588
      %v2621 = vsub.f32 %v2397, %v2589
      %v2622 = vsub.f32 %v2398, %v2590
      %v2623 = vsub.f32 %v2399, %v2591
      %v2624 = vsub.f32 %v2400, %v2592
      %v2625 = vsub.f32 %v2401, %v2593
      %v2626 = vsub.f32 %v2402, %v2594
      %v2627 = vmul.f32 %v1853, %v2595
      %v2628 = vmul.f32 %v1854, %v2596
      %v2629 = vmul.f32 %v1855, %v2597
      %v2630 = vmul.f32 %v1856, %v2598
      %v2631 = vmul.f32 %v1857, %v2599
      %v2632 = vmul.f32 %v1858, %v2600
      %v2633 = vmul.f32 %v1859, %v2601
      %v2634 = vmul.f32 %v1860, %v2602
      %v2635 = vmul.f32 %v1861, %v2603
      %v2636 = vmul.f32 %v1862, %v2604
      %v2637 = vmul.f32 %v1863, %v2605
      %v2638 = vmul.f32 %v1864, %v2606
      %v2639 = vmul.f32 %v1865, %v2607
      %v2640 = vmul.f32 %v1866, %v2608
      %v2641 = vmul.f32 %v1867, %v2609
      %v2642 = vmul.f32 %v1868, %v2610
      %v2643 = vmul.f32 %v1869, %v2611
      %v2644 = vmul.f32 %v1870, %v2612
      %v2645 = vmul.f32 %v1871, %v2613
      %v2646 = vmul.f32 %v1872, %v2614
      %v2647 = vmul.f32 %v1873, %v2615
      %v2648 = vmul.f32 %v1874, %v2616
      %v2649 = vmul.f32 %v1875, %v2617
      %v2650 = vmul.f32 %v1876, %v2618
      %v2651 = vmul.f32 %v1877, %v2619
      %v2652 = vmul.f32 %v1878, %v2620
      %v2653 = vmul.f32 %v1879, %v2621
      %v2654 = vmul.f32 %v1880, %v2622
      %v2655 = vmul.f32 %v1881, %v2623
      %v2656 = vmul.f32 %v1882, %v2624
      %v2657 = vmul.f32 %v1883, %v2625
      %v2658 = vmul.f32 %v1884, %v2626
      %v2659 = vmul.f32 %v2627, %v1955
      %v2660 = vmul.f32 %v2628, %v1956
      %v2661 = vmul.f32 %v2629, %v1957
      %v2662 = vmul.f32 %v2630, %v1958
      %v2663 = vmul.f32 %v2631, %v1959
      %v2664 = vmul.f32 %v2632, %v1960
      %v2665 = vmul.f32 %v2633, %v1961
      %v2666 = vmul.f32 %v2634, %v1962
      %v2667 = vmul.f32 %v2635, %v1963
      %v2668 = vmul.f32 %v2636, %v1964
      %v2669 = vmul.f32 %v2637, %v1965
      %v2670 = vmul.f32 %v2638, %v1966
      %v2671 = vmul.f32 %v2639, %v1967
      %v2672 = vmul.f32 %v2640, %v1968
      %v2673 = vmul.f32 %v2641, %v1969
      %v2674 = vmul.f32 %v2642, %v1970
      %v2675 = vmul.f32 %v2643, %v1971
      %v2676 = vmul.f32 %v2644, %v1972
      %v2677 = vmul.f32 %v2645, %v1973
      %v2678 = vmul.f32 %v2646, %v1974
      %v2679 = vmul.f32 %v2647, %v1975
      %v2680 = vmul.f32 %v2648, %v1976
      %v2681 = vmul.f32 %v2649, %v1977
      %v2682 = vmul.f32 %v2650, %v1978
      %v2683 = vmul.f32 %v2651, %v1979
      %v2684 = vmul.f32 %v2652, %v1980
      %v2685 = vmul.f32 %v2653, %v1981
      %v2686 = vmul.f32 %v2654, %v1982
      %v2687 = vmul.f32 %v2655, %v1983
      %v2688 = vmul.f32 %v2656, %v1984
      %v2689 = vmul.f32 %v2657, %v1985
      %v2690 = vmul.f32 %v2658, %v1986
      %v2691 = vsub.f32 0.0, %v1339
      %v2692 = vsub.f32 0.0, %v1340
      %v2693 = vsub.f32 0.0, %v1341
      %v2694 = vsub.f32 0.0, %v1342
      %v2695 = vsub.f32 0.0, %v1343
      %v2696 = vsub.f32 0.0, %v1344
      %v2697 = vsub.f32 0.0, %v1345
      %v2698 = vsub.f32 0.0, %v1346
      %v2699 = vsub.f32 0.0, %v1347
      %v2700 = vsub.f32 0.0, %v1348
      %v2701 = vsub.f32 0.0, %v1349
      %v2702 = vsub.f32 0.0, %v1350
      %v2703 = vsub.f32 0.0, %v1351
      %v2704 = vsub.f32 0.0, %v1352
      %v2705 = vsub.f32 0.0, %v1353
      %v2706 = vsub.f32 0.0, %v1354
      %v2707 = vsub.f32 0.0, %v1355
      %v2708 = vsub.f32 0.0, %v1356
      %v2709 = vsub.f32 0.0, %v1357
      %v2710 = vsub.f32 0.0, %v1358
      %v2711 = vsub.f32 0.0, %v1359
      %v2712 = vsub.f32 0.0, %v1360
      %v2713 = vsub.f32 0.0, %v1361
      %v2714 = vsub.f32 0.0, %v1362
      %v2715 = vsub.f32 0.0, %v1363
      %v2716 = vsub.f32 0.0, %v1364
      %v2717 = vsub.f32 0.0, %v1365
      %v2718 = vsub.f32 0.0, %v1366
      %v2719 = vsub.f32 0.0, %v1367
      %v2720 = vsub.f32 0.0, %v1368
      %v2721 = vsub.f32 0.0, %v1369
      %v2722 = vsub.f32 0.0, %v1370
      %v2723 = vmul.f32 %v2691, 1.442695
      %v2724 = vpow.pop %v2723
      %v2725 = vmul.f32 %v2692, 1.442695
      %v2726 = vpow.pop %v2725
      %v2727 = vmul.f32 %v2693, 1.442695
      %v2728 = vpow.pop %v2727
      %v2729 = vmul.f32 %v2694, 1.442695
      %v2730 = vpow.pop %v2729
      %v2731 = vmul.f32 %v2695, 1.442695
      %v2732 = vpow.pop %v2731
      %v2733 = vmul.f32 %v2696, 1.442695
      %v2734 = vpow.pop %v2733
      %v2735 = vmul.f32 %v2697, 1.442695
      %v2736 = vpow.pop %v2735
      %v2737 = vmul.f32 %v2698, 1.442695
      %v2738 = vpow.pop %v2737
      %v2739 = vmul.f32 %v2699, 1.442695
      %v2740 = vpow.pop %v2739
      %v2741 = vmul.f32 %v2700, 1.442695
      %v2742 = vpow.pop %v2741
      %v2743 = vmul.f32 %v2701, 1.442695
      %v2744 = vpow.pop %v2743
      %v2745 = vmul.f32 %v2702, 1.442695
      %v2746 = vpow.pop %v2745
      %v2747 = vmul.f32 %v2703, 1.442695
      %v2748 = vpow.pop %v2747
      %v2749 = vmul.f32 %v2704, 1.442695
      %v2750 = vpow.pop %v2749
      %v2751 = vmul.f32 %v2705, 1.442695
      %v2752 = vpow.pop %v2751
      %v2753 = vmul.f32 %v2706, 1.442695
      %v2754 = vpow.pop %v2753
      %v2755 = vmul.f32 %v2707, 1.442695
      %v2756 = vpow.pop %v2755
      %v2757 = vmul.f32 %v2708, 1.442695
      %v2758 = vpow.pop %v2757
      %v2759 = vmul.f32 %v2709, 1.442695
      %v2760 = vpow.pop %v2759
      %v2761 = vmul.f32 %v2710, 1.442695
      %v2762 = vpow.pop %v2761
      %v2763 = vmul.f32 %v2711, 1.442695
      %v2764 = vpow.pop %v2763
      %v2765 = vmul.f32 %v2712, 1.442695
      %v2766 = vpow.pop %v2765
      %v2767 = vmul.f32 %v2713, 1.442695
      %v2768 = vpow.pop %v2767
      %v2769 = vmul.f32 %v2714, 1.442695
      %v2770 = vpow.pop %v2769
      %v2771 = vmul.f32 %v2715, 1.442695
      %v2772 = vpow.pop %v2771
      %v2773 = vmul.f32 %v2716, 1.442695
      %v2774 = vpow.pop %v2773
      %v2775 = vmul.f32 %v2717, 1.442695
      %v2776 = vpow.pop %v2775
      %v2777 = vmul.f32 %v2718, 1.442695
      %v2778 = vpow.pop %v2777
      %v2779 = vmul.f32 %v2719, 1.442695
      %v2780 = vpow.pop %v2779
      %v2781 = vmul.f32 %v2720, 1.442695
      %v2782 = vpow.pop %v2781
      %v2783 = vmul.f32 %v2721, 1.442695
      %v2784 = vpow.pop %v2783
      %v2785 = vmul.f32 %v2722, 1.442695
      %v2786 = vpow.pop %v2785
      %v2787 = vadd.f32 %v2724, 1.0
      %v2788 = vadd.f32 %v2726, 1.0
      %v2789 = vadd.f32 %v2728, 1.0
      %v2790 = vadd.f32 %v2730, 1.0
      %v2791 = vadd.f32 %v2732, 1.0
      %v2792 = vadd.f32 %v2734, 1.0
      %v2793 = vadd.f32 %v2736, 1.0
      %v2794 = vadd.f32 %v2738, 1.0
      %v2795 = vadd.f32 %v2740, 1.0
      %v2796 = vadd.f32 %v2742, 1.0
      %v2797 = vadd.f32 %v2744, 1.0
      %v2798 = vadd.f32 %v2746, 1.0
      %v2799 = vadd.f32 %v2748, 1.0
      %v2800 = vadd.f32 %v2750, 1.0
      %v2801 = vadd.f32 %v2752, 1.0
      %v2802 = vadd.f32 %v2754, 1.0
      %v2803 = vadd.f32 %v2756, 1.0
      %v2804 = vadd.f32 %v2758, 1.0
      %v2805 = vadd.f32 %v2760, 1.0
      %v2806 = vadd.f32 %v2762, 1.0
      %v2807 = vadd.f32 %v2764, 1.0
      %v2808 = vadd.f32 %v2766, 1.0
      %v2809 = vadd.f32 %v2768, 1.0
      %v2810 = vadd.f32 %v2770, 1.0
      %v2811 = vadd.f32 %v2772, 1.0
      %v2812 = vadd.f32 %v2774, 1.0
      %v2813 = vadd.f32 %v2776, 1.0
      %v2814 = vadd.f32 %v2778, 1.0
      %v2815 = vadd.f32 %v2780, 1.0
      %v2816 = vadd.f32 %v2782, 1.0
      %v2817 = vadd.f32 %v2784, 1.0
      %v2818 = vadd.f32 %v2786, 1.0
      %v2819 = vrcp.pop %v2787
      %v2820 = vmul.f32 1.0, %v2819
      %v2821 = vrcp.pop %v2788
      %v2822 = vmul.f32 1.0, %v2821
      %v2823 = vrcp.pop %v2789
      %v2824 = vmul.f32 1.0, %v2823
      %v2825 = vrcp.pop %v2790
      %v2826 = vmul.f32 1.0, %v2825
      %v2827 = vrcp.pop %v2791
      %v2828 = vmul.f32 1.0, %v2827
      %v2829 = vrcp.pop %v2792
      %v2830 = vmul.f32 1.0, %v2829
      %v2831 = vrcp.pop %v2793
      %v2832 = vmul.f32 1.0, %v2831
      %v2833 = vrcp.pop %v2794
      %v2834 = vmul.f32 1.0, %v2833
      %v2835 = vrcp.pop %v2795
      %v2836 = vmul.f32 1.0, %v2835
      %v2837 = vrcp.pop %v2796
      %v2838 = vmul.f32 1.0, %v2837
      %v2839 = vrcp.pop %v2797
      %v2840 = vmul.f32 1.0, %v2839
      %v2841 = vrcp.pop %v2798
      %v2842 = vmul.f32 1.0, %v2841
      %v2843 = vrcp.pop %v2799
      %v2844 = vmul.f32 1.0, %v2843
      %v2845 = vrcp.pop %v2800
      %v2846 = vmul.f32 1.0, %v2845
      %v2847 = vrcp.pop %v2801
      %v2848 = vmul.f32 1.0, %v2847
      %v2849 = vrcp.pop %v2802
      %v2850 = vmul.f32 1.0, %v2849
      %v2851 = vrcp.pop %v2803
      %v2852 = vmul.f32 1.0, %v2851
      %v2853 = vrcp.pop %v2804
      %v2854 = vmul.f32 1.0, %v2853
      %v2855 = vrcp.pop %v2805
      %v2856 = vmul.f32 1.0, %v2855
      %v2857 = vrcp.pop %v2806
      %v2858 = vmul.f32 1.0, %v2857
      %v2859 = vrcp.pop %v2807
      %v2860 = vmul.f32 1.0, %v2859
      %v2861 = vrcp.pop %v2808
      %v2862 = vmul.f32 1.0, %v2861
      %v2863 = vrcp.pop %v2809
      %v2864 = vmul.f32 1.0, %v2863
      %v2865 = vrcp.pop %v2810
      %v2866 = vmul.f32 1.0, %v2865
      %v2867 = vrcp.pop %v2811
      %v2868 = vmul.f32 1.0, %v2867
      %v2869 = vrcp.pop %v2812
      %v2870 = vmul.f32 1.0, %v2869
      %v2871 = vrcp.pop %v2813
      %v2872 = vmul.f32 1.0, %v2871
      %v2873 = vrcp.pop %v2814
      %v2874 = vmul.f32 1.0, %v2873
      %v2875 = vrcp.pop %v2815
      %v2876 = vmul.f32 1.0, %v2875
      %v2877 = vrcp.pop %v2816
      %v2878 = vmul.f32 1.0, %v2877
      %v2879 = vrcp.pop %v2817
      %v2880 = vmul.f32 1.0, %v2879
      %v2881 = vrcp.pop %v2818
      %v2882 = vmul.f32 1.0, %v2881
      %v2883 = vmul.f32 %v2659, %v2820
      %v2884 = vmul.f32 %v2660, %v2822
      %v2885 = vmul.f32 %v2661, %v2824
      %v2886 = vmul.f32 %v2662, %v2826
      %v2887 = vmul.f32 %v2663, %v2828
      %v2888 = vmul.f32 %v2664, %v2830
      %v2889 = vmul.f32 %v2665, %v2832
      %v2890 = vmul.f32 %v2666, %v2834
      %v2891 = vmul.f32 %v2667, %v2836
      %v2892 = vmul.f32 %v2668, %v2838
      %v2893 = vmul.f32 %v2669, %v2840
      %v2894 = vmul.f32 %v2670, %v2842
      %v2895 = vmul.f32 %v2671, %v2844
      %v2896 = vmul.f32 %v2672, %v2846
      %v2897 = vmul.f32 %v2673, %v2848
      %v2898 = vmul.f32 %v2674, %v2850
      %v2899 = vmul.f32 %v2675, %v2852
      %v2900 = vmul.f32 %v2676, %v2854
      %v2901 = vmul.f32 %v2677, %v2856
      %v2902 = vmul.f32 %v2678, %v2858
      %v2903 = vmul.f32 %v2679, %v2860
      %v2904 = vmul.f32 %v2680, %v2862
      %v2905 = vmul.f32 %v2681, %v2864
      %v2906 = vmul.f32 %v2682, %v2866
      %v2907 = vmul.f32 %v2683, %v2868
      %v2908 = vmul.f32 %v2684, %v2870
      %v2909 = vmul.f32 %v2685, %v2872
      %v2910 = vmul.f32 %v2686, %v2874
      %v2911 = vmul.f32 %v2687, %v2876
      %v2912 = vmul.f32 %v2688, %v2878
      %v2913 = vmul.f32 %v2689, %v2880
      %v2914 = vmul.f32 %v2690, %v2882
      %v2915 = vmax.f32 %v1447, 0.0
      %v2916 = vmax.f32 %v1448, 0.0
      %v2917 = vmax.f32 %v1449, 0.0
      %v2918 = vmax.f32 %v1450, 0.0
      %v2919 = vmax.f32 %v1451, 0.0
      %v2920 = vmax.f32 %v1452, 0.0
      %v2921 = vmax.f32 %v1453, 0.0
      %v2922 = vmax.f32 %v1454, 0.0
      %v2923 = vmax.f32 %v1455, 0.0
      %v2924 = vmax.f32 %v1456, 0.0
      %v2925 = vmax.f32 %v1457, 0.0
      %v2926 = vmax.f32 %v1458, 0.0
      %v2927 = vmax.f32 %v1459, 0.0
      %v2928 = vmax.f32 %v1460, 0.0
      %v2929 = vmax.f32 %v1461, 0.0
      %v2930 = vmax.f32 %v1462, 0.0
      %v2931 = vmax.f32 %v1463, 0.0
      %v2932 = vmax.f32 %v1464, 0.0
      %v2933 = vmax.f32 %v1465, 0.0
      %v2934 = vmax.f32 %v1466, 0.0
      %v2935 = vmax.f32 %v1467, 0.0
      %v2936 = vmax.f32 %v1468, 0.0
      %v2937 = vmax.f32 %v1469, 0.0
      %v2938 = vmax.f32 %v1470, 0.0
      %v2939 = vmax.f32 %v1471, 0.0
      %v2940 = vmax.f32 %v1472, 0.0
      %v2941 = vmax.f32 %v1473, 0.0
      %v2942 = vmax.f32 %v1474, 0.0
      %v2943 = vmax.f32 %v1475, 0.0
      %v2944 = vmax.f32 %v1476, 0.0
      %v2945 = vmax.f32 %v1477, 0.0
      %v2946 = vmax.f32 %v1478, 0.0
      %v2947 = vand.u32 2147483647, %v1447
      %v2948 = vand.u32 2147483647, %v1448
      %v2949 = vand.u32 2147483647, %v1449
      %v2950 = vand.u32 2147483647, %v1450
      %v2951 = vand.u32 2147483647, %v1451
      %v2952 = vand.u32 2147483647, %v1452
      %v2953 = vand.u32 2147483647, %v1453
      %v2954 = vand.u32 2147483647, %v1454
      %v2955 = vand.u32 2147483647, %v1455
      %v2956 = vand.u32 2147483647, %v1456
      %v2957 = vand.u32 2147483647, %v1457
      %v2958 = vand.u32 2147483647, %v1458
      %v2959 = vand.u32 2147483647, %v1459
      %v2960 = vand.u32 2147483647, %v1460
      %v2961 = vand.u32 2147483647, %v1461
      %v2962 = vand.u32 2147483647, %v1462
      %v2963 = vand.u32 2147483647, %v1463
      %v2964 = vand.u32 2147483647, %v1464
      %v2965 = vand.u32 2147483647, %v1465
      %v2966 = vand.u32 2147483647, %v1466
      %v2967 = vand.u32 2147483647, %v1467
      %v2968 = vand.u32 2147483647, %v1468
      %v2969 = vand.u32 2147483647, %v1469
      %v2970 = vand.u32 2147483647, %v1470
      %v2971 = vand.u32 2147483647, %v1471
      %v2972 = vand.u32 2147483647, %v1472
      %v2973 = vand.u32 2147483647, %v1473
      %v2974 = vand.u32 2147483647, %v1474
      %v2975 = vand.u32 2147483647, %v1475
      %v2976 = vand.u32 2147483647, %v1476
      %v2977 = vand.u32 2147483647, %v1477
      %v2978 = vand.u32 2147483647, %v1478
      %v2979 = vsub.f32 0.0, %v2947
      %v2980 = vsub.f32 0.0, %v2948
      %v2981 = vsub.f32 0.0, %v2949
      %v2982 = vsub.f32 0.0, %v2950
      %v2983 = vsub.f32 0.0, %v2951
      %v2984 = vsub.f32 0.0, %v2952
      %v2985 = vsub.f32 0.0, %v2953
      %v2986 = vsub.f32 0.0, %v2954
      %v2987 = vsub.f32 0.0, %v2955
      %v2988 = vsub.f32 0.0, %v2956
      %v2989 = vsub.f32 0.0, %v2957
      %v2990 = vsub.f32 0.0, %v2958
      %v2991 = vsub.f32 0.0, %v2959
      %v2992 = vsub.f32 0.0, %v2960
      %v2993 = vsub.f32 0.0, %v2961
      %v2994 = vsub.f32 0.0, %v2962
      %v2995 = vsub.f32 0.0, %v2963
      %v2996 = vsub.f32 0.0, %v2964
      %v2997 = vsub.f32 0.0, %v2965
      %v2998 = vsub.f32 0.0, %v2966
      %v2999 = vsub.f32 0.0, %v2967
      %v3000 = vsub.f32 0.0, %v2968
      %v3001 = vsub.f32 0.0, %v2969
      %v3002 = vsub.f32 0.0, %v2970
      %v3003 = vsub.f32 0.0, %v2971
      %v3004 = vsub.f32 0.0, %v2972
      %v3005 = vsub.f32 0.0, %v2973
      %v3006 = vsub.f32 0.0, %v2974
      %v3007 = vsub.f32 0.0, %v2975
      %v3008 = vsub.f32 0.0, %v2976
      %v3009 = vsub.f32 0.0, %v2977
      %v3010 = vsub.f32 0.0, %v2978
      %v3011 = vmul.f32 %v2979, 1.442695
      %v3012 = vpow.pop %v3011
      %v3013 = vmul.f32 %v2980, 1.442695
      %v3014 = vpow.pop %v3013
      %v3015 = vmul.f32 %v2981, 1.442695
      %v3016 = vpow.pop %v3015
      %v3017 = vmul.f32 %v2982, 1.442695
      %v3018 = vpow.pop %v3017
      %v3019 = vmul.f32 %v2983, 1.442695
      %v3020 = vpow.pop %v3019
      %v3021 = vmul.f32 %v2984, 1.442695
      %v3022 = vpow.pop %v3021
      %v3023 = vmul.f32 %v2985, 1.442695
      %v3024 = vpow.pop %v3023
      %v3025 = vmul.f32 %v2986, 1.442695
      %v3026 = vpow.pop %v3025
      %v3027 = vmul.f32 %v2987, 1.442695
      %v3028 = vpow.pop %v3027
      %v3029 = vmul.f32 %v2988, 1.442695
      %v3030 = vpow.pop %v3029
      %v3031 = vmul.f32 %v2989, 1.442695
      %v3032 = vpow.pop %v3031
      %v3033 = vmul.f32 %v2990, 1.442695
      %v3034 = vpow.pop %v3033
      %v3035 = vmul.f32 %v2991, 1.442695
      %v3036 = vpow.pop %v3035
      %v3037 = vmul.f32 %v2992, 1.442695
      %v3038 = vpow.pop %v3037
      %v3039 = vmul.f32 %v2993, 1.442695
      %v3040 = vpow.pop %v3039
      %v3041 = vmul.f32 %v2994, 1.442695
      %v3042 = vpow.pop %v3041
      %v3043 = vmul.f32 %v2995, 1.442695
      %v3044 = vpow.pop %v3043
      %v3045 = vmul.f32 %v2996, 1.442695
      %v3046 = vpow.pop %v3045
      %v3047 = vmul.f32 %v2997, 1.442695
      %v3048 = vpow.pop %v3047
      %v3049 = vmul.f32 %v2998, 1.442695
      %v3050 = vpow.pop %v3049
      %v3051 = vmul.f32 %v2999, 1.442695
      %v3052 = vpow.pop %v3051
      %v3053 = vmul.f32 %v3000, 1.442695
      %v3054 = vpow.pop %v3053
      %v3055 = vmul.f32 %v3001, 1.442695
      %v3056 = vpow.pop %v3055
      %v3057 = vmul.f32 %v3002, 1.442695
      %v3058 = vpow.pop %v3057
      %v3059 = vmul.f32 %v3003, 1.442695
      %v3060 = vpow.pop %v3059
      %v3061 = vmul.f32 %v3004, 1.442695
      %v3062 = vpow.pop %v3061
      %v3063 = vmul.f32 %v3005, 1.442695
      %v3064 = vpow.pop %v3063
      %v3065 = vmul.f32 %v3006, 1.442695
      %v3066 = vpow.pop %v3065
      %v3067 = vmul.f32 %v3007, 1.442695
      %v3068 = vpow.pop %v3067
      %v3069 = vmul.f32 %v3008, 1.442695
      %v3070 = vpow.pop %v3069
      %v3071 = vmul.f32 %v3009, 1.442695
      %v3072 = vpow.pop %v3071
      %v3073 = vmul.f32 %v3010, 1.442695
      %v3074 = vpow.pop %v3073
      %v3075 = vadd.f32 %v3012, 1.0
      %v3076 = vadd.f32 %v3014, 1.0
      %v3077 = vadd.f32 %v3016, 1.0
      %v3078 = vadd.f32 %v3018, 1.0
      %v3079 = vadd.f32 %v3020, 1.0
      %v3080 = vadd.f32 %v3022, 1.0
      %v3081 = vadd.f32 %v3024, 1.0
      %v3082 = vadd.f32 %v3026, 1.0
      %v3083 = vadd.f32 %v3028, 1.0
      %v3084 = vadd.f32 %v3030, 1.0
      %v3085 = vadd.f32 %v3032, 1.0
      %v3086 = vadd.f32 %v3034, 1.0
      %v3087 = vadd.f32 %v3036, 1.0
      %v3088 = vadd.f32 %v3038, 1.0
      %v3089 = vadd.f32 %v3040, 1.0
      %v3090 = vadd.f32 %v3042, 1.0
      %v3091 = vadd.f32 %v3044, 1.0
      %v3092 = vadd.f32 %v3046, 1.0
      %v3093 = vadd.f32 %v3048, 1.0
      %v3094 = vadd.f32 %v3050, 1.0
      %v3095 = vadd.f32 %v3052, 1.0
      %v3096 = vadd.f32 %v3054, 1.0
      %v3097 = vadd.f32 %v3056, 1.0
      %v3098 = vadd.f32 %v3058, 1.0
      %v3099 = vadd.f32 %v3060, 1.0
      %v3100 = vadd.f32 %v3062, 1.0
      %v3101 = vadd.f32 %v3064, 1.0
      %v3102 = vadd.f32 %v3066, 1.0
      %v3103 = vadd.f32 %v3068, 1.0
      %v3104 = vadd.f32 %v3070, 1.0
      %v3105 = vadd.f32 %v3072, 1.0
      %v3106 = vadd.f32 %v3074, 1.0
      %v3107 = vlog2.pop %v3075
      %v3108 = vmul.f32 %v3107, 0.6931472
      %v3109 = vlog2.pop %v3076
      %v3110 = vmul.f32 %v3109, 0.6931472
      %v3111 = vlog2.pop %v3077
      %v3112 = vmul.f32 %v3111, 0.6931472
      %v3113 = vlog2.pop %v3078
      %v3114 = vmul.f32 %v3113, 0.6931472
      %v3115 = vlog2.pop %v3079
      %v3116 = vmul.f32 %v3115, 0.6931472
      %v3117 = vlog2.pop %v3080
      %v3118 = vmul.f32 %v3117, 0.6931472
      %v3119 = vlog2.pop %v3081
      %v3120 = vmul.f32 %v3119, 0.6931472
      %v3121 = vlog2.pop %v3082
      %v3122 = vmul.f32 %v3121, 0.6931472
      %v3123 = vlog2.pop %v3083
      %v3124 = vmul.f32 %v3123, 0.6931472
      %v3125 = vlog2.pop %v3084
      %v3126 = vmul.f32 %v3125, 0.6931472
      %v3127 = vlog2.pop %v3085
      %v3128 = vmul.f32 %v3127, 0.6931472
      %v3129 = vlog2.pop %v3086
      %v3130 = vmul.f32 %v3129, 0.6931472
      %v3131 = vlog2.pop %v3087
      %v3132 = vmul.f32 %v3131, 0.6931472
      %v3133 = vlog2.pop %v3088
      %v3134 = vmul.f32 %v3133, 0.6931472
      %v3135 = vlog2.pop %v3089
      %v3136 = vmul.f32 %v3135, 0.6931472
      %v3137 = vlog2.pop %v3090
      %v3138 = vmul.f32 %v3137, 0.6931472
      %v3139 = vlog2.pop %v3091
      %v3140 = vmul.f32 %v3139, 0.6931472
      %v3141 = vlog2.pop %v3092
      %v3142 = vmul.f32 %v3141, 0.6931472
      %v3143 = vlog2.pop %v3093
      %v3144 = vmul.f32 %v3143, 0.6931472
      %v3145 = vlog2.pop %v3094
      %v3146 = vmul.f32 %v3145, 0.6931472
      %v3147 = vlog2.pop %v3095
      %v3148 = vmul.f32 %v3147, 0.6931472
      %v3149 = vlog2.pop %v3096
      %v3150 = vmul.f32 %v3149, 0.6931472
      %v3151 = vlog2.pop %v3097
      %v3152 = vmul.f32 %v3151, 0.6931472
      %v3153 = vlog2.pop %v3098
      %v3154 = vmul.f32 %v3153, 0.6931472
      %v3155 = vlog2.pop %v3099
      %v3156 = vmul.f32 %v3155, 0.6931472
      %v3157 = vlog2.pop %v3100
      %v3158 = vmul.f32 %v3157, 0.6931472
      %v3159 = vlog2.pop %v3101
      %v3160 = vmul.f32 %v3159, 0.6931472
      %v3161 = vlog2.pop %v3102
      %v3162 = vmul.f32 %v3161, 0.6931472
      %v3163 = vlog2.pop %v3103
      %v3164 = vmul.f32 %v3163, 0.6931472
      %v3165 = vlog2.pop %v3104
      %v3166 = vmul.f32 %v3165, 0.6931472
      %v3167 = vlog2.pop %v3105
      %v3168 = vmul.f32 %v3167, 0.6931472
      %v3169 = vlog2.pop %v3106
      %v3170 = vmul.f32 %v3169, 0.6931472
      %v3171 = vadd.f32 %v2915, %v3108
      %v3172 = vadd.f32 %v2916, %v3110
      %v3173 = vadd.f32 %v2917, %v3112
      %v3174 = vadd.f32 %v2918, %v3114
      %v3175 = vadd.f32 %v2919, %v3116
      %v3176 = vadd.f32 %v2920, %v3118
      %v3177 = vadd.f32 %v2921, %v3120
      %v3178 = vadd.f32 %v2922, %v3122
      %v3179 = vadd.f32 %v2923, %v3124
      %v3180 = vadd.f32 %v2924, %v3126
      %v3181 = vadd.f32 %v2925, %v3128
      %v3182 = vadd.f32 %v2926, %v3130
      %v3183 = vadd.f32 %v2927, %v3132
      %v3184 = vadd.f32 %v2928, %v3134
      %v3185 = vadd.f32 %v2929, %v3136
      %v3186 = vadd.f32 %v2930, %v3138
      %v3187 = vadd.f32 %v2931, %v3140
      %v3188 = vadd.f32 %v2932, %v3142
      %v3189 = vadd.f32 %v2933, %v3144
      %v3190 = vadd.f32 %v2934, %v3146
      %v3191 = vadd.f32 %v2935, %v3148
      %v3192 = vadd.f32 %v2936, %v3150
      %v3193 = vadd.f32 %v2937, %v3152
      %v3194 = vadd.f32 %v2938, %v3154
      %v3195 = vadd.f32 %v2939, %v3156
      %v3196 = vadd.f32 %v2940, %v3158
      %v3197 = vadd.f32 %v2941, %v3160
      %v3198 = vadd.f32 %v2942, %v3162
      %v3199 = vadd.f32 %v2943, %v3164
      %v3200 = vadd.f32 %v2944, %v3166
      %v3201 = vadd.f32 %v2945, %v3168
      %v3202 = vadd.f32 %v2946, %v3170
      %v3203 = vsel %vm1923, 1.0, %v3171
      %v3204 = vsel %vm1924, 1.0, %v3172
      %v3205 = vsel %vm1925, 1.0, %v3173
      %v3206 = vsel %vm1926, 1.0, %v3174
      %v3207 = vsel %vm1927, 1.0, %v3175
      %v3208 = vsel %vm1928, 1.0, %v3176
      %v3209 = vsel %vm1929, 1.0, %v3177
      %v3210 = vsel %vm1930, 1.0, %v3178
      %v3211 = vsel %vm1931, 1.0, %v3179
      %v3212 = vsel %vm1932, 1.0, %v3180
      %v3213 = vsel %vm1933, 1.0, %v3181
      %v3214 = vsel %vm1934, 1.0, %v3182
      %v3215 = vsel %vm1935, 1.0, %v3183
      %v3216 = vsel %vm1936, 1.0, %v3184
      %v3217 = vsel %vm1937, 1.0, %v3185
      %v3218 = vsel %vm1938, 1.0, %v3186
      %v3219 = vsel %vm1939, 1.0, %v3187
      %v3220 = vsel %vm1940, 1.0, %v3188
      %v3221 = vsel %vm1941, 1.0, %v3189
      %v3222 = vsel %vm1942, 1.0, %v3190
      %v3223 = vsel %vm1943, 1.0, %v3191
      %v3224 = vsel %vm1944, 1.0, %v3192
      %v3225 = vsel %vm1945, 1.0, %v3193
      %v3226 = vsel %vm1946, 1.0, %v3194
      %v3227 = vsel %vm1947, 1.0, %v3195
      %v3228 = vsel %vm1948, 1.0, %v3196
      %v3229 = vsel %vm1949, 1.0, %v3197
      %v3230 = vsel %vm1950, 1.0, %v3198
      %v3231 = vsel %vm1951, 1.0, %v3199
      %v3232 = vsel %vm1952, 1.0, %v3200
      %v3233 = vsel %vm1953, 1.0, %v3201
      %v3234 = vsel %vm1954, 1.0, %v3202
      %v3235 = vrcp.pop %v3203
      %v3236 = vmul.f32 1.0, %v3235
      %v3237 = vrcp.pop %v3204
      %v3238 = vmul.f32 1.0, %v3237
      %v3239 = vrcp.pop %v3205
      %v3240 = vmul.f32 1.0, %v3239
      %v3241 = vrcp.pop %v3206
      %v3242 = vmul.f32 1.0, %v3241
      %v3243 = vrcp.pop %v3207
      %v3244 = vmul.f32 1.0, %v3243
      %v3245 = vrcp.pop %v3208
      %v3246 = vmul.f32 1.0, %v3245
      %v3247 = vrcp.pop %v3209
      %v3248 = vmul.f32 1.0, %v3247
      %v3249 = vrcp.pop %v3210
      %v3250 = vmul.f32 1.0, %v3249
      %v3251 = vrcp.pop %v3211
      %v3252 = vmul.f32 1.0, %v3251
      %v3253 = vrcp.pop %v3212
      %v3254 = vmul.f32 1.0, %v3253
      %v3255 = vrcp.pop %v3213
      %v3256 = vmul.f32 1.0, %v3255
      %v3257 = vrcp.pop %v3214
      %v3258 = vmul.f32 1.0, %v3257
      %v3259 = vrcp.pop %v3215
      %v3260 = vmul.f32 1.0, %v3259
      %v3261 = vrcp.pop %v3216
      %v3262 = vmul.f32 1.0, %v3261
      %v3263 = vrcp.pop %v3217
      %v3264 = vmul.f32 1.0, %v3263
      %v3265 = vrcp.pop %v3218
      %v3266 = vmul.f32 1.0, %v3265
      %v3267 = vrcp.pop %v3219
      %v3268 = vmul.f32 1.0, %v3267
      %v3269 = vrcp.pop %v3220
      %v3270 = vmul.f32 1.0, %v3269
      %v3271 = vrcp.pop %v3221
      %v3272 = vmul.f32 1.0, %v3271
      %v3273 = vrcp.pop %v3222
      %v3274 = vmul.f32 1.0, %v3273
      %v3275 = vrcp.pop %v3223
      %v3276 = vmul.f32 1.0, %v3275
      %v3277 = vrcp.pop %v3224
      %v3278 = vmul.f32 1.0, %v3277
      %v3279 = vrcp.pop %v3225
      %v3280 = vmul.f32 1.0, %v3279
      %v3281 = vrcp.pop %v3226
      %v3282 = vmul.f32 1.0, %v3281
      %v3283 = vrcp.pop %v3227
      %v3284 = vmul.f32 1.0, %v3283
      %v3285 = vrcp.pop %v3228
      %v3286 = vmul.f32 1.0, %v3285
      %v3287 = vrcp.pop %v3229
      %v3288 = vmul.f32 1.0, %v3287
      %v3289 = vrcp.pop %v3230
      %v3290 = vmul.f32 1.0, %v3289
      %v3291 = vrcp.pop %v3231
      %v3292 = vmul.f32 1.0, %v3291
      %v3293 = vrcp.pop %v3232
      %v3294 = vmul.f32 1.0, %v3293
      %v3295 = vrcp.pop %v3233
      %v3296 = vmul.f32 1.0, %v3295
      %v3297 = vrcp.pop %v3234
      %v3298 = vmul.f32 1.0, %v3297
      %v3299 = vmul.f32 %v3236, %v3236
      %v3300 = vmul.f32 %v3238, %v3238
      %v3301 = vmul.f32 %v3240, %v3240
      %v3302 = vmul.f32 %v3242, %v3242
      %v3303 = vmul.f32 %v3244, %v3244
      %v3304 = vmul.f32 %v3246, %v3246
      %v3305 = vmul.f32 %v3248, %v3248
      %v3306 = vmul.f32 %v3250, %v3250
      %v3307 = vmul.f32 %v3252, %v3252
      %v3308 = vmul.f32 %v3254, %v3254
      %v3309 = vmul.f32 %v3256, %v3256
      %v3310 = vmul.f32 %v3258, %v3258
      %v3311 = vmul.f32 %v3260, %v3260
      %v3312 = vmul.f32 %v3262, %v3262
      %v3313 = vmul.f32 %v3264, %v3264
      %v3314 = vmul.f32 %v3266, %v3266
      %v3315 = vmul.f32 %v3268, %v3268
      %v3316 = vmul.f32 %v3270, %v3270
      %v3317 = vmul.f32 %v3272, %v3272
      %v3318 = vmul.f32 %v3274, %v3274
      %v3319 = vmul.f32 %v3276, %v3276
      %v3320 = vmul.f32 %v3278, %v3278
      %v3321 = vmul.f32 %v3280, %v3280
      %v3322 = vmul.f32 %v3282, %v3282
      %v3323 = vmul.f32 %v3284, %v3284
      %v3324 = vmul.f32 %v3286, %v3286
      %v3325 = vmul.f32 %v3288, %v3288
      %v3326 = vmul.f32 %v3290, %v3290
      %v3327 = vmul.f32 %v3292, %v3292
      %v3328 = vmul.f32 %v3294, %v3294
      %v3329 = vmul.f32 %v3296, %v3296
      %v3330 = vmul.f32 %v3298, %v3298
      %v3331 = vmul.f32 %v3299, 2.0
      %v3332 = vmul.f32 %v3300, 2.0
      %v3333 = vmul.f32 %v3301, 2.0
      %v3334 = vmul.f32 %v3302, 2.0
      %v3335 = vmul.f32 %v3303, 2.0
      %v3336 = vmul.f32 %v3304, 2.0
      %v3337 = vmul.f32 %v3305, 2.0
      %v3338 = vmul.f32 %v3306, 2.0
      %v3339 = vmul.f32 %v3307, 2.0
      %v3340 = vmul.f32 %v3308, 2.0
      %v3341 = vmul.f32 %v3309, 2.0
      %v3342 = vmul.f32 %v3310, 2.0
      %v3343 = vmul.f32 %v3311, 2.0
      %v3344 = vmul.f32 %v3312, 2.0
      %v3345 = vmul.f32 %v3313, 2.0
      %v3346 = vmul.f32 %v3314, 2.0
      %v3347 = vmul.f32 %v3315, 2.0
      %v3348 = vmul.f32 %v3316, 2.0
      %v3349 = vmul.f32 %v3317, 2.0
      %v3350 = vmul.f32 %v3318, 2.0
      %v3351 = vmul.f32 %v3319, 2.0
      %v3352 = vmul.f32 %v3320, 2.0
      %v3353 = vmul.f32 %v3321, 2.0
      %v3354 = vmul.f32 %v3322, 2.0
      %v3355 = vmul.f32 %v3323, 2.0
      %v3356 = vmul.f32 %v3324, 2.0
      %v3357 = vmul.f32 %v3325, 2.0
      %v3358 = vmul.f32 %v3326, 2.0
      %v3359 = vmul.f32 %v3327, 2.0
      %v3360 = vmul.f32 %v3328, 2.0
      %v3361 = vmul.f32 %v3329, 2.0
      %v3362 = vmul.f32 %v3330, 2.0
      %v3363 = vmul.f32 %v3331, %v3236
      %v3364 = vmul.f32 %v3332, %v3238
      %v3365 = vmul.f32 %v3333, %v3240
      %v3366 = vmul.f32 %v3334, %v3242
      %v3367 = vmul.f32 %v3335, %v3244
      %v3368 = vmul.f32 %v3336, %v3246
      %v3369 = vmul.f32 %v3337, %v3248
      %v3370 = vmul.f32 %v3338, %v3250
      %v3371 = vmul.f32 %v3339, %v3252
      %v3372 = vmul.f32 %v3340, %v3254
      %v3373 = vmul.f32 %v3341, %v3256
      %v3374 = vmul.f32 %v3342, %v3258
      %v3375 = vmul.f32 %v3343, %v3260
      %v3376 = vmul.f32 %v3344, %v3262
      %v3377 = vmul.f32 %v3345, %v3264
      %v3378 = vmul.f32 %v3346, %v3266
      %v3379 = vmul.f32 %v3347, %v3268
      %v3380 = vmul.f32 %v3348, %v3270
      %v3381 = vmul.f32 %v3349, %v3272
      %v3382 = vmul.f32 %v3350, %v3274
      %v3383 = vmul.f32 %v3351, %v3276
      %v3384 = vmul.f32 %v3352, %v3278
      %v3385 = vmul.f32 %v3353, %v3280
      %v3386 = vmul.f32 %v3354, %v3282
      %v3387 = vmul.f32 %v3355, %v3284
      %v3388 = vmul.f32 %v3356, %v3286
      %v3389 = vmul.f32 %v3357, %v3288
      %v3390 = vmul.f32 %v3358, %v3290
      %v3391 = vmul.f32 %v3359, %v3292
      %v3392 = vmul.f32 %v3360, %v3294
      %v3393 = vmul.f32 %v3361, %v3296
      %v3394 = vmul.f32 %v3362, %v3298
      %v3395 = vsub.f32 %v3299, %v3363
      %v3396 = vsub.f32 %v3300, %v3364
      %v3397 = vsub.f32 %v3301, %v3365
      %v3398 = vsub.f32 %v3302, %v3366
      %v3399 = vsub.f32 %v3303, %v3367
      %v3400 = vsub.f32 %v3304, %v3368
      %v3401 = vsub.f32 %v3305, %v3369
      %v3402 = vsub.f32 %v3306, %v3370
      %v3403 = vsub.f32 %v3307, %v3371
      %v3404 = vsub.f32 %v3308, %v3372
      %v3405 = vsub.f32 %v3309, %v3373
      %v3406 = vsub.f32 %v3310, %v3374
      %v3407 = vsub.f32 %v3311, %v3375
      %v3408 = vsub.f32 %v3312, %v3376
      %v3409 = vsub.f32 %v3313, %v3377
      %v3410 = vsub.f32 %v3314, %v3378
      %v3411 = vsub.f32 %v3315, %v3379
      %v3412 = vsub.f32 %v3316, %v3380
      %v3413 = vsub.f32 %v3317, %v3381
      %v3414 = vsub.f32 %v3318, %v3382
      %v3415 = vsub.f32 %v3319, %v3383
      %v3416 = vsub.f32 %v3320, %v3384
      %v3417 = vsub.f32 %v3321, %v3385
      %v3418 = vsub.f32 %v3322, %v3386
      %v3419 = vsub.f32 %v3323, %v3387
      %v3420 = vsub.f32 %v3324, %v3388
      %v3421 = vsub.f32 %v3325, %v3389
      %v3422 = vsub.f32 %v3326, %v3390
      %v3423 = vsub.f32 %v3327, %v3391
      %v3424 = vsub.f32 %v3328, %v3392
      %v3425 = vsub.f32 %v3329, %v3393
      %v3426 = vsub.f32 %v3330, %v3394
      %v3427 = vmul.f32 %v1853, %v3395
      %v3428 = vmul.f32 %v1854, %v3396
      %v3429 = vmul.f32 %v1855, %v3397
      %v3430 = vmul.f32 %v1856, %v3398
      %v3431 = vmul.f32 %v1857, %v3399
      %v3432 = vmul.f32 %v1858, %v3400
      %v3433 = vmul.f32 %v1859, %v3401
      %v3434 = vmul.f32 %v1860, %v3402
      %v3435 = vmul.f32 %v1861, %v3403
      %v3436 = vmul.f32 %v1862, %v3404
      %v3437 = vmul.f32 %v1863, %v3405
      %v3438 = vmul.f32 %v1864, %v3406
      %v3439 = vmul.f32 %v1865, %v3407
      %v3440 = vmul.f32 %v1866, %v3408
      %v3441 = vmul.f32 %v1867, %v3409
      %v3442 = vmul.f32 %v1868, %v3410
      %v3443 = vmul.f32 %v1869, %v3411
      %v3444 = vmul.f32 %v1870, %v3412
      %v3445 = vmul.f32 %v1871, %v3413
      %v3446 = vmul.f32 %v1872, %v3414
      %v3447 = vmul.f32 %v1873, %v3415
      %v3448 = vmul.f32 %v1874, %v3416
      %v3449 = vmul.f32 %v1875, %v3417
      %v3450 = vmul.f32 %v1876, %v3418
      %v3451 = vmul.f32 %v1877, %v3419
      %v3452 = vmul.f32 %v1878, %v3420
      %v3453 = vmul.f32 %v1879, %v3421
      %v3454 = vmul.f32 %v1880, %v3422
      %v3455 = vmul.f32 %v1881, %v3423
      %v3456 = vmul.f32 %v1882, %v3424
      %v3457 = vmul.f32 %v1883, %v3425
      %v3458 = vmul.f32 %v1884, %v3426
      %v3459 = vmul.f32 %v3427, %v1955
      %v3460 = vmul.f32 %v3428, %v1956
      %v3461 = vmul.f32 %v3429, %v1957
      %v3462 = vmul.f32 %v3430, %v1958
      %v3463 = vmul.f32 %v3431, %v1959
      %v3464 = vmul.f32 %v3432, %v1960
      %v3465 = vmul.f32 %v3433, %v1961
      %v3466 = vmul.f32 %v3434, %v1962
      %v3467 = vmul.f32 %v3435, %v1963
      %v3468 = vmul.f32 %v3436, %v1964
      %v3469 = vmul.f32 %v3437, %v1965
      %v3470 = vmul.f32 %v3438, %v1966
      %v3471 = vmul.f32 %v3439, %v1967
      %v3472 = vmul.f32 %v3440, %v1968
      %v3473 = vmul.f32 %v3441, %v1969
      %v3474 = vmul.f32 %v3442, %v1970
      %v3475 = vmul.f32 %v3443, %v1971
      %v3476 = vmul.f32 %v3444, %v1972
      %v3477 = vmul.f32 %v3445, %v1973
      %v3478 = vmul.f32 %v3446, %v1974
      %v3479 = vmul.f32 %v3447, %v1975
      %v3480 = vmul.f32 %v3448, %v1976
      %v3481 = vmul.f32 %v3449, %v1977
      %v3482 = vmul.f32 %v3450, %v1978
      %v3483 = vmul.f32 %v3451, %v1979
      %v3484 = vmul.f32 %v3452, %v1980
      %v3485 = vmul.f32 %v3453, %v1981
      %v3486 = vmul.f32 %v3454, %v1982
      %v3487 = vmul.f32 %v3455, %v1983
      %v3488 = vmul.f32 %v3456, %v1984
      %v3489 = vmul.f32 %v3457, %v1985
      %v3490 = vmul.f32 %v3458, %v1986
      %v3491 = vsub.f32 0.0, %v1447
      %v3492 = vsub.f32 0.0, %v1448
      %v3493 = vsub.f32 0.0, %v1449
      %v3494 = vsub.f32 0.0, %v1450
      %v3495 = vsub.f32 0.0, %v1451
      %v3496 = vsub.f32 0.0, %v1452
      %v3497 = vsub.f32 0.0, %v1453
      %v3498 = vsub.f32 0.0, %v1454
      %v3499 = vsub.f32 0.0, %v1455
      %v3500 = vsub.f32 0.0, %v1456
      %v3501 = vsub.f32 0.0, %v1457
      %v3502 = vsub.f32 0.0, %v1458
      %v3503 = vsub.f32 0.0, %v1459
      %v3504 = vsub.f32 0.0, %v1460
      %v3505 = vsub.f32 0.0, %v1461
      %v3506 = vsub.f32 0.0, %v1462
      %v3507 = vsub.f32 0.0, %v1463
      %v3508 = vsub.f32 0.0, %v1464
      %v3509 = vsub.f32 0.0, %v1465
      %v3510 = vsub.f32 0.0, %v1466
      %v3511 = vsub.f32 0.0, %v1467
      %v3512 = vsub.f32 0.0, %v1468
      %v3513 = vsub.f32 0.0, %v1469
      %v3514 = vsub.f32 0.0, %v1470
      %v3515 = vsub.f32 0.0, %v1471
      %v3516 = vsub.f32 0.0, %v1472
      %v3517 = vsub.f32 0.0, %v1473
      %v3518 = vsub.f32 0.0, %v1474
      %v3519 = vsub.f32 0.0, %v1475
      %v3520 = vsub.f32 0.0, %v1476
      %v3521 = vsub.f32 0.0, %v1477
      %v3522 = vsub.f32 0.0, %v1478
      %v3523 = vmul.f32 %v3491, 1.442695
      %v3524 = vpow.pop %v3523
      %v3525 = vmul.f32 %v3492, 1.442695
      %v3526 = vpow.pop %v3525
      %v3527 = vmul.f32 %v3493, 1.442695
      %v3528 = vpow.pop %v3527
      %v3529 = vmul.f32 %v3494, 1.442695
      %v3530 = vpow.pop %v3529
      %v3531 = vmul.f32 %v3495, 1.442695
      %v3532 = vpow.pop %v3531
      %v3533 = vmul.f32 %v3496, 1.442695
      %v3534 = vpow.pop %v3533
      %v3535 = vmul.f32 %v3497, 1.442695
      %v3536 = vpow.pop %v3535
      %v3537 = vmul.f32 %v3498, 1.442695
      %v3538 = vpow.pop %v3537
      %v3539 = vmul.f32 %v3499, 1.442695
      %v3540 = vpow.pop %v3539
      %v3541 = vmul.f32 %v3500, 1.442695
      %v3542 = vpow.pop %v3541
      %v3543 = vmul.f32 %v3501, 1.442695
      %v3544 = vpow.pop %v3543
      %v3545 = vmul.f32 %v3502, 1.442695
      %v3546 = vpow.pop %v3545
      %v3547 = vmul.f32 %v3503, 1.442695
      %v3548 = vpow.pop %v3547
      %v3549 = vmul.f32 %v3504, 1.442695
      %v3550 = vpow.pop %v3549
      %v3551 = vmul.f32 %v3505, 1.442695
      %v3552 = vpow.pop %v3551
      %v3553 = vmul.f32 %v3506, 1.442695
      %v3554 = vpow.pop %v3553
      %v3555 = vmul.f32 %v3507, 1.442695
      %v3556 = vpow.pop %v3555
      %v3557 = vmul.f32 %v3508, 1.442695
      %v3558 = vpow.pop %v3557
      %v3559 = vmul.f32 %v3509, 1.442695
      %v3560 = vpow.pop %v3559
      %v3561 = vmul.f32 %v3510, 1.442695
      %v3562 = vpow.pop %v3561
      %v3563 = vmul.f32 %v3511, 1.442695
      %v3564 = vpow.pop %v3563
      %v3565 = vmul.f32 %v3512, 1.442695
      %v3566 = vpow.pop %v3565
      %v3567 = vmul.f32 %v3513, 1.442695
      %v3568 = vpow.pop %v3567
      %v3569 = vmul.f32 %v3514, 1.442695
      %v3570 = vpow.pop %v3569
      %v3571 = vmul.f32 %v3515, 1.442695
      %v3572 = vpow.pop %v3571
      %v3573 = vmul.f32 %v3516, 1.442695
      %v3574 = vpow.pop %v3573
      %v3575 = vmul.f32 %v3517, 1.442695
      %v3576 = vpow.pop %v3575
      %v3577 = vmul.f32 %v3518, 1.442695
      %v3578 = vpow.pop %v3577
      %v3579 = vmul.f32 %v3519, 1.442695
      %v3580 = vpow.pop %v3579
      %v3581 = vmul.f32 %v3520, 1.442695
      %v3582 = vpow.pop %v3581
      %v3583 = vmul.f32 %v3521, 1.442695
      %v3584 = vpow.pop %v3583
      %v3585 = vmul.f32 %v3522, 1.442695
      %v3586 = vpow.pop %v3585
      %v3587 = vadd.f32 %v3524, 1.0
      %v3588 = vadd.f32 %v3526, 1.0
      %v3589 = vadd.f32 %v3528, 1.0
      %v3590 = vadd.f32 %v3530, 1.0
      %v3591 = vadd.f32 %v3532, 1.0
      %v3592 = vadd.f32 %v3534, 1.0
      %v3593 = vadd.f32 %v3536, 1.0
      %v3594 = vadd.f32 %v3538, 1.0
      %v3595 = vadd.f32 %v3540, 1.0
      %v3596 = vadd.f32 %v3542, 1.0
      %v3597 = vadd.f32 %v3544, 1.0
      %v3598 = vadd.f32 %v3546, 1.0
      %v3599 = vadd.f32 %v3548, 1.0
      %v3600 = vadd.f32 %v3550, 1.0
      %v3601 = vadd.f32 %v3552, 1.0
      %v3602 = vadd.f32 %v3554, 1.0
      %v3603 = vadd.f32 %v3556, 1.0
      %v3604 = vadd.f32 %v3558, 1.0
      %v3605 = vadd.f32 %v3560, 1.0
      %v3606 = vadd.f32 %v3562, 1.0
      %v3607 = vadd.f32 %v3564, 1.0
      %v3608 = vadd.f32 %v3566, 1.0
      %v3609 = vadd.f32 %v3568, 1.0
      %v3610 = vadd.f32 %v3570, 1.0
      %v3611 = vadd.f32 %v3572, 1.0
      %v3612 = vadd.f32 %v3574, 1.0
      %v3613 = vadd.f32 %v3576, 1.0
      %v3614 = vadd.f32 %v3578, 1.0
      %v3615 = vadd.f32 %v3580, 1.0
      %v3616 = vadd.f32 %v3582, 1.0
      %v3617 = vadd.f32 %v3584, 1.0
      %v3618 = vadd.f32 %v3586, 1.0
      %v3619 = vrcp.pop %v3587
      %v3620 = vmul.f32 1.0, %v3619
      %v3621 = vrcp.pop %v3588
      %v3622 = vmul.f32 1.0, %v3621
      %v3623 = vrcp.pop %v3589
      %v3624 = vmul.f32 1.0, %v3623
      %v3625 = vrcp.pop %v3590
      %v3626 = vmul.f32 1.0, %v3625
      %v3627 = vrcp.pop %v3591
      %v3628 = vmul.f32 1.0, %v3627
      %v3629 = vrcp.pop %v3592
      %v3630 = vmul.f32 1.0, %v3629
      %v3631 = vrcp.pop %v3593
      %v3632 = vmul.f32 1.0, %v3631
      %v3633 = vrcp.pop %v3594
      %v3634 = vmul.f32 1.0, %v3633
      %v3635 = vrcp.pop %v3595
      %v3636 = vmul.f32 1.0, %v3635
      %v3637 = vrcp.pop %v3596
      %v3638 = vmul.f32 1.0, %v3637
      %v3639 = vrcp.pop %v3597
      %v3640 = vmul.f32 1.0, %v3639
      %v3641 = vrcp.pop %v3598
      %v3642 = vmul.f32 1.0, %v3641
      %v3643 = vrcp.pop %v3599
      %v3644 = vmul.f32 1.0, %v3643
      %v3645 = vrcp.pop %v3600
      %v3646 = vmul.f32 1.0, %v3645
      %v3647 = vrcp.pop %v3601
      %v3648 = vmul.f32 1.0, %v3647
      %v3649 = vrcp.pop %v3602
      %v3650 = vmul.f32 1.0, %v3649
      %v3651 = vrcp.pop %v3603
      %v3652 = vmul.f32 1.0, %v3651
      %v3653 = vrcp.pop %v3604
      %v3654 = vmul.f32 1.0, %v3653
      %v3655 = vrcp.pop %v3605
      %v3656 = vmul.f32 1.0, %v3655
      %v3657 = vrcp.pop %v3606
      %v3658 = vmul.f32 1.0, %v3657
      %v3659 = vrcp.pop %v3607
      %v3660 = vmul.f32 1.0, %v3659
      %v3661 = vrcp.pop %v3608
      %v3662 = vmul.f32 1.0, %v3661
      %v3663 = vrcp.pop %v3609
      %v3664 = vmul.f32 1.0, %v3663
      %v3665 = vrcp.pop %v3610
      %v3666 = vmul.f32 1.0, %v3665
      %v3667 = vrcp.pop %v3611
      %v3668 = vmul.f32 1.0, %v3667
      %v3669 = vrcp.pop %v3612
      %v3670 = vmul.f32 1.0, %v3669
      %v3671 = vrcp.pop %v3613
      %v3672 = vmul.f32 1.0, %v3671
      %v3673 = vrcp.pop %v3614
      %v3674 = vmul.f32 1.0, %v3673
      %v3675 = vrcp.pop %v3615
      %v3676 = vmul.f32 1.0, %v3675
      %v3677 = vrcp.pop %v3616
      %v3678 = vmul.f32 1.0, %v3677
      %v3679 = vrcp.pop %v3617
      %v3680 = vmul.f32 1.0, %v3679
      %v3681 = vrcp.pop %v3618
      %v3682 = vmul.f32 1.0, %v3681
      %v3683 = vmul.f32 %v3459, %v3620
      %v3684 = vmul.f32 %v3460, %v3622
      %v3685 = vmul.f32 %v3461, %v3624
      %v3686 = vmul.f32 %v3462, %v3626
      %v3687 = vmul.f32 %v3463, %v3628
      %v3688 = vmul.f32 %v3464, %v3630
      %v3689 = vmul.f32 %v3465, %v3632
      %v3690 = vmul.f32 %v3466, %v3634
      %v3691 = vmul.f32 %v3467, %v3636
      %v3692 = vmul.f32 %v3468, %v3638
      %v3693 = vmul.f32 %v3469, %v3640
      %v3694 = vmul.f32 %v3470, %v3642
      %v3695 = vmul.f32 %v3471, %v3644
      %v3696 = vmul.f32 %v3472, %v3646
      %v3697 = vmul.f32 %v3473, %v3648
      %v3698 = vmul.f32 %v3474, %v3650
      %v3699 = vmul.f32 %v3475, %v3652
      %v3700 = vmul.f32 %v3476, %v3654
      %v3701 = vmul.f32 %v3477, %v3656
      %v3702 = vmul.f32 %v3478, %v3658
      %v3703 = vmul.f32 %v3479, %v3660
      %v3704 = vmul.f32 %v3480, %v3662
      %v3705 = vmul.f32 %v3481, %v3664
      %v3706 = vmul.f32 %v3482, %v3666
      %v3707 = vmul.f32 %v3483, %v3668
      %v3708 = vmul.f32 %v3484, %v3670
      %v3709 = vmul.f32 %v3485, %v3672
      %v3710 = vmul.f32 %v3486, %v3674
      %v3711 = vmul.f32 %v3487, %v3676
      %v3712 = vmul.f32 %v3488, %v3678
      %v3713 = vmul.f32 %v3489, %v3680
      %v3714 = vmul.f32 %v3490, %v3682
      %v3715 = vadd.f32 %v2499, %v2500
      %3716 = vadd.xlane.f32.xlu0 %v3715
      %v3717 = vpop.xlane.xlu0 %3716
      %v3718 = vadd.f32 %v2501, %v2502
      %3719 = vadd.xlane.f32.xlu0 %v3718
      %v3720 = vpop.xlane.xlu0 %3719
      %v3721 = vadd.f32 %v2503, %v2504
      %3722 = vadd.xlane.f32.xlu0 %v3721
      %v3723 = vpop.xlane.xlu0 %3722
      %v3724 = vadd.f32 %v2505, %v2506
      %3725 = vadd.xlane.f32.xlu0 %v3724
      %v3726 = vpop.xlane.xlu0 %3725
      %v3727 = vadd.f32 %v2507, %v2508
      %3728 = vadd.xlane.f32.xlu0 %v3727
      %v3729 = vpop.xlane.xlu0 %3728
      %v3730 = vadd.f32 %v2509, %v2510
      %3731 = vadd.xlane.f32.xlu0 %v3730
      %v3732 = vpop.xlane.xlu0 %3731
      %v3733 = vadd.f32 %v2511, %v2512
      %3734 = vadd.xlane.f32.xlu0 %v3733
      %v3735 = vpop.xlane.xlu0 %3734
      %v3736 = vadd.f32 %v2513, %v2514
      %3737 = vadd.xlane.f32.xlu0 %v3736
      %v3738 = vpop.xlane.xlu0 %3737
      %v3739 = vadd.f32 %v2515, %v2516
      %3740 = vadd.xlane.f32.xlu0 %v3739
      %v3741 = vpop.xlane.xlu0 %3740
      %v3742 = vadd.f32 %v2517, %v2518
      %3743 = vadd.xlane.f32.xlu0 %v3742
      %v3744 = vpop.xlane.xlu0 %3743
      %v3745 = vadd.f32 %v2519, %v2520
      %3746 = vadd.xlane.f32.xlu0 %v3745
      %v3747 = vpop.xlane.xlu0 %3746
      %v3748 = vadd.f32 %v2521, %v2522
      %3749 = vadd.xlane.f32.xlu0 %v3748
      %v3750 = vpop.xlane.xlu0 %3749
      %v3751 = vadd.f32 %v2523, %v2524
      %3752 = vadd.xlane.f32.xlu0 %v3751
      %v3753 = vpop.xlane.xlu0 %3752
      %v3754 = vadd.f32 %v2525, %v2526
      %3755 = vadd.xlane.f32.xlu0 %v3754
      %v3756 = vpop.xlane.xlu0 %3755
      %v3757 = vadd.f32 %v2527, %v2528
      %3758 = vadd.xlane.f32.xlu0 %v3757
      %v3759 = vpop.xlane.xlu0 %3758
      %v3760 = vadd.f32 %v2529, %v2530
      %3761 = vadd.xlane.f32.xlu0 %v3760
      %v3762 = vpop.xlane.xlu0 %3761
      %v3763 = vadd.f32 %v2883, %v2884
      %3764 = vadd.xlane.f32.xlu0 %v3763
      %v3765 = vpop.xlane.xlu0 %3764
      %v3766 = vadd.f32 %v2885, %v2886
      %3767 = vadd.xlane.f32.xlu0 %v3766
      %v3768 = vpop.xlane.xlu0 %3767
      %v3769 = vadd.f32 %v2887, %v2888
      %3770 = vadd.xlane.f32.xlu0 %v3769
      %v3771 = vpop.xlane.xlu0 %3770
      %v3772 = vadd.f32 %v2889, %v2890
      %3773 = vadd.xlane.f32.xlu0 %v3772
      %v3774 = vpop.xlane.xlu0 %3773
      %v3775 = vadd.f32 %v2891, %v2892
      %3776 = vadd.xlane.f32.xlu0 %v3775
      %v3777 = vpop.xlane.xlu0 %3776
      %v3778 = vadd.f32 %v2893, %v2894
      %3779 = vadd.xlane.f32.xlu0 %v3778
      %v3780 = vpop.xlane.xlu0 %3779
      %v3781 = vadd.f32 %v2895, %v2896
      %3782 = vadd.xlane.f32.xlu0 %v3781
      %v3783 = vpop.xlane.xlu0 %3782
      %v3784 = vadd.f32 %v2897, %v2898
      %3785 = vadd.xlane.f32.xlu0 %v3784
      %v3786 = vpop.xlane.xlu0 %3785
      %v3787 = vadd.f32 %v2899, %v2900
      %3788 = vadd.xlane.f32.xlu0 %v3787
      %v3789 = vpop.xlane.xlu0 %3788
      %v3790 = vadd.f32 %v2901, %v2902
      %3791 = vadd.xlane.f32.xlu0 %v3790
      %v3792 = vpop.xlane.xlu0 %3791
      %v3793 = vadd.f32 %v2903, %v2904
      %3794 = vadd.xlane.f32.xlu0 %v3793
      %v3795 = vpop.xlane.xlu0 %3794
      %v3796 = vadd.f32 %v2905, %v2906
      %3797 = vadd.xlane.f32.xlu0 %v3796
      %v3798 = vpop.xlane.xlu0 %3797
      %v3799 = vadd.f32 %v2907, %v2908
      %3800 = vadd.xlane.f32.xlu0 %v3799
      %v3801 = vpop.xlane.xlu0 %3800
      %v3802 = vadd.f32 %v2909, %v2910
      %3803 = vadd.xlane.f32.xlu0 %v3802
      %v3804 = vpop.xlane.xlu0 %3803
      %v3805 = vadd.f32 %v2911, %v2912
      %3806 = vadd.xlane.f32.xlu0 %v3805
      %v3807 = vpop.xlane.xlu0 %3806
      %v3808 = vadd.f32 %v2913, %v2914
      %3809 = vadd.xlane.f32.xlu0 %v3808
      %v3810 = vpop.xlane.xlu0 %3809
      %v3811 = vadd.f32 %v3683, %v3684
      %3812 = vadd.xlane.f32.xlu0 %v3811
      %v3813 = vpop.xlane.xlu0 %3812
      %v3814 = vadd.f32 %v3685, %v3686
      %3815 = vadd.xlane.f32.xlu0 %v3814
      %v3816 = vpop.xlane.xlu0 %3815
      %v3817 = vadd.f32 %v3687, %v3688
      %3818 = vadd.xlane.f32.xlu0 %v3817
      %v3819 = vpop.xlane.xlu0 %3818
      %v3820 = vadd.f32 %v3689, %v3690
      %3821 = vadd.xlane.f32.xlu0 %v3820
      %v3822 = vpop.xlane.xlu0 %3821
      %v3823 = vadd.f32 %v3691, %v3692
      %3824 = vadd.xlane.f32.xlu0 %v3823
      %v3825 = vpop.xlane.xlu0 %3824
      %v3826 = vadd.f32 %v3693, %v3694
      %3827 = vadd.xlane.f32.xlu0 %v3826
      %v3828 = vpop.xlane.xlu0 %3827
      %v3829 = vadd.f32 %v3695, %v3696
      %3830 = vadd.xlane.f32.xlu0 %v3829
      %v3831 = vpop.xlane.xlu0 %3830
      %v3832 = vadd.f32 %v3697, %v3698
      %3833 = vadd.xlane.f32.xlu0 %v3832
      %v3834 = vpop.xlane.xlu0 %3833
      %v3835 = vadd.f32 %v3699, %v3700
      %3836 = vadd.xlane.f32.xlu0 %v3835
      %v3837 = vpop.xlane.xlu0 %3836
      %v3838 = vadd.f32 %v3701, %v3702
      %3839 = vadd.xlane.f32.xlu0 %v3838
      %v3840 = vpop.xlane.xlu0 %3839
      %v3841 = vadd.f32 %v3703, %v3704
      %3842 = vadd.xlane.f32.xlu0 %v3841
      %v3843 = vpop.xlane.xlu0 %3842
      %v3844 = vadd.f32 %v3705, %v3706
      %3845 = vadd.xlane.f32.xlu0 %v3844
      %v3846 = vpop.xlane.xlu0 %3845
      %v3847 = vadd.f32 %v3707, %v3708
      %3848 = vadd.xlane.f32.xlu0 %v3847
      %v3849 = vpop.xlane.xlu0 %3848
      %v3850 = vadd.f32 %v3709, %v3710
      %3851 = vadd.xlane.f32.xlu0 %v3850
      %v3852 = vpop.xlane.xlu0 %3851
      %v3853 = vadd.f32 %v3711, %v3712
      %3854 = vadd.xlane.f32.xlu0 %v3853
      %v3855 = vpop.xlane.xlu0 %3854
      %v3856 = vadd.f32 %v3713, %v3714
      %3857 = vadd.xlane.f32.xlu0 %v3856
      %v3858 = vpop.xlane.xlu0 %3857
      %3859 = vmatprep.subr.mxu0 0.0
      %3860 = vmatpush1.msra.mxu0 %v805
      %3861 = vmatprep.subr.mxu0 0.0
      %3862 = vmatpush1.msra.mxu0 %v806
      %3863 = vmatprep.subr.mxu0 0.0
      %3864 = vmatpush1.msra.mxu0 %v807
      %3865 = vmatprep.subr.mxu0 0.0
      %3866 = vmatpush1.msra.mxu0 %v808
      %3867 = vmatprep.subr.mxu0 0.0
      %3868 = vmatpush1.msra.mxu0 %v809
      %3869 = vmatprep.subr.mxu0 0.0
      %3870 = vmatpush1.msra.mxu0 %v810
      %3871 = vmatprep.subr.mxu0 0.0
      %3872 = vmatpush1.msra.mxu0 %v811
      %3873 = vmatprep.subr.mxu0 0.0
      %3874 = vmatpush1.msra.mxu0 %v812
      %3875 = vmatprep.subr.mxu0 0.0
      %3876 = vmatpush1.msra.mxu0 %v813
      %3877 = vmatprep.subr.mxu0 0.0
      %3878 = vmatpush1.msra.mxu0 %v814
      %3879 = vmatprep.subr.mxu0 0.0
      %3880 = vmatpush1.msra.mxu0 %v815
      %3881 = vmatprep.subr.mxu0 0.0
      %3882 = vmatpush1.msra.mxu0 %v816
      %3883 = vmatprep.subr.mxu0 0.0
      %3884 = vmatpush1.msra.mxu0 %v817
      %3885 = vmatprep.subr.mxu0 0.0
      %3886 = vmatpush1.msra.mxu0 %v818
      %3887 = vmatprep.subr.mxu0 0.0
      %3888 = vmatpush1.msra.mxu0 %v819
      %3889 = vmatprep.subr.mxu0 0.0
      %3890 = vmatpush1.msra.mxu0 %v820
      %3891 = vmatprep.subr.mxu0 0.0
      %3892 = vmatpush1.msra.mxu0 %v821
      %3893 = vmatprep.subr.mxu0 0.0
      %3894 = vmatpush1.msra.mxu0 %v822
      %3895 = vmatprep.subr.mxu0 0.0
      %3896 = vmatpush1.msra.mxu0 %v823
      %3897 = vmatprep.subr.mxu0 0.0
      %3898 = vmatpush1.msra.mxu0 %v824
      %3899 = vmatprep.subr.mxu0 0.0
      %3900 = vmatpush1.msra.mxu0 %v825
      %3901 = vmatprep.subr.mxu0 0.0
      %3902 = vmatpush1.msra.mxu0 %v826
      %3903 = vmatprep.subr.mxu0 0.0
      %3904 = vmatpush1.msra.mxu0 %v827
      %3905 = vmatprep.subr.mxu0 0.0
      %3906 = vmatpush1.msra.mxu0 %v828
      %3907 = vmatprep.subr.mxu0 0.0
      %3908 = vmatpush1.msra.mxu0 %v829
      %3909 = vmatprep.subr.mxu0 0.0
      %3910 = vmatpush1.msra.mxu0 %v830
      %3911 = vmatprep.subr.mxu0 0.0
      %3912 = vmatpush1.msra.mxu0 %v831
      %3913 = vmatprep.subr.mxu0 0.0
      %3914 = vmatpush1.msra.mxu0 %v832
      %3915 = vmatprep.subr.mxu0 0.0
      %3916 = vmatpush1.msra.mxu0 %v833
      %3917 = vmatprep.subr.mxu0 0.0
      %3918 = vmatpush1.msra.mxu0 %v834
      %3919 = vmatprep.subr.mxu0 0.0
      %3920 = vmatpush1.msra.mxu0 %v835
      %3921 = vmatprep.subr.mxu0 0.0
      %3922 = vmatpush1.msra.mxu0 %v836
      %3923 = vmatprep.mubr.f32.mxu0 %v3684
      %3924 = vmatmul.mubr.f32.gmra.mrb[0].mxu0 %v3683
      %v3925 = vpop.f32.mrb[0].mxu0
      %v3926 = vadd.f32 0.0, %v3925
      %v3927 = vpop.f32.mrb[0].mxu0
      %3928 = vmatprep.mubr.f32.mxu0 %v3686
      %3929 = vmatmul.mubr.f32.gmra.mrb[0].mxu0 %v3685
      %v3930 = vpop.f32.mrb[0].mxu0
      %v3931 = vadd.f32 0.0, %v3930
      %v3932 = vpop.f32.mrb[0].mxu0
      %3933 = vmatprep.mubr.f32.mxu0 %v3688
      %3934 = vmatmul.mubr.f32.gmra.mrb[0].mxu0 %v3687
      %v3935 = vpop.f32.mrb[0].mxu0
      %v3936 = vadd.f32 0.0, %v3935
      %v3937 = vpop.f32.mrb[0].mxu0
      %3938 = vmatprep.mubr.f32.mxu0 %v3690
      %3939 = vmatmul.mubr.f32.gmra.mrb[0].mxu0 %v3689
      %v3940 = vpop.f32.mrb[0].mxu0
      %v3941 = vadd.f32 0.0, %v3940
      %v3942 = vpop.f32.mrb[0].mxu0
      %3943 = vmatprep.mubr.f32.mxu0 %v3692
      %3944 = vmatmul.mubr.f32.gmra.mrb[0].mxu0 %v3691
      %v3945 = vpop.f32.mrb[0].mxu0
      %v3946 = vadd.f32 0.0, %v3945
      %v3947 = vpop.f32.mrb[0].mxu0
      %3948 = vmatprep.mubr.f32.mxu0 %v3694
      %3949 = vmatmul.mubr.f32.gmra.mrb[0].mxu0 %v3693
      %v3950 = vpop.f32.mrb[0].mxu0
      %v3951 = vadd.f32 0.0, %v3950
      %v3952 = vpop.f32.mrb[0].mxu0
      %3953 = vmatprep.mubr.f32.mxu0 %v3696
      %3954 = vmatmul.mubr.f32.gmra.mrb[0].mxu0 %v3695
      %v3955 = vpop.f32.mrb[0].mxu0
      %v3956 = vadd.f32 0.0, %v3955
      %v3957 = vpop.f32.mrb[0].mxu0
      %3958 = vmatprep.mubr.f32.mxu0 %v3698
      %3959 = vmatmul.mubr.f32.gmra.mrb[0].mxu0 %v3697
      %v3960 = vpop.f32.mrb[0].mxu0
      %v3961 = vadd.f32 0.0, %v3960
      %v3962 = vpop.f32.mrb[0].mxu0
      %3963 = vmatprep.mubr.f32.mxu0 %v3700
      %3964 = vmatmul.mubr.f32.gmra.mrb[0].mxu0 %v3699
      %v3965 = vpop.f32.mrb[0].mxu0
      %v3966 = vadd.f32 0.0, %v3965
      %v3967 = vpop.f32.mrb[0].mxu0
      %3968 = vmatprep.mubr.f32.mxu0 %v3702
      %3969 = vmatmul.mubr.f32.gmra.mrb[0].mxu0 %v3701
      %v3970 = vpop.f32.mrb[0].mxu0
      %v3971 = vadd.f32 0.0, %v3970
      %v3972 = vpop.f32.mrb[0].mxu0
      %3973 = vmatprep.mubr.f32.mxu0 %v3704
      %3974 = vmatmul.mubr.f32.gmra.mrb[0].mxu0 %v3703
      %v3975 = vpop.f32.mrb[0].mxu0
      %v3976 = vadd.f32 0.0, %v3975
      %v3977 = vpop.f32.mrb[0].mxu0
      %3978 = vmatprep.mubr.f32.mxu0 %v3706
      %3979 = vmatmul.mubr.f32.gmra.mrb[0].mxu0 %v3705
      %v3980 = vpop.f32.mrb[0].mxu0
      %v3981 = vadd.f32 0.0, %v3980
      %v3982 = vpop.f32.mrb[0].mxu0
      %3983 = vmatprep.mubr.f32.mxu0 %v3708
      %3984 = vmatmul.mubr.f32.gmra.mrb[0].mxu0 %v3707
      %v3985 = vpop.f32.mrb[0].mxu0
      %v3986 = vadd.f32 0.0, %v3985
      %v3987 = vpop.f32.mrb[0].mxu0
      %3988 = vmatprep.mubr.f32.mxu0 %v3710
      %3989 = vmatmul.mubr.f32.gmra.mrb[0].mxu0 %v3709
      %v3990 = vpop.f32.mrb[0].mxu0
      %v3991 = vadd.f32 0.0, %v3990
      %v3992 = vpop.f32.mrb[0].mxu0
      %3993 = vmatprep.mubr.f32.mxu0 %v3712
      %3994 = vmatmul.mubr.f32.gmra.mrb[0].mxu0 %v3711
      %v3995 = vpop.f32.mrb[0].mxu0
      %v3996 = vadd.f32 0.0, %v3995
      %v3997 = vpop.f32.mrb[0].mxu0
      %3998 = vmatprep.mubr.f32.mxu0 %v3714
      %3999 = vmatmul.mubr.f32.gmra.mrb[0].mxu0 %v3713
      %v4000 = vpop.f32.mrb[0].mxu0
      %v4001 = vadd.f32 0.0, %v4000
      %v4002 = vpop.f32.mrb[0].mxu0
      %4003 = vdwg.mxu0
      %v4004 = vmul.f32 %v3765, %v594
      %v4005 = vmul.f32 %v3768, %v594
      %v4006 = vmul.f32 %v3771, %v594
      %v4007 = vmul.f32 %v3774, %v594
      %v4008 = vmul.f32 %v3777, %v594
      %v4009 = vmul.f32 %v3780, %v594
      %v4010 = vmul.f32 %v3783, %v594
      %v4011 = vmul.f32 %v3786, %v594
      %v4012 = vmul.f32 %v3789, %v594
      %v4013 = vmul.f32 %v3792, %v594
      %v4014 = vmul.f32 %v3795, %v594
      %v4015 = vmul.f32 %v3798, %v594
      %v4016 = vmul.f32 %v3801, %v594
      %v4017 = vmul.f32 %v3804, %v594
      %v4018 = vmul.f32 %v3807, %v594
      %v4019 = vmul.f32 %v3810, %v594
      %4020 = vmatprep.subr.mxu0 0.0
      %4021 = vmatpush1.msra.mxu0 %v805
      %4022 = vmatprep.subr.mxu0 0.0
      %4023 = vmatpush1.msra.mxu0 %v806
      %4024 = vmatprep.subr.mxu0 0.0
      %4025 = vmatpush1.msra.mxu0 %v807
      %4026 = vmatprep.subr.mxu0 0.0
      %4027 = vmatpush1.msra.mxu0 %v808
      %4028 = vmatprep.subr.mxu0 0.0
      %4029 = vmatpush1.msra.mxu0 %v809
      %4030 = vmatprep.subr.mxu0 0.0
      %4031 = vmatpush1.msra.mxu0 %v810
      %4032 = vmatprep.subr.mxu0 0.0
      %4033 = vmatpush1.msra.mxu0 %v811
      %4034 = vmatprep.subr.mxu0 0.0
      %4035 = vmatpush1.msra.mxu0 %v812
      %4036 = vmatprep.subr.mxu0 0.0
      %4037 = vmatpush1.msra.mxu0 %v813
      %4038 = vmatprep.subr.mxu0 0.0
      %4039 = vmatpush1.msra.mxu0 %v814
      %4040 = vmatprep.subr.mxu0 0.0
      %4041 = vmatpush1.msra.mxu0 %v815
      %4042 = vmatprep.subr.mxu0 0.0
      %4043 = vmatpush1.msra.mxu0 %v816
      %4044 = vmatprep.subr.mxu0 0.0
      %4045 = vmatpush1.msra.mxu0 %v817
      %4046 = vmatprep.subr.mxu0 0.0
      %4047 = vmatpush1.msra.mxu0 %v818
      %4048 = vmatprep.subr.mxu0 0.0
      %4049 = vmatpush1.msra.mxu0 %v819
      %4050 = vmatprep.subr.mxu0 0.0
      %4051 = vmatpush1.msra.mxu0 %v820
      %4052 = vmatprep.subr.mxu0 0.0
      %4053 = vmatpush1.msra.mxu0 %v821
      %4054 = vmatprep.subr.mxu0 0.0
      %4055 = vmatpush1.msra.mxu0 %v822
      %4056 = vmatprep.subr.mxu0 0.0
      %4057 = vmatpush1.msra.mxu0 %v823
      %4058 = vmatprep.subr.mxu0 0.0
      %4059 = vmatpush1.msra.mxu0 %v824
      %4060 = vmatprep.subr.mxu0 0.0
      %4061 = vmatpush1.msra.mxu0 %v825
      %4062 = vmatprep.subr.mxu0 0.0
      %4063 = vmatpush1.msra.mxu0 %v826
      %4064 = vmatprep.subr.mxu0 0.0
      %4065 = vmatpush1.msra.mxu0 %v827
      %4066 = vmatprep.subr.mxu0 0.0
      %4067 = vmatpush1.msra.mxu0 %v828
      %4068 = vmatprep.subr.mxu0 0.0
      %4069 = vmatpush1.msra.mxu0 %v829
      %4070 = vmatprep.subr.mxu0 0.0
      %4071 = vmatpush1.msra.mxu0 %v830
      %4072 = vmatprep.subr.mxu0 0.0
      %4073 = vmatpush1.msra.mxu0 %v831
      %4074 = vmatprep.subr.mxu0 0.0
      %4075 = vmatpush1.msra.mxu0 %v832
      %4076 = vmatprep.subr.mxu0 0.0
      %4077 = vmatpush1.msra.mxu0 %v833
      %4078 = vmatprep.subr.mxu0 0.0
      %4079 = vmatpush1.msra.mxu0 %v834
      %4080 = vmatprep.subr.mxu0 0.0
      %4081 = vmatpush1.msra.mxu0 %v835
      %4082 = vmatprep.subr.mxu0 0.0
      %4083 = vmatpush1.msra.mxu0 %v836
      %4084 = vmatprep.mubr.f32.mxu0 %v2884
      %4085 = vmatmul.mubr.f32.gmra.mrb[0].mxu0 %v2883
      %v4086 = vpop.f32.mrb[0].mxu0
      %v4087 = vadd.f32 %v4004, %v4086
      %v4088 = vpop.f32.mrb[0].mxu0
      %4089 = vmatprep.mubr.f32.mxu0 %v2886
      %4090 = vmatmul.mubr.f32.gmra.mrb[0].mxu0 %v2885
      %v4091 = vpop.f32.mrb[0].mxu0
      %v4092 = vadd.f32 %v4005, %v4091
      %v4093 = vpop.f32.mrb[0].mxu0
      %4094 = vmatprep.mubr.f32.mxu0 %v2888
      %4095 = vmatmul.mubr.f32.gmra.mrb[0].mxu0 %v2887
      %v4096 = vpop.f32.mrb[0].mxu0
      %v4097 = vadd.f32 %v4006, %v4096
      %v4098 = vpop.f32.mrb[0].mxu0
      %4099 = vmatprep.mubr.f32.mxu0 %v2890
      %4100 = vmatmul.mubr.f32.gmra.mrb[0].mxu0 %v2889
      %v4101 = vpop.f32.mrb[0].mxu0
      %v4102 = vadd.f32 %v4007, %v4101
      %v4103 = vpop.f32.mrb[0].mxu0
      %4104 = vmatprep.mubr.f32.mxu0 %v2892
      %4105 = vmatmul.mubr.f32.gmra.mrb[0].mxu0 %v2891
      %v4106 = vpop.f32.mrb[0].mxu0
      %v4107 = vadd.f32 %v4008, %v4106
      %v4108 = vpop.f32.mrb[0].mxu0
      %4109 = vmatprep.mubr.f32.mxu0 %v2894
      %4110 = vmatmul.mubr.f32.gmra.mrb[0].mxu0 %v2893
      %v4111 = vpop.f32.mrb[0].mxu0
      %v4112 = vadd.f32 %v4009, %v4111
      %v4113 = vpop.f32.mrb[0].mxu0
      %4114 = vmatprep.mubr.f32.mxu0 %v2896
      %4115 = vmatmul.mubr.f32.gmra.mrb[0].mxu0 %v2895
      %v4116 = vpop.f32.mrb[0].mxu0
      %v4117 = vadd.f32 %v4010, %v4116
      %v4118 = vpop.f32.mrb[0].mxu0
      %4119 = vmatprep.mubr.f32.mxu0 %v2898
      %4120 = vmatmul.mubr.f32.gmra.mrb[0].mxu0 %v2897
      %v4121 = vpop.f32.mrb[0].mxu0
      %v4122 = vadd.f32 %v4011, %v4121
      %v4123 = vpop.f32.mrb[0].mxu0
      %4124 = vmatprep.mubr.f32.mxu0 %v2900
      %4125 = vmatmul.mubr.f32.gmra.mrb[0].mxu0 %v2899
      %v4126 = vpop.f32.mrb[0].mxu0
      %v4127 = vadd.f32 %v4012, %v4126
      %v4128 = vpop.f32.mrb[0].mxu0
      %4129 = vmatprep.mubr.f32.mxu0 %v2902
      %4130 = vmatmul.mubr.f32.gmra.mrb[0].mxu0 %v2901
      %v4131 = vpop.f32.mrb[0].mxu0
      %v4132 = vadd.f32 %v4013, %v4131
      %v4133 = vpop.f32.mrb[0].mxu0
      %4134 = vmatprep.mubr.f32.mxu0 %v2904
      %4135 = vmatmul.mubr.f32.gmra.mrb[0].mxu0 %v2903
      %v4136 = vpop.f32.mrb[0].mxu0
      %v4137 = vadd.f32 %v4014, %v4136
      %v4138 = vpop.f32.mrb[0].mxu0
      %4139 = vmatprep.mubr.f32.mxu0 %v2906
      %4140 = vmatmul.mubr.f32.gmra.mrb[0].mxu0 %v2905
      %v4141 = vpop.f32.mrb[0].mxu0
      %v4142 = vadd.f32 %v4015, %v4141
      %v4143 = vpop.f32.mrb[0].mxu0
      %4144 = vmatprep.mubr.f32.mxu0 %v2908
      %4145 = vmatmul.mubr.f32.gmra.mrb[0].mxu0 %v2907
      %v4146 = vpop.f32.mrb[0].mxu0
      %v4147 = vadd.f32 %v4016, %v4146
      %v4148 = vpop.f32.mrb[0].mxu0
      %4149 = vmatprep.mubr.f32.mxu0 %v2910
      %4150 = vmatmul.mubr.f32.gmra.mrb[0].mxu0 %v2909
      %v4151 = vpop.f32.mrb[0].mxu0
      %v4152 = vadd.f32 %v4017, %v4151
      %v4153 = vpop.f32.mrb[0].mxu0
      %4154 = vmatprep.mubr.f32.mxu0 %v2912
      %4155 = vmatmul.mubr.f32.gmra.mrb[0].mxu0 %v2911
      %v4156 = vpop.f32.mrb[0].mxu0
      %v4157 = vadd.f32 %v4018, %v4156
      %v4158 = vpop.f32.mrb[0].mxu0
      %4159 = vmatprep.mubr.f32.mxu0 %v2914
      %4160 = vmatmul.mubr.f32.gmra.mrb[0].mxu0 %v2913
      %v4161 = vpop.f32.mrb[0].mxu0
      %v4162 = vadd.f32 %v4019, %v4161
      %v4163 = vpop.f32.mrb[0].mxu0
      %4164 = vdwg.mxu0
      %v4165 = vmul.f32 %v3765, %v573
      %v4166 = vmul.f32 %v3768, %v574
      %v4167 = vmul.f32 %v3771, %v575
      %v4168 = vmul.f32 %v3774, %v576
      %v4169 = vmul.f32 %v3777, %v577
      %v4170 = vmul.f32 %v3780, %v578
      %v4171 = vmul.f32 %v3783, %v579
      %v4172 = vmul.f32 %v3786, %v580
      %v4173 = vmul.f32 %v3789, %v581
      %v4174 = vmul.f32 %v3792, %v582
      %v4175 = vmul.f32 %v3795, %v583
      %v4176 = vmul.f32 %v3798, %v584
      %v4177 = vmul.f32 %v3801, %v585
      %v4178 = vmul.f32 %v3804, %v586
      %v4179 = vmul.f32 %v3807, %v587
      %v4180 = vmul.f32 %v3810, %v588
      %v4181 = vsub.f32 %v4087, %v4165
      %v4182 = vsub.f32 %v4092, %v4166
      %v4183 = vsub.f32 %v4097, %v4167
      %v4184 = vsub.f32 %v4102, %v4168
      %v4185 = vsub.f32 %v4107, %v4169
      %v4186 = vsub.f32 %v4112, %v4170
      %v4187 = vsub.f32 %v4117, %v4171
      %v4188 = vsub.f32 %v4122, %v4172
      %v4189 = vsub.f32 %v4127, %v4173
      %v4190 = vsub.f32 %v4132, %v4174
      %v4191 = vsub.f32 %v4137, %v4175
      %v4192 = vsub.f32 %v4142, %v4176
      %v4193 = vsub.f32 %v4147, %v4177
      %v4194 = vsub.f32 %v4152, %v4178
      %v4195 = vsub.f32 %v4157, %v4179
      %v4196 = vsub.f32 %v4162, %v4180
      %v4197 = vmul.f32 %v3813, %v596
      %v4198 = vmul.f32 %v3816, %v597
      %v4199 = vmul.f32 %v3819, %v598
      %v4200 = vmul.f32 %v3822, %v599
      %v4201 = vmul.f32 %v3825, %v600
      %v4202 = vmul.f32 %v3828, %v601
      %v4203 = vmul.f32 %v3831, %v602
      %v4204 = vmul.f32 %v3834, %v603
      %v4205 = vmul.f32 %v3837, %v604
      %v4206 = vmul.f32 %v3840, %v605
      %v4207 = vmul.f32 %v3843, %v606
      %v4208 = vmul.f32 %v3846, %v607
      %v4209 = vmul.f32 %v3849, %v608
      %v4210 = vmul.f32 %v3852, %v609
      %v4211 = vmul.f32 %v3855, %v610
      %v4212 = vmul.f32 %v3858, %v611
      %v4213 = vsub.f32 %v4197, %v3926
      %v4214 = vsub.f32 %v4198, %v3931
      %v4215 = vsub.f32 %v4199, %v3936
      %v4216 = vsub.f32 %v4200, %v3941
      %v4217 = vsub.f32 %v4201, %v3946
      %v4218 = vsub.f32 %v4202, %v3951
      %v4219 = vsub.f32 %v4203, %v3956
      %v4220 = vsub.f32 %v4204, %v3961
      %v4221 = vsub.f32 %v4205, %v3966
      %v4222 = vsub.f32 %v4206, %v3971
      %v4223 = vsub.f32 %v4207, %v3976
      %v4224 = vsub.f32 %v4208, %v3981
      %v4225 = vsub.f32 %v4209, %v3986
      %v4226 = vsub.f32 %v4210, %v3991
      %v4227 = vsub.f32 %v4211, %v3996
      %v4228 = vsub.f32 %v4212, %v4001
      %v4229 = vsub.f32 %v4213, %v4181
      %v4230 = vsub.f32 %v4214, %v4182
      %v4231 = vsub.f32 %v4215, %v4183
      %v4232 = vsub.f32 %v4216, %v4184
      %v4233 = vsub.f32 %v4217, %v4185
      %v4234 = vsub.f32 %v4218, %v4186
      %v4235 = vsub.f32 %v4219, %v4187
      %v4236 = vsub.f32 %v4220, %v4188
      %v4237 = vsub.f32 %v4221, %v4189
      %v4238 = vsub.f32 %v4222, %v4190
      %v4239 = vsub.f32 %v4223, %v4191
      %v4240 = vsub.f32 %v4224, %v4192
      %v4241 = vsub.f32 %v4225, %v4193
      %v4242 = vsub.f32 %v4226, %v4194
      %v4243 = vsub.f32 %v4227, %v4195
      %v4244 = vsub.f32 %v4228, %v4196
      %v4245 = vld [vmem:[%s11] sm:$0xff]
      %v4246 = vld [vmem:[%s11 + $0x8] sm:$0xff]
      %v4247 = vld [vmem:[%s11 + $0x10] sm:$0xff]
      %v4248 = vld [vmem:[%s11 + $0x18] sm:$0xff]
      %v4250 = vsel %vm628, %v4229, 0
      %v4253 = vsel %vm628, %v4230, 0
      %v4256 = vsel %vm628, %v4231, 0
      %v4259 = vsel %vm628, %v4232, 0
      %v4262 = vsel %vm628, %v4233, 0
      %v4265 = vsel %vm628, %v4234, 0
      %v4268 = vsel %vm628, %v4235, 0
      %v4271 = vsel %vm628, %v4236, 0
      %v4274 = vsel %vm628, %v4237, 0
      %v4277 = vsel %vm628, %v4238, 0
      %v4280 = vsel %vm628, %v4239, 0
      %v4283 = vsel %vm628, %v4240, 0
      %v4286 = vsel %vm628, %v4241, 0
      %v4289 = vsel %vm628, %v4242, 0
      %v4292 = vsel %vm628, %v4243, 0
      %v4295 = vsel %vm628, %v4244, 0
      %4297 = vmatprep.subr.mxu0 0.0
      %4298 = vmatpush1.msra.mxu0 %v4245
      %4299 = vmatprep.subr.mxu0 0.0
      %4300 = vmatpush1.msra.mxu0 %v4246
      %4301 = vmatprep.subr.mxu0 0.0
      %4302 = vmatpush1.msra.mxu0 %v4247
      %4303 = vmatprep.subr.mxu0 0.0
      %4304 = vmatpush1.msra.mxu0 %v4248
      %4305 = vmatprep.subr.mxu0 0.0
      %4306 = vmatpush1.msra.mxu0 0.0
      %4307 = vmatprep.subr.mxu0 0.0
      %4308 = vmatpush1.msra.mxu0 0.0
      %4309 = vmatprep.subr.mxu0 0.0
      %4310 = vmatpush1.msra.mxu0 0.0
      %4311 = vmatprep.subr.mxu0 0.0
      %4312 = vmatpush1.msra.mxu0 0.0
      %4313 = vmatprep.subr.mxu0 0.0
      %4314 = vmatpush1.msra.mxu0 0.0
      %4315 = vmatprep.subr.mxu0 0.0
      %4316 = vmatpush1.msra.mxu0 0.0
      %4317 = vmatprep.subr.mxu0 0.0
      %4318 = vmatpush1.msra.mxu0 0.0
      %4319 = vmatprep.subr.mxu0 0.0
      %4320 = vmatpush1.msra.mxu0 0.0
      %4321 = vmatprep.subr.mxu0 0.0
      %4322 = vmatpush1.msra.mxu0 0.0
      %4323 = vmatprep.subr.mxu0 0.0
      %4324 = vmatpush1.msra.mxu0 0.0
      %4325 = vmatprep.subr.mxu0 0.0
      %4326 = vmatpush1.msra.mxu0 0.0
      %4327 = vmatprep.subr.mxu0 0.0
      %4328 = vmatpush1.msra.mxu0 0.0
      %4329 = vmatprep.subr.mxu0 0.0
      %4330 = vmatpush1.msra.mxu0 0.0
      %4331 = vmatprep.subr.mxu0 0.0
      %4332 = vmatpush1.msra.mxu0 0.0
      %4333 = vmatprep.subr.mxu0 0.0
      %4334 = vmatpush1.msra.mxu0 0.0
      %4335 = vmatprep.subr.mxu0 0.0
      %4336 = vmatpush1.msra.mxu0 0.0
      %4337 = vmatprep.subr.mxu0 0.0
      %4338 = vmatpush1.msra.mxu0 0.0
      %4339 = vmatprep.subr.mxu0 0.0
      %4340 = vmatpush1.msra.mxu0 0.0
      %4341 = vmatprep.subr.mxu0 0.0
      %4342 = vmatpush1.msra.mxu0 0.0
      %4343 = vmatprep.subr.mxu0 0.0
      %4344 = vmatpush1.msra.mxu0 0.0
      %4345 = vmatprep.subr.mxu0 0.0
      %4346 = vmatpush1.msra.mxu0 0.0
      %4347 = vmatprep.subr.mxu0 0.0
      %4348 = vmatpush1.msra.mxu0 0.0
      %4349 = vmatprep.subr.mxu0 0.0
      %4350 = vmatpush1.msra.mxu0 0.0
      %4351 = vmatprep.subr.mxu0 0.0
      %4352 = vmatpush1.msra.mxu0 0.0
      %4353 = vmatprep.subr.mxu0 0.0
      %4354 = vmatpush1.msra.mxu0 0.0
      %4355 = vmatprep.subr.mxu0 0.0
      %4356 = vmatpush1.msra.mxu0 0.0
      %4357 = vmatprep.subr.mxu0 0.0
      %4358 = vmatpush1.msra.mxu0 0.0
      %4359 = vmatprep.subr.mxu0 0.0
      %4360 = vmatpush1.msra.mxu0 0.0
      %4361 = vmatprep.mubr.f32.mxu0 0.0
      %4362 = vmatmul.mubr.f32.gmra.mrb[0].mxu0 %v4250
      %v4363 = vpop.f32.mrb[0].mxu0
      %v4364 = vadd.f32 0.0, %v4363
      %v4365 = vpop.f32.mrb[0].mxu0
      %4366 = vmatprep.mubr.f32.mxu0 0.0
      %4367 = vmatmul.mubr.f32.gmra.mrb[0].mxu0 %v4253
      %v4368 = vpop.f32.mrb[0].mxu0
      %v4369 = vadd.f32 0.0, %v4368
      %v4370 = vpop.f32.mrb[0].mxu0
      %4371 = vmatprep.mubr.f32.mxu0 0.0
      %4372 = vmatmul.mubr.f32.gmra.mrb[0].mxu0 %v4256
      %v4373 = vpop.f32.mrb[0].mxu0
      %v4374 = vadd.f32 0.0, %v4373
      %v4375 = vpop.f32.mrb[0].mxu0
      %4376 = vmatprep.mubr.f32.mxu0 0.0
      %4377 = vmatmul.mubr.f32.gmra.mrb[0].mxu0 %v4259
      %v4378 = vpop.f32.mrb[0].mxu0
      %v4379 = vadd.f32 0.0, %v4378
      %v4380 = vpop.f32.mrb[0].mxu0
      %4381 = vmatprep.mubr.f32.mxu0 0.0
      %4382 = vmatmul.mubr.f32.gmra.mrb[0].mxu0 %v4262
      %v4383 = vpop.f32.mrb[0].mxu0
      %v4384 = vadd.f32 0.0, %v4383
      %v4385 = vpop.f32.mrb[0].mxu0
      %4386 = vmatprep.mubr.f32.mxu0 0.0
      %4387 = vmatmul.mubr.f32.gmra.mrb[0].mxu0 %v4265
      %v4388 = vpop.f32.mrb[0].mxu0
      %v4389 = vadd.f32 0.0, %v4388
      %v4390 = vpop.f32.mrb[0].mxu0
      %4391 = vmatprep.mubr.f32.mxu0 0.0
      %4392 = vmatmul.mubr.f32.gmra.mrb[0].mxu0 %v4268
      %v4393 = vpop.f32.mrb[0].mxu0
      %v4394 = vadd.f32 0.0, %v4393
      %v4395 = vpop.f32.mrb[0].mxu0
      %4396 = vmatprep.mubr.f32.mxu0 0.0
      %4397 = vmatmul.mubr.f32.gmra.mrb[0].mxu0 %v4271
      %v4398 = vpop.f32.mrb[0].mxu0
      %v4399 = vadd.f32 0.0, %v4398
      %v4400 = vpop.f32.mrb[0].mxu0
      %4401 = vmatprep.mubr.f32.mxu0 0.0
      %4402 = vmatmul.mubr.f32.gmra.mrb[0].mxu0 %v4274
      %v4403 = vpop.f32.mrb[0].mxu0
      %v4404 = vadd.f32 0.0, %v4403
      %v4405 = vpop.f32.mrb[0].mxu0
      %4406 = vmatprep.mubr.f32.mxu0 0.0
      %4407 = vmatmul.mubr.f32.gmra.mrb[0].mxu0 %v4277
      %v4408 = vpop.f32.mrb[0].mxu0
      %v4409 = vadd.f32 0.0, %v4408
      %v4410 = vpop.f32.mrb[0].mxu0
      %4411 = vmatprep.mubr.f32.mxu0 0.0
      %4412 = vmatmul.mubr.f32.gmra.mrb[0].mxu0 %v4280
      %v4413 = vpop.f32.mrb[0].mxu0
      %v4414 = vadd.f32 0.0, %v4413
      %v4415 = vpop.f32.mrb[0].mxu0
      %4416 = vmatprep.mubr.f32.mxu0 0.0
      %4417 = vmatmul.mubr.f32.gmra.mrb[0].mxu0 %v4283
      %v4418 = vpop.f32.mrb[0].mxu0
      %v4419 = vadd.f32 0.0, %v4418
      %v4420 = vpop.f32.mrb[0].mxu0
      %4421 = vmatprep.mubr.f32.mxu0 0.0
      %4422 = vmatmul.mubr.f32.gmra.mrb[0].mxu0 %v4286
      %v4423 = vpop.f32.mrb[0].mxu0
      %v4424 = vadd.f32 0.0, %v4423
      %v4425 = vpop.f32.mrb[0].mxu0
      %4426 = vmatprep.mubr.f32.mxu0 0.0
      %4427 = vmatmul.mubr.f32.gmra.mrb[0].mxu0 %v4289
      %v4428 = vpop.f32.mrb[0].mxu0
      %v4429 = vadd.f32 0.0, %v4428
      %v4430 = vpop.f32.mrb[0].mxu0
      %4431 = vmatprep.mubr.f32.mxu0 0.0
      %4432 = vmatmul.mubr.f32.gmra.mrb[0].mxu0 %v4292
      %v4433 = vpop.f32.mrb[0].mxu0
      %v4434 = vadd.f32 0.0, %v4433
      %v4435 = vpop.f32.mrb[0].mxu0
      %4436 = vmatprep.mubr.f32.mxu0 0.0
      %4437 = vmatmul.mubr.f32.gmra.mrb[0].mxu0 %v4295
      %v4438 = vpop.f32.mrb[0].mxu0
      %v4439 = vadd.f32 0.0, %v4438
      %v4440 = vpop.f32.mrb[0].mxu0
      %4441 = vdwg.mxu0
      %v4442 = vmul.f32 %v4364, 2.0
      %v4443 = vmul.f32 %v4369, 2.0
      %v4444 = vmul.f32 %v4374, 2.0
      %v4445 = vmul.f32 %v4379, 2.0
      %v4446 = vmul.f32 %v4384, 2.0
      %v4447 = vmul.f32 %v4389, 2.0
      %v4448 = vmul.f32 %v4394, 2.0
      %v4449 = vmul.f32 %v4399, 2.0
      %v4450 = vmul.f32 %v4404, 2.0
      %v4451 = vmul.f32 %v4409, 2.0
      %v4452 = vmul.f32 %v4414, 2.0
      %v4453 = vmul.f32 %v4419, 2.0
      %v4454 = vmul.f32 %v4424, 2.0
      %v4455 = vmul.f32 %v4429, 2.0
      %v4456 = vmul.f32 %v4434, 2.0
      %v4457 = vmul.f32 %v4439, 2.0
      %v4458 = vld [vmem:[%s541] sm:$0xff]
      %v4459 = vld [vmem:[%s541 + $0x8] sm:$0xff]
      %v4460 = vld [vmem:[%s541 + $0x10] sm:$0xff]
      %v4461 = vld [vmem:[%s541 + $0x18] sm:$0xff]
      %v4462 = vld [vmem:[%s541 + $0x20] sm:$0xff]
      %v4463 = vld [vmem:[%s541 + $0x28] sm:$0xff]
      %v4464 = vld [vmem:[%s541 + $0x30] sm:$0xff]
      %v4465 = vld [vmem:[%s541 + $0x38] sm:$0xff]
      %v4466 = vld [vmem:[%s541 + $0x40] sm:$0xff]
      %v4467 = vld [vmem:[%s541 + $0x48] sm:$0xff]
      %v4468 = vld [vmem:[%s541 + $0x50] sm:$0xff]
      %v4469 = vld [vmem:[%s541 + $0x58] sm:$0xff]
      %v4470 = vld [vmem:[%s541 + $0x60] sm:$0xff]
      %v4471 = vld [vmem:[%s541 + $0x68] sm:$0xff]
      %v4472 = vld [vmem:[%s541 + $0x70] sm:$0xff]
      %v4473 = vld [vmem:[%s541 + $0x78] sm:$0xff]
      %v4474 = vadd.f32 %v4458, %v3717
      %v4475 = vadd.f32 %v4459, %v3720
      %v4476 = vadd.f32 %v4460, %v3723
      %v4477 = vadd.f32 %v4461, %v3726
      %v4478 = vadd.f32 %v4462, %v3729
      %v4479 = vadd.f32 %v4463, %v3732
      %v4480 = vadd.f32 %v4464, %v3735
      %v4481 = vadd.f32 %v4465, %v3738
      %v4482 = vadd.f32 %v4466, %v3741
      %v4483 = vadd.f32 %v4467, %v3744
      %v4484 = vadd.f32 %v4468, %v3747
      %v4485 = vadd.f32 %v4469, %v3750
      %v4486 = vadd.f32 %v4470, %v3753
      %v4487 = vadd.f32 %v4471, %v3756
      %v4488 = vadd.f32 %v4472, %v3759
      %v4489 = vadd.f32 %v4473, %v3762
      %vm4490 = vcmask 7168
      %4491 = vst.msk [vmem:[%s565] sm:$0xff] %vm4490, %v4474
      %4492 = vst.msk [vmem:[%s565 + $0x8] sm:$0xff] %vm4490, %v4475
      %4493 = vst.msk [vmem:[%s565 + $0x10] sm:$0xff] %vm4490, %v4476
      %4494 = vst.msk [vmem:[%s565 + $0x18] sm:$0xff] %vm4490, %v4477
      %4495 = vst.msk [vmem:[%s565 + $0x20] sm:$0xff] %vm4490, %v4478
      %4496 = vst.msk [vmem:[%s565 + $0x28] sm:$0xff] %vm4490, %v4479
      %4497 = vst.msk [vmem:[%s565 + $0x30] sm:$0xff] %vm4490, %v4480
      %4498 = vst.msk [vmem:[%s565 + $0x38] sm:$0xff] %vm4490, %v4481
      %4499 = vst.msk [vmem:[%s565 + $0x40] sm:$0xff] %vm4490, %v4482
      %4500 = vst.msk [vmem:[%s565 + $0x48] sm:$0xff] %vm4490, %v4483
      %4501 = vst.msk [vmem:[%s565 + $0x50] sm:$0xff] %vm4490, %v4484
      %4502 = vst.msk [vmem:[%s565 + $0x58] sm:$0xff] %vm4490, %v4485
      %4503 = vst.msk [vmem:[%s565 + $0x60] sm:$0xff] %vm4490, %v4486
      %4504 = vst.msk [vmem:[%s565 + $0x68] sm:$0xff] %vm4490, %v4487
      %4505 = vst.msk [vmem:[%s565 + $0x70] sm:$0xff] %vm4490, %v4488
      %4506 = vst.msk [vmem:[%s565 + $0x78] sm:$0xff] %vm4490, %v4489
      %v4507 = vld [vmem:[%s547] sm:$0xff]
      %v4508 = vld [vmem:[%s547 + $0x8] sm:$0xff]
      %v4509 = vld [vmem:[%s547 + $0x10] sm:$0xff]
      %v4510 = vld [vmem:[%s547 + $0x18] sm:$0xff]
      %v4511 = vld [vmem:[%s547 + $0x20] sm:$0xff]
      %v4512 = vld [vmem:[%s547 + $0x28] sm:$0xff]
      %v4513 = vld [vmem:[%s547 + $0x30] sm:$0xff]
      %v4514 = vld [vmem:[%s547 + $0x38] sm:$0xff]
      %v4515 = vld [vmem:[%s547 + $0x40] sm:$0xff]
      %v4516 = vld [vmem:[%s547 + $0x48] sm:$0xff]
      %v4517 = vld [vmem:[%s547 + $0x50] sm:$0xff]
      %v4518 = vld [vmem:[%s547 + $0x58] sm:$0xff]
      %v4519 = vld [vmem:[%s547 + $0x60] sm:$0xff]
      %v4520 = vld [vmem:[%s547 + $0x68] sm:$0xff]
      %v4521 = vld [vmem:[%s547 + $0x70] sm:$0xff]
      %v4522 = vld [vmem:[%s547 + $0x78] sm:$0xff]
      %v4523 = vadd.f32 %v4442, %v4507
      %v4524 = vadd.f32 %v4443, %v4508
      %v4525 = vadd.f32 %v4444, %v4509
      %v4526 = vadd.f32 %v4445, %v4510
      %v4527 = vadd.f32 %v4446, %v4511
      %v4528 = vadd.f32 %v4447, %v4512
      %v4529 = vadd.f32 %v4448, %v4513
      %v4530 = vadd.f32 %v4449, %v4514
      %v4531 = vadd.f32 %v4450, %v4515
      %v4532 = vadd.f32 %v4451, %v4516
      %v4533 = vadd.f32 %v4452, %v4517
      %v4534 = vadd.f32 %v4453, %v4518
      %v4535 = vadd.f32 %v4454, %v4519
      %v4536 = vadd.f32 %v4455, %v4520
      %v4537 = vadd.f32 %v4456, %v4521
      %v4538 = vadd.f32 %v4457, %v4522
      %v4539 = vsub.f32 0.0, %v4523
      %v4540 = vsub.f32 0.0, %v4524
      %v4541 = vsub.f32 0.0, %v4525
      %v4542 = vsub.f32 0.0, %v4526
      %v4543 = vsub.f32 0.0, %v4527
      %v4544 = vsub.f32 0.0, %v4528
      %v4545 = vsub.f32 0.0, %v4529
      %v4546 = vsub.f32 0.0, %v4530
      %v4547 = vsub.f32 0.0, %v4531
      %v4548 = vsub.f32 0.0, %v4532
      %v4549 = vsub.f32 0.0, %v4533
      %v4550 = vsub.f32 0.0, %v4534
      %v4551 = vsub.f32 0.0, %v4535
      %v4552 = vsub.f32 0.0, %v4536
      %v4553 = vsub.f32 0.0, %v4537
      %v4554 = vsub.f32 0.0, %v4538
      %vm4555 = vcmask 64512
      %4556 = vst.msk [vmem:[%s571] sm:$0xff] %vm4555, %v4539
      %4557 = vst.msk [vmem:[%s571 + $0x8] sm:$0xff] %vm4555, %v4540
      %4558 = vst.msk [vmem:[%s571 + $0x10] sm:$0xff] %vm4555, %v4541
      %4559 = vst.msk [vmem:[%s571 + $0x18] sm:$0xff] %vm4555, %v4542
      %4560 = vst.msk [vmem:[%s571 + $0x20] sm:$0xff] %vm4555, %v4543
      %4561 = vst.msk [vmem:[%s571 + $0x28] sm:$0xff] %vm4555, %v4544
      %4562 = vst.msk [vmem:[%s571 + $0x30] sm:$0xff] %vm4555, %v4545
      %4563 = vst.msk [vmem:[%s571 + $0x38] sm:$0xff] %vm4555, %v4546
      %4564 = vst.msk [vmem:[%s571 + $0x40] sm:$0xff] %vm4555, %v4547
      %4565 = vst.msk [vmem:[%s571 + $0x48] sm:$0xff] %vm4555, %v4548
      %4566 = vst.msk [vmem:[%s571 + $0x50] sm:$0xff] %vm4555, %v4549
      %4567 = vst.msk [vmem:[%s571 + $0x58] sm:$0xff] %vm4555, %v4550
      %4568 = vst.msk [vmem:[%s571 + $0x60] sm:$0xff] %vm4555, %v4551
      %4569 = vst.msk [vmem:[%s571 + $0x68] sm:$0xff] %vm4555, %v4552
      %4570 = vst.msk [vmem:[%s571 + $0x70] sm:$0xff] %vm4555, %v4553
      %4571 = vst.msk [vmem:[%s571 + $0x78] sm:$0xff] %vm4555, %v4554
      %s4572 = smul.u32 16, %s26
      %p4573 = scmp.lt.s32.totalorder %s4572, 31
      %s4574 = scalar_select %p4573, %s4572, 31
      %s4575 = smul.addr %s4574, 8
      %s4576 = scalar_lea.vmem %s13, %s4575
      %s4577 = smul.u32 16, %s26
      %p4578 = scmp.lt.s32.totalorder %s4577, 31
      %s4579 = scalar_select %p4578, %s4577, 31
      %s4580 = smul.addr %s4579, 8
      %s4581 = scalar_lea.vmem %s14, %s4580
      // Predicated region
      $region73: #{dissipative_hamiltonian_derivation.3} parent=71 // pred_check
        %p4582 = pneg %p342
      $region74: #{dissipative_hamiltonian_derivation.3} parent=71 // pred_check_branch
        %4584 = sbr.rel (%p4582) target = $region76
      $region75: #{dissipative_hamiltonian_derivation.3} parent=71 // pred_region
        %s4585 = smul.u32 16, %s26
      $region76: #{dissipative_hamiltonian_derivation.3} parent=71 // pred_fallthru
        _
      // Predicated region
      $region77: #{dissipative_hamiltonian_derivation.3} parent=71 // pred_check
        %p4586 = pneg %p368
      $region78: #{dissipative_hamiltonian_derivation.3} parent=71 // pred_check_branch
        %4588 = sbr.rel (%p4586) target = $region80
      $region79: #{dissipative_hamiltonian_derivation.3} parent=71 // pred_region
        %s4589 = smul.u32 16, %s26
      $region80: #{dissipative_hamiltonian_derivation.3} parent=71 // pred_fallthru
        _
    $region72: #{dissipative_hamiltonian_derivation.3} parent=5 // pred_fallthru
      _
    %p4590 = scmp.le.s32.totalorder 2, %s21
    // Predicated region
    $region81: #{dissipative_hamiltonian_derivation.3} parent=5 // pred_check
      %p4591 = pneg %p4590
    $region82: #{dissipative_hamiltonian_derivation.3} parent=5 // pred_check_branch
      %4593 = sbr.rel (%p4591) target = $region84
    $region83: #{dissipative_hamiltonian_derivation.3} parent=5 // pred_region
      %s4594 = ssub.s32 %s21, 2
      // Predicated region
      $region85: #{dissipative_hamiltonian_derivation.3} parent=83 // pred_check
        %p4595 = pneg %p348
      $region86: #{dissipative_hamiltonian_derivation.3} parent=83 // pred_check_branch
        %4597 = sbr.rel (%p4595) target = $region88
      $region87: #{dissipative_hamiltonian_derivation.3} parent=83 // pred_region
        %s4598 = smul.u32 16, %s27
        %p4599 = scmp.lt.s32.totalorder %s4598, 31
        %s4600 = scalar_select %p4599, %s4598, 31
        %s4601 = smul.addr %s4600, 8
        %s4602 = scalar_lea.vmem %s13, %s4601
      $region88: #{dissipative_hamiltonian_derivation.3} parent=83 // pred_fallthru
        _
      // Predicated region
      $region89: #{dissipative_hamiltonian_derivation.3} parent=83 // pred_check
        %p4603 = pneg %p374
      $region90: #{dissipative_hamiltonian_derivation.3} parent=83 // pred_check_branch
        %4605 = sbr.rel (%p4603) target = $region92
      $region91: #{dissipative_hamiltonian_derivation.3} parent=83 // pred_region
        %s4606 = smul.u32 16, %s27
        %p4607 = scmp.lt.s32.totalorder %s4606, 31
        %s4608 = scalar_select %p4607, %s4606, 31
        %s4609 = smul.addr %s4608, 8
        %s4610 = scalar_lea.vmem %s14, %s4609
      $region92: #{dissipative_hamiltonian_derivation.3} parent=83 // pred_fallthru
        _
    $region84: #{dissipative_hamiltonian_derivation.3} parent=5 // pred_fallthru
      _
  $region6: #{dissipative_hamiltonian_derivation.3} parent=0 // loop_footer
    %s25 = sadd.s32 1, %s21
  $region7: #{dissipative_hamiltonian_derivation.3} parent=0 // loop_footer_branch
    %20 = sbr.rel target = $region3
  $region8: #{dissipative_hamiltonian_derivation.3} parent=0 // loop_exit
    _

</llo_original>
